<compile_context>
chip_gen: v7x
topology: tpu7x:2x2x1
jax: 0.10.0
libtpu: 0.0.40
codegen_flags: <defaults>
</compile_context>

<pallas_src>
import jax
import jax.numpy as jnp
from jax import lax
from jax.experimental import pallas as pl
from jax.experimental.pallas import tpu as pltpu

N_BATCH, C_IN, H, W = 2, 3, 32, 32
C_OUT = 16
HW = H * W                     # 1024
K_IM2COL = C_IN * 9            # 27
K_PAD = 32                     # im2col K zero-padded for aligned MXU feed
K_FC = C_OUT * HW              # 16384
N_CLASSES = 10

# dot_general dims: contract the last (lane) dim of BOTH operands: (M,K)x(N,K)->(M,N)
_DN_LANE = (((1,), (1,)), ((), ()))


# ---------------------------------------------------------------------------
# Fused kernel (single grid step covers the whole batch):
#   pT_ref : (N, K_PAD, HW)          im2col patches (bf16), K zero-padded to 32
#   wc_ref : (C_OUT, K_PAD)          conv weight (bf16, zero-padded cols)
#   bc_ref : (C_OUT, 1)              conv bias (f32)
#   wfc_ref: (C_OUT, N_CLASSES, HW)  fc weight, lane dim = HW (bf16)
#   bfc_ref: (1, N_CLASSES)          fc bias (f32)
#   o_ref  : (N, N_CLASSES)          logits (f32)
# ---------------------------------------------------------------------------
def simplenet_kernel(pT_ref, wc_ref, bc_ref, wfc_ref, bfc_ref, o_ref):
    wc = wc_ref[...]                                   # (16, 32)  bf16
    bc = bc_ref[...]                                   # (16, 1)   f32
    bfc = bfc_ref[...]                                 # (1, 10)   f32

    n_batch = pT_ref.shape[0]
    n_chan = wfc_ref.shape[0]

    logits = []
    for b in range(n_batch):                           # static unroll (batch = 2)
        # Conv as im2col matmul on the MXU; bias + ReLU epilogue stays in f32
        # (v5e VPU has no bf16 VALU); activation stays in registers.
        y = jnp.dot(wc, pT_ref[b], preferred_element_type=jnp.float32)   # (16, 1024)
        y = jnp.maximum(y + bc, 0.0).astype(jnp.bfloat16)

        # FC over the 16384-long (c, p) contraction, in NCHW-flatten order:
        # 16 independent lane-dim matmuls (1,1024)x(10,1024)^T, then tree-reduce.
        parts = [
            lax.dot_general(y[c:c + 1, :], wfc_ref[c], _DN_LANE,
                            preferred_element_type=jnp.float32)          # (1, 10)
            for c in range(n_chan)
        ]
        while len(parts) > 1:
            parts = [parts[i] + parts[i + 1] for i in range(0, len(parts), 2)]
        logits.append(parts[0] + bfc)                  # (1, 10) f32

    o_ref[...] = jnp.concatenate(logits, axis=0).astype(o_ref.dtype)


def simplenet_pallas(patches, wc, bc, wfc, bfc):
    n = patches.shape[0]
    assert patches.shape == (n, K_PAD, HW)
    assert wc.shape == (C_OUT, K_PAD) and bc.shape == (C_OUT, 1)
    assert wfc.shape == (C_OUT, N_CLASSES, HW) and bfc.shape == (1, N_CLASSES)

    return pl.pallas_call(
        simplenet_kernel,
        out_shape=jax.ShapeDtypeStruct((n, N_CLASSES), jnp.float32),
        grid=(1,),                                     # whole batch in one step
        in_specs=[
            pl.BlockSpec((n, K_PAD, HW), lambda i: (0, 0, 0)),
            pl.BlockSpec((C_OUT, K_PAD), lambda i: (0, 0)),
            pl.BlockSpec((C_OUT, 1), lambda i: (0, 0)),
            pl.BlockSpec((C_OUT, N_CLASSES, HW), lambda i: (0, 0, 0)),
            pl.BlockSpec((1, N_CLASSES), lambda i: (0, 0)),
        ],
        out_specs=pl.BlockSpec((n, N_CLASSES), lambda i: (0, 0)),
        compiler_params=pltpu.CompilerParams(
            dimension_semantics=("arbitrary",)),
    )(patches, wc, bc, wfc, bfc)


# ---------------------------------------------------------------------------
# Glue (XLA): im2col gather + one-time weight layout / dtype prep.
# ---------------------------------------------------------------------------
def im2col_3x3_pad1(x_nchw):
    # (N, C, H, W) -> (N, K_PAD, H*W); row order (c, kh, kw) matches
    # conv_w.reshape(C_OUT, C_IN*9) column order; zero-padded 27 -> 32 along K.
    n, c, h, w = x_nchw.shape
    xp = jnp.pad(x_nchw, ((0, 0), (0, 0), (1, 1), (1, 1)))
    taps = [xp[:, :, kh:kh + h, kw:kw + w] for kh in range(3) for kw in range(3)]
    p = jnp.stack(taps, axis=2).reshape(n, c * 9, h * w)       # (N, 27, HW)
    return jnp.pad(p, ((0, 0), (0, K_PAD - c * 9), (0, 0)))    # (N, 32, HW)


def simplenet_forward(x, conv_w, conv_b, fc_w, fc_b):
    # TODO(synk): generate the 9 im2col taps inside the kernel (shifted slices /
    # pltpu.roll + boundary masks on the raw image) to cut input HBM traffic ~10x.
    patches = im2col_3x3_pad1(x).astype(jnp.bfloat16)                    # (N, 32, 1024)
    wc = jnp.pad(conv_w.reshape(C_OUT, K_IM2COL),
                 ((0, 0), (0, K_PAD - K_IM2COL))).astype(jnp.bfloat16)   # (16, 32)
    bc = conv_b.reshape(C_OUT, 1).astype(jnp.float32)                    # (16, 1)
    # fc_w columns are in NCHW-flat (c, p) order; lay out as (C_OUT, N_CLASSES, HW)
    # so the minor (lane) dim is HW = 1024 (not 10).
    wfc = jnp.transpose(fc_w.reshape(N_CLASSES, C_OUT, HW),
                        (1, 0, 2)).astype(jnp.bfloat16)                  # (16, 10, 1024)
    bfc = fc_b.reshape(1, N_CLASSES).astype(jnp.float32)                 # (1, 10)
    return simplenet_pallas(patches, wc, bc, wfc, bfc)


def reference_forward(x, conv_w, conv_b, fc_w, fc_b):
    y = lax.conv_general_dilated(
        x, conv_w, window_strides=(1, 1), padding="SAME",
        dimension_numbers=("NCHW", "OIHW", "NCHW"))
    y = jnp.maximum(y + conv_b.reshape(1, C_OUT, 1, 1), 0.0)
    return y.reshape(x.shape[0], -1) @ fc_w.T + fc_b


if __name__ == "__main__":
    key = jax.random.PRNGKey(0)
    kx, kw1, kb1, kw2, kb2 = jax.random.split(key, 5)

    # deterministic synthetic parameters (shapes from SimpleNet.__init__)
    x = jax.random.normal(kx, (N_BATCH, C_IN, H, W), dtype=jnp.float32)
    conv_w = jax.random.normal(kw1, (C_OUT, C_IN, 3, 3), dtype=jnp.float32) * 0.1
    conv_b = jax.random.normal(kb1, (C_OUT,), dtype=jnp.float32) * 0.1
    fc_w = jax.random.normal(kw2, (N_CLASSES, K_FC), dtype=jnp.float32) * 0.01
    fc_b = jax.random.normal(kb2, (N_CLASSES,), dtype=jnp.float32) * 0.1

    out = jax.block_until_ready(simplenet_forward(x, conv_w, conv_b, fc_w, fc_b))
    ref = reference_forward(x, conv_w, conv_b, fc_w, fc_b)

    assert out.shape == (N_BATCH, N_CLASSES)
    assert jnp.allclose(out, ref, rtol=1e-2, atol=2e-2), \
        f"max abs err = {float(jnp.max(jnp.abs(out - ref)))}"

    print("KERNEL_OK")
</pallas_src>

<mosaic_0001>
module attributes {stable_mosaic.version = 11 : i64} {
  func.func @simplenet_kernel(%arg0: i32, %arg1: memref<2x32x1024xbf16, #tpu.memory_space<vmem>>, %arg2: memref<16x32xbf16, #tpu.memory_space<vmem>>, %arg3: memref<16x1xf32, #tpu.memory_space<vmem>>, %arg4: memref<16x10x1024xbf16, #tpu.memory_space<vmem>>, %arg5: memref<1x10xf32, #tpu.memory_space<vmem>>, %arg6: memref<2x10xf32, #tpu.memory_space<vmem>>) attributes {dimension_semantics = [#tpu.dimension_semantics<arbitrary>], iteration_bounds = array<i64: 1>, scalar_prefetch = 0 : i64, scratch_operands = 0 : i64, tpu.core_type = #tpu.core_type<tc>, window_params = [{pipeline_mode = #tpu.pipeline_mode<synchronous>, transform_indices = @transform_0, window_bounds = array<i64: 2, 32, 1024>}, {pipeline_mode = #tpu.pipeline_mode<synchronous>, transform_indices = @transform_1, window_bounds = array<i64: 16, 32>}, {pipeline_mode = #tpu.pipeline_mode<synchronous>, transform_indices = @transform_2, window_bounds = array<i64: 16, 1>}, {pipeline_mode = #tpu.pipeline_mode<synchronous>, transform_indices = @transform_3, window_bounds = array<i64: 16, 10, 1024>}, {pipeline_mode = #tpu.pipeline_mode<synchronous>, transform_indices = @transform_4, window_bounds = array<i64: 1, 10>}, {pipeline_mode = #tpu.pipeline_mode<synchronous>, transform_indices = @transform_5, window_bounds = array<i64: 2, 10>}]} {
    %c0 = arith.constant 0 : index
    %c0_0 = arith.constant 0 : index
    %0 = vector.load %arg2[%c0, %c0_0] : memref<16x32xbf16, #tpu.memory_space<vmem>>, vector<16x32xbf16>
    %c0_1 = arith.constant 0 : index
    %c0_2 = arith.constant 0 : index
    %1 = vector.load %arg3[%c0_1, %c0_2] : memref<16x1xf32, #tpu.memory_space<vmem>>, vector<16x1xf32>
    %c0_3 = arith.constant 0 : index
    %c0_4 = arith.constant 0 : index
    %2 = vector.load %arg5[%c0_3, %c0_4] : memref<1x10xf32, #tpu.memory_space<vmem>>, vector<1x10xf32>
    %c0_5 = arith.constant 0 : index
    %c0_6 = arith.constant 0 : index
    %c0_7 = arith.constant 0 : index
    %3 = vector.load %arg1[%c0_5, %c0_6, %c0_7] : memref<2x32x1024xbf16, #tpu.memory_space<vmem>>, vector<1x32x1024xbf16>
    %4 = vector.shape_cast %3 : vector<1x32x1024xbf16> to vector<32x1024xbf16>
    %cst = arith.constant dense<0.000000e+00> : vector<16x1024xf32>
    %5 = tpu.matmul %0, %4, %cst {dimension_numbers = #tpu.dot_dimension_numbers<[1], [0], [0], [1], [0, 0, 1, 1], [], []>} : vector<16x32xbf16>, vector<32x1024xbf16>, vector<16x1024xf32> -> vector<16x1024xf32>
    %6 = vector.broadcast %1 : vector<16x1xf32> to vector<16x1024xf32>
    %7 = arith.addf %5, %6 : vector<16x1024xf32>
    %cst_8 = arith.constant 0.000000e+00 : f32
    %8 = vector.broadcast %cst_8 : f32 to vector<16x1024xf32>
    %9 = arith.maximumf %7, %8 : vector<16x1024xf32>
    %10 = arith.truncf %9 : vector<16x1024xf32> to vector<16x1024xbf16>
    %11 = vector.extract_strided_slice %10 {offsets = [0, 0], sizes = [1, 1024], strides = [1, 1]} : vector<16x1024xbf16> to vector<1x1024xbf16>
    %c0_9 = arith.constant 0 : index
    %c0_10 = arith.constant 0 : index
    %c0_11 = arith.constant 0 : index
    %12 = vector.load %arg4[%c0_9, %c0_10, %c0_11] : memref<16x10x1024xbf16, #tpu.memory_space<vmem>>, vector<1x10x1024xbf16>
    %13 = vector.shape_cast %12 : vector<1x10x1024xbf16> to vector<10x1024xbf16>
    %cst_12 = arith.constant dense<0.000000e+00> : vector<1x10xf32>
    %14 = tpu.matmul %11, %13, %cst_12 {dimension_numbers = #tpu.dot_dimension_numbers<[1], [1], [0], [0], [0, 0, 1, 0], [], []>} : vector<1x1024xbf16>, vector<10x1024xbf16>, vector<1x10xf32> -> vector<1x10xf32>
    %15 = vector.extract_strided_slice %10 {offsets = [1, 0], sizes = [1, 1024], strides = [1, 1]} : vector<16x1024xbf16> to vector<1x1024xbf16>
    %c1 = arith.constant 1 : index
    %c0_13 = arith.constant 0 : index
    %c0_14 = arith.constant 0 : index
    %16 = vector.load %arg4[%c1, %c0_13, %c0_14] : memref<16x10x1024xbf16, #tpu.memory_space<vmem>>, vector<1x10x1024xbf16>
    %17 = vector.shape_cast %16 : vector<1x10x1024xbf16> to vector<10x1024xbf16>
    %cst_15 = arith.constant dense<0.000000e+00> : vector<1x10xf32>
    %18 = tpu.matmul %15, %17, %cst_15 {dimension_numbers = #tpu.dot_dimension_numbers<[1], [1], [0], [0], [0, 0, 1, 0], [], []>} : vector<1x1024xbf16>, vector<10x1024xbf16>, vector<1x10xf32> -> vector<1x10xf32>
    %19 = vector.extract_strided_slice %10 {offsets = [2, 0], sizes = [1, 1024], strides = [1, 1]} : vector<16x1024xbf16> to vector<1x1024xbf16>
    %c2 = arith.constant 2 : index
    %c0_16 = arith.constant 0 : index
    %c0_17 = arith.constant 0 : index
    %20 = vector.load %arg4[%c2, %c0_16, %c0_17] : memref<16x10x1024xbf16, #tpu.memory_space<vmem>>, vector<1x10x1024xbf16>
    %21 = vector.shape_cast %20 : vector<1x10x1024xbf16> to vector<10x1024xbf16>
    %cst_18 = arith.constant dense<0.000000e+00> : vector<1x10xf32>
    %22 = tpu.matmul %19, %21, %cst_18 {dimension_numbers = #tpu.dot_dimension_numbers<[1], [1], [0], [0], [0, 0, 1, 0], [], []>} : vector<1x1024xbf16>, vector<10x1024xbf16>, vector<1x10xf32> -> vector<1x10xf32>
    %23 = vector.extract_strided_slice %10 {offsets = [3, 0], sizes = [1, 1024], strides = [1, 1]} : vector<16x1024xbf16> to vector<1x1024xbf16>
    %c3 = arith.constant 3 : index
    %c0_19 = arith.constant 0 : index
    %c0_20 = arith.constant 0 : index
    %24 = vector.load %arg4[%c3, %c0_19, %c0_20] : memref<16x10x1024xbf16, #tpu.memory_space<vmem>>, vector<1x10x1024xbf16>
    %25 = vector.shape_cast %24 : vector<1x10x1024xbf16> to vector<10x1024xbf16>
    %cst_21 = arith.constant dense<0.000000e+00> : vector<1x10xf32>
    %26 = tpu.matmul %23, %25, %cst_21 {dimension_numbers = #tpu.dot_dimension_numbers<[1], [1], [0], [0], [0, 0, 1, 0], [], []>} : vector<1x1024xbf16>, vector<10x1024xbf16>, vector<1x10xf32> -> vector<1x10xf32>
    %27 = vector.extract_strided_slice %10 {offsets = [4, 0], sizes = [1, 1024], strides = [1, 1]} : vector<16x1024xbf16> to vector<1x1024xbf16>
    %c4 = arith.constant 4 : index
    %c0_22 = arith.constant 0 : index
    %c0_23 = arith.constant 0 : index
    %28 = vector.load %arg4[%c4, %c0_22, %c0_23] : memref<16x10x1024xbf16, #tpu.memory_space<vmem>>, vector<1x10x1024xbf16>
    %29 = vector.shape_cast %28 : vector<1x10x1024xbf16> to vector<10x1024xbf16>
    %cst_24 = arith.constant dense<0.000000e+00> : vector<1x10xf32>
    %30 = tpu.matmul %27, %29, %cst_24 {dimension_numbers = #tpu.dot_dimension_numbers<[1], [1], [0], [0], [0, 0, 1, 0], [], []>} : vector<1x1024xbf16>, vector<10x1024xbf16>, vector<1x10xf32> -> vector<1x10xf32>
    %31 = vector.extract_strided_slice %10 {offsets = [5, 0], sizes = [1, 1024], strides = [1, 1]} : vector<16x1024xbf16> to vector<1x1024xbf16>
    %c5 = arith.constant 5 : index
    %c0_25 = arith.constant 0 : index
    %c0_26 = arith.constant 0 : index
    %32 = vector.load %arg4[%c5, %c0_25, %c0_26] : memref<16x10x1024xbf16, #tpu.memory_space<vmem>>, vector<1x10x1024xbf16>
    %33 = vector.shape_cast %32 : vector<1x10x1024xbf16> to vector<10x1024xbf16>
    %cst_27 = arith.constant dense<0.000000e+00> : vector<1x10xf32>
    %34 = tpu.matmul %31, %33, %cst_27 {dimension_numbers = #tpu.dot_dimension_numbers<[1], [1], [0], [0], [0, 0, 1, 0], [], []>} : vector<1x1024xbf16>, vector<10x1024xbf16>, vector<1x10xf32> -> vector<1x10xf32>
    %35 = vector.extract_strided_slice %10 {offsets = [6, 0], sizes = [1, 1024], strides = [1, 1]} : vector<16x1024xbf16> to vector<1x1024xbf16>
    %c6 = arith.constant 6 : index
    %c0_28 = arith.constant 0 : index
    %c0_29 = arith.constant 0 : index
    %36 = vector.load %arg4[%c6, %c0_28, %c0_29] : memref<16x10x1024xbf16, #tpu.memory_space<vmem>>, vector<1x10x1024xbf16>
    %37 = vector.shape_cast %36 : vector<1x10x1024xbf16> to vector<10x1024xbf16>
    %cst_30 = arith.constant dense<0.000000e+00> : vector<1x10xf32>
    %38 = tpu.matmul %35, %37, %cst_30 {dimension_numbers = #tpu.dot_dimension_numbers<[1], [1], [0], [0], [0, 0, 1, 0], [], []>} : vector<1x1024xbf16>, vector<10x1024xbf16>, vector<1x10xf32> -> vector<1x10xf32>
    %39 = vector.extract_strided_slice %10 {offsets = [7, 0], sizes = [1, 1024], strides = [1, 1]} : vector<16x1024xbf16> to vector<1x1024xbf16>
    %c7 = arith.constant 7 : index
    %c0_31 = arith.constant 0 : index
    %c0_32 = arith.constant 0 : index
    %40 = vector.load %arg4[%c7, %c0_31, %c0_32] : memref<16x10x1024xbf16, #tpu.memory_space<vmem>>, vector<1x10x1024xbf16>
    %41 = vector.shape_cast %40 : vector<1x10x1024xbf16> to vector<10x1024xbf16>
    %cst_33 = arith.constant dense<0.000000e+00> : vector<1x10xf32>
    %42 = tpu.matmul %39, %41, %cst_33 {dimension_numbers = #tpu.dot_dimension_numbers<[1], [1], [0], [0], [0, 0, 1, 0], [], []>} : vector<1x1024xbf16>, vector<10x1024xbf16>, vector<1x10xf32> -> vector<1x10xf32>
    %43 = vector.extract_strided_slice %10 {offsets = [8, 0], sizes = [1, 1024], strides = [1, 1]} : vector<16x1024xbf16> to vector<1x1024xbf16>
    %c8 = arith.constant 8 : index
    %c0_34 = arith.constant 0 : index
    %c0_35 = arith.constant 0 : index
    %44 = vector.load %arg4[%c8, %c0_34, %c0_35] : memref<16x10x1024xbf16, #tpu.memory_space<vmem>>, vector<1x10x1024xbf16>
    %45 = vector.shape_cast %44 : vector<1x10x1024xbf16> to vector<10x1024xbf16>
    %cst_36 = arith.constant dense<0.000000e+00> : vector<1x10xf32>
    %46 = tpu.matmul %43, %45, %cst_36 {dimension_numbers = #tpu.dot_dimension_numbers<[1], [1], [0], [0], [0, 0, 1, 0], [], []>} : vector<1x1024xbf16>, vector<10x1024xbf16>, vector<1x10xf32> -> vector<1x10xf32>
    %47 = vector.extract_strided_slice %10 {offsets = [9, 0], sizes = [1, 1024], strides = [1, 1]} : vector<16x1024xbf16> to vector<1x1024xbf16>
    %c9 = arith.constant 9 : index
    %c0_37 = arith.constant 0 : index
    %c0_38 = arith.constant 0 : index
    %48 = vector.load %arg4[%c9, %c0_37, %c0_38] : memref<16x10x1024xbf16, #tpu.memory_space<vmem>>, vector<1x10x1024xbf16>
    %49 = vector.shape_cast %48 : vector<1x10x1024xbf16> to vector<10x1024xbf16>
    %cst_39 = arith.constant dense<0.000000e+00> : vector<1x10xf32>
    %50 = tpu.matmul %47, %49, %cst_39 {dimension_numbers = #tpu.dot_dimension_numbers<[1], [1], [0], [0], [0, 0, 1, 0], [], []>} : vector<1x1024xbf16>, vector<10x1024xbf16>, vector<1x10xf32> -> vector<1x10xf32>
    %51 = vector.extract_strided_slice %10 {offsets = [10, 0], sizes = [1, 1024], strides = [1, 1]} : vector<16x1024xbf16> to vector<1x1024xbf16>
    %c10 = arith.constant 10 : index
    %c0_40 = arith.constant 0 : index
    %c0_41 = arith.constant 0 : index
    %52 = vector.load %arg4[%c10, %c0_40, %c0_41] : memref<16x10x1024xbf16, #tpu.memory_space<vmem>>, vector<1x10x1024xbf16>
    %53 = vector.shape_cast %52 : vector<1x10x1024xbf16> to vector<10x1024xbf16>
    %cst_42 = arith.constant dense<0.000000e+00> : vector<1x10xf32>
    %54 = tpu.matmul %51, %53, %cst_42 {dimension_numbers = #tpu.dot_dimension_numbers<[1], [1], [0], [0], [0, 0, 1, 0], [], []>} : vector<1x1024xbf16>, vector<10x1024xbf16>, vector<1x10xf32> -> vector<1x10xf32>
    %55 = vector.extract_strided_slice %10 {offsets = [11, 0], sizes = [1, 1024], strides = [1, 1]} : vector<16x1024xbf16> to vector<1x1024xbf16>
    %c11 = arith.constant 11 : index
    %c0_43 = arith.constant 0 : index
    %c0_44 = arith.constant 0 : index
    %56 = vector.load %arg4[%c11, %c0_43, %c0_44] : memref<16x10x1024xbf16, #tpu.memory_space<vmem>>, vector<1x10x1024xbf16>
    %57 = vector.shape_cast %56 : vector<1x10x1024xbf16> to vector<10x1024xbf16>
    %cst_45 = arith.constant dense<0.000000e+00> : vector<1x10xf32>
    %58 = tpu.matmul %55, %57, %cst_45 {dimension_numbers = #tpu.dot_dimension_numbers<[1], [1], [0], [0], [0, 0, 1, 0], [], []>} : vector<1x1024xbf16>, vector<10x1024xbf16>, vector<1x10xf32> -> vector<1x10xf32>
    %59 = vector.extract_strided_slice %10 {offsets = [12, 0], sizes = [1, 1024], strides = [1, 1]} : vector<16x1024xbf16> to vector<1x1024xbf16>
    %c12 = arith.constant 12 : index
    %c0_46 = arith.constant 0 : index
    %c0_47 = arith.constant 0 : index
    %60 = vector.load %arg4[%c12, %c0_46, %c0_47] : memref<16x10x1024xbf16, #tpu.memory_space<vmem>>, vector<1x10x1024xbf16>
    %61 = vector.shape_cast %60 : vector<1x10x1024xbf16> to vector<10x1024xbf16>
    %cst_48 = arith.constant dense<0.000000e+00> : vector<1x10xf32>
    %62 = tpu.matmul %59, %61, %cst_48 {dimension_numbers = #tpu.dot_dimension_numbers<[1], [1], [0], [0], [0, 0, 1, 0], [], []>} : vector<1x1024xbf16>, vector<10x1024xbf16>, vector<1x10xf32> -> vector<1x10xf32>
    %63 = vector.extract_strided_slice %10 {offsets = [13, 0], sizes = [1, 1024], strides = [1, 1]} : vector<16x1024xbf16> to vector<1x1024xbf16>
    %c13 = arith.constant 13 : index
    %c0_49 = arith.constant 0 : index
    %c0_50 = arith.constant 0 : index
    %64 = vector.load %arg4[%c13, %c0_49, %c0_50] : memref<16x10x1024xbf16, #tpu.memory_space<vmem>>, vector<1x10x1024xbf16>
    %65 = vector.shape_cast %64 : vector<1x10x1024xbf16> to vector<10x1024xbf16>
    %cst_51 = arith.constant dense<0.000000e+00> : vector<1x10xf32>
    %66 = tpu.matmul %63, %65, %cst_51 {dimension_numbers = #tpu.dot_dimension_numbers<[1], [1], [0], [0], [0, 0, 1, 0], [], []>} : vector<1x1024xbf16>, vector<10x1024xbf16>, vector<1x10xf32> -> vector<1x10xf32>
    %67 = vector.extract_strided_slice %10 {offsets = [14, 0], sizes = [1, 1024], strides = [1, 1]} : vector<16x1024xbf16> to vector<1x1024xbf16>
    %c14 = arith.constant 14 : index
    %c0_52 = arith.constant 0 : index
    %c0_53 = arith.constant 0 : index
    %68 = vector.load %arg4[%c14, %c0_52, %c0_53] : memref<16x10x1024xbf16, #tpu.memory_space<vmem>>, vector<1x10x1024xbf16>
    %69 = vector.shape_cast %68 : vector<1x10x1024xbf16> to vector<10x1024xbf16>
    %cst_54 = arith.constant dense<0.000000e+00> : vector<1x10xf32>
    %70 = tpu.matmul %67, %69, %cst_54 {dimension_numbers = #tpu.dot_dimension_numbers<[1], [1], [0], [0], [0, 0, 1, 0], [], []>} : vector<1x1024xbf16>, vector<10x1024xbf16>, vector<1x10xf32> -> vector<1x10xf32>
    %71 = vector.extract_strided_slice %10 {offsets = [15, 0], sizes = [1, 1024], strides = [1, 1]} : vector<16x1024xbf16> to vector<1x1024xbf16>
    %c15 = arith.constant 15 : index
    %c0_55 = arith.constant 0 : index
    %c0_56 = arith.constant 0 : index
    %72 = vector.load %arg4[%c15, %c0_55, %c0_56] : memref<16x10x1024xbf16, #tpu.memory_space<vmem>>, vector<1x10x1024xbf16>
    %73 = vector.shape_cast %72 : vector<1x10x1024xbf16> to vector<10x1024xbf16>
    %cst_57 = arith.constant dense<0.000000e+00> : vector<1x10xf32>
    %74 = tpu.matmul %71, %73, %cst_57 {dimension_numbers = #tpu.dot_dimension_numbers<[1], [1], [0], [0], [0, 0, 1, 0], [], []>} : vector<1x1024xbf16>, vector<10x1024xbf16>, vector<1x10xf32> -> vector<1x10xf32>
    %75 = arith.addf %14, %18 : vector<1x10xf32>
    %76 = arith.addf %22, %26 : vector<1x10xf32>
    %77 = arith.addf %30, %34 : vector<1x10xf32>
    %78 = arith.addf %38, %42 : vector<1x10xf32>
    %79 = arith.addf %46, %50 : vector<1x10xf32>
    %80 = arith.addf %54, %58 : vector<1x10xf32>
    %81 = arith.addf %62, %66 : vector<1x10xf32>
    %82 = arith.addf %70, %74 : vector<1x10xf32>
    %83 = arith.addf %75, %76 : vector<1x10xf32>
    %84 = arith.addf %77, %78 : vector<1x10xf32>
    %85 = arith.addf %79, %80 : vector<1x10xf32>
    %86 = arith.addf %81, %82 : vector<1x10xf32>
    %87 = arith.addf %83, %84 : vector<1x10xf32>
    %88 = arith.addf %85, %86 : vector<1x10xf32>
    %89 = arith.addf %87, %88 : vector<1x10xf32>
    %90 = arith.addf %89, %2 : vector<1x10xf32>
    %c1_58 = arith.constant 1 : index
    %c0_59 = arith.constant 0 : index
    %c0_60 = arith.constant 0 : index
    %91 = vector.load %arg1[%c1_58, %c0_59, %c0_60] : memref<2x32x1024xbf16, #tpu.memory_space<vmem>>, vector<1x32x1024xbf16>
    %92 = vector.shape_cast %91 : vector<1x32x1024xbf16> to vector<32x1024xbf16>
    %cst_61 = arith.constant dense<0.000000e+00> : vector<16x1024xf32>
    %93 = tpu.matmul %0, %92, %cst_61 {dimension_numbers = #tpu.dot_dimension_numbers<[1], [0], [0], [1], [0, 0, 1, 1], [], []>} : vector<16x32xbf16>, vector<32x1024xbf16>, vector<16x1024xf32> -> vector<16x1024xf32>
    %94 = vector.broadcast %1 : vector<16x1xf32> to vector<16x1024xf32>
    %95 = arith.addf %93, %94 : vector<16x1024xf32>
    %cst_62 = arith.constant 0.000000e+00 : f32
    %96 = vector.broadcast %cst_62 : f32 to vector<16x1024xf32>
    %97 = arith.maximumf %95, %96 : vector<16x1024xf32>
    %98 = arith.truncf %97 : vector<16x1024xf32> to vector<16x1024xbf16>
    %99 = vector.extract_strided_slice %98 {offsets = [0, 0], sizes = [1, 1024], strides = [1, 1]} : vector<16x1024xbf16> to vector<1x1024xbf16>
    %c0_63 = arith.constant 0 : index
    %c0_64 = arith.constant 0 : index
    %c0_65 = arith.constant 0 : index
    %100 = vector.load %arg4[%c0_63, %c0_64, %c0_65] : memref<16x10x1024xbf16, #tpu.memory_space<vmem>>, vector<1x10x1024xbf16>
    %101 = vector.shape_cast %100 : vector<1x10x1024xbf16> to vector<10x1024xbf16>
    %cst_66 = arith.constant dense<0.000000e+00> : vector<1x10xf32>
    %102 = tpu.matmul %99, %101, %cst_66 {dimension_numbers = #tpu.dot_dimension_numbers<[1], [1], [0], [0], [0, 0, 1, 0], [], []>} : vector<1x1024xbf16>, vector<10x1024xbf16>, vector<1x10xf32> -> vector<1x10xf32>
    %103 = vector.extract_strided_slice %98 {offsets = [1, 0], sizes = [1, 1024], strides = [1, 1]} : vector<16x1024xbf16> to vector<1x1024xbf16>
    %c1_67 = arith.constant 1 : index
    %c0_68 = arith.constant 0 : index
    %c0_69 = arith.constant 0 : index
    %104 = vector.load %arg4[%c1_67, %c0_68, %c0_69] : memref<16x10x1024xbf16, #tpu.memory_space<vmem>>, vector<1x10x1024xbf16>
    %105 = vector.shape_cast %104 : vector<1x10x1024xbf16> to vector<10x1024xbf16>
    %cst_70 = arith.constant dense<0.000000e+00> : vector<1x10xf32>
    %106 = tpu.matmul %103, %105, %cst_70 {dimension_numbers = #tpu.dot_dimension_numbers<[1], [1], [0], [0], [0, 0, 1, 0], [], []>} : vector<1x1024xbf16>, vector<10x1024xbf16>, vector<1x10xf32> -> vector<1x10xf32>
    %107 = vector.extract_strided_slice %98 {offsets = [2, 0], sizes = [1, 1024], strides = [1, 1]} : vector<16x1024xbf16> to vector<1x1024xbf16>
    %c2_71 = arith.constant 2 : index
    %c0_72 = arith.constant 0 : index
    %c0_73 = arith.constant 0 : index
    %108 = vector.load %arg4[%c2_71, %c0_72, %c0_73] : memref<16x10x1024xbf16, #tpu.memory_space<vmem>>, vector<1x10x1024xbf16>
    %109 = vector.shape_cast %108 : vector<1x10x1024xbf16> to vector<10x1024xbf16>
    %cst_74 = arith.constant dense<0.000000e+00> : vector<1x10xf32>
    %110 = tpu.matmul %107, %109, %cst_74 {dimension_numbers = #tpu.dot_dimension_numbers<[1], [1], [0], [0], [0, 0, 1, 0], [], []>} : vector<1x1024xbf16>, vector<10x1024xbf16>, vector<1x10xf32> -> vector<1x10xf32>
    %111 = vector.extract_strided_slice %98 {offsets = [3, 0], sizes = [1, 1024], strides = [1, 1]} : vector<16x1024xbf16> to vector<1x1024xbf16>
    %c3_75 = arith.constant 3 : index
    %c0_76 = arith.constant 0 : index
    %c0_77 = arith.constant 0 : index
    %112 = vector.load %arg4[%c3_75, %c0_76, %c0_77] : memref<16x10x1024xbf16, #tpu.memory_space<vmem>>, vector<1x10x1024xbf16>
    %113 = vector.shape_cast %112 : vector<1x10x1024xbf16> to vector<10x1024xbf16>
    %cst_78 = arith.constant dense<0.000000e+00> : vector<1x10xf32>
    %114 = tpu.matmul %111, %113, %cst_78 {dimension_numbers = #tpu.dot_dimension_numbers<[1], [1], [0], [0], [0, 0, 1, 0], [], []>} : vector<1x1024xbf16>, vector<10x1024xbf16>, vector<1x10xf32> -> vector<1x10xf32>
    %115 = vector.extract_strided_slice %98 {offsets = [4, 0], sizes = [1, 1024], strides = [1, 1]} : vector<16x1024xbf16> to vector<1x1024xbf16>
    %c4_79 = arith.constant 4 : index
    %c0_80 = arith.constant 0 : index
    %c0_81 = arith.constant 0 : index
    %116 = vector.load %arg4[%c4_79, %c0_80, %c0_81] : memref<16x10x1024xbf16, #tpu.memory_space<vmem>>, vector<1x10x1024xbf16>
    %117 = vector.shape_cast %116 : vector<1x10x1024xbf16> to vector<10x1024xbf16>
    %cst_82 = arith.constant dense<0.000000e+00> : vector<1x10xf32>
    %118 = tpu.matmul %115, %117, %cst_82 {dimension_numbers = #tpu.dot_dimension_numbers<[1], [1], [0], [0], [0, 0, 1, 0], [], []>} : vector<1x1024xbf16>, vector<10x1024xbf16>, vector<1x10xf32> -> vector<1x10xf32>
    %119 = vector.extract_strided_slice %98 {offsets = [5, 0], sizes = [1, 1024], strides = [1, 1]} : vector<16x1024xbf16> to vector<1x1024xbf16>
    %c5_83 = arith.constant 5 : index
    %c0_84 = arith.constant 0 : index
    %c0_85 = arith.constant 0 : index
    %120 = vector.load %arg4[%c5_83, %c0_84, %c0_85] : memref<16x10x1024xbf16, #tpu.memory_space<vmem>>, vector<1x10x1024xbf16>
    %121 = vector.shape_cast %120 : vector<1x10x1024xbf16> to vector<10x1024xbf16>
    %cst_86 = arith.constant dense<0.000000e+00> : vector<1x10xf32>
    %122 = tpu.matmul %119, %121, %cst_86 {dimension_numbers = #tpu.dot_dimension_numbers<[1], [1], [0], [0], [0, 0, 1, 0], [], []>} : vector<1x1024xbf16>, vector<10x1024xbf16>, vector<1x10xf32> -> vector<1x10xf32>
    %123 = vector.extract_strided_slice %98 {offsets = [6, 0], sizes = [1, 1024], strides = [1, 1]} : vector<16x1024xbf16> to vector<1x1024xbf16>
    %c6_87 = arith.constant 6 : index
    %c0_88 = arith.constant 0 : index
    %c0_89 = arith.constant 0 : index
    %124 = vector.load %arg4[%c6_87, %c0_88, %c0_89] : memref<16x10x1024xbf16, #tpu.memory_space<vmem>>, vector<1x10x1024xbf16>
    %125 = vector.shape_cast %124 : vector<1x10x1024xbf16> to vector<10x1024xbf16>
    %cst_90 = arith.constant dense<0.000000e+00> : vector<1x10xf32>
    %126 = tpu.matmul %123, %125, %cst_90 {dimension_numbers = #tpu.dot_dimension_numbers<[1], [1], [0], [0], [0, 0, 1, 0], [], []>} : vector<1x1024xbf16>, vector<10x1024xbf16>, vector<1x10xf32> -> vector<1x10xf32>
    %127 = vector.extract_strided_slice %98 {offsets = [7, 0], sizes = [1, 1024], strides = [1, 1]} : vector<16x1024xbf16> to vector<1x1024xbf16>
    %c7_91 = arith.constant 7 : index
    %c0_92 = arith.constant 0 : index
    %c0_93 = arith.constant 0 : index
    %128 = vector.load %arg4[%c7_91, %c0_92, %c0_93] : memref<16x10x1024xbf16, #tpu.memory_space<vmem>>, vector<1x10x1024xbf16>
    %129 = vector.shape_cast %128 : vector<1x10x1024xbf16> to vector<10x1024xbf16>
    %cst_94 = arith.constant dense<0.000000e+00> : vector<1x10xf32>
    %130 = tpu.matmul %127, %129, %cst_94 {dimension_numbers = #tpu.dot_dimension_numbers<[1], [1], [0], [0], [0, 0, 1, 0], [], []>} : vector<1x1024xbf16>, vector<10x1024xbf16>, vector<1x10xf32> -> vector<1x10xf32>
    %131 = vector.extract_strided_slice %98 {offsets = [8, 0], sizes = [1, 1024], strides = [1, 1]} : vector<16x1024xbf16> to vector<1x1024xbf16>
    %c8_95 = arith.constant 8 : index
    %c0_96 = arith.constant 0 : index
    %c0_97 = arith.constant 0 : index
    %132 = vector.load %arg4[%c8_95, %c0_96, %c0_97] : memref<16x10x1024xbf16, #tpu.memory_space<vmem>>, vector<1x10x1024xbf16>
    %133 = vector.shape_cast %132 : vector<1x10x1024xbf16> to vector<10x1024xbf16>
    %cst_98 = arith.constant dense<0.000000e+00> : vector<1x10xf32>
    %134 = tpu.matmul %131, %133, %cst_98 {dimension_numbers = #tpu.dot_dimension_numbers<[1], [1], [0], [0], [0, 0, 1, 0], [], []>} : vector<1x1024xbf16>, vector<10x1024xbf16>, vector<1x10xf32> -> vector<1x10xf32>
    %135 = vector.extract_strided_slice %98 {offsets = [9, 0], sizes = [1, 1024], strides = [1, 1]} : vector<16x1024xbf16> to vector<1x1024xbf16>
    %c9_99 = arith.constant 9 : index
    %c0_100 = arith.constant 0 : index
    %c0_101 = arith.constant 0 : index
    %136 = vector.load %arg4[%c9_99, %c0_100, %c0_101] : memref<16x10x1024xbf16, #tpu.memory_space<vmem>>, vector<1x10x1024xbf16>
    %137 = vector.shape_cast %136 : vector<1x10x1024xbf16> to vector<10x1024xbf16>
    %cst_102 = arith.constant dense<0.000000e+00> : vector<1x10xf32>
    %138 = tpu.matmul %135, %137, %cst_102 {dimension_numbers = #tpu.dot_dimension_numbers<[1], [1], [0], [0], [0, 0, 1, 0], [], []>} : vector<1x1024xbf16>, vector<10x1024xbf16>, vector<1x10xf32> -> vector<1x10xf32>
    %139 = vector.extract_strided_slice %98 {offsets = [10, 0], sizes = [1, 1024], strides = [1, 1]} : vector<16x1024xbf16> to vector<1x1024xbf16>
    %c10_103 = arith.constant 10 : index
    %c0_104 = arith.constant 0 : index
    %c0_105 = arith.constant 0 : index
    %140 = vector.load %arg4[%c10_103, %c0_104, %c0_105] : memref<16x10x1024xbf16, #tpu.memory_space<vmem>>, vector<1x10x1024xbf16>
    %141 = vector.shape_cast %140 : vector<1x10x1024xbf16> to vector<10x1024xbf16>
    %cst_106 = arith.constant dense<0.000000e+00> : vector<1x10xf32>
    %142 = tpu.matmul %139, %141, %cst_106 {dimension_numbers = #tpu.dot_dimension_numbers<[1], [1], [0], [0], [0, 0, 1, 0], [], []>} : vector<1x1024xbf16>, vector<10x1024xbf16>, vector<1x10xf32> -> vector<1x10xf32>
    %143 = vector.extract_strided_slice %98 {offsets = [11, 0], sizes = [1, 1024], strides = [1, 1]} : vector<16x1024xbf16> to vector<1x1024xbf16>
    %c11_107 = arith.constant 11 : index
    %c0_108 = arith.constant 0 : index
    %c0_109 = arith.constant 0 : index
    %144 = vector.load %arg4[%c11_107, %c0_108, %c0_109] : memref<16x10x1024xbf16, #tpu.memory_space<vmem>>, vector<1x10x1024xbf16>
    %145 = vector.shape_cast %144 : vector<1x10x1024xbf16> to vector<10x1024xbf16>
    %cst_110 = arith.constant dense<0.000000e+00> : vector<1x10xf32>
    %146 = tpu.matmul %143, %145, %cst_110 {dimension_numbers = #tpu.dot_dimension_numbers<[1], [1], [0], [0], [0, 0, 1, 0], [], []>} : vector<1x1024xbf16>, vector<10x1024xbf16>, vector<1x10xf32> -> vector<1x10xf32>
    %147 = vector.extract_strided_slice %98 {offsets = [12, 0], sizes = [1, 1024], strides = [1, 1]} : vector<16x1024xbf16> to vector<1x1024xbf16>
    %c12_111 = arith.constant 12 : index
    %c0_112 = arith.constant 0 : index
    %c0_113 = arith.constant 0 : index
    %148 = vector.load %arg4[%c12_111, %c0_112, %c0_113] : memref<16x10x1024xbf16, #tpu.memory_space<vmem>>, vector<1x10x1024xbf16>
    %149 = vector.shape_cast %148 : vector<1x10x1024xbf16> to vector<10x1024xbf16>
    %cst_114 = arith.constant dense<0.000000e+00> : vector<1x10xf32>
    %150 = tpu.matmul %147, %149, %cst_114 {dimension_numbers = #tpu.dot_dimension_numbers<[1], [1], [0], [0], [0, 0, 1, 0], [], []>} : vector<1x1024xbf16>, vector<10x1024xbf16>, vector<1x10xf32> -> vector<1x10xf32>
    %151 = vector.extract_strided_slice %98 {offsets = [13, 0], sizes = [1, 1024], strides = [1, 1]} : vector<16x1024xbf16> to vector<1x1024xbf16>
    %c13_115 = arith.constant 13 : index
    %c0_116 = arith.constant 0 : index
    %c0_117 = arith.constant 0 : index
    %152 = vector.load %arg4[%c13_115, %c0_116, %c0_117] : memref<16x10x1024xbf16, #tpu.memory_space<vmem>>, vector<1x10x1024xbf16>
    %153 = vector.shape_cast %152 : vector<1x10x1024xbf16> to vector<10x1024xbf16>
    %cst_118 = arith.constant dense<0.000000e+00> : vector<1x10xf32>
    %154 = tpu.matmul %151, %153, %cst_118 {dimension_numbers = #tpu.dot_dimension_numbers<[1], [1], [0], [0], [0, 0, 1, 0], [], []>} : vector<1x1024xbf16>, vector<10x1024xbf16>, vector<1x10xf32> -> vector<1x10xf32>
    %155 = vector.extract_strided_slice %98 {offsets = [14, 0], sizes = [1, 1024], strides = [1, 1]} : vector<16x1024xbf16> to vector<1x1024xbf16>
    %c14_119 = arith.constant 14 : index
    %c0_120 = arith.constant 0 : index
    %c0_121 = arith.constant 0 : index
    %156 = vector.load %arg4[%c14_119, %c0_120, %c0_121] : memref<16x10x1024xbf16, #tpu.memory_space<vmem>>, vector<1x10x1024xbf16>
    %157 = vector.shape_cast %156 : vector<1x10x1024xbf16> to vector<10x1024xbf16>
    %cst_122 = arith.constant dense<0.000000e+00> : vector<1x10xf32>
    %158 = tpu.matmul %155, %157, %cst_122 {dimension_numbers = #tpu.dot_dimension_numbers<[1], [1], [0], [0], [0, 0, 1, 0], [], []>} : vector<1x1024xbf16>, vector<10x1024xbf16>, vector<1x10xf32> -> vector<1x10xf32>
    %159 = vector.extract_strided_slice %98 {offsets = [15, 0], sizes = [1, 1024], strides = [1, 1]} : vector<16x1024xbf16> to vector<1x1024xbf16>
    %c15_123 = arith.constant 15 : index
    %c0_124 = arith.constant 0 : index
    %c0_125 = arith.constant 0 : index
    %160 = vector.load %arg4[%c15_123, %c0_124, %c0_125] : memref<16x10x1024xbf16, #tpu.memory_space<vmem>>, vector<1x10x1024xbf16>
    %161 = vector.shape_cast %160 : vector<1x10x1024xbf16> to vector<10x1024xbf16>
    %cst_126 = arith.constant dense<0.000000e+00> : vector<1x10xf32>
    %162 = tpu.matmul %159, %161, %cst_126 {dimension_numbers = #tpu.dot_dimension_numbers<[1], [1], [0], [0], [0, 0, 1, 0], [], []>} : vector<1x1024xbf16>, vector<10x1024xbf16>, vector<1x10xf32> -> vector<1x10xf32>
    %163 = arith.addf %102, %106 : vector<1x10xf32>
    %164 = arith.addf %110, %114 : vector<1x10xf32>
    %165 = arith.addf %118, %122 : vector<1x10xf32>
    %166 = arith.addf %126, %130 : vector<1x10xf32>
    %167 = arith.addf %134, %138 : vector<1x10xf32>
    %168 = arith.addf %142, %146 : vector<1x10xf32>
    %169 = arith.addf %150, %154 : vector<1x10xf32>
    %170 = arith.addf %158, %162 : vector<1x10xf32>
    %171 = arith.addf %163, %164 : vector<1x10xf32>
    %172 = arith.addf %165, %166 : vector<1x10xf32>
    %173 = arith.addf %167, %168 : vector<1x10xf32>
    %174 = arith.addf %169, %170 : vector<1x10xf32>
    %175 = arith.addf %171, %172 : vector<1x10xf32>
    %176 = arith.addf %173, %174 : vector<1x10xf32>
    %177 = arith.addf %175, %176 : vector<1x10xf32>
    %178 = arith.addf %177, %2 : vector<1x10xf32>
    %179 = tpu.concatenate %90, %178 in 0 : vector<1x10xf32>, vector<1x10xf32> -> vector<2x10xf32>
    %c0_127 = arith.constant 0 : index
    %c0_128 = arith.constant 0 : index
    %180 = vector.load %arg6[%c0_127, %c0_128] : memref<2x10xf32, #tpu.memory_space<vmem>>, vector<2x10xf32>
    tpu.vector_store %arg6[%c0_127, %c0_128], %179 {strides = array<i32>} : memref<2x10xf32, #tpu.memory_space<vmem>>, vector<2x10xf32>,
    return
  }
  func.func @transform_0(%arg0: i32) -> (i32, i32, i32) {
    %c0_i32 = arith.constant 0 : i32
    %c0_i32_0 = arith.constant 0 : i32
    %c0_i32_1 = arith.constant 0 : i32
    %c0_i32_2 = arith.constant 0 : i32
    return %c0_i32, %c0_i32_0, %c0_i32_1 : i32, i32, i32
  }
  func.func @transform_1(%arg0: i32) -> (i32, i32) {
    %c0_i32 = arith.constant 0 : i32
    %c0_i32_0 = arith.constant 0 : i32
    %c0_i32_1 = arith.constant 0 : i32
    return %c0_i32, %c0_i32_0 : i32, i32
  }
  func.func @transform_2(%arg0: i32) -> (i32, i32) {
    %c0_i32 = arith.constant 0 : i32
    %c0_i32_0 = arith.constant 0 : i32
    %c0_i32_1 = arith.constant 0 : i32
    return %c0_i32, %c0_i32_0 : i32, i32
  }
  func.func @transform_3(%arg0: i32) -> (i32, i32, i32) {
    %c0_i32 = arith.constant 0 : i32
    %c0_i32_0 = arith.constant 0 : i32
    %c0_i32_1 = arith.constant 0 : i32
    %c0_i32_2 = arith.constant 0 : i32
    return %c0_i32, %c0_i32_0, %c0_i32_1 : i32, i32, i32
  }
  func.func @transform_4(%arg0: i32) -> (i32, i32) {
    %c0_i32 = arith.constant 0 : i32
    %c0_i32_0 = arith.constant 0 : i32
    %c0_i32_1 = arith.constant 0 : i32
    return %c0_i32, %c0_i32_0 : i32, i32
  }
  func.func @transform_5(%arg0: i32) -> (i32, i32) {
    %c0_i32 = arith.constant 0 : i32
    %c0_i32_0 = arith.constant 0 : i32
    %c0_i32_1 = arith.constant 0 : i32
    return %c0_i32, %c0_i32_0 : i32, i32
  }
}

</mosaic_0001>

<llo_original>
// kernel: tpu_custom_call.1
$region0: #{tpu_custom_call.1}
  #allocation0 [shape = 'u32[]', space=smem, size = 0x4, offset = 0x4, fixed_abs, tag = 'smem constant byte address 0x4 - core index']
  #allocation1 [shape = 'u32[144,128]{1,0:T(1,128)}', space=vmem, size = 0x12000, scoped, tag = 'internal scratch']
  %s0 = inlined_call_operand.vmem [shape: bf16[2,32,1024], index: 0, kind: input, shape index: {}]
  %s1 = inlined_call_operand.vmem [shape: bf16[16,32], index: 1, kind: input, shape index: {}]
  %s2 = inlined_call_operand.vmem [shape: f32[16,1], index: 2, kind: input, shape index: {}]
  %s3 = inlined_call_operand.vmem [shape: bf16[16,10,1024], index: 3, kind: input, shape index: {}]
  %s4 = inlined_call_operand.vmem [shape: f32[1,10], index: 4, kind: input, shape index: {}]
  %s5 = inlined_call_operand.hbm [shape: f32[2,10], index: 5, kind: output, shape index: {}]
  %s6 = sld [smem:[#allocation0]]
  $region30: #{tpu_custom_call.1} parent=0
    _
  %s8 = ssub.s32 1, %s6
  %s9 = scalar_select 0, %s8, %s6
  $region1: #{tpu_custom_call.1} parent=0
    #allocation2 [shape = 'u8[1024]{0}', space=vmem, size = 0x400, scoped, tag = 'output window, operand 0, single buffered']
    #allocation3 [shape = 's32[1]{0}', space=sflag, size = 0x4, scoped, tag = 'scoped memory for tpu_custom_call.1']
    %10 = vsyncpa [#allocation3], 0
    // Predicated region
    $region2: #{tpu_custom_call.1} parent=1 // pred_check
      _
    $region3: #{tpu_custom_call.1} parent=1 // pred_check_branch
      %12 = sbr.rel (0) target = $region5
    $region4: #{tpu_custom_call.1} parent=1 // pred_region
      _
    $region5: #{tpu_custom_call.1} parent=1 // pred_fallthru
      _
    // Predicated region
    $region6: #{tpu_custom_call.1} parent=1 // pred_check
      _
    $region7: #{tpu_custom_call.1} parent=1 // pred_check_branch
      %14 = sbr.rel (0) target = $region9
    $region8: #{tpu_custom_call.1} parent=1 // pred_region
      _
    $region9: #{tpu_custom_call.1} parent=1 // pred_fallthru
      _
    // Predicated region
    $region10: #{tpu_custom_call.1} parent=1 // pred_check
      _
    $region11: #{tpu_custom_call.1} parent=1 // pred_check_branch
      %16 = sbr.rel (0) target = $region13
    $region12: #{tpu_custom_call.1} parent=1 // pred_region
      _
    $region13: #{tpu_custom_call.1} parent=1 // pred_fallthru
      _
    // Predicated region
    $region14: #{tpu_custom_call.1} parent=1 // pred_check
      _
    $region15: #{tpu_custom_call.1} parent=1 // pred_check_branch
      %18 = sbr.rel (0) target = $region17
    $region16: #{tpu_custom_call.1} parent=1 // pred_region
      _
    $region17: #{tpu_custom_call.1} parent=1 // pred_fallthru
      _
    // Predicated region
    $region18: #{tpu_custom_call.1} parent=1 // pred_check
      _
    $region19: #{tpu_custom_call.1} parent=1 // pred_check_branch
      %20 = sbr.rel (0) target = $region21
    $region20: #{tpu_custom_call.1} parent=1 // pred_region
      _
    $region21: #{tpu_custom_call.1} parent=1 // pred_fallthru
      _
    %v22 = vld [vmem:[%s1] sm:$0xf]
    %v23 = vld [vmem:[%s1 + $0x4] sm:$0xf]
    %v24 = vld [vmem:[%s2] sm:$0xff]
    %v25 = vld [vmem:[%s2 + $0x8] sm:$0xff]
    %v26 = vld [vmem:[%s4] sm:$0x1]
    %v27 = vld [vmem:[%s0] sm:$0xff]
    %v28 = vld [vmem:[%s0 + $0x8] sm:$0xff]
    %v29 = vld [vmem:[%s0 + $0x10] sm:$0xff]
    %v30 = vld [vmem:[%s0 + $0x18] sm:$0xff]
    %v31 = vld [vmem:[%s0 + $0x20] sm:$0xff]
    %v32 = vld [vmem:[%s0 + $0x28] sm:$0xff]
    %v33 = vld [vmem:[%s0 + $0x30] sm:$0xff]
    %v34 = vld [vmem:[%s0 + $0x38] sm:$0xff]
    %v35 = vld [vmem:[%s0 + $0x40] sm:$0xff]
    %v36 = vld [vmem:[%s0 + $0x48] sm:$0xff]
    %v37 = vld [vmem:[%s0 + $0x50] sm:$0xff]
    %v38 = vld [vmem:[%s0 + $0x58] sm:$0xff]
    %v39 = vld [vmem:[%s0 + $0x60] sm:$0xff]
    %v40 = vld [vmem:[%s0 + $0x68] sm:$0xff]
    %v41 = vld [vmem:[%s0 + $0x70] sm:$0xff]
    %v42 = vld [vmem:[%s0 + $0x78] sm:$0xff]
    %44 = vset.pattern.permute.xlu0 0
    %45 = vperm.xlu0 %44, %v24
    %v46 = vpop.permute.xlu0 %45
    %49 = vset.pattern.permute.xlu0 0
    %50 = vperm.xlu0 %49, %v25
    %v51 = vpop.permute.xlu0 %50
    %v55 = vunpack.c.l.b16 %v22
    %v56 = vunpack.c.l.b16 %v23
    %v57 = vpack.c.b16 %v56, %v55
    %v74 = vunpack.c.l.b16 %v27
    %v75 = vunpack.c.h.b16 %v27
    %v76 = vunpack.c.l.b16 %v28
    %v77 = vunpack.c.h.b16 %v28
    %v78 = vunpack.c.l.b16 %v29
    %v79 = vunpack.c.h.b16 %v29
    %v80 = vunpack.c.l.b16 %v30
    %v81 = vunpack.c.h.b16 %v30
    %v82 = vunpack.c.l.b16 %v31
    %v83 = vunpack.c.h.b16 %v31
    %v84 = vunpack.c.l.b16 %v32
    %v85 = vunpack.c.h.b16 %v32
    %v86 = vunpack.c.l.b16 %v33
    %v87 = vunpack.c.h.b16 %v33
    %v88 = vunpack.c.l.b16 %v34
    %v89 = vunpack.c.h.b16 %v34
    %v90 = vunpack.c.l.b16 %v35
    %v91 = vunpack.c.h.b16 %v35
    %v92 = vunpack.c.l.b16 %v36
    %v93 = vunpack.c.h.b16 %v36
    %v94 = vunpack.c.l.b16 %v37
    %v95 = vunpack.c.h.b16 %v37
    %v96 = vunpack.c.l.b16 %v38
    %v97 = vunpack.c.h.b16 %v38
    %v98 = vunpack.c.l.b16 %v39
    %v99 = vunpack.c.h.b16 %v39
    %v100 = vunpack.c.l.b16 %v40
    %v101 = vunpack.c.h.b16 %v40
    %v102 = vunpack.c.l.b16 %v41
    %v103 = vunpack.c.h.b16 %v41
    %v104 = vunpack.c.l.b16 %v42
    %v105 = vunpack.c.h.b16 %v42
    %v106 = vpack.c.b16 %v82, %v74
    %v107 = vpack.c.b16 %v83, %v75
    %v108 = vpack.c.b16 %v84, %v76
    %v109 = vpack.c.b16 %v85, %v77
    %v110 = vpack.c.b16 %v86, %v78
    %v111 = vpack.c.b16 %v87, %v79
    %v112 = vpack.c.b16 %v88, %v80
    %v113 = vpack.c.b16 %v89, %v81
    %v114 = vpack.c.b16 %v98, %v90
    %v115 = vpack.c.b16 %v99, %v91
    %v116 = vpack.c.b16 %v100, %v92
    %v117 = vpack.c.b16 %v101, %v93
    %v118 = vpack.c.b16 %v102, %v94
    %v119 = vpack.c.b16 %v103, %v95
    %v120 = vpack.c.b16 %v104, %v96
    %v121 = vpack.c.b16 %v105, %v97
    %vm138 = vcmask 261120
    %v140 = vsel %vm138, %v57, 0
    %142 = vmatprep.subr.bf16.mxu0 %v107
    %143 = vmatpush1.bf16.msra.mxu0 %v106
    %144 = vmatprep.subr.bf16.mxu0 %v115
    %145 = vmatpush1.bf16.msra.mxu0 %v114
    %146 = vmatprep.subr.bf16.mxu0 0
    %147 = vmatpush1.bf16.msra.mxu0 0
    %148 = vmatprep.subr.bf16.mxu0 0
    %149 = vmatpush1.bf16.msra.mxu0 0
    %150 = vmatprep.subr.bf16.mxu0 0
    %151 = vmatpush1.bf16.msra.mxu0 0
    %152 = vmatprep.subr.bf16.mxu0 0
    %153 = vmatpush1.bf16.msra.mxu0 0
    %154 = vmatprep.subr.bf16.mxu0 0
    %155 = vmatpush1.bf16.msra.mxu0 0
    %156 = vmatprep.subr.bf16.mxu0 0
    %157 = vmatpush1.bf16.msra.mxu0 0
    %158 = vmatprep.subr.bf16.mxu0 0
    %159 = vmatpush1.bf16.msra.mxu0 0
    %160 = vmatprep.subr.bf16.mxu0 0
    %161 = vmatpush1.bf16.msra.mxu0 0
    %162 = vmatprep.subr.bf16.mxu0 0
    %163 = vmatpush1.bf16.msra.mxu0 0
    %164 = vmatprep.subr.bf16.mxu0 0
    %165 = vmatpush1.bf16.msra.mxu0 0
    %166 = vmatprep.subr.bf16.mxu0 0
    %167 = vmatpush1.bf16.msra.mxu0 0
    %168 = vmatprep.subr.bf16.mxu0 0
    %169 = vmatpush1.bf16.msra.mxu0 0
    %170 = vmatprep.subr.bf16.mxu0 0
    %171 = vmatpush1.bf16.msra.mxu0 0
    %172 = vmatprep.subr.bf16.mxu0 0
    %173 = vmatpush1.bf16.msra.mxu0 0
    %174 = vmatprep.mubr.bf16.mxu0 0
    %175 = vmatmul.mubr.bf16.gmra.mrb[0].mxu0 %v140
    %v176 = vpop.f32.mrb[0].mxu0
    %v177 = vadd.f32 %v46, %v176
    %v178 = vpop.f32.mrb[0].mxu0
    %v179 = vadd.f32 %v46, %v178
    %v180 = vpop.f32.mrb[0].mxu0
    %v181 = vadd.f32 %v51, %v180
    %v182 = vpop.f32.mrb[0].mxu0
    %v183 = vadd.f32 %v51, %v182
    %184 = vdwg.mxu0
    %185 = vmatprep.subr.bf16.mxu0 %v109
    %186 = vmatpush1.bf16.msra.mxu0 %v108
    %187 = vmatprep.subr.bf16.mxu0 %v117
    %188 = vmatpush1.bf16.msra.mxu0 %v116
    %189 = vmatprep.subr.bf16.mxu0 0
    %190 = vmatpush1.bf16.msra.mxu0 0
    %191 = vmatprep.subr.bf16.mxu0 0
    %192 = vmatpush1.bf16.msra.mxu0 0
    %193 = vmatprep.subr.bf16.mxu0 0
    %194 = vmatpush1.bf16.msra.mxu0 0
    %195 = vmatprep.subr.bf16.mxu0 0
    %196 = vmatpush1.bf16.msra.mxu0 0
    %197 = vmatprep.subr.bf16.mxu0 0
    %198 = vmatpush1.bf16.msra.mxu0 0
    %199 = vmatprep.subr.bf16.mxu0 0
    %200 = vmatpush1.bf16.msra.mxu0 0
    %201 = vmatprep.subr.bf16.mxu0 0
    %202 = vmatpush1.bf16.msra.mxu0 0
    %203 = vmatprep.subr.bf16.mxu0 0
    %204 = vmatpush1.bf16.msra.mxu0 0
    %205 = vmatprep.subr.bf16.mxu0 0
    %206 = vmatpush1.bf16.msra.mxu0 0
    %207 = vmatprep.subr.bf16.mxu0 0
    %208 = vmatpush1.bf16.msra.mxu0 0
    %209 = vmatprep.subr.bf16.mxu0 0
    %210 = vmatpush1.bf16.msra.mxu0 0
    %211 = vmatprep.subr.bf16.mxu0 0
    %212 = vmatpush1.bf16.msra.mxu0 0
    %213 = vmatprep.subr.bf16.mxu0 0
    %214 = vmatpush1.bf16.msra.mxu0 0
    %215 = vmatprep.subr.bf16.mxu0 0
    %216 = vmatpush1.bf16.msra.mxu0 0
    %217 = vmatprep.mubr.bf16.mxu0 0
    %218 = vmatmul.mubr.bf16.gmra.mrb[0].mxu0 %v140
    %v219 = vpop.f32.mrb[0].mxu0
    %v220 = vadd.f32 %v46, %v219
    %v221 = vpop.f32.mrb[0].mxu0
    %v222 = vadd.f32 %v46, %v221
    %v223 = vpop.f32.mrb[0].mxu0
    %v224 = vadd.f32 %v51, %v223
    %v225 = vpop.f32.mrb[0].mxu0
    %v226 = vadd.f32 %v51, %v225
    %227 = vdwg.mxu0
    %228 = vmatprep.subr.bf16.mxu0 %v111
    %229 = vmatpush1.bf16.msra.mxu0 %v110
    %230 = vmatprep.subr.bf16.mxu0 %v119
    %231 = vmatpush1.bf16.msra.mxu0 %v118
    %232 = vmatprep.subr.bf16.mxu0 0
    %233 = vmatpush1.bf16.msra.mxu0 0
    %234 = vmatprep.subr.bf16.mxu0 0
    %235 = vmatpush1.bf16.msra.mxu0 0
    %236 = vmatprep.subr.bf16.mxu0 0
    %237 = vmatpush1.bf16.msra.mxu0 0
    %238 = vmatprep.subr.bf16.mxu0 0
    %239 = vmatpush1.bf16.msra.mxu0 0
    %240 = vmatprep.subr.bf16.mxu0 0
    %241 = vmatpush1.bf16.msra.mxu0 0
    %242 = vmatprep.subr.bf16.mxu0 0
    %243 = vmatpush1.bf16.msra.mxu0 0
    %244 = vmatprep.subr.bf16.mxu0 0
    %245 = vmatpush1.bf16.msra.mxu0 0
    %246 = vmatprep.subr.bf16.mxu0 0
    %247 = vmatpush1.bf16.msra.mxu0 0
    %248 = vmatprep.subr.bf16.mxu0 0
    %249 = vmatpush1.bf16.msra.mxu0 0
    %250 = vmatprep.subr.bf16.mxu0 0
    %251 = vmatpush1.bf16.msra.mxu0 0
    %252 = vmatprep.subr.bf16.mxu0 0
    %253 = vmatpush1.bf16.msra.mxu0 0
    %254 = vmatprep.subr.bf16.mxu0 0
    %255 = vmatpush1.bf16.msra.mxu0 0
    %256 = vmatprep.subr.bf16.mxu0 0
    %257 = vmatpush1.bf16.msra.mxu0 0
    %258 = vmatprep.subr.bf16.mxu0 0
    %259 = vmatpush1.bf16.msra.mxu0 0
    %260 = vmatprep.mubr.bf16.mxu0 0
    %261 = vmatmul.mubr.bf16.gmra.mrb[0].mxu0 %v140
    %v262 = vpop.f32.mrb[0].mxu0
    %v263 = vadd.f32 %v46, %v262
    %v264 = vpop.f32.mrb[0].mxu0
    %v265 = vadd.f32 %v46, %v264
    %v266 = vpop.f32.mrb[0].mxu0
    %v267 = vadd.f32 %v51, %v266
    %v268 = vpop.f32.mrb[0].mxu0
    %v269 = vadd.f32 %v51, %v268
    %270 = vdwg.mxu0
    %271 = vmatprep.subr.bf16.mxu0 %v113
    %272 = vmatpush1.bf16.msra.mxu0 %v112
    %273 = vmatprep.subr.bf16.mxu0 %v121
    %274 = vmatpush1.bf16.msra.mxu0 %v120
    %275 = vmatprep.subr.bf16.mxu0 0
    %276 = vmatpush1.bf16.msra.mxu0 0
    %277 = vmatprep.subr.bf16.mxu0 0
    %278 = vmatpush1.bf16.msra.mxu0 0
    %279 = vmatprep.subr.bf16.mxu0 0
    %280 = vmatpush1.bf16.msra.mxu0 0
    %281 = vmatprep.subr.bf16.mxu0 0
    %282 = vmatpush1.bf16.msra.mxu0 0
    %283 = vmatprep.subr.bf16.mxu0 0
    %284 = vmatpush1.bf16.msra.mxu0 0
    %285 = vmatprep.subr.bf16.mxu0 0
    %286 = vmatpush1.bf16.msra.mxu0 0
    %287 = vmatprep.subr.bf16.mxu0 0
    %288 = vmatpush1.bf16.msra.mxu0 0
    %289 = vmatprep.subr.bf16.mxu0 0
    %290 = vmatpush1.bf16.msra.mxu0 0
    %291 = vmatprep.subr.bf16.mxu0 0
    %292 = vmatpush1.bf16.msra.mxu0 0
    %293 = vmatprep.subr.bf16.mxu0 0
    %294 = vmatpush1.bf16.msra.mxu0 0
    %295 = vmatprep.subr.bf16.mxu0 0
    %296 = vmatpush1.bf16.msra.mxu0 0
    %297 = vmatprep.subr.bf16.mxu0 0
    %298 = vmatpush1.bf16.msra.mxu0 0
    %299 = vmatprep.subr.bf16.mxu0 0
    %300 = vmatpush1.bf16.msra.mxu0 0
    %301 = vmatprep.subr.bf16.mxu0 0
    %302 = vmatpush1.bf16.msra.mxu0 0
    %303 = vmatprep.mubr.bf16.mxu0 0
    %304 = vmatmul.mubr.bf16.gmra.mrb[0].mxu0 %v140
    %v305 = vpop.f32.mrb[0].mxu0
    %v306 = vadd.f32 %v46, %v305
    %v307 = vpop.f32.mrb[0].mxu0
    %v308 = vadd.f32 %v46, %v307
    %v309 = vpop.f32.mrb[0].mxu0
    %v310 = vadd.f32 %v51, %v309
    %v311 = vpop.f32.mrb[0].mxu0
    %v312 = vadd.f32 %v51, %v311
    %313 = vdwg.mxu0
    %v314 = vmax.f32 %v177, 0.0
    %v315 = vmax.f32 %v179, 0.0
    %v316 = vmax.f32 %v220, 0.0
    %v317 = vmax.f32 %v222, 0.0
    %v318 = vmax.f32 %v263, 0.0
    %v319 = vmax.f32 %v265, 0.0
    %v320 = vmax.f32 %v306, 0.0
    %v321 = vmax.f32 %v308, 0.0
    %v322 = vmax.f32 %v181, 0.0
    %v323 = vmax.f32 %v183, 0.0
    %v324 = vmax.f32 %v224, 0.0
    %v325 = vmax.f32 %v226, 0.0
    %v326 = vmax.f32 %v267, 0.0
    %v327 = vmax.f32 %v269, 0.0
    %v328 = vmax.f32 %v310, 0.0
    %v329 = vmax.f32 %v312, 0.0
    %v330 = vpack.c.bf16 %v322, %v314
    %v331 = vpack.c.bf16 %v323, %v315
    %v332 = vpack.c.bf16 %v324, %v316
    %v333 = vpack.c.bf16 %v325, %v317
    %v334 = vpack.c.bf16 %v326, %v318
    %v335 = vpack.c.bf16 %v327, %v319
    %v336 = vpack.c.bf16 %v328, %v320
    %v337 = vpack.c.bf16 %v329, %v321
    %v338 = vld [vmem:[%s3] sm:$0xff]
    %v339 = vld [vmem:[%s3 + $0x8] sm:$0xff]
    %v340 = vld [vmem:[%s3 + $0x10] sm:$0xff]
    %v341 = vld [vmem:[%s3 + $0x18] sm:$0xff]
    %v342 = vld [vmem:[%s3 + $0x20] sm:$0x11]
    %v343 = vld [vmem:[%s3 + $0x28] sm:$0x11]
    %v344 = vld [vmem:[%s3 + $0x30] sm:$0x11]
    %v345 = vld [vmem:[%s3 + $0x38] sm:$0x11]
    %s346 = scalar_lea.vmem %s3, 64
    %v347 = vld [vmem:[%s346] sm:$0xff]
    %v348 = vld [vmem:[%s346 + $0x8] sm:$0xff]
    %v349 = vld [vmem:[%s346 + $0x10] sm:$0xff]
    %v350 = vld [vmem:[%s346 + $0x18] sm:$0xff]
    %v351 = vld [vmem:[%s346 + $0x20] sm:$0x11]
    %v352 = vld [vmem:[%s346 + $0x28] sm:$0x11]
    %v353 = vld [vmem:[%s346 + $0x30] sm:$0x11]
    %v354 = vld [vmem:[%s346 + $0x38] sm:$0x11]
    %v356 = vshrl.u32 %v330, 16
    %v359 = vshrl.u32 %v331, 16
    %v362 = vshrl.u32 %v332, 16
    %v365 = vshrl.u32 %v333, 16
    %v368 = vshrl.u32 %v334, 16
    %v371 = vshrl.u32 %v335, 16
    %v374 = vshrl.u32 %v336, 16
    %v377 = vshrl.u32 %v337, 16
    %v395 = vunpack.c.l.b16 %v347
    %v396 = vunpack.c.h.b16 %v347
    %v397 = vunpack.c.l.b16 %v348
    %v398 = vunpack.c.h.b16 %v348
    %v399 = vunpack.c.l.b16 %v349
    %v400 = vunpack.c.h.b16 %v349
    %v401 = vunpack.c.l.b16 %v350
    %v402 = vunpack.c.h.b16 %v350
    %v403 = vunpack.c.l.b16 %v351
    %v404 = vunpack.c.h.b16 %v351
    %v405 = vunpack.c.l.b16 %v352
    %v406 = vunpack.c.h.b16 %v352
    %v407 = vunpack.c.l.b16 %v353
    %v408 = vunpack.c.h.b16 %v353
    %v409 = vunpack.c.l.b16 %v354
    %v410 = vunpack.c.h.b16 %v354
    %v411 = vpack.c.b16 %v403, %v395
    %v412 = vpack.c.b16 %v404, %v396
    %v413 = vpack.c.b16 %v405, %v397
    %v414 = vpack.c.b16 %v406, %v398
    %v415 = vpack.c.b16 %v407, %v399
    %v416 = vpack.c.b16 %v408, %v400
    %v417 = vpack.c.b16 %v409, %v401
    %v418 = vpack.c.b16 %v410, %v402
    %427 = vmatprep.subr.bf16.mxu0 %v412
    %428 = vmatpush1.bf16.xpose.msra.mxu0 %v411
    %429 = vmatprep.subr.bf16.mxu0 0
    %430 = vmatpush1.bf16.xpose.msra.mxu0 0
    %431 = vmatprep.subr.bf16.mxu0 0
    %432 = vmatpush1.bf16.xpose.msra.mxu0 0
    %433 = vmatprep.subr.bf16.mxu0 0
    %434 = vmatpush1.bf16.xpose.msra.mxu0 0
    %435 = vmatprep.subr.bf16.mxu0 0
    %436 = vmatpush1.bf16.xpose.msra.mxu0 0
    %437 = vmatprep.subr.bf16.mxu0 0
    %438 = vmatpush1.bf16.xpose.msra.mxu0 0
    %439 = vmatprep.subr.bf16.mxu0 0
    %440 = vmatpush1.bf16.xpose.msra.mxu0 0
    %441 = vmatprep.subr.bf16.mxu0 0
    %442 = vmatpush1.bf16.xpose.msra.mxu0 0
    %443 = vmatprep.subr.bf16.mxu0 0
    %444 = vmatpush1.bf16.xpose.msra.mxu0 0
    %445 = vmatprep.subr.bf16.mxu0 0
    %446 = vmatpush1.bf16.xpose.msra.mxu0 0
    %447 = vmatprep.subr.bf16.mxu0 0
    %448 = vmatpush1.bf16.xpose.msra.mxu0 0
    %449 = vmatprep.subr.bf16.mxu0 0
    %450 = vmatpush1.bf16.xpose.msra.mxu0 0
    %451 = vmatprep.subr.bf16.mxu0 0
    %452 = vmatpush1.bf16.xpose.msra.mxu0 0
    %453 = vmatprep.subr.bf16.mxu0 0
    %454 = vmatpush1.bf16.xpose.msra.mxu0 0
    %455 = vmatprep.subr.bf16.mxu0 0
    %456 = vmatpush1.bf16.xpose.msra.mxu0 0
    %457 = vmatprep.subr.bf16.mxu0 0
    %458 = vmatpush1.bf16.xpose.msra.mxu0 0
    %459 = vmatprep.mubr.bf16.mxu0 %v359
    %460 = vmatmul.mubr.bf16.gmra.mrb[0].mxu0 %v356
    %v461 = vpop.f32.mrb[0].mxu0
    %v462 = vadd.f32 0.0, %v461
    %v463 = vpop.f32.mrb[0].mxu0
    %v464 = vpop.f32.mrb[0].mxu0
    %v465 = vpop.f32.mrb[0].mxu0
    %466 = vdwg.mxu0
    %467 = vmatprep.subr.bf16.mxu0 %v414
    %468 = vmatpush1.bf16.xpose.msra.mxu0 %v413
    %469 = vmatprep.subr.bf16.mxu0 0
    %470 = vmatpush1.bf16.xpose.msra.mxu0 0
    %471 = vmatprep.subr.bf16.mxu0 0
    %472 = vmatpush1.bf16.xpose.msra.mxu0 0
    %473 = vmatprep.subr.bf16.mxu0 0
    %474 = vmatpush1.bf16.xpose.msra.mxu0 0
    %475 = vmatprep.subr.bf16.mxu0 0
    %476 = vmatpush1.bf16.xpose.msra.mxu0 0
    %477 = vmatprep.subr.bf16.mxu0 0
    %478 = vmatpush1.bf16.xpose.msra.mxu0 0
    %479 = vmatprep.subr.bf16.mxu0 0
    %480 = vmatpush1.bf16.xpose.msra.mxu0 0
    %481 = vmatprep.subr.bf16.mxu0 0
    %482 = vmatpush1.bf16.xpose.msra.mxu0 0
    %483 = vmatprep.subr.bf16.mxu0 0
    %484 = vmatpush1.bf16.xpose.msra.mxu0 0
    %485 = vmatprep.subr.bf16.mxu0 0
    %486 = vmatpush1.bf16.xpose.msra.mxu0 0
    %487 = vmatprep.subr.bf16.mxu0 0
    %488 = vmatpush1.bf16.xpose.msra.mxu0 0
    %489 = vmatprep.subr.bf16.mxu0 0
    %490 = vmatpush1.bf16.xpose.msra.mxu0 0
    %491 = vmatprep.subr.bf16.mxu0 0
    %492 = vmatpush1.bf16.xpose.msra.mxu0 0
    %493 = vmatprep.subr.bf16.mxu0 0
    %494 = vmatpush1.bf16.xpose.msra.mxu0 0
    %495 = vmatprep.subr.bf16.mxu0 0
    %496 = vmatpush1.bf16.xpose.msra.mxu0 0
    %497 = vmatprep.subr.bf16.mxu0 0
    %498 = vmatpush1.bf16.xpose.msra.mxu0 0
    %499 = vmatprep.mubr.bf16.mxu0 %v365
    %500 = vmatmul.mubr.bf16.gmra.mrb[0].mxu0 %v362
    %v501 = vpop.f32.mrb[0].mxu0
    %v502 = vadd.f32 %v462, %v501
    %v503 = vpop.f32.mrb[0].mxu0
    %v504 = vpop.f32.mrb[0].mxu0
    %v505 = vpop.f32.mrb[0].mxu0
    %506 = vdwg.mxu0
    %507 = vmatprep.subr.bf16.mxu0 %v416
    %508 = vmatpush1.bf16.xpose.msra.mxu0 %v415
    %509 = vmatprep.subr.bf16.mxu0 0
    %510 = vmatpush1.bf16.xpose.msra.mxu0 0
    %511 = vmatprep.subr.bf16.mxu0 0
    %512 = vmatpush1.bf16.xpose.msra.mxu0 0
    %513 = vmatprep.subr.bf16.mxu0 0
    %514 = vmatpush1.bf16.xpose.msra.mxu0 0
    %515 = vmatprep.subr.bf16.mxu0 0
    %516 = vmatpush1.bf16.xpose.msra.mxu0 0
    %517 = vmatprep.subr.bf16.mxu0 0
    %518 = vmatpush1.bf16.xpose.msra.mxu0 0
    %519 = vmatprep.subr.bf16.mxu0 0
    %520 = vmatpush1.bf16.xpose.msra.mxu0 0
    %521 = vmatprep.subr.bf16.mxu0 0
    %522 = vmatpush1.bf16.xpose.msra.mxu0 0
    %523 = vmatprep.subr.bf16.mxu0 0
    %524 = vmatpush1.bf16.xpose.msra.mxu0 0
    %525 = vmatprep.subr.bf16.mxu0 0
    %526 = vmatpush1.bf16.xpose.msra.mxu0 0
    %527 = vmatprep.subr.bf16.mxu0 0
    %528 = vmatpush1.bf16.xpose.msra.mxu0 0
    %529 = vmatprep.subr.bf16.mxu0 0
    %530 = vmatpush1.bf16.xpose.msra.mxu0 0
    %531 = vmatprep.subr.bf16.mxu0 0
    %532 = vmatpush1.bf16.xpose.msra.mxu0 0
    %533 = vmatprep.subr.bf16.mxu0 0
    %534 = vmatpush1.bf16.xpose.msra.mxu0 0
    %535 = vmatprep.subr.bf16.mxu0 0
    %536 = vmatpush1.bf16.xpose.msra.mxu0 0
    %537 = vmatprep.subr.bf16.mxu0 0
    %538 = vmatpush1.bf16.xpose.msra.mxu0 0
    %539 = vmatprep.mubr.bf16.mxu0 %v371
    %540 = vmatmul.mubr.bf16.gmra.mrb[0].mxu0 %v368
    %v541 = vpop.f32.mrb[0].mxu0
    %v542 = vadd.f32 %v502, %v541
    %v543 = vpop.f32.mrb[0].mxu0
    %v544 = vpop.f32.mrb[0].mxu0
    %v545 = vpop.f32.mrb[0].mxu0
    %546 = vdwg.mxu0
    %547 = vmatprep.subr.bf16.mxu0 %v418
    %548 = vmatpush1.bf16.xpose.msra.mxu0 %v417
    %549 = vmatprep.subr.bf16.mxu0 0
    %550 = vmatpush1.bf16.xpose.msra.mxu0 0
    %551 = vmatprep.subr.bf16.mxu0 0
    %552 = vmatpush1.bf16.xpose.msra.mxu0 0
    %553 = vmatprep.subr.bf16.mxu0 0
    %554 = vmatpush1.bf16.xpose.msra.mxu0 0
    %555 = vmatprep.subr.bf16.mxu0 0
    %556 = vmatpush1.bf16.xpose.msra.mxu0 0
    %557 = vmatprep.subr.bf16.mxu0 0
    %558 = vmatpush1.bf16.xpose.msra.mxu0 0
    %559 = vmatprep.subr.bf16.mxu0 0
    %560 = vmatpush1.bf16.xpose.msra.mxu0 0
    %561 = vmatprep.subr.bf16.mxu0 0
    %562 = vmatpush1.bf16.xpose.msra.mxu0 0
    %563 = vmatprep.subr.bf16.mxu0 0
    %564 = vmatpush1.bf16.xpose.msra.mxu0 0
    %565 = vmatprep.subr.bf16.mxu0 0
    %566 = vmatpush1.bf16.xpose.msra.mxu0 0
    %567 = vmatprep.subr.bf16.mxu0 0
    %568 = vmatpush1.bf16.xpose.msra.mxu0 0
    %569 = vmatprep.subr.bf16.mxu0 0
    %570 = vmatpush1.bf16.xpose.msra.mxu0 0
    %571 = vmatprep.subr.bf16.mxu0 0
    %572 = vmatpush1.bf16.xpose.msra.mxu0 0
    %573 = vmatprep.subr.bf16.mxu0 0
    %574 = vmatpush1.bf16.xpose.msra.mxu0 0
    %575 = vmatprep.subr.bf16.mxu0 0
    %576 = vmatpush1.bf16.xpose.msra.mxu0 0
    %577 = vmatprep.subr.bf16.mxu0 0
    %578 = vmatpush1.bf16.xpose.msra.mxu0 0
    %579 = vmatprep.mubr.bf16.mxu0 %v377
    %580 = vmatmul.mubr.bf16.gmra.mrb[0].mxu0 %v374
    %v581 = vpop.f32.mrb[0].mxu0
    %v582 = vadd.f32 %v542, %v581
    %v583 = vpop.f32.mrb[0].mxu0
    %v584 = vpop.f32.mrb[0].mxu0
    %v585 = vpop.f32.mrb[0].mxu0
    %586 = vdwg.mxu0
    %s587 = scalar_lea.vmem %s3, 128
    %v588 = vld [vmem:[%s587] sm:$0xff]
    %v589 = vld [vmem:[%s587 + $0x8] sm:$0xff]
    %v590 = vld [vmem:[%s587 + $0x10] sm:$0xff]
    %v591 = vld [vmem:[%s587 + $0x18] sm:$0xff]
    %v592 = vld [vmem:[%s587 + $0x20] sm:$0x11]
    %v593 = vld [vmem:[%s587 + $0x28] sm:$0x11]
    %v594 = vld [vmem:[%s587 + $0x30] sm:$0x11]
    %v595 = vld [vmem:[%s587 + $0x38] sm:$0x11]
    %s596 = scalar_lea.vmem %s3, 192
    %v597 = vld [vmem:[%s596] sm:$0xff]
    %v598 = vld [vmem:[%s596 + $0x8] sm:$0xff]
    %v599 = vld [vmem:[%s596 + $0x10] sm:$0xff]
    %v600 = vld [vmem:[%s596 + $0x18] sm:$0xff]
    %v601 = vld [vmem:[%s596 + $0x20] sm:$0x11]
    %v602 = vld [vmem:[%s596 + $0x28] sm:$0x11]
    %v603 = vld [vmem:[%s596 + $0x30] sm:$0x11]
    %v604 = vld [vmem:[%s596 + $0x38] sm:$0x11]
    %v605 = vrot.slane %v356, 1
    %v606 = vrot.slane %v359, 1
    %v607 = vrot.slane %v362, 1
    %v608 = vrot.slane %v365, 1
    %v609 = vrot.slane %v368, 1
    %v610 = vrot.slane %v371, 1
    %v611 = vrot.slane %v374, 1
    %v612 = vrot.slane %v377, 1
    %v629 = vunpack.c.l.b16 %v597
    %v630 = vunpack.c.h.b16 %v597
    %v631 = vunpack.c.l.b16 %v598
    %v632 = vunpack.c.h.b16 %v598
    %v633 = vunpack.c.l.b16 %v599
    %v634 = vunpack.c.h.b16 %v599
    %v635 = vunpack.c.l.b16 %v600
    %v636 = vunpack.c.h.b16 %v600
    %v637 = vunpack.c.l.b16 %v601
    %v638 = vunpack.c.h.b16 %v601
    %v639 = vunpack.c.l.b16 %v602
    %v640 = vunpack.c.h.b16 %v602
    %v641 = vunpack.c.l.b16 %v603
    %v642 = vunpack.c.h.b16 %v603
    %v643 = vunpack.c.l.b16 %v604
    %v644 = vunpack.c.h.b16 %v604
    %v645 = vpack.c.b16 %v637, %v629
    %v646 = vpack.c.b16 %v638, %v630
    %v647 = vpack.c.b16 %v639, %v631
    %v648 = vpack.c.b16 %v640, %v632
    %v649 = vpack.c.b16 %v641, %v633
    %v650 = vpack.c.b16 %v642, %v634
    %v651 = vpack.c.b16 %v643, %v635
    %v652 = vpack.c.b16 %v644, %v636
    %661 = vmatprep.subr.bf16.mxu0 %v646
    %662 = vmatpush1.bf16.xpose.msra.mxu0 %v645
    %663 = vmatprep.subr.bf16.mxu0 0
    %664 = vmatpush1.bf16.xpose.msra.mxu0 0
    %665 = vmatprep.subr.bf16.mxu0 0
    %666 = vmatpush1.bf16.xpose.msra.mxu0 0
    %667 = vmatprep.subr.bf16.mxu0 0
    %668 = vmatpush1.bf16.xpose.msra.mxu0 0
    %669 = vmatprep.subr.bf16.mxu0 0
    %670 = vmatpush1.bf16.xpose.msra.mxu0 0
    %671 = vmatprep.subr.bf16.mxu0 0
    %672 = vmatpush1.bf16.xpose.msra.mxu0 0
    %673 = vmatprep.subr.bf16.mxu0 0
    %674 = vmatpush1.bf16.xpose.msra.mxu0 0
    %675 = vmatprep.subr.bf16.mxu0 0
    %676 = vmatpush1.bf16.xpose.msra.mxu0 0
    %677 = vmatprep.subr.bf16.mxu0 0
    %678 = vmatpush1.bf16.xpose.msra.mxu0 0
    %679 = vmatprep.subr.bf16.mxu0 0
    %680 = vmatpush1.bf16.xpose.msra.mxu0 0
    %681 = vmatprep.subr.bf16.mxu0 0
    %682 = vmatpush1.bf16.xpose.msra.mxu0 0
    %683 = vmatprep.subr.bf16.mxu0 0
    %684 = vmatpush1.bf16.xpose.msra.mxu0 0
    %685 = vmatprep.subr.bf16.mxu0 0
    %686 = vmatpush1.bf16.xpose.msra.mxu0 0
    %687 = vmatprep.subr.bf16.mxu0 0
    %688 = vmatpush1.bf16.xpose.msra.mxu0 0
    %689 = vmatprep.subr.bf16.mxu0 0
    %690 = vmatpush1.bf16.xpose.msra.mxu0 0
    %691 = vmatprep.subr.bf16.mxu0 0
    %692 = vmatpush1.bf16.xpose.msra.mxu0 0
    %693 = vmatprep.mubr.bf16.mxu0 %v606
    %694 = vmatmul.mubr.bf16.gmra.mrb[0].mxu0 %v605
    %v695 = vpop.f32.mrb[0].mxu0
    %v696 = vadd.f32 0.0, %v695
    %v697 = vpop.f32.mrb[0].mxu0
    %v698 = vpop.f32.mrb[0].mxu0
    %v699 = vpop.f32.mrb[0].mxu0
    %700 = vdwg.mxu0
    %701 = vmatprep.subr.bf16.mxu0 %v648
    %702 = vmatpush1.bf16.xpose.msra.mxu0 %v647
    %703 = vmatprep.subr.bf16.mxu0 0
    %704 = vmatpush1.bf16.xpose.msra.mxu0 0
    %705 = vmatprep.subr.bf16.mxu0 0
    %706 = vmatpush1.bf16.xpose.msra.mxu0 0
    %707 = vmatprep.subr.bf16.mxu0 0
    %708 = vmatpush1.bf16.xpose.msra.mxu0 0
    %709 = vmatprep.subr.bf16.mxu0 0
    %710 = vmatpush1.bf16.xpose.msra.mxu0 0
    %711 = vmatprep.subr.bf16.mxu0 0
    %712 = vmatpush1.bf16.xpose.msra.mxu0 0
    %713 = vmatprep.subr.bf16.mxu0 0
    %714 = vmatpush1.bf16.xpose.msra.mxu0 0
    %715 = vmatprep.subr.bf16.mxu0 0
    %716 = vmatpush1.bf16.xpose.msra.mxu0 0
    %717 = vmatprep.subr.bf16.mxu0 0
    %718 = vmatpush1.bf16.xpose.msra.mxu0 0
    %719 = vmatprep.subr.bf16.mxu0 0
    %720 = vmatpush1.bf16.xpose.msra.mxu0 0
    %721 = vmatprep.subr.bf16.mxu0 0
    %722 = vmatpush1.bf16.xpose.msra.mxu0 0
    %723 = vmatprep.subr.bf16.mxu0 0
    %724 = vmatpush1.bf16.xpose.msra.mxu0 0
    %725 = vmatprep.subr.bf16.mxu0 0
    %726 = vmatpush1.bf16.xpose.msra.mxu0 0
    %727 = vmatprep.subr.bf16.mxu0 0
    %728 = vmatpush1.bf16.xpose.msra.mxu0 0
    %729 = vmatprep.subr.bf16.mxu0 0
    %730 = vmatpush1.bf16.xpose.msra.mxu0 0
    %731 = vmatprep.subr.bf16.mxu0 0
    %732 = vmatpush1.bf16.xpose.msra.mxu0 0
    %733 = vmatprep.mubr.bf16.mxu0 %v608
    %734 = vmatmul.mubr.bf16.gmra.mrb[0].mxu0 %v607
    %v735 = vpop.f32.mrb[0].mxu0
    %v736 = vadd.f32 %v696, %v735
    %v737 = vpop.f32.mrb[0].mxu0
    %v738 = vpop.f32.mrb[0].mxu0
    %v739 = vpop.f32.mrb[0].mxu0
    %740 = vdwg.mxu0
    %741 = vmatprep.subr.bf16.mxu0 %v650
    %742 = vmatpush1.bf16.xpose.msra.mxu0 %v649
    %743 = vmatprep.subr.bf16.mxu0 0
    %744 = vmatpush1.bf16.xpose.msra.mxu0 0
    %745 = vmatprep.subr.bf16.mxu0 0
    %746 = vmatpush1.bf16.xpose.msra.mxu0 0
    %747 = vmatprep.subr.bf16.mxu0 0
    %748 = vmatpush1.bf16.xpose.msra.mxu0 0
    %749 = vmatprep.subr.bf16.mxu0 0
    %750 = vmatpush1.bf16.xpose.msra.mxu0 0
    %751 = vmatprep.subr.bf16.mxu0 0
    %752 = vmatpush1.bf16.xpose.msra.mxu0 0
    %753 = vmatprep.subr.bf16.mxu0 0
    %754 = vmatpush1.bf16.xpose.msra.mxu0 0
    %755 = vmatprep.subr.bf16.mxu0 0
    %756 = vmatpush1.bf16.xpose.msra.mxu0 0
    %757 = vmatprep.subr.bf16.mxu0 0
    %758 = vmatpush1.bf16.xpose.msra.mxu0 0
    %759 = vmatprep.subr.bf16.mxu0 0
    %760 = vmatpush1.bf16.xpose.msra.mxu0 0
    %761 = vmatprep.subr.bf16.mxu0 0
    %762 = vmatpush1.bf16.xpose.msra.mxu0 0
    %763 = vmatprep.subr.bf16.mxu0 0
    %764 = vmatpush1.bf16.xpose.msra.mxu0 0
    %765 = vmatprep.subr.bf16.mxu0 0
    %766 = vmatpush1.bf16.xpose.msra.mxu0 0
    %767 = vmatprep.subr.bf16.mxu0 0
    %768 = vmatpush1.bf16.xpose.msra.mxu0 0
    %769 = vmatprep.subr.bf16.mxu0 0
    %770 = vmatpush1.bf16.xpose.msra.mxu0 0
    %771 = vmatprep.subr.bf16.mxu0 0
    %772 = vmatpush1.bf16.xpose.msra.mxu0 0
    %773 = vmatprep.mubr.bf16.mxu0 %v610
    %774 = vmatmul.mubr.bf16.gmra.mrb[0].mxu0 %v609
    %v775 = vpop.f32.mrb[0].mxu0
    %v776 = vadd.f32 %v736, %v775
    %v777 = vpop.f32.mrb[0].mxu0
    %v778 = vpop.f32.mrb[0].mxu0
    %v779 = vpop.f32.mrb[0].mxu0
    %780 = vdwg.mxu0
    %781 = vmatprep.subr.bf16.mxu0 %v652
    %782 = vmatpush1.bf16.xpose.msra.mxu0 %v651
    %783 = vmatprep.subr.bf16.mxu0 0
    %784 = vmatpush1.bf16.xpose.msra.mxu0 0
    %785 = vmatprep.subr.bf16.mxu0 0
    %786 = vmatpush1.bf16.xpose.msra.mxu0 0
    %787 = vmatprep.subr.bf16.mxu0 0
    %788 = vmatpush1.bf16.xpose.msra.mxu0 0
    %789 = vmatprep.subr.bf16.mxu0 0
    %790 = vmatpush1.bf16.xpose.msra.mxu0 0
    %791 = vmatprep.subr.bf16.mxu0 0
    %792 = vmatpush1.bf16.xpose.msra.mxu0 0
    %793 = vmatprep.subr.bf16.mxu0 0
    %794 = vmatpush1.bf16.xpose.msra.mxu0 0
    %795 = vmatprep.subr.bf16.mxu0 0
    %796 = vmatpush1.bf16.xpose.msra.mxu0 0
    %797 = vmatprep.subr.bf16.mxu0 0
    %798 = vmatpush1.bf16.xpose.msra.mxu0 0
    %799 = vmatprep.subr.bf16.mxu0 0
    %800 = vmatpush1.bf16.xpose.msra.mxu0 0
    %801 = vmatprep.subr.bf16.mxu0 0
    %802 = vmatpush1.bf16.xpose.msra.mxu0 0
    %803 = vmatprep.subr.bf16.mxu0 0
    %804 = vmatpush1.bf16.xpose.msra.mxu0 0
    %805 = vmatprep.subr.bf16.mxu0 0
    %806 = vmatpush1.bf16.xpose.msra.mxu0 0
    %807 = vmatprep.subr.bf16.mxu0 0
    %808 = vmatpush1.bf16.xpose.msra.mxu0 0
    %809 = vmatprep.subr.bf16.mxu0 0
    %810 = vmatpush1.bf16.xpose.msra.mxu0 0
    %811 = vmatprep.subr.bf16.mxu0 0
    %812 = vmatpush1.bf16.xpose.msra.mxu0 0
    %813 = vmatprep.mubr.bf16.mxu0 %v612
    %814 = vmatmul.mubr.bf16.gmra.mrb[0].mxu0 %v611
    %v815 = vpop.f32.mrb[0].mxu0
    %v816 = vadd.f32 %v776, %v815
    %v817 = vpop.f32.mrb[0].mxu0
    %v818 = vpop.f32.mrb[0].mxu0
    %v819 = vpop.f32.mrb[0].mxu0
    %820 = vdwg.mxu0
    %s821 = scalar_lea.vmem %s3, 256
    %v822 = vld [vmem:[%s821] sm:$0xff]
    %v823 = vld [vmem:[%s821 + $0x8] sm:$0xff]
    %v824 = vld [vmem:[%s821 + $0x10] sm:$0xff]
    %v825 = vld [vmem:[%s821 + $0x18] sm:$0xff]
    %v826 = vld [vmem:[%s821 + $0x20] sm:$0x11]
    %v827 = vld [vmem:[%s821 + $0x28] sm:$0x11]
    %v828 = vld [vmem:[%s821 + $0x30] sm:$0x11]
    %v829 = vld [vmem:[%s821 + $0x38] sm:$0x11]
    %s830 = scalar_lea.vmem %s3, 320
    %v831 = vld [vmem:[%s830] sm:$0xff]
    %v832 = vld [vmem:[%s830 + $0x8] sm:$0xff]
    %v833 = vld [vmem:[%s830 + $0x10] sm:$0xff]
    %v834 = vld [vmem:[%s830 + $0x18] sm:$0xff]
    %v835 = vld [vmem:[%s830 + $0x20] sm:$0x11]
    %v836 = vld [vmem:[%s830 + $0x28] sm:$0x11]
    %v837 = vld [vmem:[%s830 + $0x30] sm:$0x11]
    %v838 = vld [vmem:[%s830 + $0x38] sm:$0x11]
    %v839 = vrot.slane %v356, 2
    %v840 = vrot.slane %v359, 2
    %v841 = vrot.slane %v362, 2
    %v842 = vrot.slane %v365, 2
    %v843 = vrot.slane %v368, 2
    %v844 = vrot.slane %v371, 2
    %v845 = vrot.slane %v374, 2
    %v846 = vrot.slane %v377, 2
    %v863 = vunpack.c.l.b16 %v831
    %v864 = vunpack.c.h.b16 %v831
    %v865 = vunpack.c.l.b16 %v832
    %v866 = vunpack.c.h.b16 %v832
    %v867 = vunpack.c.l.b16 %v833
    %v868 = vunpack.c.h.b16 %v833
    %v869 = vunpack.c.l.b16 %v834
    %v870 = vunpack.c.h.b16 %v834
    %v871 = vunpack.c.l.b16 %v835
    %v872 = vunpack.c.h.b16 %v835
    %v873 = vunpack.c.l.b16 %v836
    %v874 = vunpack.c.h.b16 %v836
    %v875 = vunpack.c.l.b16 %v837
    %v876 = vunpack.c.h.b16 %v837
    %v877 = vunpack.c.l.b16 %v838
    %v878 = vunpack.c.h.b16 %v838
    %v879 = vpack.c.b16 %v871, %v863
    %v880 = vpack.c.b16 %v872, %v864
    %v881 = vpack.c.b16 %v873, %v865
    %v882 = vpack.c.b16 %v874, %v866
    %v883 = vpack.c.b16 %v875, %v867
    %v884 = vpack.c.b16 %v876, %v868
    %v885 = vpack.c.b16 %v877, %v869
    %v886 = vpack.c.b16 %v878, %v870
    %895 = vmatprep.subr.bf16.mxu0 %v880
    %896 = vmatpush1.bf16.xpose.msra.mxu0 %v879
    %897 = vmatprep.subr.bf16.mxu0 0
    %898 = vmatpush1.bf16.xpose.msra.mxu0 0
    %899 = vmatprep.subr.bf16.mxu0 0
    %900 = vmatpush1.bf16.xpose.msra.mxu0 0
    %901 = vmatprep.subr.bf16.mxu0 0
    %902 = vmatpush1.bf16.xpose.msra.mxu0 0
    %903 = vmatprep.subr.bf16.mxu0 0
    %904 = vmatpush1.bf16.xpose.msra.mxu0 0
    %905 = vmatprep.subr.bf16.mxu0 0
    %906 = vmatpush1.bf16.xpose.msra.mxu0 0
    %907 = vmatprep.subr.bf16.mxu0 0
    %908 = vmatpush1.bf16.xpose.msra.mxu0 0
    %909 = vmatprep.subr.bf16.mxu0 0
    %910 = vmatpush1.bf16.xpose.msra.mxu0 0
    %911 = vmatprep.subr.bf16.mxu0 0
    %912 = vmatpush1.bf16.xpose.msra.mxu0 0
    %913 = vmatprep.subr.bf16.mxu0 0
    %914 = vmatpush1.bf16.xpose.msra.mxu0 0
    %915 = vmatprep.subr.bf16.mxu0 0
    %916 = vmatpush1.bf16.xpose.msra.mxu0 0
    %917 = vmatprep.subr.bf16.mxu0 0
    %918 = vmatpush1.bf16.xpose.msra.mxu0 0
    %919 = vmatprep.subr.bf16.mxu0 0
    %920 = vmatpush1.bf16.xpose.msra.mxu0 0
    %921 = vmatprep.subr.bf16.mxu0 0
    %922 = vmatpush1.bf16.xpose.msra.mxu0 0
    %923 = vmatprep.subr.bf16.mxu0 0
    %924 = vmatpush1.bf16.xpose.msra.mxu0 0
    %925 = vmatprep.subr.bf16.mxu0 0
    %926 = vmatpush1.bf16.xpose.msra.mxu0 0
    %927 = vmatprep.mubr.bf16.mxu0 %v840
    %928 = vmatmul.mubr.bf16.gmra.mrb[0].mxu0 %v839
    %v929 = vpop.f32.mrb[0].mxu0
    %v930 = vadd.f32 0.0, %v929
    %v931 = vpop.f32.mrb[0].mxu0
    %v932 = vpop.f32.mrb[0].mxu0
    %v933 = vpop.f32.mrb[0].mxu0
    %934 = vdwg.mxu0
    %935 = vmatprep.subr.bf16.mxu0 %v882
    %936 = vmatpush1.bf16.xpose.msra.mxu0 %v881
    %937 = vmatprep.subr.bf16.mxu0 0
    %938 = vmatpush1.bf16.xpose.msra.mxu0 0
    %939 = vmatprep.subr.bf16.mxu0 0
    %940 = vmatpush1.bf16.xpose.msra.mxu0 0
    %941 = vmatprep.subr.bf16.mxu0 0
    %942 = vmatpush1.bf16.xpose.msra.mxu0 0
    %943 = vmatprep.subr.bf16.mxu0 0
    %944 = vmatpush1.bf16.xpose.msra.mxu0 0
    %945 = vmatprep.subr.bf16.mxu0 0
    %946 = vmatpush1.bf16.xpose.msra.mxu0 0
    %947 = vmatprep.subr.bf16.mxu0 0
    %948 = vmatpush1.bf16.xpose.msra.mxu0 0
    %949 = vmatprep.subr.bf16.mxu0 0
    %950 = vmatpush1.bf16.xpose.msra.mxu0 0
    %951 = vmatprep.subr.bf16.mxu0 0
    %952 = vmatpush1.bf16.xpose.msra.mxu0 0
    %953 = vmatprep.subr.bf16.mxu0 0
    %954 = vmatpush1.bf16.xpose.msra.mxu0 0
    %955 = vmatprep.subr.bf16.mxu0 0
    %956 = vmatpush1.bf16.xpose.msra.mxu0 0
    %957 = vmatprep.subr.bf16.mxu0 0
    %958 = vmatpush1.bf16.xpose.msra.mxu0 0
    %959 = vmatprep.subr.bf16.mxu0 0
    %960 = vmatpush1.bf16.xpose.msra.mxu0 0
    %961 = vmatprep.subr.bf16.mxu0 0
    %962 = vmatpush1.bf16.xpose.msra.mxu0 0
    %963 = vmatprep.subr.bf16.mxu0 0
    %964 = vmatpush1.bf16.xpose.msra.mxu0 0
    %965 = vmatprep.subr.bf16.mxu0 0
    %966 = vmatpush1.bf16.xpose.msra.mxu0 0
    %967 = vmatprep.mubr.bf16.mxu0 %v842
    %968 = vmatmul.mubr.bf16.gmra.mrb[0].mxu0 %v841
    %v969 = vpop.f32.mrb[0].mxu0
    %v970 = vadd.f32 %v930, %v969
    %v971 = vpop.f32.mrb[0].mxu0
    %v972 = vpop.f32.mrb[0].mxu0
    %v973 = vpop.f32.mrb[0].mxu0
    %974 = vdwg.mxu0
    %975 = vmatprep.subr.bf16.mxu0 %v884
    %976 = vmatpush1.bf16.xpose.msra.mxu0 %v883
    %977 = vmatprep.subr.bf16.mxu0 0
    %978 = vmatpush1.bf16.xpose.msra.mxu0 0
    %979 = vmatprep.subr.bf16.mxu0 0
    %980 = vmatpush1.bf16.xpose.msra.mxu0 0
    %981 = vmatprep.subr.bf16.mxu0 0
    %982 = vmatpush1.bf16.xpose.msra.mxu0 0
    %983 = vmatprep.subr.bf16.mxu0 0
    %984 = vmatpush1.bf16.xpose.msra.mxu0 0
    %985 = vmatprep.subr.bf16.mxu0 0
    %986 = vmatpush1.bf16.xpose.msra.mxu0 0
    %987 = vmatprep.subr.bf16.mxu0 0
    %988 = vmatpush1.bf16.xpose.msra.mxu0 0
    %989 = vmatprep.subr.bf16.mxu0 0
    %990 = vmatpush1.bf16.xpose.msra.mxu0 0
    %991 = vmatprep.subr.bf16.mxu0 0
    %992 = vmatpush1.bf16.xpose.msra.mxu0 0
    %993 = vmatprep.subr.bf16.mxu0 0
    %994 = vmatpush1.bf16.xpose.msra.mxu0 0
    %995 = vmatprep.subr.bf16.mxu0 0
    %996 = vmatpush1.bf16.xpose.msra.mxu0 0
    %997 = vmatprep.subr.bf16.mxu0 0
    %998 = vmatpush1.bf16.xpose.msra.mxu0 0
    %999 = vmatprep.subr.bf16.mxu0 0
    %1000 = vmatpush1.bf16.xpose.msra.mxu0 0
    %1001 = vmatprep.subr.bf16.mxu0 0
    %1002 = vmatpush1.bf16.xpose.msra.mxu0 0
    %1003 = vmatprep.subr.bf16.mxu0 0
    %1004 = vmatpush1.bf16.xpose.msra.mxu0 0
    %1005 = vmatprep.subr.bf16.mxu0 0
    %1006 = vmatpush1.bf16.xpose.msra.mxu0 0
    %1007 = vmatprep.mubr.bf16.mxu0 %v844
    %1008 = vmatmul.mubr.bf16.gmra.mrb[0].mxu0 %v843
    %v1009 = vpop.f32.mrb[0].mxu0
    %v1010 = vadd.f32 %v970, %v1009
    %v1011 = vpop.f32.mrb[0].mxu0
    %v1012 = vpop.f32.mrb[0].mxu0
    %v1013 = vpop.f32.mrb[0].mxu0
    %1014 = vdwg.mxu0
    %1015 = vmatprep.subr.bf16.mxu0 %v886
    %1016 = vmatpush1.bf16.xpose.msra.mxu0 %v885
    %1017 = vmatprep.subr.bf16.mxu0 0
    %1018 = vmatpush1.bf16.xpose.msra.mxu0 0
    %1019 = vmatprep.subr.bf16.mxu0 0
    %1020 = vmatpush1.bf16.xpose.msra.mxu0 0
    %1021 = vmatprep.subr.bf16.mxu0 0
    %1022 = vmatpush1.bf16.xpose.msra.mxu0 0
    %1023 = vmatprep.subr.bf16.mxu0 0
    %1024 = vmatpush1.bf16.xpose.msra.mxu0 0
    %1025 = vmatprep.subr.bf16.mxu0 0
    %1026 = vmatpush1.bf16.xpose.msra.mxu0 0
    %1027 = vmatprep.subr.bf16.mxu0 0
    %1028 = vmatpush1.bf16.xpose.msra.mxu0 0
    %1029 = vmatprep.subr.bf16.mxu0 0
    %1030 = vmatpush1.bf16.xpose.msra.mxu0 0
    %1031 = vmatprep.subr.bf16.mxu0 0
    %1032 = vmatpush1.bf16.xpose.msra.mxu0 0
    %1033 = vmatprep.subr.bf16.mxu0 0
    %1034 = vmatpush1.bf16.xpose.msra.mxu0 0
    %1035 = vmatprep.subr.bf16.mxu0 0
    %1036 = vmatpush1.bf16.xpose.msra.mxu0 0
    %1037 = vmatprep.subr.bf16.mxu0 0
    %1038 = vmatpush1.bf16.xpose.msra.mxu0 0
    %1039 = vmatprep.subr.bf16.mxu0 0
    %1040 = vmatpush1.bf16.xpose.msra.mxu0 0
    %1041 = vmatprep.subr.bf16.mxu0 0
    %1042 = vmatpush1.bf16.xpose.msra.mxu0 0
    %1043 = vmatprep.subr.bf16.mxu0 0
    %1044 = vmatpush1.bf16.xpose.msra.mxu0 0
    %1045 = vmatprep.subr.bf16.mxu0 0
    %1046 = vmatpush1.bf16.xpose.msra.mxu0 0
    %1047 = vmatprep.mubr.bf16.mxu0 %v846
    %1048 = vmatmul.mubr.bf16.gmra.mrb[0].mxu0 %v845
    %v1049 = vpop.f32.mrb[0].mxu0
    %v1050 = vadd.f32 %v1010, %v1049
    %v1051 = vpop.f32.mrb[0].mxu0
    %v1052 = vpop.f32.mrb[0].mxu0
    %v1053 = vpop.f32.mrb[0].mxu0
    %1054 = vdwg.mxu0
    %s1055 = scalar_lea.vmem %s3, 384
    %v1056 = vld [vmem:[%s1055] sm:$0xff]
    %v1057 = vld [vmem:[%s1055 + $0x8] sm:$0xff]
    %v1058 = vld [vmem:[%s1055 + $0x10] sm:$0xff]
    %v1059 = vld [vmem:[%s1055 + $0x18] sm:$0xff]
    %v1060 = vld [vmem:[%s1055 + $0x20] sm:$0x11]
    %v1061 = vld [vmem:[%s1055 + $0x28] sm:$0x11]
    %v1062 = vld [vmem:[%s1055 + $0x30] sm:$0x11]
    %v1063 = vld [vmem:[%s1055 + $0x38] sm:$0x11]
    %s1064 = scalar_lea.vmem %s3, 448
    %v1065 = vld [vmem:[%s1064] sm:$0xff]
    %v1066 = vld [vmem:[%s1064 + $0x8] sm:$0xff]
    %v1067 = vld [vmem:[%s1064 + $0x10] sm:$0xff]
    %v1068 = vld [vmem:[%s1064 + $0x18] sm:$0xff]
    %v1069 = vld [vmem:[%s1064 + $0x20] sm:$0x11]
    %v1070 = vld [vmem:[%s1064 + $0x28] sm:$0x11]
    %v1071 = vld [vmem:[%s1064 + $0x30] sm:$0x11]
    %v1072 = vld [vmem:[%s1064 + $0x38] sm:$0x11]
    %v1073 = vrot.slane %v356, 3
    %v1074 = vrot.slane %v359, 3
    %v1075 = vrot.slane %v362, 3
    %v1076 = vrot.slane %v365, 3
    %v1077 = vrot.slane %v368, 3
    %v1078 = vrot.slane %v371, 3
    %v1079 = vrot.slane %v374, 3
    %v1080 = vrot.slane %v377, 3
    %v1097 = vunpack.c.l.b16 %v1065
    %v1098 = vunpack.c.h.b16 %v1065
    %v1099 = vunpack.c.l.b16 %v1066
    %v1100 = vunpack.c.h.b16 %v1066
    %v1101 = vunpack.c.l.b16 %v1067
    %v1102 = vunpack.c.h.b16 %v1067
    %v1103 = vunpack.c.l.b16 %v1068
    %v1104 = vunpack.c.h.b16 %v1068
    %v1105 = vunpack.c.l.b16 %v1069
    %v1106 = vunpack.c.h.b16 %v1069
    %v1107 = vunpack.c.l.b16 %v1070
    %v1108 = vunpack.c.h.b16 %v1070
    %v1109 = vunpack.c.l.b16 %v1071
    %v1110 = vunpack.c.h.b16 %v1071
    %v1111 = vunpack.c.l.b16 %v1072
    %v1112 = vunpack.c.h.b16 %v1072
    %v1113 = vpack.c.b16 %v1105, %v1097
    %v1114 = vpack.c.b16 %v1106, %v1098
    %v1115 = vpack.c.b16 %v1107, %v1099
    %v1116 = vpack.c.b16 %v1108, %v1100
    %v1117 = vpack.c.b16 %v1109, %v1101
    %v1118 = vpack.c.b16 %v1110, %v1102
    %v1119 = vpack.c.b16 %v1111, %v1103
    %v1120 = vpack.c.b16 %v1112, %v1104
    %1129 = vmatprep.subr.bf16.mxu0 %v1114
    %1130 = vmatpush1.bf16.xpose.msra.mxu0 %v1113
    %1131 = vmatprep.subr.bf16.mxu0 0
    %1132 = vmatpush1.bf16.xpose.msra.mxu0 0
    %1133 = vmatprep.subr.bf16.mxu0 0
    %1134 = vmatpush1.bf16.xpose.msra.mxu0 0
    %1135 = vmatprep.subr.bf16.mxu0 0
    %1136 = vmatpush1.bf16.xpose.msra.mxu0 0
    %1137 = vmatprep.subr.bf16.mxu0 0
    %1138 = vmatpush1.bf16.xpose.msra.mxu0 0
    %1139 = vmatprep.subr.bf16.mxu0 0
    %1140 = vmatpush1.bf16.xpose.msra.mxu0 0
    %1141 = vmatprep.subr.bf16.mxu0 0
    %1142 = vmatpush1.bf16.xpose.msra.mxu0 0
    %1143 = vmatprep.subr.bf16.mxu0 0
    %1144 = vmatpush1.bf16.xpose.msra.mxu0 0
    %1145 = vmatprep.subr.bf16.mxu0 0
    %1146 = vmatpush1.bf16.xpose.msra.mxu0 0
    %1147 = vmatprep.subr.bf16.mxu0 0
    %1148 = vmatpush1.bf16.xpose.msra.mxu0 0
    %1149 = vmatprep.subr.bf16.mxu0 0
    %1150 = vmatpush1.bf16.xpose.msra.mxu0 0
    %1151 = vmatprep.subr.bf16.mxu0 0
    %1152 = vmatpush1.bf16.xpose.msra.mxu0 0
    %1153 = vmatprep.subr.bf16.mxu0 0
    %1154 = vmatpush1.bf16.xpose.msra.mxu0 0
    %1155 = vmatprep.subr.bf16.mxu0 0
    %1156 = vmatpush1.bf16.xpose.msra.mxu0 0
    %1157 = vmatprep.subr.bf16.mxu0 0
    %1158 = vmatpush1.bf16.xpose.msra.mxu0 0
    %1159 = vmatprep.subr.bf16.mxu0 0
    %1160 = vmatpush1.bf16.xpose.msra.mxu0 0
    %1161 = vmatprep.mubr.bf16.mxu0 %v1074
    %1162 = vmatmul.mubr.bf16.gmra.mrb[0].mxu0 %v1073
    %v1163 = vpop.f32.mrb[0].mxu0
    %v1164 = vadd.f32 0.0, %v1163
    %v1165 = vpop.f32.mrb[0].mxu0
    %v1166 = vpop.f32.mrb[0].mxu0
    %v1167 = vpop.f32.mrb[0].mxu0
    %1168 = vdwg.mxu0
    %1169 = vmatprep.subr.bf16.mxu0 %v1116
    %1170 = vmatpush1.bf16.xpose.msra.mxu0 %v1115
    %1171 = vmatprep.subr.bf16.mxu0 0
    %1172 = vmatpush1.bf16.xpose.msra.mxu0 0
    %1173 = vmatprep.subr.bf16.mxu0 0
    %1174 = vmatpush1.bf16.xpose.msra.mxu0 0
    %1175 = vmatprep.subr.bf16.mxu0 0
    %1176 = vmatpush1.bf16.xpose.msra.mxu0 0
    %1177 = vmatprep.subr.bf16.mxu0 0
    %1178 = vmatpush1.bf16.xpose.msra.mxu0 0
    %1179 = vmatprep.subr.bf16.mxu0 0
    %1180 = vmatpush1.bf16.xpose.msra.mxu0 0
    %1181 = vmatprep.subr.bf16.mxu0 0
    %1182 = vmatpush1.bf16.xpose.msra.mxu0 0
    %1183 = vmatprep.subr.bf16.mxu0 0
    %1184 = vmatpush1.bf16.xpose.msra.mxu0 0
    %1185 = vmatprep.subr.bf16.mxu0 0
    %1186 = vmatpush1.bf16.xpose.msra.mxu0 0
    %1187 = vmatprep.subr.bf16.mxu0 0
    %1188 = vmatpush1.bf16.xpose.msra.mxu0 0
    %1189 = vmatprep.subr.bf16.mxu0 0
    %1190 = vmatpush1.bf16.xpose.msra.mxu0 0
    %1191 = vmatprep.subr.bf16.mxu0 0
    %1192 = vmatpush1.bf16.xpose.msra.mxu0 0
    %1193 = vmatprep.subr.bf16.mxu0 0
    %1194 = vmatpush1.bf16.xpose.msra.mxu0 0
    %1195 = vmatprep.subr.bf16.mxu0 0
    %1196 = vmatpush1.bf16.xpose.msra.mxu0 0
    %1197 = vmatprep.subr.bf16.mxu0 0
    %1198 = vmatpush1.bf16.xpose.msra.mxu0 0
    %1199 = vmatprep.subr.bf16.mxu0 0
    %1200 = vmatpush1.bf16.xpose.msra.mxu0 0
    %1201 = vmatprep.mubr.bf16.mxu0 %v1076
    %1202 = vmatmul.mubr.bf16.gmra.mrb[0].mxu0 %v1075
    %v1203 = vpop.f32.mrb[0].mxu0
    %v1204 = vadd.f32 %v1164, %v1203
    %v1205 = vpop.f32.mrb[0].mxu0
    %v1206 = vpop.f32.mrb[0].mxu0
    %v1207 = vpop.f32.mrb[0].mxu0
    %1208 = vdwg.mxu0
    %1209 = vmatprep.subr.bf16.mxu0 %v1118
    %1210 = vmatpush1.bf16.xpose.msra.mxu0 %v1117
    %1211 = vmatprep.subr.bf16.mxu0 0
    %1212 = vmatpush1.bf16.xpose.msra.mxu0 0
    %1213 = vmatprep.subr.bf16.mxu0 0
    %1214 = vmatpush1.bf16.xpose.msra.mxu0 0
    %1215 = vmatprep.subr.bf16.mxu0 0
    %1216 = vmatpush1.bf16.xpose.msra.mxu0 0
    %1217 = vmatprep.subr.bf16.mxu0 0
    %1218 = vmatpush1.bf16.xpose.msra.mxu0 0
    %1219 = vmatprep.subr.bf16.mxu0 0
    %1220 = vmatpush1.bf16.xpose.msra.mxu0 0
    %1221 = vmatprep.subr.bf16.mxu0 0
    %1222 = vmatpush1.bf16.xpose.msra.mxu0 0
    %1223 = vmatprep.subr.bf16.mxu0 0
    %1224 = vmatpush1.bf16.xpose.msra.mxu0 0
    %1225 = vmatprep.subr.bf16.mxu0 0
    %1226 = vmatpush1.bf16.xpose.msra.mxu0 0
    %1227 = vmatprep.subr.bf16.mxu0 0
    %1228 = vmatpush1.bf16.xpose.msra.mxu0 0
    %1229 = vmatprep.subr.bf16.mxu0 0
    %1230 = vmatpush1.bf16.xpose.msra.mxu0 0
    %1231 = vmatprep.subr.bf16.mxu0 0
    %1232 = vmatpush1.bf16.xpose.msra.mxu0 0
    %1233 = vmatprep.subr.bf16.mxu0 0
    %1234 = vmatpush1.bf16.xpose.msra.mxu0 0
    %1235 = vmatprep.subr.bf16.mxu0 0
    %1236 = vmatpush1.bf16.xpose.msra.mxu0 0
    %1237 = vmatprep.subr.bf16.mxu0 0
    %1238 = vmatpush1.bf16.xpose.msra.mxu0 0
    %1239 = vmatprep.subr.bf16.mxu0 0
    %1240 = vmatpush1.bf16.xpose.msra.mxu0 0
    %1241 = vmatprep.mubr.bf16.mxu0 %v1078
    %1242 = vmatmul.mubr.bf16.gmra.mrb[0].mxu0 %v1077
    %v1243 = vpop.f32.mrb[0].mxu0
    %v1244 = vadd.f32 %v1204, %v1243
    %v1245 = vpop.f32.mrb[0].mxu0
    %v1246 = vpop.f32.mrb[0].mxu0
    %v1247 = vpop.f32.mrb[0].mxu0
    %1248 = vdwg.mxu0
    %1249 = vmatprep.subr.bf16.mxu0 %v1120
    %1250 = vmatpush1.bf16.xpose.msra.mxu0 %v1119
    %1251 = vmatprep.subr.bf16.mxu0 0
    %1252 = vmatpush1.bf16.xpose.msra.mxu0 0
    %1253 = vmatprep.subr.bf16.mxu0 0
    %1254 = vmatpush1.bf16.xpose.msra.mxu0 0
    %1255 = vmatprep.subr.bf16.mxu0 0
    %1256 = vmatpush1.bf16.xpose.msra.mxu0 0
    %1257 = vmatprep.subr.bf16.mxu0 0
    %1258 = vmatpush1.bf16.xpose.msra.mxu0 0
    %1259 = vmatprep.subr.bf16.mxu0 0
    %1260 = vmatpush1.bf16.xpose.msra.mxu0 0
    %1261 = vmatprep.subr.bf16.mxu0 0
    %1262 = vmatpush1.bf16.xpose.msra.mxu0 0
    %1263 = vmatprep.subr.bf16.mxu0 0
    %1264 = vmatpush1.bf16.xpose.msra.mxu0 0
    %1265 = vmatprep.subr.bf16.mxu0 0
    %1266 = vmatpush1.bf16.xpose.msra.mxu0 0
    %1267 = vmatprep.subr.bf16.mxu0 0
    %1268 = vmatpush1.bf16.xpose.msra.mxu0 0
    %1269 = vmatprep.subr.bf16.mxu0 0
    %1270 = vmatpush1.bf16.xpose.msra.mxu0 0
    %1271 = vmatprep.subr.bf16.mxu0 0
    %1272 = vmatpush1.bf16.xpose.msra.mxu0 0
    %1273 = vmatprep.subr.bf16.mxu0 0
    %1274 = vmatpush1.bf16.xpose.msra.mxu0 0
    %1275 = vmatprep.subr.bf16.mxu0 0
    %1276 = vmatpush1.bf16.xpose.msra.mxu0 0
    %1277 = vmatprep.subr.bf16.mxu0 0
    %1278 = vmatpush1.bf16.xpose.msra.mxu0 0
    %1279 = vmatprep.subr.bf16.mxu0 0
    %1280 = vmatpush1.bf16.xpose.msra.mxu0 0
    %1281 = vmatprep.mubr.bf16.mxu0 %v1080
    %1282 = vmatmul.mubr.bf16.gmra.mrb[0].mxu0 %v1079
    %v1283 = vpop.f32.mrb[0].mxu0
    %v1284 = vadd.f32 %v1244, %v1283
    %v1285 = vpop.f32.mrb[0].mxu0
    %v1286 = vpop.f32.mrb[0].mxu0
    %v1287 = vpop.f32.mrb[0].mxu0
    %1288 = vdwg.mxu0
    %s1289 = scalar_lea.vmem %s3, 512
    %v1290 = vld [vmem:[%s1289] sm:$0xff]
    %v1291 = vld [vmem:[%s1289 + $0x8] sm:$0xff]
    %v1292 = vld [vmem:[%s1289 + $0x10] sm:$0xff]
    %v1293 = vld [vmem:[%s1289 + $0x18] sm:$0xff]
    %v1294 = vld [vmem:[%s1289 + $0x20] sm:$0x11]
    %v1295 = vld [vmem:[%s1289 + $0x28] sm:$0x11]
    %v1296 = vld [vmem:[%s1289 + $0x30] sm:$0x11]
    %v1297 = vld [vmem:[%s1289 + $0x38] sm:$0x11]
    %s1298 = scalar_lea.vmem %s3, 576
    %v1299 = vld [vmem:[%s1298] sm:$0xff]
    %v1300 = vld [vmem:[%s1298 + $0x8] sm:$0xff]
    %v1301 = vld [vmem:[%s1298 + $0x10] sm:$0xff]
    %v1302 = vld [vmem:[%s1298 + $0x18] sm:$0xff]
    %v1303 = vld [vmem:[%s1298 + $0x20] sm:$0x11]
    %v1304 = vld [vmem:[%s1298 + $0x28] sm:$0x11]
    %v1305 = vld [vmem:[%s1298 + $0x30] sm:$0x11]
    %v1306 = vld [vmem:[%s1298 + $0x38] sm:$0x11]
    %v1307 = vrot.slane %v356, 4
    %v1308 = vrot.slane %v359, 4
    %v1309 = vrot.slane %v362, 4
    %v1310 = vrot.slane %v365, 4
    %v1311 = vrot.slane %v368, 4
    %v1312 = vrot.slane %v371, 4
    %v1313 = vrot.slane %v374, 4
    %v1314 = vrot.slane %v377, 4
    %v1331 = vunpack.c.l.b16 %v1299
    %v1332 = vunpack.c.h.b16 %v1299
    %v1333 = vunpack.c.l.b16 %v1300
    %v1334 = vunpack.c.h.b16 %v1300
    %v1335 = vunpack.c.l.b16 %v1301
    %v1336 = vunpack.c.h.b16 %v1301
    %v1337 = vunpack.c.l.b16 %v1302
    %v1338 = vunpack.c.h.b16 %v1302
    %v1339 = vunpack.c.l.b16 %v1303
    %v1340 = vunpack.c.h.b16 %v1303
    %v1341 = vunpack.c.l.b16 %v1304
    %v1342 = vunpack.c.h.b16 %v1304
    %v1343 = vunpack.c.l.b16 %v1305
    %v1344 = vunpack.c.h.b16 %v1305
    %v1345 = vunpack.c.l.b16 %v1306
    %v1346 = vunpack.c.h.b16 %v1306
    %v1347 = vpack.c.b16 %v1339, %v1331
    %v1348 = vpack.c.b16 %v1340, %v1332
    %v1349 = vpack.c.b16 %v1341, %v1333
    %v1350 = vpack.c.b16 %v1342, %v1334
    %v1351 = vpack.c.b16 %v1343, %v1335
    %v1352 = vpack.c.b16 %v1344, %v1336
    %v1353 = vpack.c.b16 %v1345, %v1337
    %v1354 = vpack.c.b16 %v1346, %v1338
    %1363 = vmatprep.subr.bf16.mxu0 %v1348
    %1364 = vmatpush1.bf16.xpose.msra.mxu0 %v1347
    %1365 = vmatprep.subr.bf16.mxu0 0
    %1366 = vmatpush1.bf16.xpose.msra.mxu0 0
    %1367 = vmatprep.subr.bf16.mxu0 0
    %1368 = vmatpush1.bf16.xpose.msra.mxu0 0
    %1369 = vmatprep.subr.bf16.mxu0 0
    %1370 = vmatpush1.bf16.xpose.msra.mxu0 0
    %1371 = vmatprep.subr.bf16.mxu0 0
    %1372 = vmatpush1.bf16.xpose.msra.mxu0 0
    %1373 = vmatprep.subr.bf16.mxu0 0
    %1374 = vmatpush1.bf16.xpose.msra.mxu0 0
    %1375 = vmatprep.subr.bf16.mxu0 0
    %1376 = vmatpush1.bf16.xpose.msra.mxu0 0
    %1377 = vmatprep.subr.bf16.mxu0 0
    %1378 = vmatpush1.bf16.xpose.msra.mxu0 0
    %1379 = vmatprep.subr.bf16.mxu0 0
    %1380 = vmatpush1.bf16.xpose.msra.mxu0 0
    %1381 = vmatprep.subr.bf16.mxu0 0
    %1382 = vmatpush1.bf16.xpose.msra.mxu0 0
    %1383 = vmatprep.subr.bf16.mxu0 0
    %1384 = vmatpush1.bf16.xpose.msra.mxu0 0
    %1385 = vmatprep.subr.bf16.mxu0 0
    %1386 = vmatpush1.bf16.xpose.msra.mxu0 0
    %1387 = vmatprep.subr.bf16.mxu0 0
    %1388 = vmatpush1.bf16.xpose.msra.mxu0 0
    %1389 = vmatprep.subr.bf16.mxu0 0
    %1390 = vmatpush1.bf16.xpose.msra.mxu0 0
    %1391 = vmatprep.subr.bf16.mxu0 0
    %1392 = vmatpush1.bf16.xpose.msra.mxu0 0
    %1393 = vmatprep.subr.bf16.mxu0 0
    %1394 = vmatpush1.bf16.xpose.msra.mxu0 0
    %1395 = vmatprep.mubr.bf16.mxu0 %v1308
    %1396 = vmatmul.mubr.bf16.gmra.mrb[0].mxu0 %v1307
    %v1397 = vpop.f32.mrb[0].mxu0
    %v1398 = vadd.f32 0.0, %v1397
    %v1399 = vpop.f32.mrb[0].mxu0
    %v1400 = vpop.f32.mrb[0].mxu0
    %v1401 = vpop.f32.mrb[0].mxu0
    %1402 = vdwg.mxu0
    %1403 = vmatprep.subr.bf16.mxu0 %v1350
    %1404 = vmatpush1.bf16.xpose.msra.mxu0 %v1349
    %1405 = vmatprep.subr.bf16.mxu0 0
    %1406 = vmatpush1.bf16.xpose.msra.mxu0 0
    %1407 = vmatprep.subr.bf16.mxu0 0
    %1408 = vmatpush1.bf16.xpose.msra.mxu0 0
    %1409 = vmatprep.subr.bf16.mxu0 0
    %1410 = vmatpush1.bf16.xpose.msra.mxu0 0
    %1411 = vmatprep.subr.bf16.mxu0 0
    %1412 = vmatpush1.bf16.xpose.msra.mxu0 0
    %1413 = vmatprep.subr.bf16.mxu0 0
    %1414 = vmatpush1.bf16.xpose.msra.mxu0 0
    %1415 = vmatprep.subr.bf16.mxu0 0
    %1416 = vmatpush1.bf16.xpose.msra.mxu0 0
    %1417 = vmatprep.subr.bf16.mxu0 0
    %1418 = vmatpush1.bf16.xpose.msra.mxu0 0
    %1419 = vmatprep.subr.bf16.mxu0 0
    %1420 = vmatpush1.bf16.xpose.msra.mxu0 0
    %1421 = vmatprep.subr.bf16.mxu0 0
    %1422 = vmatpush1.bf16.xpose.msra.mxu0 0
    %1423 = vmatprep.subr.bf16.mxu0 0
    %1424 = vmatpush1.bf16.xpose.msra.mxu0 0
    %1425 = vmatprep.subr.bf16.mxu0 0
    %1426 = vmatpush1.bf16.xpose.msra.mxu0 0
    %1427 = vmatprep.subr.bf16.mxu0 0
    %1428 = vmatpush1.bf16.xpose.msra.mxu0 0
    %1429 = vmatprep.subr.bf16.mxu0 0
    %1430 = vmatpush1.bf16.xpose.msra.mxu0 0
    %1431 = vmatprep.subr.bf16.mxu0 0
    %1432 = vmatpush1.bf16.xpose.msra.mxu0 0
    %1433 = vmatprep.subr.bf16.mxu0 0
    %1434 = vmatpush1.bf16.xpose.msra.mxu0 0
    %1435 = vmatprep.mubr.bf16.mxu0 %v1310
    %1436 = vmatmul.mubr.bf16.gmra.mrb[0].mxu0 %v1309
    %v1437 = vpop.f32.mrb[0].mxu0
    %v1438 = vadd.f32 %v1398, %v1437
    %v1439 = vpop.f32.mrb[0].mxu0
    %v1440 = vpop.f32.mrb[0].mxu0
    %v1441 = vpop.f32.mrb[0].mxu0
    %1442 = vdwg.mxu0
    %1443 = vmatprep.subr.bf16.mxu0 %v1352
    %1444 = vmatpush1.bf16.xpose.msra.mxu0 %v1351
    %1445 = vmatprep.subr.bf16.mxu0 0
    %1446 = vmatpush1.bf16.xpose.msra.mxu0 0
    %1447 = vmatprep.subr.bf16.mxu0 0
    %1448 = vmatpush1.bf16.xpose.msra.mxu0 0
    %1449 = vmatprep.subr.bf16.mxu0 0
    %1450 = vmatpush1.bf16.xpose.msra.mxu0 0
    %1451 = vmatprep.subr.bf16.mxu0 0
    %1452 = vmatpush1.bf16.xpose.msra.mxu0 0
    %1453 = vmatprep.subr.bf16.mxu0 0
    %1454 = vmatpush1.bf16.xpose.msra.mxu0 0
    %1455 = vmatprep.subr.bf16.mxu0 0
    %1456 = vmatpush1.bf16.xpose.msra.mxu0 0
    %1457 = vmatprep.subr.bf16.mxu0 0
    %1458 = vmatpush1.bf16.xpose.msra.mxu0 0
    %1459 = vmatprep.subr.bf16.mxu0 0
    %1460 = vmatpush1.bf16.xpose.msra.mxu0 0
    %1461 = vmatprep.subr.bf16.mxu0 0
    %1462 = vmatpush1.bf16.xpose.msra.mxu0 0
    %1463 = vmatprep.subr.bf16.mxu0 0
    %1464 = vmatpush1.bf16.xpose.msra.mxu0 0
    %1465 = vmatprep.subr.bf16.mxu0 0
    %1466 = vmatpush1.bf16.xpose.msra.mxu0 0
    %1467 = vmatprep.subr.bf16.mxu0 0
    %1468 = vmatpush1.bf16.xpose.msra.mxu0 0
    %1469 = vmatprep.subr.bf16.mxu0 0
    %1470 = vmatpush1.bf16.xpose.msra.mxu0 0
    %1471 = vmatprep.subr.bf16.mxu0 0
    %1472 = vmatpush1.bf16.xpose.msra.mxu0 0
    %1473 = vmatprep.subr.bf16.mxu0 0
    %1474 = vmatpush1.bf16.xpose.msra.mxu0 0
    %1475 = vmatprep.mubr.bf16.mxu0 %v1312
    %1476 = vmatmul.mubr.bf16.gmra.mrb[0].mxu0 %v1311
    %v1477 = vpop.f32.mrb[0].mxu0
    %v1478 = vadd.f32 %v1438, %v1477
    %v1479 = vpop.f32.mrb[0].mxu0
    %v1480 = vpop.f32.mrb[0].mxu0
    %v1481 = vpop.f32.mrb[0].mxu0
    %1482 = vdwg.mxu0
    %1483 = vmatprep.subr.bf16.mxu0 %v1354
    %1484 = vmatpush1.bf16.xpose.msra.mxu0 %v1353
    %1485 = vmatprep.subr.bf16.mxu0 0
    %1486 = vmatpush1.bf16.xpose.msra.mxu0 0
    %1487 = vmatprep.subr.bf16.mxu0 0
    %1488 = vmatpush1.bf16.xpose.msra.mxu0 0
    %1489 = vmatprep.subr.bf16.mxu0 0
    %1490 = vmatpush1.bf16.xpose.msra.mxu0 0
    %1491 = vmatprep.subr.bf16.mxu0 0
    %1492 = vmatpush1.bf16.xpose.msra.mxu0 0
    %1493 = vmatprep.subr.bf16.mxu0 0
    %1494 = vmatpush1.bf16.xpose.msra.mxu0 0
    %1495 = vmatprep.subr.bf16.mxu0 0
    %1496 = vmatpush1.bf16.xpose.msra.mxu0 0
    %1497 = vmatprep.subr.bf16.mxu0 0
    %1498 = vmatpush1.bf16.xpose.msra.mxu0 0
    %1499 = vmatprep.subr.bf16.mxu0 0
    %1500 = vmatpush1.bf16.xpose.msra.mxu0 0
    %1501 = vmatprep.subr.bf16.mxu0 0
    %1502 = vmatpush1.bf16.xpose.msra.mxu0 0
    %1503 = vmatprep.subr.bf16.mxu0 0
    %1504 = vmatpush1.bf16.xpose.msra.mxu0 0
    %1505 = vmatprep.subr.bf16.mxu0 0
    %1506 = vmatpush1.bf16.xpose.msra.mxu0 0
    %1507 = vmatprep.subr.bf16.mxu0 0
    %1508 = vmatpush1.bf16.xpose.msra.mxu0 0
    %1509 = vmatprep.subr.bf16.mxu0 0
    %1510 = vmatpush1.bf16.xpose.msra.mxu0 0
    %1511 = vmatprep.subr.bf16.mxu0 0
    %1512 = vmatpush1.bf16.xpose.msra.mxu0 0
    %1513 = vmatprep.subr.bf16.mxu0 0
    %1514 = vmatpush1.bf16.xpose.msra.mxu0 0
    %1515 = vmatprep.mubr.bf16.mxu0 %v1314
    %1516 = vmatmul.mubr.bf16.gmra.mrb[0].mxu0 %v1313
    %v1517 = vpop.f32.mrb[0].mxu0
    %v1518 = vadd.f32 %v1478, %v1517
    %v1519 = vpop.f32.mrb[0].mxu0
    %v1520 = vpop.f32.mrb[0].mxu0
    %v1521 = vpop.f32.mrb[0].mxu0
    %1522 = vdwg.mxu0
    %s1523 = scalar_lea.vmem %s3, 640
    %v1524 = vld [vmem:[%s1523] sm:$0xff]
    %v1525 = vld [vmem:[%s1523 + $0x8] sm:$0xff]
    %v1526 = vld [vmem:[%s1523 + $0x10] sm:$0xff]
    %v1527 = vld [vmem:[%s1523 + $0x18] sm:$0xff]
    %v1528 = vld [vmem:[%s1523 + $0x20] sm:$0x11]
    %v1529 = vld [vmem:[%s1523 + $0x28] sm:$0x11]
    %v1530 = vld [vmem:[%s1523 + $0x30] sm:$0x11]
    %v1531 = vld [vmem:[%s1523 + $0x38] sm:$0x11]
    %s1532 = scalar_lea.vmem %s3, 704
    %v1533 = vld [vmem:[%s1532] sm:$0xff]
    %v1534 = vld [vmem:[%s1532 + $0x8] sm:$0xff]
    %v1535 = vld [vmem:[%s1532 + $0x10] sm:$0xff]
    %v1536 = vld [vmem:[%s1532 + $0x18] sm:$0xff]
    %v1537 = vld [vmem:[%s1532 + $0x20] sm:$0x11]
    %v1538 = vld [vmem:[%s1532 + $0x28] sm:$0x11]
    %v1539 = vld [vmem:[%s1532 + $0x30] sm:$0x11]
    %v1540 = vld [vmem:[%s1532 + $0x38] sm:$0x11]
    %v1541 = vrot.slane %v356, 5
    %v1542 = vrot.slane %v359, 5
    %v1543 = vrot.slane %v362, 5
    %v1544 = vrot.slane %v365, 5
    %v1545 = vrot.slane %v368, 5
    %v1546 = vrot.slane %v371, 5
    %v1547 = vrot.slane %v374, 5
    %v1548 = vrot.slane %v377, 5
    %v1565 = vunpack.c.l.b16 %v1533
    %v1566 = vunpack.c.h.b16 %v1533
    %v1567 = vunpack.c.l.b16 %v1534
    %v1568 = vunpack.c.h.b16 %v1534
    %v1569 = vunpack.c.l.b16 %v1535
    %v1570 = vunpack.c.h.b16 %v1535
    %v1571 = vunpack.c.l.b16 %v1536
    %v1572 = vunpack.c.h.b16 %v1536
    %v1573 = vunpack.c.l.b16 %v1537
    %v1574 = vunpack.c.h.b16 %v1537
    %v1575 = vunpack.c.l.b16 %v1538
    %v1576 = vunpack.c.h.b16 %v1538
    %v1577 = vunpack.c.l.b16 %v1539
    %v1578 = vunpack.c.h.b16 %v1539
    %v1579 = vunpack.c.l.b16 %v1540
    %v1580 = vunpack.c.h.b16 %v1540
    %v1581 = vpack.c.b16 %v1573, %v1565
    %v1582 = vpack.c.b16 %v1574, %v1566
    %v1583 = vpack.c.b16 %v1575, %v1567
    %v1584 = vpack.c.b16 %v1576, %v1568
    %v1585 = vpack.c.b16 %v1577, %v1569
    %v1586 = vpack.c.b16 %v1578, %v1570
    %v1587 = vpack.c.b16 %v1579, %v1571
    %v1588 = vpack.c.b16 %v1580, %v1572
    %1597 = vmatprep.subr.bf16.mxu0 %v1582
    %1598 = vmatpush1.bf16.xpose.msra.mxu0 %v1581
    %1599 = vmatprep.subr.bf16.mxu0 0
    %1600 = vmatpush1.bf16.xpose.msra.mxu0 0
    %1601 = vmatprep.subr.bf16.mxu0 0
    %1602 = vmatpush1.bf16.xpose.msra.mxu0 0
    %1603 = vmatprep.subr.bf16.mxu0 0
    %1604 = vmatpush1.bf16.xpose.msra.mxu0 0
    %1605 = vmatprep.subr.bf16.mxu0 0
    %1606 = vmatpush1.bf16.xpose.msra.mxu0 0
    %1607 = vmatprep.subr.bf16.mxu0 0
    %1608 = vmatpush1.bf16.xpose.msra.mxu0 0
    %1609 = vmatprep.subr.bf16.mxu0 0
    %1610 = vmatpush1.bf16.xpose.msra.mxu0 0
    %1611 = vmatprep.subr.bf16.mxu0 0
    %1612 = vmatpush1.bf16.xpose.msra.mxu0 0
    %1613 = vmatprep.subr.bf16.mxu0 0
    %1614 = vmatpush1.bf16.xpose.msra.mxu0 0
    %1615 = vmatprep.subr.bf16.mxu0 0
    %1616 = vmatpush1.bf16.xpose.msra.mxu0 0
    %1617 = vmatprep.subr.bf16.mxu0 0
    %1618 = vmatpush1.bf16.xpose.msra.mxu0 0
    %1619 = vmatprep.subr.bf16.mxu0 0
    %1620 = vmatpush1.bf16.xpose.msra.mxu0 0
    %1621 = vmatprep.subr.bf16.mxu0 0
    %1622 = vmatpush1.bf16.xpose.msra.mxu0 0
    %1623 = vmatprep.subr.bf16.mxu0 0
    %1624 = vmatpush1.bf16.xpose.msra.mxu0 0
    %1625 = vmatprep.subr.bf16.mxu0 0
    %1626 = vmatpush1.bf16.xpose.msra.mxu0 0
    %1627 = vmatprep.subr.bf16.mxu0 0
    %1628 = vmatpush1.bf16.xpose.msra.mxu0 0
    %1629 = vmatprep.mubr.bf16.mxu0 %v1542
    %1630 = vmatmul.mubr.bf16.gmra.mrb[0].mxu0 %v1541
    %v1631 = vpop.f32.mrb[0].mxu0
    %v1632 = vadd.f32 0.0, %v1631
    %v1633 = vpop.f32.mrb[0].mxu0
    %v1634 = vpop.f32.mrb[0].mxu0
    %v1635 = vpop.f32.mrb[0].mxu0
    %1636 = vdwg.mxu0
    %1637 = vmatprep.subr.bf16.mxu0 %v1584
    %1638 = vmatpush1.bf16.xpose.msra.mxu0 %v1583
    %1639 = vmatprep.subr.bf16.mxu0 0
    %1640 = vmatpush1.bf16.xpose.msra.mxu0 0
    %1641 = vmatprep.subr.bf16.mxu0 0
    %1642 = vmatpush1.bf16.xpose.msra.mxu0 0
    %1643 = vmatprep.subr.bf16.mxu0 0
    %1644 = vmatpush1.bf16.xpose.msra.mxu0 0
    %1645 = vmatprep.subr.bf16.mxu0 0
    %1646 = vmatpush1.bf16.xpose.msra.mxu0 0
    %1647 = vmatprep.subr.bf16.mxu0 0
    %1648 = vmatpush1.bf16.xpose.msra.mxu0 0
    %1649 = vmatprep.subr.bf16.mxu0 0
    %1650 = vmatpush1.bf16.xpose.msra.mxu0 0
    %1651 = vmatprep.subr.bf16.mxu0 0
    %1652 = vmatpush1.bf16.xpose.msra.mxu0 0
    %1653 = vmatprep.subr.bf16.mxu0 0
    %1654 = vmatpush1.bf16.xpose.msra.mxu0 0
    %1655 = vmatprep.subr.bf16.mxu0 0
    %1656 = vmatpush1.bf16.xpose.msra.mxu0 0
    %1657 = vmatprep.subr.bf16.mxu0 0
    %1658 = vmatpush1.bf16.xpose.msra.mxu0 0
    %1659 = vmatprep.subr.bf16.mxu0 0
    %1660 = vmatpush1.bf16.xpose.msra.mxu0 0
    %1661 = vmatprep.subr.bf16.mxu0 0
    %1662 = vmatpush1.bf16.xpose.msra.mxu0 0
    %1663 = vmatprep.subr.bf16.mxu0 0
    %1664 = vmatpush1.bf16.xpose.msra.mxu0 0
    %1665 = vmatprep.subr.bf16.mxu0 0
    %1666 = vmatpush1.bf16.xpose.msra.mxu0 0
    %1667 = vmatprep.subr.bf16.mxu0 0
    %1668 = vmatpush1.bf16.xpose.msra.mxu0 0
    %1669 = vmatprep.mubr.bf16.mxu0 %v1544
    %1670 = vmatmul.mubr.bf16.gmra.mrb[0].mxu0 %v1543
    %v1671 = vpop.f32.mrb[0].mxu0
    %v1672 = vadd.f32 %v1632, %v1671
    %v1673 = vpop.f32.mrb[0].mxu0
    %v1674 = vpop.f32.mrb[0].mxu0
    %v1675 = vpop.f32.mrb[0].mxu0
    %1676 = vdwg.mxu0
    %1677 = vmatprep.subr.bf16.mxu0 %v1586
    %1678 = vmatpush1.bf16.xpose.msra.mxu0 %v1585
    %1679 = vmatprep.subr.bf16.mxu0 0
    %1680 = vmatpush1.bf16.xpose.msra.mxu0 0
    %1681 = vmatprep.subr.bf16.mxu0 0
    %1682 = vmatpush1.bf16.xpose.msra.mxu0 0
    %1683 = vmatprep.subr.bf16.mxu0 0
    %1684 = vmatpush1.bf16.xpose.msra.mxu0 0
    %1685 = vmatprep.subr.bf16.mxu0 0
    %1686 = vmatpush1.bf16.xpose.msra.mxu0 0
    %1687 = vmatprep.subr.bf16.mxu0 0
    %1688 = vmatpush1.bf16.xpose.msra.mxu0 0
    %1689 = vmatprep.subr.bf16.mxu0 0
    %1690 = vmatpush1.bf16.xpose.msra.mxu0 0
    %1691 = vmatprep.subr.bf16.mxu0 0
    %1692 = vmatpush1.bf16.xpose.msra.mxu0 0
    %1693 = vmatprep.subr.bf16.mxu0 0
    %1694 = vmatpush1.bf16.xpose.msra.mxu0 0
    %1695 = vmatprep.subr.bf16.mxu0 0
    %1696 = vmatpush1.bf16.xpose.msra.mxu0 0
    %1697 = vmatprep.subr.bf16.mxu0 0
    %1698 = vmatpush1.bf16.xpose.msra.mxu0 0
    %1699 = vmatprep.subr.bf16.mxu0 0
    %1700 = vmatpush1.bf16.xpose.msra.mxu0 0
    %1701 = vmatprep.subr.bf16.mxu0 0
    %1702 = vmatpush1.bf16.xpose.msra.mxu0 0
    %1703 = vmatprep.subr.bf16.mxu0 0
    %1704 = vmatpush1.bf16.xpose.msra.mxu0 0
    %1705 = vmatprep.subr.bf16.mxu0 0
    %1706 = vmatpush1.bf16.xpose.msra.mxu0 0
    %1707 = vmatprep.subr.bf16.mxu0 0
    %1708 = vmatpush1.bf16.xpose.msra.mxu0 0
    %1709 = vmatprep.mubr.bf16.mxu0 %v1546
    %1710 = vmatmul.mubr.bf16.gmra.mrb[0].mxu0 %v1545
    %v1711 = vpop.f32.mrb[0].mxu0
    %v1712 = vadd.f32 %v1672, %v1711
    %v1713 = vpop.f32.mrb[0].mxu0
    %v1714 = vpop.f32.mrb[0].mxu0
    %v1715 = vpop.f32.mrb[0].mxu0
    %1716 = vdwg.mxu0
    %1717 = vmatprep.subr.bf16.mxu0 %v1588
    %1718 = vmatpush1.bf16.xpose.msra.mxu0 %v1587
    %1719 = vmatprep.subr.bf16.mxu0 0
    %1720 = vmatpush1.bf16.xpose.msra.mxu0 0
    %1721 = vmatprep.subr.bf16.mxu0 0
    %1722 = vmatpush1.bf16.xpose.msra.mxu0 0
    %1723 = vmatprep.subr.bf16.mxu0 0
    %1724 = vmatpush1.bf16.xpose.msra.mxu0 0
    %1725 = vmatprep.subr.bf16.mxu0 0
    %1726 = vmatpush1.bf16.xpose.msra.mxu0 0
    %1727 = vmatprep.subr.bf16.mxu0 0
    %1728 = vmatpush1.bf16.xpose.msra.mxu0 0
    %1729 = vmatprep.subr.bf16.mxu0 0
    %1730 = vmatpush1.bf16.xpose.msra.mxu0 0
    %1731 = vmatprep.subr.bf16.mxu0 0
    %1732 = vmatpush1.bf16.xpose.msra.mxu0 0
    %1733 = vmatprep.subr.bf16.mxu0 0
    %1734 = vmatpush1.bf16.xpose.msra.mxu0 0
    %1735 = vmatprep.subr.bf16.mxu0 0
    %1736 = vmatpush1.bf16.xpose.msra.mxu0 0
    %1737 = vmatprep.subr.bf16.mxu0 0
    %1738 = vmatpush1.bf16.xpose.msra.mxu0 0
    %1739 = vmatprep.subr.bf16.mxu0 0
    %1740 = vmatpush1.bf16.xpose.msra.mxu0 0
    %1741 = vmatprep.subr.bf16.mxu0 0
    %1742 = vmatpush1.bf16.xpose.msra.mxu0 0
    %1743 = vmatprep.subr.bf16.mxu0 0
    %1744 = vmatpush1.bf16.xpose.msra.mxu0 0
    %1745 = vmatprep.subr.bf16.mxu0 0
    %1746 = vmatpush1.bf16.xpose.msra.mxu0 0
    %1747 = vmatprep.subr.bf16.mxu0 0
    %1748 = vmatpush1.bf16.xpose.msra.mxu0 0
    %1749 = vmatprep.mubr.bf16.mxu0 %v1548
    %1750 = vmatmul.mubr.bf16.gmra.mrb[0].mxu0 %v1547
    %v1751 = vpop.f32.mrb[0].mxu0
    %v1752 = vadd.f32 %v1712, %v1751
    %v1753 = vpop.f32.mrb[0].mxu0
    %v1754 = vpop.f32.mrb[0].mxu0
    %v1755 = vpop.f32.mrb[0].mxu0
    %1756 = vdwg.mxu0
    %s1757 = scalar_lea.vmem %s3, 768
    %v1758 = vld [vmem:[%s1757] sm:$0xff]
    %v1759 = vld [vmem:[%s1757 + $0x8] sm:$0xff]
    %v1760 = vld [vmem:[%s1757 + $0x10] sm:$0xff]
    %v1761 = vld [vmem:[%s1757 + $0x18] sm:$0xff]
    %v1762 = vld [vmem:[%s1757 + $0x20] sm:$0x11]
    %v1763 = vld [vmem:[%s1757 + $0x28] sm:$0x11]
    %v1764 = vld [vmem:[%s1757 + $0x30] sm:$0x11]
    %v1765 = vld [vmem:[%s1757 + $0x38] sm:$0x11]
    %s1766 = scalar_lea.vmem %s3, 832
    %v1767 = vld [vmem:[%s1766] sm:$0xff]
    %v1768 = vld [vmem:[%s1766 + $0x8] sm:$0xff]
    %v1769 = vld [vmem:[%s1766 + $0x10] sm:$0xff]
    %v1770 = vld [vmem:[%s1766 + $0x18] sm:$0xff]
    %v1771 = vld [vmem:[%s1766 + $0x20] sm:$0x11]
    %v1772 = vld [vmem:[%s1766 + $0x28] sm:$0x11]
    %v1773 = vld [vmem:[%s1766 + $0x30] sm:$0x11]
    %v1774 = vld [vmem:[%s1766 + $0x38] sm:$0x11]
    %v1775 = vrot.slane %v356, 6
    %v1776 = vrot.slane %v359, 6
    %v1777 = vrot.slane %v362, 6
    %v1778 = vrot.slane %v365, 6
    %v1779 = vrot.slane %v368, 6
    %v1780 = vrot.slane %v371, 6
    %v1781 = vrot.slane %v374, 6
    %v1782 = vrot.slane %v377, 6
    %v1799 = vunpack.c.l.b16 %v1767
    %v1800 = vunpack.c.h.b16 %v1767
    %v1801 = vunpack.c.l.b16 %v1768
    %v1802 = vunpack.c.h.b16 %v1768
    %v1803 = vunpack.c.l.b16 %v1769
    %v1804 = vunpack.c.h.b16 %v1769
    %v1805 = vunpack.c.l.b16 %v1770
    %v1806 = vunpack.c.h.b16 %v1770
    %v1807 = vunpack.c.l.b16 %v1771
    %v1808 = vunpack.c.h.b16 %v1771
    %v1809 = vunpack.c.l.b16 %v1772
    %v1810 = vunpack.c.h.b16 %v1772
    %v1811 = vunpack.c.l.b16 %v1773
    %v1812 = vunpack.c.h.b16 %v1773
    %v1813 = vunpack.c.l.b16 %v1774
    %v1814 = vunpack.c.h.b16 %v1774
    %v1815 = vpack.c.b16 %v1807, %v1799
    %v1816 = vpack.c.b16 %v1808, %v1800
    %v1817 = vpack.c.b16 %v1809, %v1801
    %v1818 = vpack.c.b16 %v1810, %v1802
    %v1819 = vpack.c.b16 %v1811, %v1803
    %v1820 = vpack.c.b16 %v1812, %v1804
    %v1821 = vpack.c.b16 %v1813, %v1805
    %v1822 = vpack.c.b16 %v1814, %v1806
    %1831 = vmatprep.subr.bf16.mxu0 %v1816
    %1832 = vmatpush1.bf16.xpose.msra.mxu0 %v1815
    %1833 = vmatprep.subr.bf16.mxu0 0
    %1834 = vmatpush1.bf16.xpose.msra.mxu0 0
    %1835 = vmatprep.subr.bf16.mxu0 0
    %1836 = vmatpush1.bf16.xpose.msra.mxu0 0
    %1837 = vmatprep.subr.bf16.mxu0 0
    %1838 = vmatpush1.bf16.xpose.msra.mxu0 0
    %1839 = vmatprep.subr.bf16.mxu0 0
    %1840 = vmatpush1.bf16.xpose.msra.mxu0 0
    %1841 = vmatprep.subr.bf16.mxu0 0
    %1842 = vmatpush1.bf16.xpose.msra.mxu0 0
    %1843 = vmatprep.subr.bf16.mxu0 0
    %1844 = vmatpush1.bf16.xpose.msra.mxu0 0
    %1845 = vmatprep.subr.bf16.mxu0 0
    %1846 = vmatpush1.bf16.xpose.msra.mxu0 0
    %1847 = vmatprep.subr.bf16.mxu0 0
    %1848 = vmatpush1.bf16.xpose.msra.mxu0 0
    %1849 = vmatprep.subr.bf16.mxu0 0
    %1850 = vmatpush1.bf16.xpose.msra.mxu0 0
    %1851 = vmatprep.subr.bf16.mxu0 0
    %1852 = vmatpush1.bf16.xpose.msra.mxu0 0
    %1853 = vmatprep.subr.bf16.mxu0 0
    %1854 = vmatpush1.bf16.xpose.msra.mxu0 0
    %1855 = vmatprep.subr.bf16.mxu0 0
    %1856 = vmatpush1.bf16.xpose.msra.mxu0 0
    %1857 = vmatprep.subr.bf16.mxu0 0
    %1858 = vmatpush1.bf16.xpose.msra.mxu0 0
    %1859 = vmatprep.subr.bf16.mxu0 0
    %1860 = vmatpush1.bf16.xpose.msra.mxu0 0
    %1861 = vmatprep.subr.bf16.mxu0 0
    %1862 = vmatpush1.bf16.xpose.msra.mxu0 0
    %1863 = vmatprep.mubr.bf16.mxu0 %v1776
    %1864 = vmatmul.mubr.bf16.gmra.mrb[0].mxu0 %v1775
    %v1865 = vpop.f32.mrb[0].mxu0
    %v1866 = vadd.f32 0.0, %v1865
    %v1867 = vpop.f32.mrb[0].mxu0
    %v1868 = vpop.f32.mrb[0].mxu0
    %v1869 = vpop.f32.mrb[0].mxu0
    %1870 = vdwg.mxu0
    %1871 = vmatprep.subr.bf16.mxu0 %v1818
    %1872 = vmatpush1.bf16.xpose.msra.mxu0 %v1817
    %1873 = vmatprep.subr.bf16.mxu0 0
    %1874 = vmatpush1.bf16.xpose.msra.mxu0 0
    %1875 = vmatprep.subr.bf16.mxu0 0
    %1876 = vmatpush1.bf16.xpose.msra.mxu0 0
    %1877 = vmatprep.subr.bf16.mxu0 0
    %1878 = vmatpush1.bf16.xpose.msra.mxu0 0
    %1879 = vmatprep.subr.bf16.mxu0 0
    %1880 = vmatpush1.bf16.xpose.msra.mxu0 0
    %1881 = vmatprep.subr.bf16.mxu0 0
    %1882 = vmatpush1.bf16.xpose.msra.mxu0 0
    %1883 = vmatprep.subr.bf16.mxu0 0
    %1884 = vmatpush1.bf16.xpose.msra.mxu0 0
    %1885 = vmatprep.subr.bf16.mxu0 0
    %1886 = vmatpush1.bf16.xpose.msra.mxu0 0
    %1887 = vmatprep.subr.bf16.mxu0 0
    %1888 = vmatpush1.bf16.xpose.msra.mxu0 0
    %1889 = vmatprep.subr.bf16.mxu0 0
    %1890 = vmatpush1.bf16.xpose.msra.mxu0 0
    %1891 = vmatprep.subr.bf16.mxu0 0
    %1892 = vmatpush1.bf16.xpose.msra.mxu0 0
    %1893 = vmatprep.subr.bf16.mxu0 0
    %1894 = vmatpush1.bf16.xpose.msra.mxu0 0
    %1895 = vmatprep.subr.bf16.mxu0 0
    %1896 = vmatpush1.bf16.xpose.msra.mxu0 0
    %1897 = vmatprep.subr.bf16.mxu0 0
    %1898 = vmatpush1.bf16.xpose.msra.mxu0 0
    %1899 = vmatprep.subr.bf16.mxu0 0
    %1900 = vmatpush1.bf16.xpose.msra.mxu0 0
    %1901 = vmatprep.subr.bf16.mxu0 0
    %1902 = vmatpush1.bf16.xpose.msra.mxu0 0
    %1903 = vmatprep.mubr.bf16.mxu0 %v1778
    %1904 = vmatmul.mubr.bf16.gmra.mrb[0].mxu0 %v1777
    %v1905 = vpop.f32.mrb[0].mxu0
    %v1906 = vadd.f32 %v1866, %v1905
    %v1907 = vpop.f32.mrb[0].mxu0
    %v1908 = vpop.f32.mrb[0].mxu0
    %v1909 = vpop.f32.mrb[0].mxu0
    %1910 = vdwg.mxu0
    %1911 = vmatprep.subr.bf16.mxu0 %v1820
    %1912 = vmatpush1.bf16.xpose.msra.mxu0 %v1819
    %1913 = vmatprep.subr.bf16.mxu0 0
    %1914 = vmatpush1.bf16.xpose.msra.mxu0 0
    %1915 = vmatprep.subr.bf16.mxu0 0
    %1916 = vmatpush1.bf16.xpose.msra.mxu0 0
    %1917 = vmatprep.subr.bf16.mxu0 0
    %1918 = vmatpush1.bf16.xpose.msra.mxu0 0
    %1919 = vmatprep.subr.bf16.mxu0 0
    %1920 = vmatpush1.bf16.xpose.msra.mxu0 0
    %1921 = vmatprep.subr.bf16.mxu0 0
    %1922 = vmatpush1.bf16.xpose.msra.mxu0 0
    %1923 = vmatprep.subr.bf16.mxu0 0
    %1924 = vmatpush1.bf16.xpose.msra.mxu0 0
    %1925 = vmatprep.subr.bf16.mxu0 0
    %1926 = vmatpush1.bf16.xpose.msra.mxu0 0
    %1927 = vmatprep.subr.bf16.mxu0 0
    %1928 = vmatpush1.bf16.xpose.msra.mxu0 0
    %1929 = vmatprep.subr.bf16.mxu0 0
    %1930 = vmatpush1.bf16.xpose.msra.mxu0 0
    %1931 = vmatprep.subr.bf16.mxu0 0
    %1932 = vmatpush1.bf16.xpose.msra.mxu0 0
    %1933 = vmatprep.subr.bf16.mxu0 0
    %1934 = vmatpush1.bf16.xpose.msra.mxu0 0
    %1935 = vmatprep.subr.bf16.mxu0 0
    %1936 = vmatpush1.bf16.xpose.msra.mxu0 0
    %1937 = vmatprep.subr.bf16.mxu0 0
    %1938 = vmatpush1.bf16.xpose.msra.mxu0 0
    %1939 = vmatprep.subr.bf16.mxu0 0
    %1940 = vmatpush1.bf16.xpose.msra.mxu0 0
    %1941 = vmatprep.subr.bf16.mxu0 0
    %1942 = vmatpush1.bf16.xpose.msra.mxu0 0
    %1943 = vmatprep.mubr.bf16.mxu0 %v1780
    %1944 = vmatmul.mubr.bf16.gmra.mrb[0].mxu0 %v1779
    %v1945 = vpop.f32.mrb[0].mxu0
    %v1946 = vadd.f32 %v1906, %v1945
    %v1947 = vpop.f32.mrb[0].mxu0
    %v1948 = vpop.f32.mrb[0].mxu0
    %v1949 = vpop.f32.mrb[0].mxu0
    %1950 = vdwg.mxu0
    %1951 = vmatprep.subr.bf16.mxu0 %v1822
    %1952 = vmatpush1.bf16.xpose.msra.mxu0 %v1821
    %1953 = vmatprep.subr.bf16.mxu0 0
    %1954 = vmatpush1.bf16.xpose.msra.mxu0 0
    %1955 = vmatprep.subr.bf16.mxu0 0
    %1956 = vmatpush1.bf16.xpose.msra.mxu0 0
    %1957 = vmatprep.subr.bf16.mxu0 0
    %1958 = vmatpush1.bf16.xpose.msra.mxu0 0
    %1959 = vmatprep.subr.bf16.mxu0 0
    %1960 = vmatpush1.bf16.xpose.msra.mxu0 0
    %1961 = vmatprep.subr.bf16.mxu0 0
    %1962 = vmatpush1.bf16.xpose.msra.mxu0 0
    %1963 = vmatprep.subr.bf16.mxu0 0
    %1964 = vmatpush1.bf16.xpose.msra.mxu0 0
    %1965 = vmatprep.subr.bf16.mxu0 0
    %1966 = vmatpush1.bf16.xpose.msra.mxu0 0
    %1967 = vmatprep.subr.bf16.mxu0 0
    %1968 = vmatpush1.bf16.xpose.msra.mxu0 0
    %1969 = vmatprep.subr.bf16.mxu0 0
    %1970 = vmatpush1.bf16.xpose.msra.mxu0 0
    %1971 = vmatprep.subr.bf16.mxu0 0
    %1972 = vmatpush1.bf16.xpose.msra.mxu0 0
    %1973 = vmatprep.subr.bf16.mxu0 0
    %1974 = vmatpush1.bf16.xpose.msra.mxu0 0
    %1975 = vmatprep.subr.bf16.mxu0 0
    %1976 = vmatpush1.bf16.xpose.msra.mxu0 0
    %1977 = vmatprep.subr.bf16.mxu0 0
    %1978 = vmatpush1.bf16.xpose.msra.mxu0 0
    %1979 = vmatprep.subr.bf16.mxu0 0
    %1980 = vmatpush1.bf16.xpose.msra.mxu0 0
    %1981 = vmatprep.subr.bf16.mxu0 0
    %1982 = vmatpush1.bf16.xpose.msra.mxu0 0
    %1983 = vmatprep.mubr.bf16.mxu0 %v1782
    %1984 = vmatmul.mubr.bf16.gmra.mrb[0].mxu0 %v1781
    %v1985 = vpop.f32.mrb[0].mxu0
    %v1986 = vadd.f32 %v1946, %v1985
    %v1987 = vpop.f32.mrb[0].mxu0
    %v1988 = vpop.f32.mrb[0].mxu0
    %v1989 = vpop.f32.mrb[0].mxu0
    %1990 = vdwg.mxu0
    %s1991 = scalar_lea.vmem %s3, 896
    %v1992 = vld [vmem:[%s1991] sm:$0xff]
    %v1993 = vld [vmem:[%s1991 + $0x8] sm:$0xff]
    %v1994 = vld [vmem:[%s1991 + $0x10] sm:$0xff]
    %v1995 = vld [vmem:[%s1991 + $0x18] sm:$0xff]
    %v1996 = vld [vmem:[%s1991 + $0x20] sm:$0x11]
    %v1997 = vld [vmem:[%s1991 + $0x28] sm:$0x11]
    %v1998 = vld [vmem:[%s1991 + $0x30] sm:$0x11]
    %v1999 = vld [vmem:[%s1991 + $0x38] sm:$0x11]
    %s2000 = scalar_lea.vmem %s3, 960
    %v2001 = vld [vmem:[%s2000] sm:$0xff]
    %v2002 = vld [vmem:[%s2000 + $0x8] sm:$0xff]
    %v2003 = vld [vmem:[%s2000 + $0x10] sm:$0xff]
    %v2004 = vld [vmem:[%s2000 + $0x18] sm:$0xff]
    %v2005 = vld [vmem:[%s2000 + $0x20] sm:$0x11]
    %v2006 = vld [vmem:[%s2000 + $0x28] sm:$0x11]
    %v2007 = vld [vmem:[%s2000 + $0x30] sm:$0x11]
    %v2008 = vld [vmem:[%s2000 + $0x38] sm:$0x11]
    %v2009 = vrot.slane %v356, 7
    %v2010 = vrot.slane %v359, 7
    %v2011 = vrot.slane %v362, 7
    %v2012 = vrot.slane %v365, 7
    %v2013 = vrot.slane %v368, 7
    %v2014 = vrot.slane %v371, 7
    %v2015 = vrot.slane %v374, 7
    %v2016 = vrot.slane %v377, 7
    %v2033 = vunpack.c.l.b16 %v2001
    %v2034 = vunpack.c.h.b16 %v2001
    %v2035 = vunpack.c.l.b16 %v2002
    %v2036 = vunpack.c.h.b16 %v2002
    %v2037 = vunpack.c.l.b16 %v2003
    %v2038 = vunpack.c.h.b16 %v2003
    %v2039 = vunpack.c.l.b16 %v2004
    %v2040 = vunpack.c.h.b16 %v2004
    %v2041 = vunpack.c.l.b16 %v2005
    %v2042 = vunpack.c.h.b16 %v2005
    %v2043 = vunpack.c.l.b16 %v2006
    %v2044 = vunpack.c.h.b16 %v2006
    %v2045 = vunpack.c.l.b16 %v2007
    %v2046 = vunpack.c.h.b16 %v2007
    %v2047 = vunpack.c.l.b16 %v2008
    %v2048 = vunpack.c.h.b16 %v2008
    %v2049 = vpack.c.b16 %v2041, %v2033
    %v2050 = vpack.c.b16 %v2042, %v2034
    %v2051 = vpack.c.b16 %v2043, %v2035
    %v2052 = vpack.c.b16 %v2044, %v2036
    %v2053 = vpack.c.b16 %v2045, %v2037
    %v2054 = vpack.c.b16 %v2046, %v2038
    %v2055 = vpack.c.b16 %v2047, %v2039
    %v2056 = vpack.c.b16 %v2048, %v2040
    %2065 = vmatprep.subr.bf16.mxu0 %v2050
    %2066 = vmatpush1.bf16.xpose.msra.mxu0 %v2049
    %2067 = vmatprep.subr.bf16.mxu0 0
    %2068 = vmatpush1.bf16.xpose.msra.mxu0 0
    %2069 = vmatprep.subr.bf16.mxu0 0
    %2070 = vmatpush1.bf16.xpose.msra.mxu0 0
    %2071 = vmatprep.subr.bf16.mxu0 0
    %2072 = vmatpush1.bf16.xpose.msra.mxu0 0
    %2073 = vmatprep.subr.bf16.mxu0 0
    %2074 = vmatpush1.bf16.xpose.msra.mxu0 0
    %2075 = vmatprep.subr.bf16.mxu0 0
    %2076 = vmatpush1.bf16.xpose.msra.mxu0 0
    %2077 = vmatprep.subr.bf16.mxu0 0
    %2078 = vmatpush1.bf16.xpose.msra.mxu0 0
    %2079 = vmatprep.subr.bf16.mxu0 0
    %2080 = vmatpush1.bf16.xpose.msra.mxu0 0
    %2081 = vmatprep.subr.bf16.mxu0 0
    %2082 = vmatpush1.bf16.xpose.msra.mxu0 0
    %2083 = vmatprep.subr.bf16.mxu0 0
    %2084 = vmatpush1.bf16.xpose.msra.mxu0 0
    %2085 = vmatprep.subr.bf16.mxu0 0
    %2086 = vmatpush1.bf16.xpose.msra.mxu0 0
    %2087 = vmatprep.subr.bf16.mxu0 0
    %2088 = vmatpush1.bf16.xpose.msra.mxu0 0
    %2089 = vmatprep.subr.bf16.mxu0 0
    %2090 = vmatpush1.bf16.xpose.msra.mxu0 0
    %2091 = vmatprep.subr.bf16.mxu0 0
    %2092 = vmatpush1.bf16.xpose.msra.mxu0 0
    %2093 = vmatprep.subr.bf16.mxu0 0
    %2094 = vmatpush1.bf16.xpose.msra.mxu0 0
    %2095 = vmatprep.subr.bf16.mxu0 0
    %2096 = vmatpush1.bf16.xpose.msra.mxu0 0
    %2097 = vmatprep.mubr.bf16.mxu0 %v2010
    %2098 = vmatmul.mubr.bf16.gmra.mrb[0].mxu0 %v2009
    %v2099 = vpop.f32.mrb[0].mxu0
    %v2100 = vadd.f32 0.0, %v2099
    %v2101 = vpop.f32.mrb[0].mxu0
    %v2102 = vpop.f32.mrb[0].mxu0
    %v2103 = vpop.f32.mrb[0].mxu0
    %2104 = vdwg.mxu0
    %2105 = vmatprep.subr.bf16.mxu0 %v2052
    %2106 = vmatpush1.bf16.xpose.msra.mxu0 %v2051
    %2107 = vmatprep.subr.bf16.mxu0 0
    %2108 = vmatpush1.bf16.xpose.msra.mxu0 0
    %2109 = vmatprep.subr.bf16.mxu0 0
    %2110 = vmatpush1.bf16.xpose.msra.mxu0 0
    %2111 = vmatprep.subr.bf16.mxu0 0
    %2112 = vmatpush1.bf16.xpose.msra.mxu0 0
    %2113 = vmatprep.subr.bf16.mxu0 0
    %2114 = vmatpush1.bf16.xpose.msra.mxu0 0
    %2115 = vmatprep.subr.bf16.mxu0 0
    %2116 = vmatpush1.bf16.xpose.msra.mxu0 0
    %2117 = vmatprep.subr.bf16.mxu0 0
    %2118 = vmatpush1.bf16.xpose.msra.mxu0 0
    %2119 = vmatprep.subr.bf16.mxu0 0
    %2120 = vmatpush1.bf16.xpose.msra.mxu0 0
    %2121 = vmatprep.subr.bf16.mxu0 0
    %2122 = vmatpush1.bf16.xpose.msra.mxu0 0
    %2123 = vmatprep.subr.bf16.mxu0 0
    %2124 = vmatpush1.bf16.xpose.msra.mxu0 0
    %2125 = vmatprep.subr.bf16.mxu0 0
    %2126 = vmatpush1.bf16.xpose.msra.mxu0 0
    %2127 = vmatprep.subr.bf16.mxu0 0
    %2128 = vmatpush1.bf16.xpose.msra.mxu0 0
    %2129 = vmatprep.subr.bf16.mxu0 0
    %2130 = vmatpush1.bf16.xpose.msra.mxu0 0
    %2131 = vmatprep.subr.bf16.mxu0 0
    %2132 = vmatpush1.bf16.xpose.msra.mxu0 0
    %2133 = vmatprep.subr.bf16.mxu0 0
    %2134 = vmatpush1.bf16.xpose.msra.mxu0 0
    %2135 = vmatprep.subr.bf16.mxu0 0
    %2136 = vmatpush1.bf16.xpose.msra.mxu0 0
    %2137 = vmatprep.mubr.bf16.mxu0 %v2012
    %2138 = vmatmul.mubr.bf16.gmra.mrb[0].mxu0 %v2011
    %v2139 = vpop.f32.mrb[0].mxu0
    %v2140 = vadd.f32 %v2100, %v2139
    %v2141 = vpop.f32.mrb[0].mxu0
    %v2142 = vpop.f32.mrb[0].mxu0
    %v2143 = vpop.f32.mrb[0].mxu0
    %2144 = vdwg.mxu0
    %2145 = vmatprep.subr.bf16.mxu0 %v2054
    %2146 = vmatpush1.bf16.xpose.msra.mxu0 %v2053
    %2147 = vmatprep.subr.bf16.mxu0 0
    %2148 = vmatpush1.bf16.xpose.msra.mxu0 0
    %2149 = vmatprep.subr.bf16.mxu0 0
    %2150 = vmatpush1.bf16.xpose.msra.mxu0 0
    %2151 = vmatprep.subr.bf16.mxu0 0
    %2152 = vmatpush1.bf16.xpose.msra.mxu0 0
    %2153 = vmatprep.subr.bf16.mxu0 0
    %2154 = vmatpush1.bf16.xpose.msra.mxu0 0
    %2155 = vmatprep.subr.bf16.mxu0 0
    %2156 = vmatpush1.bf16.xpose.msra.mxu0 0
    %2157 = vmatprep.subr.bf16.mxu0 0
    %2158 = vmatpush1.bf16.xpose.msra.mxu0 0
    %2159 = vmatprep.subr.bf16.mxu0 0
    %2160 = vmatpush1.bf16.xpose.msra.mxu0 0
    %2161 = vmatprep.subr.bf16.mxu0 0
    %2162 = vmatpush1.bf16.xpose.msra.mxu0 0
    %2163 = vmatprep.subr.bf16.mxu0 0
    %2164 = vmatpush1.bf16.xpose.msra.mxu0 0
    %2165 = vmatprep.subr.bf16.mxu0 0
    %2166 = vmatpush1.bf16.xpose.msra.mxu0 0
    %2167 = vmatprep.subr.bf16.mxu0 0
    %2168 = vmatpush1.bf16.xpose.msra.mxu0 0
    %2169 = vmatprep.subr.bf16.mxu0 0
    %2170 = vmatpush1.bf16.xpose.msra.mxu0 0
    %2171 = vmatprep.subr.bf16.mxu0 0
    %2172 = vmatpush1.bf16.xpose.msra.mxu0 0
    %2173 = vmatprep.subr.bf16.mxu0 0
    %2174 = vmatpush1.bf16.xpose.msra.mxu0 0
    %2175 = vmatprep.subr.bf16.mxu0 0
    %2176 = vmatpush1.bf16.xpose.msra.mxu0 0
    %2177 = vmatprep.mubr.bf16.mxu0 %v2014
    %2178 = vmatmul.mubr.bf16.gmra.mrb[0].mxu0 %v2013
    %v2179 = vpop.f32.mrb[0].mxu0
    %v2180 = vadd.f32 %v2140, %v2179
    %v2181 = vpop.f32.mrb[0].mxu0
    %v2182 = vpop.f32.mrb[0].mxu0
    %v2183 = vpop.f32.mrb[0].mxu0
    %2184 = vdwg.mxu0
    %2185 = vmatprep.subr.bf16.mxu0 %v2056
    %2186 = vmatpush1.bf16.xpose.msra.mxu0 %v2055
    %2187 = vmatprep.subr.bf16.mxu0 0
    %2188 = vmatpush1.bf16.xpose.msra.mxu0 0
    %2189 = vmatprep.subr.bf16.mxu0 0
    %2190 = vmatpush1.bf16.xpose.msra.mxu0 0
    %2191 = vmatprep.subr.bf16.mxu0 0
    %2192 = vmatpush1.bf16.xpose.msra.mxu0 0
    %2193 = vmatprep.subr.bf16.mxu0 0
    %2194 = vmatpush1.bf16.xpose.msra.mxu0 0
    %2195 = vmatprep.subr.bf16.mxu0 0
    %2196 = vmatpush1.bf16.xpose.msra.mxu0 0
    %2197 = vmatprep.subr.bf16.mxu0 0
    %2198 = vmatpush1.bf16.xpose.msra.mxu0 0
    %2199 = vmatprep.subr.bf16.mxu0 0
    %2200 = vmatpush1.bf16.xpose.msra.mxu0 0
    %2201 = vmatprep.subr.bf16.mxu0 0
    %2202 = vmatpush1.bf16.xpose.msra.mxu0 0
    %2203 = vmatprep.subr.bf16.mxu0 0
    %2204 = vmatpush1.bf16.xpose.msra.mxu0 0
    %2205 = vmatprep.subr.bf16.mxu0 0
    %2206 = vmatpush1.bf16.xpose.msra.mxu0 0
    %2207 = vmatprep.subr.bf16.mxu0 0
    %2208 = vmatpush1.bf16.xpose.msra.mxu0 0
    %2209 = vmatprep.subr.bf16.mxu0 0
    %2210 = vmatpush1.bf16.xpose.msra.mxu0 0
    %2211 = vmatprep.subr.bf16.mxu0 0
    %2212 = vmatpush1.bf16.xpose.msra.mxu0 0
    %2213 = vmatprep.subr.bf16.mxu0 0
    %2214 = vmatpush1.bf16.xpose.msra.mxu0 0
    %2215 = vmatprep.subr.bf16.mxu0 0
    %2216 = vmatpush1.bf16.xpose.msra.mxu0 0
    %2217 = vmatprep.mubr.bf16.mxu0 %v2016
    %2218 = vmatmul.mubr.bf16.gmra.mrb[0].mxu0 %v2015
    %v2219 = vpop.f32.mrb[0].mxu0
    %v2220 = vadd.f32 %v2180, %v2219
    %v2221 = vpop.f32.mrb[0].mxu0
    %v2222 = vpop.f32.mrb[0].mxu0
    %v2223 = vpop.f32.mrb[0].mxu0
    %2224 = vdwg.mxu0
    %v2233 = vunpack.c.l.b16 %v338
    %v2234 = vunpack.c.h.b16 %v338
    %v2235 = vunpack.c.l.b16 %v339
    %v2236 = vunpack.c.h.b16 %v339
    %v2237 = vunpack.c.l.b16 %v340
    %v2238 = vunpack.c.h.b16 %v340
    %v2239 = vunpack.c.l.b16 %v341
    %v2240 = vunpack.c.h.b16 %v341
    %v2241 = vunpack.c.l.b16 %v342
    %v2242 = vunpack.c.h.b16 %v342
    %v2243 = vunpack.c.l.b16 %v343
    %v2244 = vunpack.c.h.b16 %v343
    %v2245 = vunpack.c.l.b16 %v344
    %v2246 = vunpack.c.h.b16 %v344
    %v2247 = vunpack.c.l.b16 %v345
    %v2248 = vunpack.c.h.b16 %v345
    %v2249 = vpack.c.b16 %v2241, %v2233
    %v2250 = vpack.c.b16 %v2242, %v2234
    %v2251 = vpack.c.b16 %v2243, %v2235
    %v2252 = vpack.c.b16 %v2244, %v2236
    %v2253 = vpack.c.b16 %v2245, %v2237
    %v2254 = vpack.c.b16 %v2246, %v2238
    %v2255 = vpack.c.b16 %v2247, %v2239
    %v2256 = vpack.c.b16 %v2248, %v2240
    %2265 = vmatprep.subr.bf16.mxu0 %v2250
    %2266 = vmatpush1.bf16.xpose.msra.mxu0 %v2249
    %2267 = vmatprep.subr.bf16.mxu0 0
    %2268 = vmatpush1.bf16.xpose.msra.mxu0 0
    %2269 = vmatprep.subr.bf16.mxu0 0
    %2270 = vmatpush1.bf16.xpose.msra.mxu0 0
    %2271 = vmatprep.subr.bf16.mxu0 0
    %2272 = vmatpush1.bf16.xpose.msra.mxu0 0
    %2273 = vmatprep.subr.bf16.mxu0 0
    %2274 = vmatpush1.bf16.xpose.msra.mxu0 0
    %2275 = vmatprep.subr.bf16.mxu0 0
    %2276 = vmatpush1.bf16.xpose.msra.mxu0 0
    %2277 = vmatprep.subr.bf16.mxu0 0
    %2278 = vmatpush1.bf16.xpose.msra.mxu0 0
    %2279 = vmatprep.subr.bf16.mxu0 0
    %2280 = vmatpush1.bf16.xpose.msra.mxu0 0
    %2281 = vmatprep.subr.bf16.mxu0 0
    %2282 = vmatpush1.bf16.xpose.msra.mxu0 0
    %2283 = vmatprep.subr.bf16.mxu0 0
    %2284 = vmatpush1.bf16.xpose.msra.mxu0 0
    %2285 = vmatprep.subr.bf16.mxu0 0
    %2286 = vmatpush1.bf16.xpose.msra.mxu0 0
    %2287 = vmatprep.subr.bf16.mxu0 0
    %2288 = vmatpush1.bf16.xpose.msra.mxu0 0
    %2289 = vmatprep.subr.bf16.mxu0 0
    %2290 = vmatpush1.bf16.xpose.msra.mxu0 0
    %2291 = vmatprep.subr.bf16.mxu0 0
    %2292 = vmatpush1.bf16.xpose.msra.mxu0 0
    %2293 = vmatprep.subr.bf16.mxu0 0
    %2294 = vmatpush1.bf16.xpose.msra.mxu0 0
    %2295 = vmatprep.subr.bf16.mxu0 0
    %2296 = vmatpush1.bf16.xpose.msra.mxu0 0
    %2297 = vmatprep.mubr.bf16.mxu0 %v331
    %2298 = vmatmul.mubr.bf16.gmra.mrb[0].mxu0 %v330
    %v2299 = vpop.f32.mrb[0].mxu0
    %v2300 = vadd.f32 %v582, %v2299
    %v2301 = vpop.f32.mrb[0].mxu0
    %v2302 = vpop.f32.mrb[0].mxu0
    %v2303 = vpop.f32.mrb[0].mxu0
    %2304 = vdwg.mxu0
    %2305 = vmatprep.subr.bf16.mxu0 %v2252
    %2306 = vmatpush1.bf16.xpose.msra.mxu0 %v2251
    %2307 = vmatprep.subr.bf16.mxu0 0
    %2308 = vmatpush1.bf16.xpose.msra.mxu0 0
    %2309 = vmatprep.subr.bf16.mxu0 0
    %2310 = vmatpush1.bf16.xpose.msra.mxu0 0
    %2311 = vmatprep.subr.bf16.mxu0 0
    %2312 = vmatpush1.bf16.xpose.msra.mxu0 0
    %2313 = vmatprep.subr.bf16.mxu0 0
    %2314 = vmatpush1.bf16.xpose.msra.mxu0 0
    %2315 = vmatprep.subr.bf16.mxu0 0
    %2316 = vmatpush1.bf16.xpose.msra.mxu0 0
    %2317 = vmatprep.subr.bf16.mxu0 0
    %2318 = vmatpush1.bf16.xpose.msra.mxu0 0
    %2319 = vmatprep.subr.bf16.mxu0 0
    %2320 = vmatpush1.bf16.xpose.msra.mxu0 0
    %2321 = vmatprep.subr.bf16.mxu0 0
    %2322 = vmatpush1.bf16.xpose.msra.mxu0 0
    %2323 = vmatprep.subr.bf16.mxu0 0
    %2324 = vmatpush1.bf16.xpose.msra.mxu0 0
    %2325 = vmatprep.subr.bf16.mxu0 0
    %2326 = vmatpush1.bf16.xpose.msra.mxu0 0
    %2327 = vmatprep.subr.bf16.mxu0 0
    %2328 = vmatpush1.bf16.xpose.msra.mxu0 0
    %2329 = vmatprep.subr.bf16.mxu0 0
    %2330 = vmatpush1.bf16.xpose.msra.mxu0 0
    %2331 = vmatprep.subr.bf16.mxu0 0
    %2332 = vmatpush1.bf16.xpose.msra.mxu0 0
    %2333 = vmatprep.subr.bf16.mxu0 0
    %2334 = vmatpush1.bf16.xpose.msra.mxu0 0
    %2335 = vmatprep.subr.bf16.mxu0 0
    %2336 = vmatpush1.bf16.xpose.msra.mxu0 0
    %2337 = vmatprep.mubr.bf16.mxu0 %v333
    %2338 = vmatmul.mubr.bf16.gmra.mrb[0].mxu0 %v332
    %v2339 = vpop.f32.mrb[0].mxu0
    %v2340 = vadd.f32 %v2300, %v2339
    %v2341 = vpop.f32.mrb[0].mxu0
    %v2342 = vpop.f32.mrb[0].mxu0
    %v2343 = vpop.f32.mrb[0].mxu0
    %2344 = vdwg.mxu0
    %2345 = vmatprep.subr.bf16.mxu0 %v2254
    %2346 = vmatpush1.bf16.xpose.msra.mxu0 %v2253
    %2347 = vmatprep.subr.bf16.mxu0 0
    %2348 = vmatpush1.bf16.xpose.msra.mxu0 0
    %2349 = vmatprep.subr.bf16.mxu0 0
    %2350 = vmatpush1.bf16.xpose.msra.mxu0 0
    %2351 = vmatprep.subr.bf16.mxu0 0
    %2352 = vmatpush1.bf16.xpose.msra.mxu0 0
    %2353 = vmatprep.subr.bf16.mxu0 0
    %2354 = vmatpush1.bf16.xpose.msra.mxu0 0
    %2355 = vmatprep.subr.bf16.mxu0 0
    %2356 = vmatpush1.bf16.xpose.msra.mxu0 0
    %2357 = vmatprep.subr.bf16.mxu0 0
    %2358 = vmatpush1.bf16.xpose.msra.mxu0 0
    %2359 = vmatprep.subr.bf16.mxu0 0
    %2360 = vmatpush1.bf16.xpose.msra.mxu0 0
    %2361 = vmatprep.subr.bf16.mxu0 0
    %2362 = vmatpush1.bf16.xpose.msra.mxu0 0
    %2363 = vmatprep.subr.bf16.mxu0 0
    %2364 = vmatpush1.bf16.xpose.msra.mxu0 0
    %2365 = vmatprep.subr.bf16.mxu0 0
    %2366 = vmatpush1.bf16.xpose.msra.mxu0 0
    %2367 = vmatprep.subr.bf16.mxu0 0
    %2368 = vmatpush1.bf16.xpose.msra.mxu0 0
    %2369 = vmatprep.subr.bf16.mxu0 0
    %2370 = vmatpush1.bf16.xpose.msra.mxu0 0
    %2371 = vmatprep.subr.bf16.mxu0 0
    %2372 = vmatpush1.bf16.xpose.msra.mxu0 0
    %2373 = vmatprep.subr.bf16.mxu0 0
    %2374 = vmatpush1.bf16.xpose.msra.mxu0 0
    %2375 = vmatprep.subr.bf16.mxu0 0
    %2376 = vmatpush1.bf16.xpose.msra.mxu0 0
    %2377 = vmatprep.mubr.bf16.mxu0 %v335
    %2378 = vmatmul.mubr.bf16.gmra.mrb[0].mxu0 %v334
    %v2379 = vpop.f32.mrb[0].mxu0
    %v2380 = vadd.f32 %v2340, %v2379
    %v2381 = vpop.f32.mrb[0].mxu0
    %v2382 = vpop.f32.mrb[0].mxu0
    %v2383 = vpop.f32.mrb[0].mxu0
    %2384 = vdwg.mxu0
    %2385 = vmatprep.subr.bf16.mxu0 %v2256
    %2386 = vmatpush1.bf16.xpose.msra.mxu0 %v2255
    %2387 = vmatprep.subr.bf16.mxu0 0
    %2388 = vmatpush1.bf16.xpose.msra.mxu0 0
    %2389 = vmatprep.subr.bf16.mxu0 0
    %2390 = vmatpush1.bf16.xpose.msra.mxu0 0
    %2391 = vmatprep.subr.bf16.mxu0 0
    %2392 = vmatpush1.bf16.xpose.msra.mxu0 0
    %2393 = vmatprep.subr.bf16.mxu0 0
    %2394 = vmatpush1.bf16.xpose.msra.mxu0 0
    %2395 = vmatprep.subr.bf16.mxu0 0
    %2396 = vmatpush1.bf16.xpose.msra.mxu0 0
    %2397 = vmatprep.subr.bf16.mxu0 0
    %2398 = vmatpush1.bf16.xpose.msra.mxu0 0
    %2399 = vmatprep.subr.bf16.mxu0 0
    %2400 = vmatpush1.bf16.xpose.msra.mxu0 0
    %2401 = vmatprep.subr.bf16.mxu0 0
    %2402 = vmatpush1.bf16.xpose.msra.mxu0 0
    %2403 = vmatprep.subr.bf16.mxu0 0
    %2404 = vmatpush1.bf16.xpose.msra.mxu0 0
    %2405 = vmatprep.subr.bf16.mxu0 0
    %2406 = vmatpush1.bf16.xpose.msra.mxu0 0
    %2407 = vmatprep.subr.bf16.mxu0 0
    %2408 = vmatpush1.bf16.xpose.msra.mxu0 0
    %2409 = vmatprep.subr.bf16.mxu0 0
    %2410 = vmatpush1.bf16.xpose.msra.mxu0 0
    %2411 = vmatprep.subr.bf16.mxu0 0
    %2412 = vmatpush1.bf16.xpose.msra.mxu0 0
    %2413 = vmatprep.subr.bf16.mxu0 0
    %2414 = vmatpush1.bf16.xpose.msra.mxu0 0
    %2415 = vmatprep.subr.bf16.mxu0 0
    %2416 = vmatpush1.bf16.xpose.msra.mxu0 0
    %2417 = vmatprep.mubr.bf16.mxu0 %v337
    %2418 = vmatmul.mubr.bf16.gmra.mrb[0].mxu0 %v336
    %v2419 = vpop.f32.mrb[0].mxu0
    %v2420 = vadd.f32 %v2380, %v2419
    %v2421 = vpop.f32.mrb[0].mxu0
    %v2422 = vpop.f32.mrb[0].mxu0
    %v2423 = vpop.f32.mrb[0].mxu0
    %2424 = vdwg.mxu0
    %v2433 = vrot.slane %v330, 1
    %v2434 = vrot.slane %v331, 1
    %v2435 = vrot.slane %v332, 1
    %v2436 = vrot.slane %v333, 1
    %v2437 = vrot.slane %v334, 1
    %v2438 = vrot.slane %v335, 1
    %v2439 = vrot.slane %v336, 1
    %v2440 = vrot.slane %v337, 1
    %v2457 = vunpack.c.l.b16 %v588
    %v2458 = vunpack.c.h.b16 %v588
    %v2459 = vunpack.c.l.b16 %v589
    %v2460 = vunpack.c.h.b16 %v589
    %v2461 = vunpack.c.l.b16 %v590
    %v2462 = vunpack.c.h.b16 %v590
    %v2463 = vunpack.c.l.b16 %v591
    %v2464 = vunpack.c.h.b16 %v591
    %v2465 = vunpack.c.l.b16 %v592
    %v2466 = vunpack.c.h.b16 %v592
    %v2467 = vunpack.c.l.b16 %v593
    %v2468 = vunpack.c.h.b16 %v593
    %v2469 = vunpack.c.l.b16 %v594
    %v2470 = vunpack.c.h.b16 %v594
    %v2471 = vunpack.c.l.b16 %v595
    %v2472 = vunpack.c.h.b16 %v595
    %v2473 = vpack.c.b16 %v2465, %v2457
    %v2474 = vpack.c.b16 %v2466, %v2458
    %v2475 = vpack.c.b16 %v2467, %v2459
    %v2476 = vpack.c.b16 %v2468, %v2460
    %v2477 = vpack.c.b16 %v2469, %v2461
    %v2478 = vpack.c.b16 %v2470, %v2462
    %v2479 = vpack.c.b16 %v2471, %v2463
    %v2480 = vpack.c.b16 %v2472, %v2464
    %2489 = vmatprep.subr.bf16.mxu0 %v2474
    %2490 = vmatpush1.bf16.xpose.msra.mxu0 %v2473
    %2491 = vmatprep.subr.bf16.mxu0 0
    %2492 = vmatpush1.bf16.xpose.msra.mxu0 0
    %2493 = vmatprep.subr.bf16.mxu0 0
    %2494 = vmatpush1.bf16.xpose.msra.mxu0 0
    %2495 = vmatprep.subr.bf16.mxu0 0
    %2496 = vmatpush1.bf16.xpose.msra.mxu0 0
    %2497 = vmatprep.subr.bf16.mxu0 0
    %2498 = vmatpush1.bf16.xpose.msra.mxu0 0
    %2499 = vmatprep.subr.bf16.mxu0 0
    %2500 = vmatpush1.bf16.xpose.msra.mxu0 0
    %2501 = vmatprep.subr.bf16.mxu0 0
    %2502 = vmatpush1.bf16.xpose.msra.mxu0 0
    %2503 = vmatprep.subr.bf16.mxu0 0
    %2504 = vmatpush1.bf16.xpose.msra.mxu0 0
    %2505 = vmatprep.subr.bf16.mxu0 0
    %2506 = vmatpush1.bf16.xpose.msra.mxu0 0
    %2507 = vmatprep.subr.bf16.mxu0 0
    %2508 = vmatpush1.bf16.xpose.msra.mxu0 0
    %2509 = vmatprep.subr.bf16.mxu0 0
    %2510 = vmatpush1.bf16.xpose.msra.mxu0 0
    %2511 = vmatprep.subr.bf16.mxu0 0
    %2512 = vmatpush1.bf16.xpose.msra.mxu0 0
    %2513 = vmatprep.subr.bf16.mxu0 0
    %2514 = vmatpush1.bf16.xpose.msra.mxu0 0
    %2515 = vmatprep.subr.bf16.mxu0 0
    %2516 = vmatpush1.bf16.xpose.msra.mxu0 0
    %2517 = vmatprep.subr.bf16.mxu0 0
    %2518 = vmatpush1.bf16.xpose.msra.mxu0 0
    %2519 = vmatprep.subr.bf16.mxu0 0
    %2520 = vmatpush1.bf16.xpose.msra.mxu0 0
    %2521 = vmatprep.mubr.bf16.mxu0 %v2434
    %2522 = vmatmul.mubr.bf16.gmra.mrb[0].mxu0 %v2433
    %v2523 = vpop.f32.mrb[0].mxu0
    %v2524 = vadd.f32 %v816, %v2523
    %v2525 = vpop.f32.mrb[0].mxu0
    %v2526 = vpop.f32.mrb[0].mxu0
    %v2527 = vpop.f32.mrb[0].mxu0
    %2528 = vdwg.mxu0
    %2529 = vmatprep.subr.bf16.mxu0 %v2476
    %2530 = vmatpush1.bf16.xpose.msra.mxu0 %v2475
    %2531 = vmatprep.subr.bf16.mxu0 0
    %2532 = vmatpush1.bf16.xpose.msra.mxu0 0
    %2533 = vmatprep.subr.bf16.mxu0 0
    %2534 = vmatpush1.bf16.xpose.msra.mxu0 0
    %2535 = vmatprep.subr.bf16.mxu0 0
    %2536 = vmatpush1.bf16.xpose.msra.mxu0 0
    %2537 = vmatprep.subr.bf16.mxu0 0
    %2538 = vmatpush1.bf16.xpose.msra.mxu0 0
    %2539 = vmatprep.subr.bf16.mxu0 0
    %2540 = vmatpush1.bf16.xpose.msra.mxu0 0
    %2541 = vmatprep.subr.bf16.mxu0 0
    %2542 = vmatpush1.bf16.xpose.msra.mxu0 0
    %2543 = vmatprep.subr.bf16.mxu0 0
    %2544 = vmatpush1.bf16.xpose.msra.mxu0 0
    %2545 = vmatprep.subr.bf16.mxu0 0
    %2546 = vmatpush1.bf16.xpose.msra.mxu0 0
    %2547 = vmatprep.subr.bf16.mxu0 0
    %2548 = vmatpush1.bf16.xpose.msra.mxu0 0
    %2549 = vmatprep.subr.bf16.mxu0 0
    %2550 = vmatpush1.bf16.xpose.msra.mxu0 0
    %2551 = vmatprep.subr.bf16.mxu0 0
    %2552 = vmatpush1.bf16.xpose.msra.mxu0 0
    %2553 = vmatprep.subr.bf16.mxu0 0
    %2554 = vmatpush1.bf16.xpose.msra.mxu0 0
    %2555 = vmatprep.subr.bf16.mxu0 0
    %2556 = vmatpush1.bf16.xpose.msra.mxu0 0
    %2557 = vmatprep.subr.bf16.mxu0 0
    %2558 = vmatpush1.bf16.xpose.msra.mxu0 0
    %2559 = vmatprep.subr.bf16.mxu0 0
    %2560 = vmatpush1.bf16.xpose.msra.mxu0 0
    %2561 = vmatprep.mubr.bf16.mxu0 %v2436
    %2562 = vmatmul.mubr.bf16.gmra.mrb[0].mxu0 %v2435
    %v2563 = vpop.f32.mrb[0].mxu0
    %v2564 = vadd.f32 %v2524, %v2563
    %v2565 = vpop.f32.mrb[0].mxu0
    %v2566 = vpop.f32.mrb[0].mxu0
    %v2567 = vpop.f32.mrb[0].mxu0
    %2568 = vdwg.mxu0
    %2569 = vmatprep.subr.bf16.mxu0 %v2478
    %2570 = vmatpush1.bf16.xpose.msra.mxu0 %v2477
    %2571 = vmatprep.subr.bf16.mxu0 0
    %2572 = vmatpush1.bf16.xpose.msra.mxu0 0
    %2573 = vmatprep.subr.bf16.mxu0 0
    %2574 = vmatpush1.bf16.xpose.msra.mxu0 0
    %2575 = vmatprep.subr.bf16.mxu0 0
    %2576 = vmatpush1.bf16.xpose.msra.mxu0 0
    %2577 = vmatprep.subr.bf16.mxu0 0
    %2578 = vmatpush1.bf16.xpose.msra.mxu0 0
    %2579 = vmatprep.subr.bf16.mxu0 0
    %2580 = vmatpush1.bf16.xpose.msra.mxu0 0
    %2581 = vmatprep.subr.bf16.mxu0 0
    %2582 = vmatpush1.bf16.xpose.msra.mxu0 0
    %2583 = vmatprep.subr.bf16.mxu0 0
    %2584 = vmatpush1.bf16.xpose.msra.mxu0 0
    %2585 = vmatprep.subr.bf16.mxu0 0
    %2586 = vmatpush1.bf16.xpose.msra.mxu0 0
    %2587 = vmatprep.subr.bf16.mxu0 0
    %2588 = vmatpush1.bf16.xpose.msra.mxu0 0
    %2589 = vmatprep.subr.bf16.mxu0 0
    %2590 = vmatpush1.bf16.xpose.msra.mxu0 0
    %2591 = vmatprep.subr.bf16.mxu0 0
    %2592 = vmatpush1.bf16.xpose.msra.mxu0 0
    %2593 = vmatprep.subr.bf16.mxu0 0
    %2594 = vmatpush1.bf16.xpose.msra.mxu0 0
    %2595 = vmatprep.subr.bf16.mxu0 0
    %2596 = vmatpush1.bf16.xpose.msra.mxu0 0
    %2597 = vmatprep.subr.bf16.mxu0 0
    %2598 = vmatpush1.bf16.xpose.msra.mxu0 0
    %2599 = vmatprep.subr.bf16.mxu0 0
    %2600 = vmatpush1.bf16.xpose.msra.mxu0 0
    %2601 = vmatprep.mubr.bf16.mxu0 %v2438
    %2602 = vmatmul.mubr.bf16.gmra.mrb[0].mxu0 %v2437
    %v2603 = vpop.f32.mrb[0].mxu0
    %v2604 = vadd.f32 %v2564, %v2603
    %v2605 = vpop.f32.mrb[0].mxu0
    %v2606 = vpop.f32.mrb[0].mxu0
    %v2607 = vpop.f32.mrb[0].mxu0
    %2608 = vdwg.mxu0
    %2609 = vmatprep.subr.bf16.mxu0 %v2480
    %2610 = vmatpush1.bf16.xpose.msra.mxu0 %v2479
    %2611 = vmatprep.subr.bf16.mxu0 0
    %2612 = vmatpush1.bf16.xpose.msra.mxu0 0
    %2613 = vmatprep.subr.bf16.mxu0 0
    %2614 = vmatpush1.bf16.xpose.msra.mxu0 0
    %2615 = vmatprep.subr.bf16.mxu0 0
    %2616 = vmatpush1.bf16.xpose.msra.mxu0 0
    %2617 = vmatprep.subr.bf16.mxu0 0
    %2618 = vmatpush1.bf16.xpose.msra.mxu0 0
    %2619 = vmatprep.subr.bf16.mxu0 0
    %2620 = vmatpush1.bf16.xpose.msra.mxu0 0
    %2621 = vmatprep.subr.bf16.mxu0 0
    %2622 = vmatpush1.bf16.xpose.msra.mxu0 0
    %2623 = vmatprep.subr.bf16.mxu0 0
    %2624 = vmatpush1.bf16.xpose.msra.mxu0 0
    %2625 = vmatprep.subr.bf16.mxu0 0
    %2626 = vmatpush1.bf16.xpose.msra.mxu0 0
    %2627 = vmatprep.subr.bf16.mxu0 0
    %2628 = vmatpush1.bf16.xpose.msra.mxu0 0
    %2629 = vmatprep.subr.bf16.mxu0 0
    %2630 = vmatpush1.bf16.xpose.msra.mxu0 0
    %2631 = vmatprep.subr.bf16.mxu0 0
    %2632 = vmatpush1.bf16.xpose.msra.mxu0 0
    %2633 = vmatprep.subr.bf16.mxu0 0
    %2634 = vmatpush1.bf16.xpose.msra.mxu0 0
    %2635 = vmatprep.subr.bf16.mxu0 0
    %2636 = vmatpush1.bf16.xpose.msra.mxu0 0
    %2637 = vmatprep.subr.bf16.mxu0 0
    %2638 = vmatpush1.bf16.xpose.msra.mxu0 0
    %2639 = vmatprep.subr.bf16.mxu0 0
    %2640 = vmatpush1.bf16.xpose.msra.mxu0 0
    %2641 = vmatprep.mubr.bf16.mxu0 %v2440
    %2642 = vmatmul.mubr.bf16.gmra.mrb[0].mxu0 %v2439
    %v2643 = vpop.f32.mrb[0].mxu0
    %v2644 = vadd.f32 %v2604, %v2643
    %v2645 = vpop.f32.mrb[0].mxu0
    %v2646 = vpop.f32.mrb[0].mxu0
    %v2647 = vpop.f32.mrb[0].mxu0
    %2648 = vdwg.mxu0
    %v2649 = vrot.slane %v330, 2
    %v2650 = vrot.slane %v331, 2
    %v2651 = vrot.slane %v332, 2
    %v2652 = vrot.slane %v333, 2
    %v2653 = vrot.slane %v334, 2
    %v2654 = vrot.slane %v335, 2
    %v2655 = vrot.slane %v336, 2
    %v2656 = vrot.slane %v337, 2
    %v2673 = vunpack.c.l.b16 %v822
    %v2674 = vunpack.c.h.b16 %v822
    %v2675 = vunpack.c.l.b16 %v823
    %v2676 = vunpack.c.h.b16 %v823
    %v2677 = vunpack.c.l.b16 %v824
    %v2678 = vunpack.c.h.b16 %v824
    %v2679 = vunpack.c.l.b16 %v825
    %v2680 = vunpack.c.h.b16 %v825
    %v2681 = vunpack.c.l.b16 %v826
    %v2682 = vunpack.c.h.b16 %v826
    %v2683 = vunpack.c.l.b16 %v827
    %v2684 = vunpack.c.h.b16 %v827
    %v2685 = vunpack.c.l.b16 %v828
    %v2686 = vunpack.c.h.b16 %v828
    %v2687 = vunpack.c.l.b16 %v829
    %v2688 = vunpack.c.h.b16 %v829
    %v2689 = vpack.c.b16 %v2681, %v2673
    %v2690 = vpack.c.b16 %v2682, %v2674
    %v2691 = vpack.c.b16 %v2683, %v2675
    %v2692 = vpack.c.b16 %v2684, %v2676
    %v2693 = vpack.c.b16 %v2685, %v2677
    %v2694 = vpack.c.b16 %v2686, %v2678
    %v2695 = vpack.c.b16 %v2687, %v2679
    %v2696 = vpack.c.b16 %v2688, %v2680
    %2705 = vmatprep.subr.bf16.mxu0 %v2690
    %2706 = vmatpush1.bf16.xpose.msra.mxu0 %v2689
    %2707 = vmatprep.subr.bf16.mxu0 0
    %2708 = vmatpush1.bf16.xpose.msra.mxu0 0
    %2709 = vmatprep.subr.bf16.mxu0 0
    %2710 = vmatpush1.bf16.xpose.msra.mxu0 0
    %2711 = vmatprep.subr.bf16.mxu0 0
    %2712 = vmatpush1.bf16.xpose.msra.mxu0 0
    %2713 = vmatprep.subr.bf16.mxu0 0
    %2714 = vmatpush1.bf16.xpose.msra.mxu0 0
    %2715 = vmatprep.subr.bf16.mxu0 0
    %2716 = vmatpush1.bf16.xpose.msra.mxu0 0
    %2717 = vmatprep.subr.bf16.mxu0 0
    %2718 = vmatpush1.bf16.xpose.msra.mxu0 0
    %2719 = vmatprep.subr.bf16.mxu0 0
    %2720 = vmatpush1.bf16.xpose.msra.mxu0 0
    %2721 = vmatprep.subr.bf16.mxu0 0
    %2722 = vmatpush1.bf16.xpose.msra.mxu0 0
    %2723 = vmatprep.subr.bf16.mxu0 0
    %2724 = vmatpush1.bf16.xpose.msra.mxu0 0
    %2725 = vmatprep.subr.bf16.mxu0 0
    %2726 = vmatpush1.bf16.xpose.msra.mxu0 0
    %2727 = vmatprep.subr.bf16.mxu0 0
    %2728 = vmatpush1.bf16.xpose.msra.mxu0 0
    %2729 = vmatprep.subr.bf16.mxu0 0
    %2730 = vmatpush1.bf16.xpose.msra.mxu0 0
    %2731 = vmatprep.subr.bf16.mxu0 0
    %2732 = vmatpush1.bf16.xpose.msra.mxu0 0
    %2733 = vmatprep.subr.bf16.mxu0 0
    %2734 = vmatpush1.bf16.xpose.msra.mxu0 0
    %2735 = vmatprep.subr.bf16.mxu0 0
    %2736 = vmatpush1.bf16.xpose.msra.mxu0 0
    %2737 = vmatprep.mubr.bf16.mxu0 %v2650
    %2738 = vmatmul.mubr.bf16.gmra.mrb[0].mxu0 %v2649
    %v2739 = vpop.f32.mrb[0].mxu0
    %v2740 = vadd.f32 %v1050, %v2739
    %v2741 = vpop.f32.mrb[0].mxu0
    %v2742 = vpop.f32.mrb[0].mxu0
    %v2743 = vpop.f32.mrb[0].mxu0
    %2744 = vdwg.mxu0
    %2745 = vmatprep.subr.bf16.mxu0 %v2692
    %2746 = vmatpush1.bf16.xpose.msra.mxu0 %v2691
    %2747 = vmatprep.subr.bf16.mxu0 0
    %2748 = vmatpush1.bf16.xpose.msra.mxu0 0
    %2749 = vmatprep.subr.bf16.mxu0 0
    %2750 = vmatpush1.bf16.xpose.msra.mxu0 0
    %2751 = vmatprep.subr.bf16.mxu0 0
    %2752 = vmatpush1.bf16.xpose.msra.mxu0 0
    %2753 = vmatprep.subr.bf16.mxu0 0
    %2754 = vmatpush1.bf16.xpose.msra.mxu0 0
    %2755 = vmatprep.subr.bf16.mxu0 0
    %2756 = vmatpush1.bf16.xpose.msra.mxu0 0
    %2757 = vmatprep.subr.bf16.mxu0 0
    %2758 = vmatpush1.bf16.xpose.msra.mxu0 0
    %2759 = vmatprep.subr.bf16.mxu0 0
    %2760 = vmatpush1.bf16.xpose.msra.mxu0 0
    %2761 = vmatprep.subr.bf16.mxu0 0
    %2762 = vmatpush1.bf16.xpose.msra.mxu0 0
    %2763 = vmatprep.subr.bf16.mxu0 0
    %2764 = vmatpush1.bf16.xpose.msra.mxu0 0
    %2765 = vmatprep.subr.bf16.mxu0 0
    %2766 = vmatpush1.bf16.xpose.msra.mxu0 0
    %2767 = vmatprep.subr.bf16.mxu0 0
    %2768 = vmatpush1.bf16.xpose.msra.mxu0 0
    %2769 = vmatprep.subr.bf16.mxu0 0
    %2770 = vmatpush1.bf16.xpose.msra.mxu0 0
    %2771 = vmatprep.subr.bf16.mxu0 0
    %2772 = vmatpush1.bf16.xpose.msra.mxu0 0
    %2773 = vmatprep.subr.bf16.mxu0 0
    %2774 = vmatpush1.bf16.xpose.msra.mxu0 0
    %2775 = vmatprep.subr.bf16.mxu0 0
    %2776 = vmatpush1.bf16.xpose.msra.mxu0 0
    %2777 = vmatprep.mubr.bf16.mxu0 %v2652
    %2778 = vmatmul.mubr.bf16.gmra.mrb[0].mxu0 %v2651
    %v2779 = vpop.f32.mrb[0].mxu0
    %v2780 = vadd.f32 %v2740, %v2779
    %v2781 = vpop.f32.mrb[0].mxu0
    %v2782 = vpop.f32.mrb[0].mxu0
    %v2783 = vpop.f32.mrb[0].mxu0
    %2784 = vdwg.mxu0
    %2785 = vmatprep.subr.bf16.mxu0 %v2694
    %2786 = vmatpush1.bf16.xpose.msra.mxu0 %v2693
    %2787 = vmatprep.subr.bf16.mxu0 0
    %2788 = vmatpush1.bf16.xpose.msra.mxu0 0
    %2789 = vmatprep.subr.bf16.mxu0 0
    %2790 = vmatpush1.bf16.xpose.msra.mxu0 0
    %2791 = vmatprep.subr.bf16.mxu0 0
    %2792 = vmatpush1.bf16.xpose.msra.mxu0 0
    %2793 = vmatprep.subr.bf16.mxu0 0
    %2794 = vmatpush1.bf16.xpose.msra.mxu0 0
    %2795 = vmatprep.subr.bf16.mxu0 0
    %2796 = vmatpush1.bf16.xpose.msra.mxu0 0
    %2797 = vmatprep.subr.bf16.mxu0 0
    %2798 = vmatpush1.bf16.xpose.msra.mxu0 0
    %2799 = vmatprep.subr.bf16.mxu0 0
    %2800 = vmatpush1.bf16.xpose.msra.mxu0 0
    %2801 = vmatprep.subr.bf16.mxu0 0
    %2802 = vmatpush1.bf16.xpose.msra.mxu0 0
    %2803 = vmatprep.subr.bf16.mxu0 0
    %2804 = vmatpush1.bf16.xpose.msra.mxu0 0
    %2805 = vmatprep.subr.bf16.mxu0 0
    %2806 = vmatpush1.bf16.xpose.msra.mxu0 0
    %2807 = vmatprep.subr.bf16.mxu0 0
    %2808 = vmatpush1.bf16.xpose.msra.mxu0 0
    %2809 = vmatprep.subr.bf16.mxu0 0
    %2810 = vmatpush1.bf16.xpose.msra.mxu0 0
    %2811 = vmatprep.subr.bf16.mxu0 0
    %2812 = vmatpush1.bf16.xpose.msra.mxu0 0
    %2813 = vmatprep.subr.bf16.mxu0 0
    %2814 = vmatpush1.bf16.xpose.msra.mxu0 0
    %2815 = vmatprep.subr.bf16.mxu0 0
    %2816 = vmatpush1.bf16.xpose.msra.mxu0 0
    %2817 = vmatprep.mubr.bf16.mxu0 %v2654
    %2818 = vmatmul.mubr.bf16.gmra.mrb[0].mxu0 %v2653
    %v2819 = vpop.f32.mrb[0].mxu0
    %v2820 = vadd.f32 %v2780, %v2819
    %v2821 = vpop.f32.mrb[0].mxu0
    %v2822 = vpop.f32.mrb[0].mxu0
    %v2823 = vpop.f32.mrb[0].mxu0
    %2824 = vdwg.mxu0
    %2825 = vmatprep.subr.bf16.mxu0 %v2696
    %2826 = vmatpush1.bf16.xpose.msra.mxu0 %v2695
    %2827 = vmatprep.subr.bf16.mxu0 0
    %2828 = vmatpush1.bf16.xpose.msra.mxu0 0
    %2829 = vmatprep.subr.bf16.mxu0 0
    %2830 = vmatpush1.bf16.xpose.msra.mxu0 0
    %2831 = vmatprep.subr.bf16.mxu0 0
    %2832 = vmatpush1.bf16.xpose.msra.mxu0 0
    %2833 = vmatprep.subr.bf16.mxu0 0
    %2834 = vmatpush1.bf16.xpose.msra.mxu0 0
    %2835 = vmatprep.subr.bf16.mxu0 0
    %2836 = vmatpush1.bf16.xpose.msra.mxu0 0
    %2837 = vmatprep.subr.bf16.mxu0 0
    %2838 = vmatpush1.bf16.xpose.msra.mxu0 0
    %2839 = vmatprep.subr.bf16.mxu0 0
    %2840 = vmatpush1.bf16.xpose.msra.mxu0 0
    %2841 = vmatprep.subr.bf16.mxu0 0
    %2842 = vmatpush1.bf16.xpose.msra.mxu0 0
    %2843 = vmatprep.subr.bf16.mxu0 0
    %2844 = vmatpush1.bf16.xpose.msra.mxu0 0
    %2845 = vmatprep.subr.bf16.mxu0 0
    %2846 = vmatpush1.bf16.xpose.msra.mxu0 0
    %2847 = vmatprep.subr.bf16.mxu0 0
    %2848 = vmatpush1.bf16.xpose.msra.mxu0 0
    %2849 = vmatprep.subr.bf16.mxu0 0
    %2850 = vmatpush1.bf16.xpose.msra.mxu0 0
    %2851 = vmatprep.subr.bf16.mxu0 0
    %2852 = vmatpush1.bf16.xpose.msra.mxu0 0
    %2853 = vmatprep.subr.bf16.mxu0 0
    %2854 = vmatpush1.bf16.xpose.msra.mxu0 0
    %2855 = vmatprep.subr.bf16.mxu0 0
    %2856 = vmatpush1.bf16.xpose.msra.mxu0 0
    %2857 = vmatprep.mubr.bf16.mxu0 %v2656
    %2858 = vmatmul.mubr.bf16.gmra.mrb[0].mxu0 %v2655
    %v2859 = vpop.f32.mrb[0].mxu0
    %v2860 = vadd.f32 %v2820, %v2859
    %v2861 = vpop.f32.mrb[0].mxu0
    %v2862 = vpop.f32.mrb[0].mxu0
    %v2863 = vpop.f32.mrb[0].mxu0
    %2864 = vdwg.mxu0
    %v2865 = vrot.slane %v330, 3
    %v2866 = vrot.slane %v331, 3
    %v2867 = vrot.slane %v332, 3
    %v2868 = vrot.slane %v333, 3
    %v2869 = vrot.slane %v334, 3
    %v2870 = vrot.slane %v335, 3
    %v2871 = vrot.slane %v336, 3
    %v2872 = vrot.slane %v337, 3
    %v2889 = vunpack.c.l.b16 %v1056
    %v2890 = vunpack.c.h.b16 %v1056
    %v2891 = vunpack.c.l.b16 %v1057
    %v2892 = vunpack.c.h.b16 %v1057
    %v2893 = vunpack.c.l.b16 %v1058
    %v2894 = vunpack.c.h.b16 %v1058
    %v2895 = vunpack.c.l.b16 %v1059
    %v2896 = vunpack.c.h.b16 %v1059
    %v2897 = vunpack.c.l.b16 %v1060
    %v2898 = vunpack.c.h.b16 %v1060
    %v2899 = vunpack.c.l.b16 %v1061
    %v2900 = vunpack.c.h.b16 %v1061
    %v2901 = vunpack.c.l.b16 %v1062
    %v2902 = vunpack.c.h.b16 %v1062
    %v2903 = vunpack.c.l.b16 %v1063
    %v2904 = vunpack.c.h.b16 %v1063
    %v2905 = vpack.c.b16 %v2897, %v2889
    %v2906 = vpack.c.b16 %v2898, %v2890
    %v2907 = vpack.c.b16 %v2899, %v2891
    %v2908 = vpack.c.b16 %v2900, %v2892
    %v2909 = vpack.c.b16 %v2901, %v2893
    %v2910 = vpack.c.b16 %v2902, %v2894
    %v2911 = vpack.c.b16 %v2903, %v2895
    %v2912 = vpack.c.b16 %v2904, %v2896
    %2921 = vmatprep.subr.bf16.mxu0 %v2906
    %2922 = vmatpush1.bf16.xpose.msra.mxu0 %v2905
    %2923 = vmatprep.subr.bf16.mxu0 0
    %2924 = vmatpush1.bf16.xpose.msra.mxu0 0
    %2925 = vmatprep.subr.bf16.mxu0 0
    %2926 = vmatpush1.bf16.xpose.msra.mxu0 0
    %2927 = vmatprep.subr.bf16.mxu0 0
    %2928 = vmatpush1.bf16.xpose.msra.mxu0 0
    %2929 = vmatprep.subr.bf16.mxu0 0
    %2930 = vmatpush1.bf16.xpose.msra.mxu0 0
    %2931 = vmatprep.subr.bf16.mxu0 0
    %2932 = vmatpush1.bf16.xpose.msra.mxu0 0
    %2933 = vmatprep.subr.bf16.mxu0 0
    %2934 = vmatpush1.bf16.xpose.msra.mxu0 0
    %2935 = vmatprep.subr.bf16.mxu0 0
    %2936 = vmatpush1.bf16.xpose.msra.mxu0 0
    %2937 = vmatprep.subr.bf16.mxu0 0
    %2938 = vmatpush1.bf16.xpose.msra.mxu0 0
    %2939 = vmatprep.subr.bf16.mxu0 0
    %2940 = vmatpush1.bf16.xpose.msra.mxu0 0
    %2941 = vmatprep.subr.bf16.mxu0 0
    %2942 = vmatpush1.bf16.xpose.msra.mxu0 0
    %2943 = vmatprep.subr.bf16.mxu0 0
    %2944 = vmatpush1.bf16.xpose.msra.mxu0 0
    %2945 = vmatprep.subr.bf16.mxu0 0
    %2946 = vmatpush1.bf16.xpose.msra.mxu0 0
    %2947 = vmatprep.subr.bf16.mxu0 0
    %2948 = vmatpush1.bf16.xpose.msra.mxu0 0
    %2949 = vmatprep.subr.bf16.mxu0 0
    %2950 = vmatpush1.bf16.xpose.msra.mxu0 0
    %2951 = vmatprep.subr.bf16.mxu0 0
    %2952 = vmatpush1.bf16.xpose.msra.mxu0 0
    %2953 = vmatprep.mubr.bf16.mxu0 %v2866
    %2954 = vmatmul.mubr.bf16.gmra.mrb[0].mxu0 %v2865
    %v2955 = vpop.f32.mrb[0].mxu0
    %v2956 = vadd.f32 %v1284, %v2955
    %v2957 = vpop.f32.mrb[0].mxu0
    %v2958 = vpop.f32.mrb[0].mxu0
    %v2959 = vpop.f32.mrb[0].mxu0
    %2960 = vdwg.mxu0
    %2961 = vmatprep.subr.bf16.mxu0 %v2908
    %2962 = vmatpush1.bf16.xpose.msra.mxu0 %v2907
    %2963 = vmatprep.subr.bf16.mxu0 0
    %2964 = vmatpush1.bf16.xpose.msra.mxu0 0
    %2965 = vmatprep.subr.bf16.mxu0 0
    %2966 = vmatpush1.bf16.xpose.msra.mxu0 0
    %2967 = vmatprep.subr.bf16.mxu0 0
    %2968 = vmatpush1.bf16.xpose.msra.mxu0 0
    %2969 = vmatprep.subr.bf16.mxu0 0
    %2970 = vmatpush1.bf16.xpose.msra.mxu0 0
    %2971 = vmatprep.subr.bf16.mxu0 0
    %2972 = vmatpush1.bf16.xpose.msra.mxu0 0
    %2973 = vmatprep.subr.bf16.mxu0 0
    %2974 = vmatpush1.bf16.xpose.msra.mxu0 0
    %2975 = vmatprep.subr.bf16.mxu0 0
    %2976 = vmatpush1.bf16.xpose.msra.mxu0 0
    %2977 = vmatprep.subr.bf16.mxu0 0
    %2978 = vmatpush1.bf16.xpose.msra.mxu0 0
    %2979 = vmatprep.subr.bf16.mxu0 0
    %2980 = vmatpush1.bf16.xpose.msra.mxu0 0
    %2981 = vmatprep.subr.bf16.mxu0 0
    %2982 = vmatpush1.bf16.xpose.msra.mxu0 0
    %2983 = vmatprep.subr.bf16.mxu0 0
    %2984 = vmatpush1.bf16.xpose.msra.mxu0 0
    %2985 = vmatprep.subr.bf16.mxu0 0
    %2986 = vmatpush1.bf16.xpose.msra.mxu0 0
    %2987 = vmatprep.subr.bf16.mxu0 0
    %2988 = vmatpush1.bf16.xpose.msra.mxu0 0
    %2989 = vmatprep.subr.bf16.mxu0 0
    %2990 = vmatpush1.bf16.xpose.msra.mxu0 0
    %2991 = vmatprep.subr.bf16.mxu0 0
    %2992 = vmatpush1.bf16.xpose.msra.mxu0 0
    %2993 = vmatprep.mubr.bf16.mxu0 %v2868
    %2994 = vmatmul.mubr.bf16.gmra.mrb[0].mxu0 %v2867
    %v2995 = vpop.f32.mrb[0].mxu0
    %v2996 = vadd.f32 %v2956, %v2995
    %v2997 = vpop.f32.mrb[0].mxu0
    %v2998 = vpop.f32.mrb[0].mxu0
    %v2999 = vpop.f32.mrb[0].mxu0
    %3000 = vdwg.mxu0
    %3001 = vmatprep.subr.bf16.mxu0 %v2910
    %3002 = vmatpush1.bf16.xpose.msra.mxu0 %v2909
    %3003 = vmatprep.subr.bf16.mxu0 0
    %3004 = vmatpush1.bf16.xpose.msra.mxu0 0
    %3005 = vmatprep.subr.bf16.mxu0 0
    %3006 = vmatpush1.bf16.xpose.msra.mxu0 0
    %3007 = vmatprep.subr.bf16.mxu0 0
    %3008 = vmatpush1.bf16.xpose.msra.mxu0 0
    %3009 = vmatprep.subr.bf16.mxu0 0
    %3010 = vmatpush1.bf16.xpose.msra.mxu0 0
    %3011 = vmatprep.subr.bf16.mxu0 0
    %3012 = vmatpush1.bf16.xpose.msra.mxu0 0
    %3013 = vmatprep.subr.bf16.mxu0 0
    %3014 = vmatpush1.bf16.xpose.msra.mxu0 0
    %3015 = vmatprep.subr.bf16.mxu0 0
    %3016 = vmatpush1.bf16.xpose.msra.mxu0 0
    %3017 = vmatprep.subr.bf16.mxu0 0
    %3018 = vmatpush1.bf16.xpose.msra.mxu0 0
    %3019 = vmatprep.subr.bf16.mxu0 0
    %3020 = vmatpush1.bf16.xpose.msra.mxu0 0
    %3021 = vmatprep.subr.bf16.mxu0 0
    %3022 = vmatpush1.bf16.xpose.msra.mxu0 0
    %3023 = vmatprep.subr.bf16.mxu0 0
    %3024 = vmatpush1.bf16.xpose.msra.mxu0 0
    %3025 = vmatprep.subr.bf16.mxu0 0
    %3026 = vmatpush1.bf16.xpose.msra.mxu0 0
    %3027 = vmatprep.subr.bf16.mxu0 0
    %3028 = vmatpush1.bf16.xpose.msra.mxu0 0
    %3029 = vmatprep.subr.bf16.mxu0 0
    %3030 = vmatpush1.bf16.xpose.msra.mxu0 0
    %3031 = vmatprep.subr.bf16.mxu0 0
    %3032 = vmatpush1.bf16.xpose.msra.mxu0 0
    %3033 = vmatprep.mubr.bf16.mxu0 %v2870
    %3034 = vmatmul.mubr.bf16.gmra.mrb[0].mxu0 %v2869
    %v3035 = vpop.f32.mrb[0].mxu0
    %v3036 = vadd.f32 %v2996, %v3035
    %v3037 = vpop.f32.mrb[0].mxu0
    %v3038 = vpop.f32.mrb[0].mxu0
    %v3039 = vpop.f32.mrb[0].mxu0
    %3040 = vdwg.mxu0
    %3041 = vmatprep.subr.bf16.mxu0 %v2912
    %3042 = vmatpush1.bf16.xpose.msra.mxu0 %v2911
    %3043 = vmatprep.subr.bf16.mxu0 0
    %3044 = vmatpush1.bf16.xpose.msra.mxu0 0
    %3045 = vmatprep.subr.bf16.mxu0 0
    %3046 = vmatpush1.bf16.xpose.msra.mxu0 0
    %3047 = vmatprep.subr.bf16.mxu0 0
    %3048 = vmatpush1.bf16.xpose.msra.mxu0 0
    %3049 = vmatprep.subr.bf16.mxu0 0
    %3050 = vmatpush1.bf16.xpose.msra.mxu0 0
    %3051 = vmatprep.subr.bf16.mxu0 0
    %3052 = vmatpush1.bf16.xpose.msra.mxu0 0
    %3053 = vmatprep.subr.bf16.mxu0 0
    %3054 = vmatpush1.bf16.xpose.msra.mxu0 0
    %3055 = vmatprep.subr.bf16.mxu0 0
    %3056 = vmatpush1.bf16.xpose.msra.mxu0 0
    %3057 = vmatprep.subr.bf16.mxu0 0
    %3058 = vmatpush1.bf16.xpose.msra.mxu0 0
    %3059 = vmatprep.subr.bf16.mxu0 0
    %3060 = vmatpush1.bf16.xpose.msra.mxu0 0
    %3061 = vmatprep.subr.bf16.mxu0 0
    %3062 = vmatpush1.bf16.xpose.msra.mxu0 0
    %3063 = vmatprep.subr.bf16.mxu0 0
    %3064 = vmatpush1.bf16.xpose.msra.mxu0 0
    %3065 = vmatprep.subr.bf16.mxu0 0
    %3066 = vmatpush1.bf16.xpose.msra.mxu0 0
    %3067 = vmatprep.subr.bf16.mxu0 0
    %3068 = vmatpush1.bf16.xpose.msra.mxu0 0
    %3069 = vmatprep.subr.bf16.mxu0 0
    %3070 = vmatpush1.bf16.xpose.msra.mxu0 0
    %3071 = vmatprep.subr.bf16.mxu0 0
    %3072 = vmatpush1.bf16.xpose.msra.mxu0 0
    %3073 = vmatprep.mubr.bf16.mxu0 %v2872
    %3074 = vmatmul.mubr.bf16.gmra.mrb[0].mxu0 %v2871
    %v3075 = vpop.f32.mrb[0].mxu0
    %v3076 = vadd.f32 %v3036, %v3075
    %v3077 = vpop.f32.mrb[0].mxu0
    %v3078 = vpop.f32.mrb[0].mxu0
    %v3079 = vpop.f32.mrb[0].mxu0
    %3080 = vdwg.mxu0
    %v3081 = vrot.slane %v330, 4
    %v3082 = vrot.slane %v331, 4
    %v3083 = vrot.slane %v332, 4
    %v3084 = vrot.slane %v333, 4
    %v3085 = vrot.slane %v334, 4
    %v3086 = vrot.slane %v335, 4
    %v3087 = vrot.slane %v336, 4
    %v3088 = vrot.slane %v337, 4
    %v3105 = vunpack.c.l.b16 %v1290
    %v3106 = vunpack.c.h.b16 %v1290
    %v3107 = vunpack.c.l.b16 %v1291
    %v3108 = vunpack.c.h.b16 %v1291
    %v3109 = vunpack.c.l.b16 %v1292
    %v3110 = vunpack.c.h.b16 %v1292
    %v3111 = vunpack.c.l.b16 %v1293
    %v3112 = vunpack.c.h.b16 %v1293
    %v3113 = vunpack.c.l.b16 %v1294
    %v3114 = vunpack.c.h.b16 %v1294
    %v3115 = vunpack.c.l.b16 %v1295
    %v3116 = vunpack.c.h.b16 %v1295
    %v3117 = vunpack.c.l.b16 %v1296
    %v3118 = vunpack.c.h.b16 %v1296
    %v3119 = vunpack.c.l.b16 %v1297
    %v3120 = vunpack.c.h.b16 %v1297
    %v3121 = vpack.c.b16 %v3113, %v3105
    %v3122 = vpack.c.b16 %v3114, %v3106
    %v3123 = vpack.c.b16 %v3115, %v3107
    %v3124 = vpack.c.b16 %v3116, %v3108
    %v3125 = vpack.c.b16 %v3117, %v3109
    %v3126 = vpack.c.b16 %v3118, %v3110
    %v3127 = vpack.c.b16 %v3119, %v3111
    %v3128 = vpack.c.b16 %v3120, %v3112
    %3137 = vmatprep.subr.bf16.mxu0 %v3122
    %3138 = vmatpush1.bf16.xpose.msra.mxu0 %v3121
    %3139 = vmatprep.subr.bf16.mxu0 0
    %3140 = vmatpush1.bf16.xpose.msra.mxu0 0
    %3141 = vmatprep.subr.bf16.mxu0 0
    %3142 = vmatpush1.bf16.xpose.msra.mxu0 0
    %3143 = vmatprep.subr.bf16.mxu0 0
    %3144 = vmatpush1.bf16.xpose.msra.mxu0 0
    %3145 = vmatprep.subr.bf16.mxu0 0
    %3146 = vmatpush1.bf16.xpose.msra.mxu0 0
    %3147 = vmatprep.subr.bf16.mxu0 0
    %3148 = vmatpush1.bf16.xpose.msra.mxu0 0
    %3149 = vmatprep.subr.bf16.mxu0 0
    %3150 = vmatpush1.bf16.xpose.msra.mxu0 0
    %3151 = vmatprep.subr.bf16.mxu0 0
    %3152 = vmatpush1.bf16.xpose.msra.mxu0 0
    %3153 = vmatprep.subr.bf16.mxu0 0
    %3154 = vmatpush1.bf16.xpose.msra.mxu0 0
    %3155 = vmatprep.subr.bf16.mxu0 0
    %3156 = vmatpush1.bf16.xpose.msra.mxu0 0
    %3157 = vmatprep.subr.bf16.mxu0 0
    %3158 = vmatpush1.bf16.xpose.msra.mxu0 0
    %3159 = vmatprep.subr.bf16.mxu0 0
    %3160 = vmatpush1.bf16.xpose.msra.mxu0 0
    %3161 = vmatprep.subr.bf16.mxu0 0
    %3162 = vmatpush1.bf16.xpose.msra.mxu0 0
    %3163 = vmatprep.subr.bf16.mxu0 0
    %3164 = vmatpush1.bf16.xpose.msra.mxu0 0
    %3165 = vmatprep.subr.bf16.mxu0 0
    %3166 = vmatpush1.bf16.xpose.msra.mxu0 0
    %3167 = vmatprep.subr.bf16.mxu0 0
    %3168 = vmatpush1.bf16.xpose.msra.mxu0 0
    %3169 = vmatprep.mubr.bf16.mxu0 %v3082
    %3170 = vmatmul.mubr.bf16.gmra.mrb[0].mxu0 %v3081
    %v3171 = vpop.f32.mrb[0].mxu0
    %v3172 = vadd.f32 %v1518, %v3171
    %v3173 = vpop.f32.mrb[0].mxu0
    %v3174 = vpop.f32.mrb[0].mxu0
    %v3175 = vpop.f32.mrb[0].mxu0
    %3176 = vdwg.mxu0
    %3177 = vmatprep.subr.bf16.mxu0 %v3124
    %3178 = vmatpush1.bf16.xpose.msra.mxu0 %v3123
    %3179 = vmatprep.subr.bf16.mxu0 0
    %3180 = vmatpush1.bf16.xpose.msra.mxu0 0
    %3181 = vmatprep.subr.bf16.mxu0 0
    %3182 = vmatpush1.bf16.xpose.msra.mxu0 0
    %3183 = vmatprep.subr.bf16.mxu0 0
    %3184 = vmatpush1.bf16.xpose.msra.mxu0 0
    %3185 = vmatprep.subr.bf16.mxu0 0
    %3186 = vmatpush1.bf16.xpose.msra.mxu0 0
    %3187 = vmatprep.subr.bf16.mxu0 0
    %3188 = vmatpush1.bf16.xpose.msra.mxu0 0
    %3189 = vmatprep.subr.bf16.mxu0 0
    %3190 = vmatpush1.bf16.xpose.msra.mxu0 0
    %3191 = vmatprep.subr.bf16.mxu0 0
    %3192 = vmatpush1.bf16.xpose.msra.mxu0 0
    %3193 = vmatprep.subr.bf16.mxu0 0
    %3194 = vmatpush1.bf16.xpose.msra.mxu0 0
    %3195 = vmatprep.subr.bf16.mxu0 0
    %3196 = vmatpush1.bf16.xpose.msra.mxu0 0
    %3197 = vmatprep.subr.bf16.mxu0 0
    %3198 = vmatpush1.bf16.xpose.msra.mxu0 0
    %3199 = vmatprep.subr.bf16.mxu0 0
    %3200 = vmatpush1.bf16.xpose.msra.mxu0 0
    %3201 = vmatprep.subr.bf16.mxu0 0
    %3202 = vmatpush1.bf16.xpose.msra.mxu0 0
    %3203 = vmatprep.subr.bf16.mxu0 0
    %3204 = vmatpush1.bf16.xpose.msra.mxu0 0
    %3205 = vmatprep.subr.bf16.mxu0 0
    %3206 = vmatpush1.bf16.xpose.msra.mxu0 0
    %3207 = vmatprep.subr.bf16.mxu0 0
    %3208 = vmatpush1.bf16.xpose.msra.mxu0 0
    %3209 = vmatprep.mubr.bf16.mxu0 %v3084
    %3210 = vmatmul.mubr.bf16.gmra.mrb[0].mxu0 %v3083
    %v3211 = vpop.f32.mrb[0].mxu0
    %v3212 = vadd.f32 %v3172, %v3211
    %v3213 = vpop.f32.mrb[0].mxu0
    %v3214 = vpop.f32.mrb[0].mxu0
    %v3215 = vpop.f32.mrb[0].mxu0
    %3216 = vdwg.mxu0
    %3217 = vmatprep.subr.bf16.mxu0 %v3126
    %3218 = vmatpush1.bf16.xpose.msra.mxu0 %v3125
    %3219 = vmatprep.subr.bf16.mxu0 0
    %3220 = vmatpush1.bf16.xpose.msra.mxu0 0
    %3221 = vmatprep.subr.bf16.mxu0 0
    %3222 = vmatpush1.bf16.xpose.msra.mxu0 0
    %3223 = vmatprep.subr.bf16.mxu0 0
    %3224 = vmatpush1.bf16.xpose.msra.mxu0 0
    %3225 = vmatprep.subr.bf16.mxu0 0
    %3226 = vmatpush1.bf16.xpose.msra.mxu0 0
    %3227 = vmatprep.subr.bf16.mxu0 0
    %3228 = vmatpush1.bf16.xpose.msra.mxu0 0
    %3229 = vmatprep.subr.bf16.mxu0 0
    %3230 = vmatpush1.bf16.xpose.msra.mxu0 0
    %3231 = vmatprep.subr.bf16.mxu0 0
    %3232 = vmatpush1.bf16.xpose.msra.mxu0 0
    %3233 = vmatprep.subr.bf16.mxu0 0
    %3234 = vmatpush1.bf16.xpose.msra.mxu0 0
    %3235 = vmatprep.subr.bf16.mxu0 0
    %3236 = vmatpush1.bf16.xpose.msra.mxu0 0
    %3237 = vmatprep.subr.bf16.mxu0 0
    %3238 = vmatpush1.bf16.xpose.msra.mxu0 0
    %3239 = vmatprep.subr.bf16.mxu0 0
    %3240 = vmatpush1.bf16.xpose.msra.mxu0 0
    %3241 = vmatprep.subr.bf16.mxu0 0
    %3242 = vmatpush1.bf16.xpose.msra.mxu0 0
    %3243 = vmatprep.subr.bf16.mxu0 0
    %3244 = vmatpush1.bf16.xpose.msra.mxu0 0
    %3245 = vmatprep.subr.bf16.mxu0 0
    %3246 = vmatpush1.bf16.xpose.msra.mxu0 0
    %3247 = vmatprep.subr.bf16.mxu0 0
    %3248 = vmatpush1.bf16.xpose.msra.mxu0 0
    %3249 = vmatprep.mubr.bf16.mxu0 %v3086
    %3250 = vmatmul.mubr.bf16.gmra.mrb[0].mxu0 %v3085
    %v3251 = vpop.f32.mrb[0].mxu0
    %v3252 = vadd.f32 %v3212, %v3251
    %v3253 = vpop.f32.mrb[0].mxu0
    %v3254 = vpop.f32.mrb[0].mxu0
    %v3255 = vpop.f32.mrb[0].mxu0
    %3256 = vdwg.mxu0
    %3257 = vmatprep.subr.bf16.mxu0 %v3128
    %3258 = vmatpush1.bf16.xpose.msra.mxu0 %v3127
    %3259 = vmatprep.subr.bf16.mxu0 0
    %3260 = vmatpush1.bf16.xpose.msra.mxu0 0
    %3261 = vmatprep.subr.bf16.mxu0 0
    %3262 = vmatpush1.bf16.xpose.msra.mxu0 0
    %3263 = vmatprep.subr.bf16.mxu0 0
    %3264 = vmatpush1.bf16.xpose.msra.mxu0 0
    %3265 = vmatprep.subr.bf16.mxu0 0
    %3266 = vmatpush1.bf16.xpose.msra.mxu0 0
    %3267 = vmatprep.subr.bf16.mxu0 0
    %3268 = vmatpush1.bf16.xpose.msra.mxu0 0
    %3269 = vmatprep.subr.bf16.mxu0 0
    %3270 = vmatpush1.bf16.xpose.msra.mxu0 0
    %3271 = vmatprep.subr.bf16.mxu0 0
    %3272 = vmatpush1.bf16.xpose.msra.mxu0 0
    %3273 = vmatprep.subr.bf16.mxu0 0
    %3274 = vmatpush1.bf16.xpose.msra.mxu0 0
    %3275 = vmatprep.subr.bf16.mxu0 0
    %3276 = vmatpush1.bf16.xpose.msra.mxu0 0
    %3277 = vmatprep.subr.bf16.mxu0 0
    %3278 = vmatpush1.bf16.xpose.msra.mxu0 0
    %3279 = vmatprep.subr.bf16.mxu0 0
    %3280 = vmatpush1.bf16.xpose.msra.mxu0 0
    %3281 = vmatprep.subr.bf16.mxu0 0
    %3282 = vmatpush1.bf16.xpose.msra.mxu0 0
    %3283 = vmatprep.subr.bf16.mxu0 0
    %3284 = vmatpush1.bf16.xpose.msra.mxu0 0
    %3285 = vmatprep.subr.bf16.mxu0 0
    %3286 = vmatpush1.bf16.xpose.msra.mxu0 0
    %3287 = vmatprep.subr.bf16.mxu0 0
    %3288 = vmatpush1.bf16.xpose.msra.mxu0 0
    %3289 = vmatprep.mubr.bf16.mxu0 %v3088
    %3290 = vmatmul.mubr.bf16.gmra.mrb[0].mxu0 %v3087
    %v3291 = vpop.f32.mrb[0].mxu0
    %v3292 = vadd.f32 %v3252, %v3291
    %v3293 = vpop.f32.mrb[0].mxu0
    %v3294 = vpop.f32.mrb[0].mxu0
    %v3295 = vpop.f32.mrb[0].mxu0
    %3296 = vdwg.mxu0
    %v3297 = vrot.slane %v330, 5
    %v3298 = vrot.slane %v331, 5
    %v3299 = vrot.slane %v332, 5
    %v3300 = vrot.slane %v333, 5
    %v3301 = vrot.slane %v334, 5
    %v3302 = vrot.slane %v335, 5
    %v3303 = vrot.slane %v336, 5
    %v3304 = vrot.slane %v337, 5
    %v3321 = vunpack.c.l.b16 %v1524
    %v3322 = vunpack.c.h.b16 %v1524
    %v3323 = vunpack.c.l.b16 %v1525
    %v3324 = vunpack.c.h.b16 %v1525
    %v3325 = vunpack.c.l.b16 %v1526
    %v3326 = vunpack.c.h.b16 %v1526
    %v3327 = vunpack.c.l.b16 %v1527
    %v3328 = vunpack.c.h.b16 %v1527
    %v3329 = vunpack.c.l.b16 %v1528
    %v3330 = vunpack.c.h.b16 %v1528
    %v3331 = vunpack.c.l.b16 %v1529
    %v3332 = vunpack.c.h.b16 %v1529
    %v3333 = vunpack.c.l.b16 %v1530
    %v3334 = vunpack.c.h.b16 %v1530
    %v3335 = vunpack.c.l.b16 %v1531
    %v3336 = vunpack.c.h.b16 %v1531
    %v3337 = vpack.c.b16 %v3329, %v3321
    %v3338 = vpack.c.b16 %v3330, %v3322
    %v3339 = vpack.c.b16 %v3331, %v3323
    %v3340 = vpack.c.b16 %v3332, %v3324
    %v3341 = vpack.c.b16 %v3333, %v3325
    %v3342 = vpack.c.b16 %v3334, %v3326
    %v3343 = vpack.c.b16 %v3335, %v3327
    %v3344 = vpack.c.b16 %v3336, %v3328
    %3353 = vmatprep.subr.bf16.mxu0 %v3338
    %3354 = vmatpush1.bf16.xpose.msra.mxu0 %v3337
    %3355 = vmatprep.subr.bf16.mxu0 0
    %3356 = vmatpush1.bf16.xpose.msra.mxu0 0
    %3357 = vmatprep.subr.bf16.mxu0 0
    %3358 = vmatpush1.bf16.xpose.msra.mxu0 0
    %3359 = vmatprep.subr.bf16.mxu0 0
    %3360 = vmatpush1.bf16.xpose.msra.mxu0 0
    %3361 = vmatprep.subr.bf16.mxu0 0
    %3362 = vmatpush1.bf16.xpose.msra.mxu0 0
    %3363 = vmatprep.subr.bf16.mxu0 0
    %3364 = vmatpush1.bf16.xpose.msra.mxu0 0
    %3365 = vmatprep.subr.bf16.mxu0 0
    %3366 = vmatpush1.bf16.xpose.msra.mxu0 0
    %3367 = vmatprep.subr.bf16.mxu0 0
    %3368 = vmatpush1.bf16.xpose.msra.mxu0 0
    %3369 = vmatprep.subr.bf16.mxu0 0
    %3370 = vmatpush1.bf16.xpose.msra.mxu0 0
    %3371 = vmatprep.subr.bf16.mxu0 0
    %3372 = vmatpush1.bf16.xpose.msra.mxu0 0
    %3373 = vmatprep.subr.bf16.mxu0 0
    %3374 = vmatpush1.bf16.xpose.msra.mxu0 0
    %3375 = vmatprep.subr.bf16.mxu0 0
    %3376 = vmatpush1.bf16.xpose.msra.mxu0 0
    %3377 = vmatprep.subr.bf16.mxu0 0
    %3378 = vmatpush1.bf16.xpose.msra.mxu0 0
    %3379 = vmatprep.subr.bf16.mxu0 0
    %3380 = vmatpush1.bf16.xpose.msra.mxu0 0
    %3381 = vmatprep.subr.bf16.mxu0 0
    %3382 = vmatpush1.bf16.xpose.msra.mxu0 0
    %3383 = vmatprep.subr.bf16.mxu0 0
    %3384 = vmatpush1.bf16.xpose.msra.mxu0 0
    %3385 = vmatprep.mubr.bf16.mxu0 %v3298
    %3386 = vmatmul.mubr.bf16.gmra.mrb[0].mxu0 %v3297
    %v3387 = vpop.f32.mrb[0].mxu0
    %v3388 = vadd.f32 %v1752, %v3387
    %v3389 = vpop.f32.mrb[0].mxu0
    %v3390 = vpop.f32.mrb[0].mxu0
    %v3391 = vpop.f32.mrb[0].mxu0
    %3392 = vdwg.mxu0
    %3393 = vmatprep.subr.bf16.mxu0 %v3340
    %3394 = vmatpush1.bf16.xpose.msra.mxu0 %v3339
    %3395 = vmatprep.subr.bf16.mxu0 0
    %3396 = vmatpush1.bf16.xpose.msra.mxu0 0
    %3397 = vmatprep.subr.bf16.mxu0 0
    %3398 = vmatpush1.bf16.xpose.msra.mxu0 0
    %3399 = vmatprep.subr.bf16.mxu0 0
    %3400 = vmatpush1.bf16.xpose.msra.mxu0 0
    %3401 = vmatprep.subr.bf16.mxu0 0
    %3402 = vmatpush1.bf16.xpose.msra.mxu0 0
    %3403 = vmatprep.subr.bf16.mxu0 0
    %3404 = vmatpush1.bf16.xpose.msra.mxu0 0
    %3405 = vmatprep.subr.bf16.mxu0 0
    %3406 = vmatpush1.bf16.xpose.msra.mxu0 0
    %3407 = vmatprep.subr.bf16.mxu0 0
    %3408 = vmatpush1.bf16.xpose.msra.mxu0 0
    %3409 = vmatprep.subr.bf16.mxu0 0
    %3410 = vmatpush1.bf16.xpose.msra.mxu0 0
    %3411 = vmatprep.subr.bf16.mxu0 0
    %3412 = vmatpush1.bf16.xpose.msra.mxu0 0
    %3413 = vmatprep.subr.bf16.mxu0 0
    %3414 = vmatpush1.bf16.xpose.msra.mxu0 0
    %3415 = vmatprep.subr.bf16.mxu0 0
    %3416 = vmatpush1.bf16.xpose.msra.mxu0 0
    %3417 = vmatprep.subr.bf16.mxu0 0
    %3418 = vmatpush1.bf16.xpose.msra.mxu0 0
    %3419 = vmatprep.subr.bf16.mxu0 0
    %3420 = vmatpush1.bf16.xpose.msra.mxu0 0
    %3421 = vmatprep.subr.bf16.mxu0 0
    %3422 = vmatpush1.bf16.xpose.msra.mxu0 0
    %3423 = vmatprep.subr.bf16.mxu0 0
    %3424 = vmatpush1.bf16.xpose.msra.mxu0 0
    %3425 = vmatprep.mubr.bf16.mxu0 %v3300
    %3426 = vmatmul.mubr.bf16.gmra.mrb[0].mxu0 %v3299
    %v3427 = vpop.f32.mrb[0].mxu0
    %v3428 = vadd.f32 %v3388, %v3427
    %v3429 = vpop.f32.mrb[0].mxu0
    %v3430 = vpop.f32.mrb[0].mxu0
    %v3431 = vpop.f32.mrb[0].mxu0
    %3432 = vdwg.mxu0
    %3433 = vmatprep.subr.bf16.mxu0 %v3342
    %3434 = vmatpush1.bf16.xpose.msra.mxu0 %v3341
    %3435 = vmatprep.subr.bf16.mxu0 0
    %3436 = vmatpush1.bf16.xpose.msra.mxu0 0
    %3437 = vmatprep.subr.bf16.mxu0 0
    %3438 = vmatpush1.bf16.xpose.msra.mxu0 0
    %3439 = vmatprep.subr.bf16.mxu0 0
    %3440 = vmatpush1.bf16.xpose.msra.mxu0 0
    %3441 = vmatprep.subr.bf16.mxu0 0
    %3442 = vmatpush1.bf16.xpose.msra.mxu0 0
    %3443 = vmatprep.subr.bf16.mxu0 0
    %3444 = vmatpush1.bf16.xpose.msra.mxu0 0
    %3445 = vmatprep.subr.bf16.mxu0 0
    %3446 = vmatpush1.bf16.xpose.msra.mxu0 0
    %3447 = vmatprep.subr.bf16.mxu0 0
    %3448 = vmatpush1.bf16.xpose.msra.mxu0 0
    %3449 = vmatprep.subr.bf16.mxu0 0
    %3450 = vmatpush1.bf16.xpose.msra.mxu0 0
    %3451 = vmatprep.subr.bf16.mxu0 0
    %3452 = vmatpush1.bf16.xpose.msra.mxu0 0
    %3453 = vmatprep.subr.bf16.mxu0 0
    %3454 = vmatpush1.bf16.xpose.msra.mxu0 0
    %3455 = vmatprep.subr.bf16.mxu0 0
    %3456 = vmatpush1.bf16.xpose.msra.mxu0 0
    %3457 = vmatprep.subr.bf16.mxu0 0
    %3458 = vmatpush1.bf16.xpose.msra.mxu0 0
    %3459 = vmatprep.subr.bf16.mxu0 0
    %3460 = vmatpush1.bf16.xpose.msra.mxu0 0
    %3461 = vmatprep.subr.bf16.mxu0 0
    %3462 = vmatpush1.bf16.xpose.msra.mxu0 0
    %3463 = vmatprep.subr.bf16.mxu0 0
    %3464 = vmatpush1.bf16.xpose.msra.mxu0 0
    %3465 = vmatprep.mubr.bf16.mxu0 %v3302
    %3466 = vmatmul.mubr.bf16.gmra.mrb[0].mxu0 %v3301
    %v3467 = vpop.f32.mrb[0].mxu0
    %v3468 = vadd.f32 %v3428, %v3467
    %v3469 = vpop.f32.mrb[0].mxu0
    %v3470 = vpop.f32.mrb[0].mxu0
    %v3471 = vpop.f32.mrb[0].mxu0
    %3472 = vdwg.mxu0
    %3473 = vmatprep.subr.bf16.mxu0 %v3344
    %3474 = vmatpush1.bf16.xpose.msra.mxu0 %v3343
    %3475 = vmatprep.subr.bf16.mxu0 0
    %3476 = vmatpush1.bf16.xpose.msra.mxu0 0
    %3477 = vmatprep.subr.bf16.mxu0 0
    %3478 = vmatpush1.bf16.xpose.msra.mxu0 0
    %3479 = vmatprep.subr.bf16.mxu0 0
    %3480 = vmatpush1.bf16.xpose.msra.mxu0 0
    %3481 = vmatprep.subr.bf16.mxu0 0
    %3482 = vmatpush1.bf16.xpose.msra.mxu0 0
    %3483 = vmatprep.subr.bf16.mxu0 0
    %3484 = vmatpush1.bf16.xpose.msra.mxu0 0
    %3485 = vmatprep.subr.bf16.mxu0 0
    %3486 = vmatpush1.bf16.xpose.msra.mxu0 0
    %3487 = vmatprep.subr.bf16.mxu0 0
    %3488 = vmatpush1.bf16.xpose.msra.mxu0 0
    %3489 = vmatprep.subr.bf16.mxu0 0
    %3490 = vmatpush1.bf16.xpose.msra.mxu0 0
    %3491 = vmatprep.subr.bf16.mxu0 0
    %3492 = vmatpush1.bf16.xpose.msra.mxu0 0
    %3493 = vmatprep.subr.bf16.mxu0 0
    %3494 = vmatpush1.bf16.xpose.msra.mxu0 0
    %3495 = vmatprep.subr.bf16.mxu0 0
    %3496 = vmatpush1.bf16.xpose.msra.mxu0 0
    %3497 = vmatprep.subr.bf16.mxu0 0
    %3498 = vmatpush1.bf16.xpose.msra.mxu0 0
    %3499 = vmatprep.subr.bf16.mxu0 0
    %3500 = vmatpush1.bf16.xpose.msra.mxu0 0
    %3501 = vmatprep.subr.bf16.mxu0 0
    %3502 = vmatpush1.bf16.xpose.msra.mxu0 0
    %3503 = vmatprep.subr.bf16.mxu0 0
    %3504 = vmatpush1.bf16.xpose.msra.mxu0 0
    %3505 = vmatprep.mubr.bf16.mxu0 %v3304
    %3506 = vmatmul.mubr.bf16.gmra.mrb[0].mxu0 %v3303
    %v3507 = vpop.f32.mrb[0].mxu0
    %v3508 = vadd.f32 %v3468, %v3507
    %v3509 = vpop.f32.mrb[0].mxu0
    %v3510 = vpop.f32.mrb[0].mxu0
    %v3511 = vpop.f32.mrb[0].mxu0
    %3512 = vdwg.mxu0
    %v3513 = vrot.slane %v330, 6
    %v3514 = vrot.slane %v331, 6
    %v3515 = vrot.slane %v332, 6
    %v3516 = vrot.slane %v333, 6
    %v3517 = vrot.slane %v334, 6
    %v3518 = vrot.slane %v335, 6
    %v3519 = vrot.slane %v336, 6
    %v3520 = vrot.slane %v337, 6
    %v3537 = vunpack.c.l.b16 %v1758
    %v3538 = vunpack.c.h.b16 %v1758
    %v3539 = vunpack.c.l.b16 %v1759
    %v3540 = vunpack.c.h.b16 %v1759
    %v3541 = vunpack.c.l.b16 %v1760
    %v3542 = vunpack.c.h.b16 %v1760
    %v3543 = vunpack.c.l.b16 %v1761
    %v3544 = vunpack.c.h.b16 %v1761
    %v3545 = vunpack.c.l.b16 %v1762
    %v3546 = vunpack.c.h.b16 %v1762
    %v3547 = vunpack.c.l.b16 %v1763
    %v3548 = vunpack.c.h.b16 %v1763
    %v3549 = vunpack.c.l.b16 %v1764
    %v3550 = vunpack.c.h.b16 %v1764
    %v3551 = vunpack.c.l.b16 %v1765
    %v3552 = vunpack.c.h.b16 %v1765
    %v3553 = vpack.c.b16 %v3545, %v3537
    %v3554 = vpack.c.b16 %v3546, %v3538
    %v3555 = vpack.c.b16 %v3547, %v3539
    %v3556 = vpack.c.b16 %v3548, %v3540
    %v3557 = vpack.c.b16 %v3549, %v3541
    %v3558 = vpack.c.b16 %v3550, %v3542
    %v3559 = vpack.c.b16 %v3551, %v3543
    %v3560 = vpack.c.b16 %v3552, %v3544
    %3569 = vmatprep.subr.bf16.mxu0 %v3554
    %3570 = vmatpush1.bf16.xpose.msra.mxu0 %v3553
    %3571 = vmatprep.subr.bf16.mxu0 0
    %3572 = vmatpush1.bf16.xpose.msra.mxu0 0
    %3573 = vmatprep.subr.bf16.mxu0 0
    %3574 = vmatpush1.bf16.xpose.msra.mxu0 0
    %3575 = vmatprep.subr.bf16.mxu0 0
    %3576 = vmatpush1.bf16.xpose.msra.mxu0 0
    %3577 = vmatprep.subr.bf16.mxu0 0
    %3578 = vmatpush1.bf16.xpose.msra.mxu0 0
    %3579 = vmatprep.subr.bf16.mxu0 0
    %3580 = vmatpush1.bf16.xpose.msra.mxu0 0
    %3581 = vmatprep.subr.bf16.mxu0 0
    %3582 = vmatpush1.bf16.xpose.msra.mxu0 0
    %3583 = vmatprep.subr.bf16.mxu0 0
    %3584 = vmatpush1.bf16.xpose.msra.mxu0 0
    %3585 = vmatprep.subr.bf16.mxu0 0
    %3586 = vmatpush1.bf16.xpose.msra.mxu0 0
    %3587 = vmatprep.subr.bf16.mxu0 0
    %3588 = vmatpush1.bf16.xpose.msra.mxu0 0
    %3589 = vmatprep.subr.bf16.mxu0 0
    %3590 = vmatpush1.bf16.xpose.msra.mxu0 0
    %3591 = vmatprep.subr.bf16.mxu0 0
    %3592 = vmatpush1.bf16.xpose.msra.mxu0 0
    %3593 = vmatprep.subr.bf16.mxu0 0
    %3594 = vmatpush1.bf16.xpose.msra.mxu0 0
    %3595 = vmatprep.subr.bf16.mxu0 0
    %3596 = vmatpush1.bf16.xpose.msra.mxu0 0
    %3597 = vmatprep.subr.bf16.mxu0 0
    %3598 = vmatpush1.bf16.xpose.msra.mxu0 0
    %3599 = vmatprep.subr.bf16.mxu0 0
    %3600 = vmatpush1.bf16.xpose.msra.mxu0 0
    %3601 = vmatprep.mubr.bf16.mxu0 %v3514
    %3602 = vmatmul.mubr.bf16.gmra.mrb[0].mxu0 %v3513
    %v3603 = vpop.f32.mrb[0].mxu0
    %v3604 = vadd.f32 %v1986, %v3603
    %v3605 = vpop.f32.mrb[0].mxu0
    %v3606 = vpop.f32.mrb[0].mxu0
    %v3607 = vpop.f32.mrb[0].mxu0
    %3608 = vdwg.mxu0
    %3609 = vmatprep.subr.bf16.mxu0 %v3556
    %3610 = vmatpush1.bf16.xpose.msra.mxu0 %v3555
    %3611 = vmatprep.subr.bf16.mxu0 0
    %3612 = vmatpush1.bf16.xpose.msra.mxu0 0
    %3613 = vmatprep.subr.bf16.mxu0 0
    %3614 = vmatpush1.bf16.xpose.msra.mxu0 0
    %3615 = vmatprep.subr.bf16.mxu0 0
    %3616 = vmatpush1.bf16.xpose.msra.mxu0 0
    %3617 = vmatprep.subr.bf16.mxu0 0
    %3618 = vmatpush1.bf16.xpose.msra.mxu0 0
    %3619 = vmatprep.subr.bf16.mxu0 0
    %3620 = vmatpush1.bf16.xpose.msra.mxu0 0
    %3621 = vmatprep.subr.bf16.mxu0 0
    %3622 = vmatpush1.bf16.xpose.msra.mxu0 0
    %3623 = vmatprep.subr.bf16.mxu0 0
    %3624 = vmatpush1.bf16.xpose.msra.mxu0 0
    %3625 = vmatprep.subr.bf16.mxu0 0
    %3626 = vmatpush1.bf16.xpose.msra.mxu0 0
    %3627 = vmatprep.subr.bf16.mxu0 0
    %3628 = vmatpush1.bf16.xpose.msra.mxu0 0
    %3629 = vmatprep.subr.bf16.mxu0 0
    %3630 = vmatpush1.bf16.xpose.msra.mxu0 0
    %3631 = vmatprep.subr.bf16.mxu0 0
    %3632 = vmatpush1.bf16.xpose.msra.mxu0 0
    %3633 = vmatprep.subr.bf16.mxu0 0
    %3634 = vmatpush1.bf16.xpose.msra.mxu0 0
    %3635 = vmatprep.subr.bf16.mxu0 0
    %3636 = vmatpush1.bf16.xpose.msra.mxu0 0
    %3637 = vmatprep.subr.bf16.mxu0 0
    %3638 = vmatpush1.bf16.xpose.msra.mxu0 0
    %3639 = vmatprep.subr.bf16.mxu0 0
    %3640 = vmatpush1.bf16.xpose.msra.mxu0 0
    %3641 = vmatprep.mubr.bf16.mxu0 %v3516
    %3642 = vmatmul.mubr.bf16.gmra.mrb[0].mxu0 %v3515
    %v3643 = vpop.f32.mrb[0].mxu0
    %v3644 = vadd.f32 %v3604, %v3643
    %v3645 = vpop.f32.mrb[0].mxu0
    %v3646 = vpop.f32.mrb[0].mxu0
    %v3647 = vpop.f32.mrb[0].mxu0
    %3648 = vdwg.mxu0
    %3649 = vmatprep.subr.bf16.mxu0 %v3558
    %3650 = vmatpush1.bf16.xpose.msra.mxu0 %v3557
    %3651 = vmatprep.subr.bf16.mxu0 0
    %3652 = vmatpush1.bf16.xpose.msra.mxu0 0
    %3653 = vmatprep.subr.bf16.mxu0 0
    %3654 = vmatpush1.bf16.xpose.msra.mxu0 0
    %3655 = vmatprep.subr.bf16.mxu0 0
    %3656 = vmatpush1.bf16.xpose.msra.mxu0 0
    %3657 = vmatprep.subr.bf16.mxu0 0
    %3658 = vmatpush1.bf16.xpose.msra.mxu0 0
    %3659 = vmatprep.subr.bf16.mxu0 0
    %3660 = vmatpush1.bf16.xpose.msra.mxu0 0
    %3661 = vmatprep.subr.bf16.mxu0 0
    %3662 = vmatpush1.bf16.xpose.msra.mxu0 0
    %3663 = vmatprep.subr.bf16.mxu0 0
    %3664 = vmatpush1.bf16.xpose.msra.mxu0 0
    %3665 = vmatprep.subr.bf16.mxu0 0
    %3666 = vmatpush1.bf16.xpose.msra.mxu0 0
    %3667 = vmatprep.subr.bf16.mxu0 0
    %3668 = vmatpush1.bf16.xpose.msra.mxu0 0
    %3669 = vmatprep.subr.bf16.mxu0 0
    %3670 = vmatpush1.bf16.xpose.msra.mxu0 0
    %3671 = vmatprep.subr.bf16.mxu0 0
    %3672 = vmatpush1.bf16.xpose.msra.mxu0 0
    %3673 = vmatprep.subr.bf16.mxu0 0
    %3674 = vmatpush1.bf16.xpose.msra.mxu0 0
    %3675 = vmatprep.subr.bf16.mxu0 0
    %3676 = vmatpush1.bf16.xpose.msra.mxu0 0
    %3677 = vmatprep.subr.bf16.mxu0 0
    %3678 = vmatpush1.bf16.xpose.msra.mxu0 0
    %3679 = vmatprep.subr.bf16.mxu0 0
    %3680 = vmatpush1.bf16.xpose.msra.mxu0 0
    %3681 = vmatprep.mubr.bf16.mxu0 %v3518
    %3682 = vmatmul.mubr.bf16.gmra.mrb[0].mxu0 %v3517
    %v3683 = vpop.f32.mrb[0].mxu0
    %v3684 = vadd.f32 %v3644, %v3683
    %v3685 = vpop.f32.mrb[0].mxu0
    %v3686 = vpop.f32.mrb[0].mxu0
    %v3687 = vpop.f32.mrb[0].mxu0
    %3688 = vdwg.mxu0
    %3689 = vmatprep.subr.bf16.mxu0 %v3560
    %3690 = vmatpush1.bf16.xpose.msra.mxu0 %v3559
    %3691 = vmatprep.subr.bf16.mxu0 0
    %3692 = vmatpush1.bf16.xpose.msra.mxu0 0
    %3693 = vmatprep.subr.bf16.mxu0 0
    %3694 = vmatpush1.bf16.xpose.msra.mxu0 0
    %3695 = vmatprep.subr.bf16.mxu0 0
    %3696 = vmatpush1.bf16.xpose.msra.mxu0 0
    %3697 = vmatprep.subr.bf16.mxu0 0
    %3698 = vmatpush1.bf16.xpose.msra.mxu0 0
    %3699 = vmatprep.subr.bf16.mxu0 0
    %3700 = vmatpush1.bf16.xpose.msra.mxu0 0
    %3701 = vmatprep.subr.bf16.mxu0 0
    %3702 = vmatpush1.bf16.xpose.msra.mxu0 0
    %3703 = vmatprep.subr.bf16.mxu0 0
    %3704 = vmatpush1.bf16.xpose.msra.mxu0 0
    %3705 = vmatprep.subr.bf16.mxu0 0
    %3706 = vmatpush1.bf16.xpose.msra.mxu0 0
    %3707 = vmatprep.subr.bf16.mxu0 0
    %3708 = vmatpush1.bf16.xpose.msra.mxu0 0
    %3709 = vmatprep.subr.bf16.mxu0 0
    %3710 = vmatpush1.bf16.xpose.msra.mxu0 0
    %3711 = vmatprep.subr.bf16.mxu0 0
    %3712 = vmatpush1.bf16.xpose.msra.mxu0 0
    %3713 = vmatprep.subr.bf16.mxu0 0
    %3714 = vmatpush1.bf16.xpose.msra.mxu0 0
    %3715 = vmatprep.subr.bf16.mxu0 0
    %3716 = vmatpush1.bf16.xpose.msra.mxu0 0
    %3717 = vmatprep.subr.bf16.mxu0 0
    %3718 = vmatpush1.bf16.xpose.msra.mxu0 0
    %3719 = vmatprep.subr.bf16.mxu0 0
    %3720 = vmatpush1.bf16.xpose.msra.mxu0 0
    %3721 = vmatprep.mubr.bf16.mxu0 %v3520
    %3722 = vmatmul.mubr.bf16.gmra.mrb[0].mxu0 %v3519
    %v3723 = vpop.f32.mrb[0].mxu0
    %v3724 = vadd.f32 %v3684, %v3723
    %v3725 = vpop.f32.mrb[0].mxu0
    %v3726 = vpop.f32.mrb[0].mxu0
    %v3727 = vpop.f32.mrb[0].mxu0
    %3728 = vdwg.mxu0
    %v3729 = vrot.slane %v330, 7
    %v3730 = vrot.slane %v331, 7
    %v3731 = vrot.slane %v332, 7
    %v3732 = vrot.slane %v333, 7
    %v3733 = vrot.slane %v334, 7
    %v3734 = vrot.slane %v335, 7
    %v3735 = vrot.slane %v336, 7
    %v3736 = vrot.slane %v337, 7
    %v3753 = vunpack.c.l.b16 %v1992
    %v3754 = vunpack.c.h.b16 %v1992
    %v3755 = vunpack.c.l.b16 %v1993
    %v3756 = vunpack.c.h.b16 %v1993
    %v3757 = vunpack.c.l.b16 %v1994
    %v3758 = vunpack.c.h.b16 %v1994
    %v3759 = vunpack.c.l.b16 %v1995
    %v3760 = vunpack.c.h.b16 %v1995
    %v3761 = vunpack.c.l.b16 %v1996
    %v3762 = vunpack.c.h.b16 %v1996
    %v3763 = vunpack.c.l.b16 %v1997
    %v3764 = vunpack.c.h.b16 %v1997
    %v3765 = vunpack.c.l.b16 %v1998
    %v3766 = vunpack.c.h.b16 %v1998
    %v3767 = vunpack.c.l.b16 %v1999
    %v3768 = vunpack.c.h.b16 %v1999
    %v3769 = vpack.c.b16 %v3761, %v3753
    %v3770 = vpack.c.b16 %v3762, %v3754
    %v3771 = vpack.c.b16 %v3763, %v3755
    %v3772 = vpack.c.b16 %v3764, %v3756
    %v3773 = vpack.c.b16 %v3765, %v3757
    %v3774 = vpack.c.b16 %v3766, %v3758
    %v3775 = vpack.c.b16 %v3767, %v3759
    %v3776 = vpack.c.b16 %v3768, %v3760
    %3785 = vmatprep.subr.bf16.mxu0 %v3770
    %3786 = vmatpush1.bf16.xpose.msra.mxu0 %v3769
    %3787 = vmatprep.subr.bf16.mxu0 0
    %3788 = vmatpush1.bf16.xpose.msra.mxu0 0
    %3789 = vmatprep.subr.bf16.mxu0 0
    %3790 = vmatpush1.bf16.xpose.msra.mxu0 0
    %3791 = vmatprep.subr.bf16.mxu0 0
    %3792 = vmatpush1.bf16.xpose.msra.mxu0 0
    %3793 = vmatprep.subr.bf16.mxu0 0
    %3794 = vmatpush1.bf16.xpose.msra.mxu0 0
    %3795 = vmatprep.subr.bf16.mxu0 0
    %3796 = vmatpush1.bf16.xpose.msra.mxu0 0
    %3797 = vmatprep.subr.bf16.mxu0 0
    %3798 = vmatpush1.bf16.xpose.msra.mxu0 0
    %3799 = vmatprep.subr.bf16.mxu0 0
    %3800 = vmatpush1.bf16.xpose.msra.mxu0 0
    %3801 = vmatprep.subr.bf16.mxu0 0
    %3802 = vmatpush1.bf16.xpose.msra.mxu0 0
    %3803 = vmatprep.subr.bf16.mxu0 0
    %3804 = vmatpush1.bf16.xpose.msra.mxu0 0
    %3805 = vmatprep.subr.bf16.mxu0 0
    %3806 = vmatpush1.bf16.xpose.msra.mxu0 0
    %3807 = vmatprep.subr.bf16.mxu0 0
    %3808 = vmatpush1.bf16.xpose.msra.mxu0 0
    %3809 = vmatprep.subr.bf16.mxu0 0
    %3810 = vmatpush1.bf16.xpose.msra.mxu0 0
    %3811 = vmatprep.subr.bf16.mxu0 0
    %3812 = vmatpush1.bf16.xpose.msra.mxu0 0
    %3813 = vmatprep.subr.bf16.mxu0 0
    %3814 = vmatpush1.bf16.xpose.msra.mxu0 0
    %3815 = vmatprep.subr.bf16.mxu0 0
    %3816 = vmatpush1.bf16.xpose.msra.mxu0 0
    %3817 = vmatprep.mubr.bf16.mxu0 %v3730
    %3818 = vmatmul.mubr.bf16.gmra.mrb[0].mxu0 %v3729
    %v3819 = vpop.f32.mrb[0].mxu0
    %v3820 = vadd.f32 %v2220, %v3819
    %v3821 = vpop.f32.mrb[0].mxu0
    %v3822 = vpop.f32.mrb[0].mxu0
    %v3823 = vpop.f32.mrb[0].mxu0
    %3824 = vdwg.mxu0
    %3825 = vmatprep.subr.bf16.mxu0 %v3772
    %3826 = vmatpush1.bf16.xpose.msra.mxu0 %v3771
    %3827 = vmatprep.subr.bf16.mxu0 0
    %3828 = vmatpush1.bf16.xpose.msra.mxu0 0
    %3829 = vmatprep.subr.bf16.mxu0 0
    %3830 = vmatpush1.bf16.xpose.msra.mxu0 0
    %3831 = vmatprep.subr.bf16.mxu0 0
    %3832 = vmatpush1.bf16.xpose.msra.mxu0 0
    %3833 = vmatprep.subr.bf16.mxu0 0
    %3834 = vmatpush1.bf16.xpose.msra.mxu0 0
    %3835 = vmatprep.subr.bf16.mxu0 0
    %3836 = vmatpush1.bf16.xpose.msra.mxu0 0
    %3837 = vmatprep.subr.bf16.mxu0 0
    %3838 = vmatpush1.bf16.xpose.msra.mxu0 0
    %3839 = vmatprep.subr.bf16.mxu0 0
    %3840 = vmatpush1.bf16.xpose.msra.mxu0 0
    %3841 = vmatprep.subr.bf16.mxu0 0
    %3842 = vmatpush1.bf16.xpose.msra.mxu0 0
    %3843 = vmatprep.subr.bf16.mxu0 0
    %3844 = vmatpush1.bf16.xpose.msra.mxu0 0
    %3845 = vmatprep.subr.bf16.mxu0 0
    %3846 = vmatpush1.bf16.xpose.msra.mxu0 0
    %3847 = vmatprep.subr.bf16.mxu0 0
    %3848 = vmatpush1.bf16.xpose.msra.mxu0 0
    %3849 = vmatprep.subr.bf16.mxu0 0
    %3850 = vmatpush1.bf16.xpose.msra.mxu0 0
    %3851 = vmatprep.subr.bf16.mxu0 0
    %3852 = vmatpush1.bf16.xpose.msra.mxu0 0
    %3853 = vmatprep.subr.bf16.mxu0 0
    %3854 = vmatpush1.bf16.xpose.msra.mxu0 0
    %3855 = vmatprep.subr.bf16.mxu0 0
    %3856 = vmatpush1.bf16.xpose.msra.mxu0 0
    %3857 = vmatprep.mubr.bf16.mxu0 %v3732
    %3858 = vmatmul.mubr.bf16.gmra.mrb[0].mxu0 %v3731
    %v3859 = vpop.f32.mrb[0].mxu0
    %v3860 = vadd.f32 %v3820, %v3859
    %v3861 = vpop.f32.mrb[0].mxu0
    %v3862 = vpop.f32.mrb[0].mxu0
    %v3863 = vpop.f32.mrb[0].mxu0
    %3864 = vdwg.mxu0
    %3865 = vmatprep.subr.bf16.mxu0 %v3774
    %3866 = vmatpush1.bf16.xpose.msra.mxu0 %v3773
    %3867 = vmatprep.subr.bf16.mxu0 0
    %3868 = vmatpush1.bf16.xpose.msra.mxu0 0
    %3869 = vmatprep.subr.bf16.mxu0 0
    %3870 = vmatpush1.bf16.xpose.msra.mxu0 0
    %3871 = vmatprep.subr.bf16.mxu0 0
    %3872 = vmatpush1.bf16.xpose.msra.mxu0 0
    %3873 = vmatprep.subr.bf16.mxu0 0
    %3874 = vmatpush1.bf16.xpose.msra.mxu0 0
    %3875 = vmatprep.subr.bf16.mxu0 0
    %3876 = vmatpush1.bf16.xpose.msra.mxu0 0
    %3877 = vmatprep.subr.bf16.mxu0 0
    %3878 = vmatpush1.bf16.xpose.msra.mxu0 0
    %3879 = vmatprep.subr.bf16.mxu0 0
    %3880 = vmatpush1.bf16.xpose.msra.mxu0 0
    %3881 = vmatprep.subr.bf16.mxu0 0
    %3882 = vmatpush1.bf16.xpose.msra.mxu0 0
    %3883 = vmatprep.subr.bf16.mxu0 0
    %3884 = vmatpush1.bf16.xpose.msra.mxu0 0
    %3885 = vmatprep.subr.bf16.mxu0 0
    %3886 = vmatpush1.bf16.xpose.msra.mxu0 0
    %3887 = vmatprep.subr.bf16.mxu0 0
    %3888 = vmatpush1.bf16.xpose.msra.mxu0 0
    %3889 = vmatprep.subr.bf16.mxu0 0
    %3890 = vmatpush1.bf16.xpose.msra.mxu0 0
    %3891 = vmatprep.subr.bf16.mxu0 0
    %3892 = vmatpush1.bf16.xpose.msra.mxu0 0
    %3893 = vmatprep.subr.bf16.mxu0 0
    %3894 = vmatpush1.bf16.xpose.msra.mxu0 0
    %3895 = vmatprep.subr.bf16.mxu0 0
    %3896 = vmatpush1.bf16.xpose.msra.mxu0 0
    %3897 = vmatprep.mubr.bf16.mxu0 %v3734
    %3898 = vmatmul.mubr.bf16.gmra.mrb[0].mxu0 %v3733
    %v3899 = vpop.f32.mrb[0].mxu0
    %v3900 = vadd.f32 %v3860, %v3899
    %v3901 = vpop.f32.mrb[0].mxu0
    %v3902 = vpop.f32.mrb[0].mxu0
    %v3903 = vpop.f32.mrb[0].mxu0
    %3904 = vdwg.mxu0
    %3905 = vmatprep.subr.bf16.mxu0 %v3776
    %3906 = vmatpush1.bf16.xpose.msra.mxu0 %v3775
    %3907 = vmatprep.subr.bf16.mxu0 0
    %3908 = vmatpush1.bf16.xpose.msra.mxu0 0
    %3909 = vmatprep.subr.bf16.mxu0 0
    %3910 = vmatpush1.bf16.xpose.msra.mxu0 0
    %3911 = vmatprep.subr.bf16.mxu0 0
    %3912 = vmatpush1.bf16.xpose.msra.mxu0 0
    %3913 = vmatprep.subr.bf16.mxu0 0
    %3914 = vmatpush1.bf16.xpose.msra.mxu0 0
    %3915 = vmatprep.subr.bf16.mxu0 0
    %3916 = vmatpush1.bf16.xpose.msra.mxu0 0
    %3917 = vmatprep.subr.bf16.mxu0 0
    %3918 = vmatpush1.bf16.xpose.msra.mxu0 0
    %3919 = vmatprep.subr.bf16.mxu0 0
    %3920 = vmatpush1.bf16.xpose.msra.mxu0 0
    %3921 = vmatprep.subr.bf16.mxu0 0
    %3922 = vmatpush1.bf16.xpose.msra.mxu0 0
    %3923 = vmatprep.subr.bf16.mxu0 0
    %3924 = vmatpush1.bf16.xpose.msra.mxu0 0
    %3925 = vmatprep.subr.bf16.mxu0 0
    %3926 = vmatpush1.bf16.xpose.msra.mxu0 0
    %3927 = vmatprep.subr.bf16.mxu0 0
    %3928 = vmatpush1.bf16.xpose.msra.mxu0 0
    %3929 = vmatprep.subr.bf16.mxu0 0
    %3930 = vmatpush1.bf16.xpose.msra.mxu0 0
    %3931 = vmatprep.subr.bf16.mxu0 0
    %3932 = vmatpush1.bf16.xpose.msra.mxu0 0
    %3933 = vmatprep.subr.bf16.mxu0 0
    %3934 = vmatpush1.bf16.xpose.msra.mxu0 0
    %3935 = vmatprep.subr.bf16.mxu0 0
    %3936 = vmatpush1.bf16.xpose.msra.mxu0 0
    %3937 = vmatprep.mubr.bf16.mxu0 %v3736
    %3938 = vmatmul.mubr.bf16.gmra.mrb[0].mxu0 %v3735
    %v3939 = vpop.f32.mrb[0].mxu0
    %v3940 = vadd.f32 %v3900, %v3939
    %v3941 = vpop.f32.mrb[0].mxu0
    %v3942 = vpop.f32.mrb[0].mxu0
    %v3943 = vpop.f32.mrb[0].mxu0
    %3944 = vdwg.mxu0
    %v3945 = vadd.f32 %v2420, %v2644
    %v3946 = vadd.f32 %v2860, %v3076
    %v3947 = vadd.f32 %v3292, %v3508
    %v3948 = vadd.f32 %v3724, %v3940
    %v3949 = vadd.f32 %v3945, %v3946
    %v3950 = vadd.f32 %v3947, %v3948
    %v3951 = vadd.f32 %v3949, %v3950
    %v3952 = vadd.f32 %v3951, %v26
    %s3953 = scalar_lea.vmem %s0, 128
    %v3954 = vld [vmem:[%s3953] sm:$0xff]
    %v3955 = vld [vmem:[%s3953 + $0x8] sm:$0xff]
    %v3956 = vld [vmem:[%s3953 + $0x10] sm:$0xff]
    %v3957 = vld [vmem:[%s3953 + $0x18] sm:$0xff]
    %v3958 = vld [vmem:[%s3953 + $0x20] sm:$0xff]
    %v3959 = vld [vmem:[%s3953 + $0x28] sm:$0xff]
    %v3960 = vld [vmem:[%s3953 + $0x30] sm:$0xff]
    %v3961 = vld [vmem:[%s3953 + $0x38] sm:$0xff]
    %v3962 = vld [vmem:[%s3953 + $0x40] sm:$0xff]
    %v3963 = vld [vmem:[%s3953 + $0x48] sm:$0xff]
    %v3964 = vld [vmem:[%s3953 + $0x50] sm:$0xff]
    %v3965 = vld [vmem:[%s3953 + $0x58] sm:$0xff]
    %v3966 = vld [vmem:[%s3953 + $0x60] sm:$0xff]
    %v3967 = vld [vmem:[%s3953 + $0x68] sm:$0xff]
    %v3968 = vld [vmem:[%s3953 + $0x70] sm:$0xff]
    %v3969 = vld [vmem:[%s3953 + $0x78] sm:$0xff]
    %v3986 = vunpack.c.l.b16 %v3954
    %v3987 = vunpack.c.h.b16 %v3954
    %v3988 = vunpack.c.l.b16 %v3955
    %v3989 = vunpack.c.h.b16 %v3955
    %v3990 = vunpack.c.l.b16 %v3956
    %v3991 = vunpack.c.h.b16 %v3956
    %v3992 = vunpack.c.l.b16 %v3957
    %v3993 = vunpack.c.h.b16 %v3957
    %v3994 = vunpack.c.l.b16 %v3958
    %v3995 = vunpack.c.h.b16 %v3958
    %v3996 = vunpack.c.l.b16 %v3959
    %v3997 = vunpack.c.h.b16 %v3959
    %v3998 = vunpack.c.l.b16 %v3960
    %v3999 = vunpack.c.h.b16 %v3960
    %v4000 = vunpack.c.l.b16 %v3961
    %v4001 = vunpack.c.h.b16 %v3961
    %v4002 = vunpack.c.l.b16 %v3962
    %v4003 = vunpack.c.h.b16 %v3962
    %v4004 = vunpack.c.l.b16 %v3963
    %v4005 = vunpack.c.h.b16 %v3963
    %v4006 = vunpack.c.l.b16 %v3964
    %v4007 = vunpack.c.h.b16 %v3964
    %v4008 = vunpack.c.l.b16 %v3965
    %v4009 = vunpack.c.h.b16 %v3965
    %v4010 = vunpack.c.l.b16 %v3966
    %v4011 = vunpack.c.h.b16 %v3966
    %v4012 = vunpack.c.l.b16 %v3967
    %v4013 = vunpack.c.h.b16 %v3967
    %v4014 = vunpack.c.l.b16 %v3968
    %v4015 = vunpack.c.h.b16 %v3968
    %v4016 = vunpack.c.l.b16 %v3969
    %v4017 = vunpack.c.h.b16 %v3969
    %v4018 = vpack.c.b16 %v3994, %v3986
    %v4019 = vpack.c.b16 %v3995, %v3987
    %v4020 = vpack.c.b16 %v3996, %v3988
    %v4021 = vpack.c.b16 %v3997, %v3989
    %v4022 = vpack.c.b16 %v3998, %v3990
    %v4023 = vpack.c.b16 %v3999, %v3991
    %v4024 = vpack.c.b16 %v4000, %v3992
    %v4025 = vpack.c.b16 %v4001, %v3993
    %v4026 = vpack.c.b16 %v4010, %v4002
    %v4027 = vpack.c.b16 %v4011, %v4003
    %v4028 = vpack.c.b16 %v4012, %v4004
    %v4029 = vpack.c.b16 %v4013, %v4005
    %v4030 = vpack.c.b16 %v4014, %v4006
    %v4031 = vpack.c.b16 %v4015, %v4007
    %v4032 = vpack.c.b16 %v4016, %v4008
    %v4033 = vpack.c.b16 %v4017, %v4009
    %4050 = vmatprep.subr.bf16.mxu0 %v4019
    %4051 = vmatpush1.bf16.msra.mxu0 %v4018
    %4052 = vmatprep.subr.bf16.mxu0 %v4027
    %4053 = vmatpush1.bf16.msra.mxu0 %v4026
    %4054 = vmatprep.subr.bf16.mxu0 0
    %4055 = vmatpush1.bf16.msra.mxu0 0
    %4056 = vmatprep.subr.bf16.mxu0 0
    %4057 = vmatpush1.bf16.msra.mxu0 0
    %4058 = vmatprep.subr.bf16.mxu0 0
    %4059 = vmatpush1.bf16.msra.mxu0 0
    %4060 = vmatprep.subr.bf16.mxu0 0
    %4061 = vmatpush1.bf16.msra.mxu0 0
    %4062 = vmatprep.subr.bf16.mxu0 0
    %4063 = vmatpush1.bf16.msra.mxu0 0
    %4064 = vmatprep.subr.bf16.mxu0 0
    %4065 = vmatpush1.bf16.msra.mxu0 0
    %4066 = vmatprep.subr.bf16.mxu0 0
    %4067 = vmatpush1.bf16.msra.mxu0 0
    %4068 = vmatprep.subr.bf16.mxu0 0
    %4069 = vmatpush1.bf16.msra.mxu0 0
    %4070 = vmatprep.subr.bf16.mxu0 0
    %4071 = vmatpush1.bf16.msra.mxu0 0
    %4072 = vmatprep.subr.bf16.mxu0 0
    %4073 = vmatpush1.bf16.msra.mxu0 0
    %4074 = vmatprep.subr.bf16.mxu0 0
    %4075 = vmatpush1.bf16.msra.mxu0 0
    %4076 = vmatprep.subr.bf16.mxu0 0
    %4077 = vmatpush1.bf16.msra.mxu0 0
    %4078 = vmatprep.subr.bf16.mxu0 0
    %4079 = vmatpush1.bf16.msra.mxu0 0
    %4080 = vmatprep.subr.bf16.mxu0 0
    %4081 = vmatpush1.bf16.msra.mxu0 0
    %4082 = vmatprep.mubr.bf16.mxu0 0
    %4083 = vmatmul.mubr.bf16.gmra.mrb[0].mxu0 %v140
    %v4084 = vpop.f32.mrb[0].mxu0
    %v4085 = vadd.f32 %v46, %v4084
    %v4086 = vpop.f32.mrb[0].mxu0
    %v4087 = vadd.f32 %v46, %v4086
    %v4088 = vpop.f32.mrb[0].mxu0
    %v4089 = vadd.f32 %v51, %v4088
    %v4090 = vpop.f32.mrb[0].mxu0
    %v4091 = vadd.f32 %v51, %v4090
    %4092 = vdwg.mxu0
    %4093 = vmatprep.subr.bf16.mxu0 %v4021
    %4094 = vmatpush1.bf16.msra.mxu0 %v4020
    %4095 = vmatprep.subr.bf16.mxu0 %v4029
    %4096 = vmatpush1.bf16.msra.mxu0 %v4028
    %4097 = vmatprep.subr.bf16.mxu0 0
    %4098 = vmatpush1.bf16.msra.mxu0 0
    %4099 = vmatprep.subr.bf16.mxu0 0
    %4100 = vmatpush1.bf16.msra.mxu0 0
    %4101 = vmatprep.subr.bf16.mxu0 0
    %4102 = vmatpush1.bf16.msra.mxu0 0
    %4103 = vmatprep.subr.bf16.mxu0 0
    %4104 = vmatpush1.bf16.msra.mxu0 0
    %4105 = vmatprep.subr.bf16.mxu0 0
    %4106 = vmatpush1.bf16.msra.mxu0 0
    %4107 = vmatprep.subr.bf16.mxu0 0
    %4108 = vmatpush1.bf16.msra.mxu0 0
    %4109 = vmatprep.subr.bf16.mxu0 0
    %4110 = vmatpush1.bf16.msra.mxu0 0
    %4111 = vmatprep.subr.bf16.mxu0 0
    %4112 = vmatpush1.bf16.msra.mxu0 0
    %4113 = vmatprep.subr.bf16.mxu0 0
    %4114 = vmatpush1.bf16.msra.mxu0 0
    %4115 = vmatprep.subr.bf16.mxu0 0
    %4116 = vmatpush1.bf16.msra.mxu0 0
    %4117 = vmatprep.subr.bf16.mxu0 0
    %4118 = vmatpush1.bf16.msra.mxu0 0
    %4119 = vmatprep.subr.bf16.mxu0 0
    %4120 = vmatpush1.bf16.msra.mxu0 0
    %4121 = vmatprep.subr.bf16.mxu0 0
    %4122 = vmatpush1.bf16.msra.mxu0 0
    %4123 = vmatprep.subr.bf16.mxu0 0
    %4124 = vmatpush1.bf16.msra.mxu0 0
    %4125 = vmatprep.mubr.bf16.mxu0 0
    %4126 = vmatmul.mubr.bf16.gmra.mrb[0].mxu0 %v140
    %v4127 = vpop.f32.mrb[0].mxu0
    %v4128 = vadd.f32 %v46, %v4127
    %v4129 = vpop.f32.mrb[0].mxu0
    %v4130 = vadd.f32 %v46, %v4129
    %v4131 = vpop.f32.mrb[0].mxu0
    %v4132 = vadd.f32 %v51, %v4131
    %v4133 = vpop.f32.mrb[0].mxu0
    %v4134 = vadd.f32 %v51, %v4133
    %4135 = vdwg.mxu0
    %4136 = vmatprep.subr.bf16.mxu0 %v4023
    %4137 = vmatpush1.bf16.msra.mxu0 %v4022
    %4138 = vmatprep.subr.bf16.mxu0 %v4031
    %4139 = vmatpush1.bf16.msra.mxu0 %v4030
    %4140 = vmatprep.subr.bf16.mxu0 0
    %4141 = vmatpush1.bf16.msra.mxu0 0
    %4142 = vmatprep.subr.bf16.mxu0 0
    %4143 = vmatpush1.bf16.msra.mxu0 0
    %4144 = vmatprep.subr.bf16.mxu0 0
    %4145 = vmatpush1.bf16.msra.mxu0 0
    %4146 = vmatprep.subr.bf16.mxu0 0
    %4147 = vmatpush1.bf16.msra.mxu0 0
    %4148 = vmatprep.subr.bf16.mxu0 0
    %4149 = vmatpush1.bf16.msra.mxu0 0
    %4150 = vmatprep.subr.bf16.mxu0 0
    %4151 = vmatpush1.bf16.msra.mxu0 0
    %4152 = vmatprep.subr.bf16.mxu0 0
    %4153 = vmatpush1.bf16.msra.mxu0 0
    %4154 = vmatprep.subr.bf16.mxu0 0
    %4155 = vmatpush1.bf16.msra.mxu0 0
    %4156 = vmatprep.subr.bf16.mxu0 0
    %4157 = vmatpush1.bf16.msra.mxu0 0
    %4158 = vmatprep.subr.bf16.mxu0 0
    %4159 = vmatpush1.bf16.msra.mxu0 0
    %4160 = vmatprep.subr.bf16.mxu0 0
    %4161 = vmatpush1.bf16.msra.mxu0 0
    %4162 = vmatprep.subr.bf16.mxu0 0
    %4163 = vmatpush1.bf16.msra.mxu0 0
    %4164 = vmatprep.subr.bf16.mxu0 0
    %4165 = vmatpush1.bf16.msra.mxu0 0
    %4166 = vmatprep.subr.bf16.mxu0 0
    %4167 = vmatpush1.bf16.msra.mxu0 0
    %4168 = vmatprep.mubr.bf16.mxu0 0
    %4169 = vmatmul.mubr.bf16.gmra.mrb[0].mxu0 %v140
    %v4170 = vpop.f32.mrb[0].mxu0
    %v4171 = vadd.f32 %v46, %v4170
    %v4172 = vpop.f32.mrb[0].mxu0
    %v4173 = vadd.f32 %v46, %v4172
    %v4174 = vpop.f32.mrb[0].mxu0
    %v4175 = vadd.f32 %v51, %v4174
    %v4176 = vpop.f32.mrb[0].mxu0
    %v4177 = vadd.f32 %v51, %v4176
    %4178 = vdwg.mxu0
    %4179 = vmatprep.subr.bf16.mxu0 %v4025
    %4180 = vmatpush1.bf16.msra.mxu0 %v4024
    %4181 = vmatprep.subr.bf16.mxu0 %v4033
    %4182 = vmatpush1.bf16.msra.mxu0 %v4032
    %4183 = vmatprep.subr.bf16.mxu0 0
    %4184 = vmatpush1.bf16.msra.mxu0 0
    %4185 = vmatprep.subr.bf16.mxu0 0
    %4186 = vmatpush1.bf16.msra.mxu0 0
    %4187 = vmatprep.subr.bf16.mxu0 0
    %4188 = vmatpush1.bf16.msra.mxu0 0
    %4189 = vmatprep.subr.bf16.mxu0 0
    %4190 = vmatpush1.bf16.msra.mxu0 0
    %4191 = vmatprep.subr.bf16.mxu0 0
    %4192 = vmatpush1.bf16.msra.mxu0 0
    %4193 = vmatprep.subr.bf16.mxu0 0
    %4194 = vmatpush1.bf16.msra.mxu0 0
    %4195 = vmatprep.subr.bf16.mxu0 0
    %4196 = vmatpush1.bf16.msra.mxu0 0
    %4197 = vmatprep.subr.bf16.mxu0 0
    %4198 = vmatpush1.bf16.msra.mxu0 0
    %4199 = vmatprep.subr.bf16.mxu0 0
    %4200 = vmatpush1.bf16.msra.mxu0 0
    %4201 = vmatprep.subr.bf16.mxu0 0
    %4202 = vmatpush1.bf16.msra.mxu0 0
    %4203 = vmatprep.subr.bf16.mxu0 0
    %4204 = vmatpush1.bf16.msra.mxu0 0
    %4205 = vmatprep.subr.bf16.mxu0 0
    %4206 = vmatpush1.bf16.msra.mxu0 0
    %4207 = vmatprep.subr.bf16.mxu0 0
    %4208 = vmatpush1.bf16.msra.mxu0 0
    %4209 = vmatprep.subr.bf16.mxu0 0
    %4210 = vmatpush1.bf16.msra.mxu0 0
    %4211 = vmatprep.mubr.bf16.mxu0 0
    %4212 = vmatmul.mubr.bf16.gmra.mrb[0].mxu0 %v140
    %v4213 = vpop.f32.mrb[0].mxu0
    %v4214 = vadd.f32 %v46, %v4213
    %v4215 = vpop.f32.mrb[0].mxu0
    %v4216 = vadd.f32 %v46, %v4215
    %v4217 = vpop.f32.mrb[0].mxu0
    %v4218 = vadd.f32 %v51, %v4217
    %v4219 = vpop.f32.mrb[0].mxu0
    %v4220 = vadd.f32 %v51, %v4219
    %4221 = vdwg.mxu0
    %v4222 = vmax.f32 %v4085, 0.0
    %v4223 = vmax.f32 %v4087, 0.0
    %v4224 = vmax.f32 %v4128, 0.0
    %v4225 = vmax.f32 %v4130, 0.0
    %v4226 = vmax.f32 %v4171, 0.0
    %v4227 = vmax.f32 %v4173, 0.0
    %v4228 = vmax.f32 %v4214, 0.0
    %v4229 = vmax.f32 %v4216, 0.0
    %v4230 = vmax.f32 %v4089, 0.0
    %v4231 = vmax.f32 %v4091, 0.0
    %v4232 = vmax.f32 %v4132, 0.0
    %v4233 = vmax.f32 %v4134, 0.0
    %v4234 = vmax.f32 %v4175, 0.0
    %v4235 = vmax.f32 %v4177, 0.0
    %v4236 = vmax.f32 %v4218, 0.0
    %v4237 = vmax.f32 %v4220, 0.0
    %v4238 = vpack.c.bf16 %v4230, %v4222
    %v4239 = vpack.c.bf16 %v4231, %v4223
    %v4240 = vpack.c.bf16 %v4232, %v4224
    %v4241 = vpack.c.bf16 %v4233, %v4225
    %v4242 = vpack.c.bf16 %v4234, %v4226
    %v4243 = vpack.c.bf16 %v4235, %v4227
    %v4244 = vpack.c.bf16 %v4236, %v4228
    %v4245 = vpack.c.bf16 %v4237, %v4229
    %v4247 = vshrl.u32 %v4238, 16
    %v4250 = vshrl.u32 %v4239, 16
    %v4253 = vshrl.u32 %v4240, 16
    %v4256 = vshrl.u32 %v4241, 16
    %v4259 = vshrl.u32 %v4242, 16
    %v4262 = vshrl.u32 %v4243, 16
    %v4265 = vshrl.u32 %v4244, 16
    %v4268 = vshrl.u32 %v4245, 16
    %4278 = vmatprep.subr.bf16.mxu0 %v412
    %4279 = vmatpush1.bf16.xpose.msra.mxu0 %v411
    %4280 = vmatprep.subr.bf16.mxu0 0
    %4281 = vmatpush1.bf16.xpose.msra.mxu0 0
    %4282 = vmatprep.subr.bf16.mxu0 0
    %4283 = vmatpush1.bf16.xpose.msra.mxu0 0
    %4284 = vmatprep.subr.bf16.mxu0 0
    %4285 = vmatpush1.bf16.xpose.msra.mxu0 0
    %4286 = vmatprep.subr.bf16.mxu0 0
    %4287 = vmatpush1.bf16.xpose.msra.mxu0 0
    %4288 = vmatprep.subr.bf16.mxu0 0
    %4289 = vmatpush1.bf16.xpose.msra.mxu0 0
    %4290 = vmatprep.subr.bf16.mxu0 0
    %4291 = vmatpush1.bf16.xpose.msra.mxu0 0
    %4292 = vmatprep.subr.bf16.mxu0 0
    %4293 = vmatpush1.bf16.xpose.msra.mxu0 0
    %4294 = vmatprep.subr.bf16.mxu0 0
    %4295 = vmatpush1.bf16.xpose.msra.mxu0 0
    %4296 = vmatprep.subr.bf16.mxu0 0
    %4297 = vmatpush1.bf16.xpose.msra.mxu0 0
    %4298 = vmatprep.subr.bf16.mxu0 0
    %4299 = vmatpush1.bf16.xpose.msra.mxu0 0
    %4300 = vmatprep.subr.bf16.mxu0 0
    %4301 = vmatpush1.bf16.xpose.msra.mxu0 0
    %4302 = vmatprep.subr.bf16.mxu0 0
    %4303 = vmatpush1.bf16.xpose.msra.mxu0 0
    %4304 = vmatprep.subr.bf16.mxu0 0
    %4305 = vmatpush1.bf16.xpose.msra.mxu0 0
    %4306 = vmatprep.subr.bf16.mxu0 0
    %4307 = vmatpush1.bf16.xpose.msra.mxu0 0
    %4308 = vmatprep.subr.bf16.mxu0 0
    %4309 = vmatpush1.bf16.xpose.msra.mxu0 0
    %4310 = vmatprep.mubr.bf16.mxu0 %v4250
    %4311 = vmatmul.mubr.bf16.gmra.mrb[0].mxu0 %v4247
    %v4312 = vpop.f32.mrb[0].mxu0
    %v4313 = vadd.f32 0.0, %v4312
    %v4314 = vpop.f32.mrb[0].mxu0
    %v4315 = vpop.f32.mrb[0].mxu0
    %v4316 = vpop.f32.mrb[0].mxu0
    %4317 = vdwg.mxu0
    %4318 = vmatprep.subr.bf16.mxu0 %v414
    %4319 = vmatpush1.bf16.xpose.msra.mxu0 %v413
    %4320 = vmatprep.subr.bf16.mxu0 0
    %4321 = vmatpush1.bf16.xpose.msra.mxu0 0
    %4322 = vmatprep.subr.bf16.mxu0 0
    %4323 = vmatpush1.bf16.xpose.msra.mxu0 0
    %4324 = vmatprep.subr.bf16.mxu0 0
    %4325 = vmatpush1.bf16.xpose.msra.mxu0 0
    %4326 = vmatprep.subr.bf16.mxu0 0
    %4327 = vmatpush1.bf16.xpose.msra.mxu0 0
    %4328 = vmatprep.subr.bf16.mxu0 0
    %4329 = vmatpush1.bf16.xpose.msra.mxu0 0
    %4330 = vmatprep.subr.bf16.mxu0 0
    %4331 = vmatpush1.bf16.xpose.msra.mxu0 0
    %4332 = vmatprep.subr.bf16.mxu0 0
    %4333 = vmatpush1.bf16.xpose.msra.mxu0 0
    %4334 = vmatprep.subr.bf16.mxu0 0
    %4335 = vmatpush1.bf16.xpose.msra.mxu0 0
    %4336 = vmatprep.subr.bf16.mxu0 0
    %4337 = vmatpush1.bf16.xpose.msra.mxu0 0
    %4338 = vmatprep.subr.bf16.mxu0 0
    %4339 = vmatpush1.bf16.xpose.msra.mxu0 0
    %4340 = vmatprep.subr.bf16.mxu0 0
    %4341 = vmatpush1.bf16.xpose.msra.mxu0 0
    %4342 = vmatprep.subr.bf16.mxu0 0
    %4343 = vmatpush1.bf16.xpose.msra.mxu0 0
    %4344 = vmatprep.subr.bf16.mxu0 0
    %4345 = vmatpush1.bf16.xpose.msra.mxu0 0
    %4346 = vmatprep.subr.bf16.mxu0 0
    %4347 = vmatpush1.bf16.xpose.msra.mxu0 0
    %4348 = vmatprep.subr.bf16.mxu0 0
    %4349 = vmatpush1.bf16.xpose.msra.mxu0 0
    %4350 = vmatprep.mubr.bf16.mxu0 %v4256
    %4351 = vmatmul.mubr.bf16.gmra.mrb[0].mxu0 %v4253
    %v4352 = vpop.f32.mrb[0].mxu0
    %v4353 = vadd.f32 %v4313, %v4352
    %v4354 = vpop.f32.mrb[0].mxu0
    %v4355 = vpop.f32.mrb[0].mxu0
    %v4356 = vpop.f32.mrb[0].mxu0
    %4357 = vdwg.mxu0
    %4358 = vmatprep.subr.bf16.mxu0 %v416
    %4359 = vmatpush1.bf16.xpose.msra.mxu0 %v415
    %4360 = vmatprep.subr.bf16.mxu0 0
    %4361 = vmatpush1.bf16.xpose.msra.mxu0 0
    %4362 = vmatprep.subr.bf16.mxu0 0
    %4363 = vmatpush1.bf16.xpose.msra.mxu0 0
    %4364 = vmatprep.subr.bf16.mxu0 0
    %4365 = vmatpush1.bf16.xpose.msra.mxu0 0
    %4366 = vmatprep.subr.bf16.mxu0 0
    %4367 = vmatpush1.bf16.xpose.msra.mxu0 0
    %4368 = vmatprep.subr.bf16.mxu0 0
    %4369 = vmatpush1.bf16.xpose.msra.mxu0 0
    %4370 = vmatprep.subr.bf16.mxu0 0
    %4371 = vmatpush1.bf16.xpose.msra.mxu0 0
    %4372 = vmatprep.subr.bf16.mxu0 0
    %4373 = vmatpush1.bf16.xpose.msra.mxu0 0
    %4374 = vmatprep.subr.bf16.mxu0 0
    %4375 = vmatpush1.bf16.xpose.msra.mxu0 0
    %4376 = vmatprep.subr.bf16.mxu0 0
    %4377 = vmatpush1.bf16.xpose.msra.mxu0 0
    %4378 = vmatprep.subr.bf16.mxu0 0
    %4379 = vmatpush1.bf16.xpose.msra.mxu0 0
    %4380 = vmatprep.subr.bf16.mxu0 0
    %4381 = vmatpush1.bf16.xpose.msra.mxu0 0
    %4382 = vmatprep.subr.bf16.mxu0 0
    %4383 = vmatpush1.bf16.xpose.msra.mxu0 0
    %4384 = vmatprep.subr.bf16.mxu0 0
    %4385 = vmatpush1.bf16.xpose.msra.mxu0 0
    %4386 = vmatprep.subr.bf16.mxu0 0
    %4387 = vmatpush1.bf16.xpose.msra.mxu0 0
    %4388 = vmatprep.subr.bf16.mxu0 0
    %4389 = vmatpush1.bf16.xpose.msra.mxu0 0
    %4390 = vmatprep.mubr.bf16.mxu0 %v4262
    %4391 = vmatmul.mubr.bf16.gmra.mrb[0].mxu0 %v4259
    %v4392 = vpop.f32.mrb[0].mxu0
    %v4393 = vadd.f32 %v4353, %v4392
    %v4394 = vpop.f32.mrb[0].mxu0
    %v4395 = vpop.f32.mrb[0].mxu0
    %v4396 = vpop.f32.mrb[0].mxu0
    %4397 = vdwg.mxu0
    %4398 = vmatprep.subr.bf16.mxu0 %v418
    %4399 = vmatpush1.bf16.xpose.msra.mxu0 %v417
    %4400 = vmatprep.subr.bf16.mxu0 0
    %4401 = vmatpush1.bf16.xpose.msra.mxu0 0
    %4402 = vmatprep.subr.bf16.mxu0 0
    %4403 = vmatpush1.bf16.xpose.msra.mxu0 0
    %4404 = vmatprep.subr.bf16.mxu0 0
    %4405 = vmatpush1.bf16.xpose.msra.mxu0 0
    %4406 = vmatprep.subr.bf16.mxu0 0
    %4407 = vmatpush1.bf16.xpose.msra.mxu0 0
    %4408 = vmatprep.subr.bf16.mxu0 0
    %4409 = vmatpush1.bf16.xpose.msra.mxu0 0
    %4410 = vmatprep.subr.bf16.mxu0 0
    %4411 = vmatpush1.bf16.xpose.msra.mxu0 0
    %4412 = vmatprep.subr.bf16.mxu0 0
    %4413 = vmatpush1.bf16.xpose.msra.mxu0 0
    %4414 = vmatprep.subr.bf16.mxu0 0
    %4415 = vmatpush1.bf16.xpose.msra.mxu0 0
    %4416 = vmatprep.subr.bf16.mxu0 0
    %4417 = vmatpush1.bf16.xpose.msra.mxu0 0
    %4418 = vmatprep.subr.bf16.mxu0 0
    %4419 = vmatpush1.bf16.xpose.msra.mxu0 0
    %4420 = vmatprep.subr.bf16.mxu0 0
    %4421 = vmatpush1.bf16.xpose.msra.mxu0 0
    %4422 = vmatprep.subr.bf16.mxu0 0
    %4423 = vmatpush1.bf16.xpose.msra.mxu0 0
    %4424 = vmatprep.subr.bf16.mxu0 0
    %4425 = vmatpush1.bf16.xpose.msra.mxu0 0
    %4426 = vmatprep.subr.bf16.mxu0 0
    %4427 = vmatpush1.bf16.xpose.msra.mxu0 0
    %4428 = vmatprep.subr.bf16.mxu0 0
    %4429 = vmatpush1.bf16.xpose.msra.mxu0 0
    %4430 = vmatprep.mubr.bf16.mxu0 %v4268
    %4431 = vmatmul.mubr.bf16.gmra.mrb[0].mxu0 %v4265
    %v4432 = vpop.f32.mrb[0].mxu0
    %v4433 = vadd.f32 %v4393, %v4432
    %v4434 = vpop.f32.mrb[0].mxu0
    %v4435 = vpop.f32.mrb[0].mxu0
    %v4436 = vpop.f32.mrb[0].mxu0
    %4437 = vdwg.mxu0
    %v4438 = vrot.slane %v4247, 1
    %v4439 = vrot.slane %v4250, 1
    %v4440 = vrot.slane %v4253, 1
    %v4441 = vrot.slane %v4256, 1
    %v4442 = vrot.slane %v4259, 1
    %v4443 = vrot.slane %v4262, 1
    %v4444 = vrot.slane %v4265, 1
    %v4445 = vrot.slane %v4268, 1
    %4454 = vmatprep.subr.bf16.mxu0 %v646
    %4455 = vmatpush1.bf16.xpose.msra.mxu0 %v645
    %4456 = vmatprep.subr.bf16.mxu0 0
    %4457 = vmatpush1.bf16.xpose.msra.mxu0 0
    %4458 = vmatprep.subr.bf16.mxu0 0
    %4459 = vmatpush1.bf16.xpose.msra.mxu0 0
    %4460 = vmatprep.subr.bf16.mxu0 0
    %4461 = vmatpush1.bf16.xpose.msra.mxu0 0
    %4462 = vmatprep.subr.bf16.mxu0 0
    %4463 = vmatpush1.bf16.xpose.msra.mxu0 0
    %4464 = vmatprep.subr.bf16.mxu0 0
    %4465 = vmatpush1.bf16.xpose.msra.mxu0 0
    %4466 = vmatprep.subr.bf16.mxu0 0
    %4467 = vmatpush1.bf16.xpose.msra.mxu0 0
    %4468 = vmatprep.subr.bf16.mxu0 0
    %4469 = vmatpush1.bf16.xpose.msra.mxu0 0
    %4470 = vmatprep.subr.bf16.mxu0 0
    %4471 = vmatpush1.bf16.xpose.msra.mxu0 0
    %4472 = vmatprep.subr.bf16.mxu0 0
    %4473 = vmatpush1.bf16.xpose.msra.mxu0 0
    %4474 = vmatprep.subr.bf16.mxu0 0
    %4475 = vmatpush1.bf16.xpose.msra.mxu0 0
    %4476 = vmatprep.subr.bf16.mxu0 0
    %4477 = vmatpush1.bf16.xpose.msra.mxu0 0
    %4478 = vmatprep.subr.bf16.mxu0 0
    %4479 = vmatpush1.bf16.xpose.msra.mxu0 0
    %4480 = vmatprep.subr.bf16.mxu0 0
    %4481 = vmatpush1.bf16.xpose.msra.mxu0 0
    %4482 = vmatprep.subr.bf16.mxu0 0
    %4483 = vmatpush1.bf16.xpose.msra.mxu0 0
    %4484 = vmatprep.subr.bf16.mxu0 0
    %4485 = vmatpush1.bf16.xpose.msra.mxu0 0
    %4486 = vmatprep.mubr.bf16.mxu0 %v4439
    %4487 = vmatmul.mubr.bf16.gmra.mrb[0].mxu0 %v4438
    %v4488 = vpop.f32.mrb[0].mxu0
    %v4489 = vadd.f32 0.0, %v4488
    %v4490 = vpop.f32.mrb[0].mxu0
    %v4491 = vpop.f32.mrb[0].mxu0
    %v4492 = vpop.f32.mrb[0].mxu0
    %4493 = vdwg.mxu0
    %4494 = vmatprep.subr.bf16.mxu0 %v648
    %4495 = vmatpush1.bf16.xpose.msra.mxu0 %v647
    %4496 = vmatprep.subr.bf16.mxu0 0
    %4497 = vmatpush1.bf16.xpose.msra.mxu0 0
    %4498 = vmatprep.subr.bf16.mxu0 0
    %4499 = vmatpush1.bf16.xpose.msra.mxu0 0
    %4500 = vmatprep.subr.bf16.mxu0 0
    %4501 = vmatpush1.bf16.xpose.msra.mxu0 0
    %4502 = vmatprep.subr.bf16.mxu0 0
    %4503 = vmatpush1.bf16.xpose.msra.mxu0 0
    %4504 = vmatprep.subr.bf16.mxu0 0
    %4505 = vmatpush1.bf16.xpose.msra.mxu0 0
    %4506 = vmatprep.subr.bf16.mxu0 0
    %4507 = vmatpush1.bf16.xpose.msra.mxu0 0
    %4508 = vmatprep.subr.bf16.mxu0 0
    %4509 = vmatpush1.bf16.xpose.msra.mxu0 0
    %4510 = vmatprep.subr.bf16.mxu0 0
    %4511 = vmatpush1.bf16.xpose.msra.mxu0 0
    %4512 = vmatprep.subr.bf16.mxu0 0
    %4513 = vmatpush1.bf16.xpose.msra.mxu0 0
    %4514 = vmatprep.subr.bf16.mxu0 0
    %4515 = vmatpush1.bf16.xpose.msra.mxu0 0
    %4516 = vmatprep.subr.bf16.mxu0 0
    %4517 = vmatpush1.bf16.xpose.msra.mxu0 0
    %4518 = vmatprep.subr.bf16.mxu0 0
    %4519 = vmatpush1.bf16.xpose.msra.mxu0 0
    %4520 = vmatprep.subr.bf16.mxu0 0
    %4521 = vmatpush1.bf16.xpose.msra.mxu0 0
    %4522 = vmatprep.subr.bf16.mxu0 0
    %4523 = vmatpush1.bf16.xpose.msra.mxu0 0
    %4524 = vmatprep.subr.bf16.mxu0 0
    %4525 = vmatpush1.bf16.xpose.msra.mxu0 0
    %4526 = vmatprep.mubr.bf16.mxu0 %v4441
    %4527 = vmatmul.mubr.bf16.gmra.mrb[0].mxu0 %v4440
    %v4528 = vpop.f32.mrb[0].mxu0
    %v4529 = vadd.f32 %v4489, %v4528
    %v4530 = vpop.f32.mrb[0].mxu0
    %v4531 = vpop.f32.mrb[0].mxu0
    %v4532 = vpop.f32.mrb[0].mxu0
    %4533 = vdwg.mxu0
    %4534 = vmatprep.subr.bf16.mxu0 %v650
    %4535 = vmatpush1.bf16.xpose.msra.mxu0 %v649
    %4536 = vmatprep.subr.bf16.mxu0 0
    %4537 = vmatpush1.bf16.xpose.msra.mxu0 0
    %4538 = vmatprep.subr.bf16.mxu0 0
    %4539 = vmatpush1.bf16.xpose.msra.mxu0 0
    %4540 = vmatprep.subr.bf16.mxu0 0
    %4541 = vmatpush1.bf16.xpose.msra.mxu0 0
    %4542 = vmatprep.subr.bf16.mxu0 0
    %4543 = vmatpush1.bf16.xpose.msra.mxu0 0
    %4544 = vmatprep.subr.bf16.mxu0 0
    %4545 = vmatpush1.bf16.xpose.msra.mxu0 0
    %4546 = vmatprep.subr.bf16.mxu0 0
    %4547 = vmatpush1.bf16.xpose.msra.mxu0 0
    %4548 = vmatprep.subr.bf16.mxu0 0
    %4549 = vmatpush1.bf16.xpose.msra.mxu0 0
    %4550 = vmatprep.subr.bf16.mxu0 0
    %4551 = vmatpush1.bf16.xpose.msra.mxu0 0
    %4552 = vmatprep.subr.bf16.mxu0 0
    %4553 = vmatpush1.bf16.xpose.msra.mxu0 0
    %4554 = vmatprep.subr.bf16.mxu0 0
    %4555 = vmatpush1.bf16.xpose.msra.mxu0 0
    %4556 = vmatprep.subr.bf16.mxu0 0
    %4557 = vmatpush1.bf16.xpose.msra.mxu0 0
    %4558 = vmatprep.subr.bf16.mxu0 0
    %4559 = vmatpush1.bf16.xpose.msra.mxu0 0
    %4560 = vmatprep.subr.bf16.mxu0 0
    %4561 = vmatpush1.bf16.xpose.msra.mxu0 0
    %4562 = vmatprep.subr.bf16.mxu0 0
    %4563 = vmatpush1.bf16.xpose.msra.mxu0 0
    %4564 = vmatprep.subr.bf16.mxu0 0
    %4565 = vmatpush1.bf16.xpose.msra.mxu0 0
    %4566 = vmatprep.mubr.bf16.mxu0 %v4443
    %4567 = vmatmul.mubr.bf16.gmra.mrb[0].mxu0 %v4442
    %v4568 = vpop.f32.mrb[0].mxu0
    %v4569 = vadd.f32 %v4529, %v4568
    %v4570 = vpop.f32.mrb[0].mxu0
    %v4571 = vpop.f32.mrb[0].mxu0
    %v4572 = vpop.f32.mrb[0].mxu0
    %4573 = vdwg.mxu0
    %4574 = vmatprep.subr.bf16.mxu0 %v652
    %4575 = vmatpush1.bf16.xpose.msra.mxu0 %v651
    %4576 = vmatprep.subr.bf16.mxu0 0
    %4577 = vmatpush1.bf16.xpose.msra.mxu0 0
    %4578 = vmatprep.subr.bf16.mxu0 0
    %4579 = vmatpush1.bf16.xpose.msra.mxu0 0
    %4580 = vmatprep.subr.bf16.mxu0 0
    %4581 = vmatpush1.bf16.xpose.msra.mxu0 0
    %4582 = vmatprep.subr.bf16.mxu0 0
    %4583 = vmatpush1.bf16.xpose.msra.mxu0 0
    %4584 = vmatprep.subr.bf16.mxu0 0
    %4585 = vmatpush1.bf16.xpose.msra.mxu0 0
    %4586 = vmatprep.subr.bf16.mxu0 0
    %4587 = vmatpush1.bf16.xpose.msra.mxu0 0
    %4588 = vmatprep.subr.bf16.mxu0 0
    %4589 = vmatpush1.bf16.xpose.msra.mxu0 0
    %4590 = vmatprep.subr.bf16.mxu0 0
    %4591 = vmatpush1.bf16.xpose.msra.mxu0 0
    %4592 = vmatprep.subr.bf16.mxu0 0
    %4593 = vmatpush1.bf16.xpose.msra.mxu0 0
    %4594 = vmatprep.subr.bf16.mxu0 0
    %4595 = vmatpush1.bf16.xpose.msra.mxu0 0
    %4596 = vmatprep.subr.bf16.mxu0 0
    %4597 = vmatpush1.bf16.xpose.msra.mxu0 0
    %4598 = vmatprep.subr.bf16.mxu0 0
    %4599 = vmatpush1.bf16.xpose.msra.mxu0 0
    %4600 = vmatprep.subr.bf16.mxu0 0
    %4601 = vmatpush1.bf16.xpose.msra.mxu0 0
    %4602 = vmatprep.subr.bf16.mxu0 0
    %4603 = vmatpush1.bf16.xpose.msra.mxu0 0
    %4604 = vmatprep.subr.bf16.mxu0 0
    %4605 = vmatpush1.bf16.xpose.msra.mxu0 0
    %4606 = vmatprep.mubr.bf16.mxu0 %v4445
    %4607 = vmatmul.mubr.bf16.gmra.mrb[0].mxu0 %v4444
    %v4608 = vpop.f32.mrb[0].mxu0
    %v4609 = vadd.f32 %v4569, %v4608
    %v4610 = vpop.f32.mrb[0].mxu0
    %v4611 = vpop.f32.mrb[0].mxu0
    %v4612 = vpop.f32.mrb[0].mxu0
    %4613 = vdwg.mxu0
    %v4614 = vrot.slane %v4247, 2
    %v4615 = vrot.slane %v4250, 2
    %v4616 = vrot.slane %v4253, 2
    %v4617 = vrot.slane %v4256, 2
    %v4618 = vrot.slane %v4259, 2
    %v4619 = vrot.slane %v4262, 2
    %v4620 = vrot.slane %v4265, 2
    %v4621 = vrot.slane %v4268, 2
    %4630 = vmatprep.subr.bf16.mxu0 %v880
    %4631 = vmatpush1.bf16.xpose.msra.mxu0 %v879
    %4632 = vmatprep.subr.bf16.mxu0 0
    %4633 = vmatpush1.bf16.xpose.msra.mxu0 0
    %4634 = vmatprep.subr.bf16.mxu0 0
    %4635 = vmatpush1.bf16.xpose.msra.mxu0 0
    %4636 = vmatprep.subr.bf16.mxu0 0
    %4637 = vmatpush1.bf16.xpose.msra.mxu0 0
    %4638 = vmatprep.subr.bf16.mxu0 0
    %4639 = vmatpush1.bf16.xpose.msra.mxu0 0
    %4640 = vmatprep.subr.bf16.mxu0 0
    %4641 = vmatpush1.bf16.xpose.msra.mxu0 0
    %4642 = vmatprep.subr.bf16.mxu0 0
    %4643 = vmatpush1.bf16.xpose.msra.mxu0 0
    %4644 = vmatprep.subr.bf16.mxu0 0
    %4645 = vmatpush1.bf16.xpose.msra.mxu0 0
    %4646 = vmatprep.subr.bf16.mxu0 0
    %4647 = vmatpush1.bf16.xpose.msra.mxu0 0
    %4648 = vmatprep.subr.bf16.mxu0 0
    %4649 = vmatpush1.bf16.xpose.msra.mxu0 0
    %4650 = vmatprep.subr.bf16.mxu0 0
    %4651 = vmatpush1.bf16.xpose.msra.mxu0 0
    %4652 = vmatprep.subr.bf16.mxu0 0
    %4653 = vmatpush1.bf16.xpose.msra.mxu0 0
    %4654 = vmatprep.subr.bf16.mxu0 0
    %4655 = vmatpush1.bf16.xpose.msra.mxu0 0
    %4656 = vmatprep.subr.bf16.mxu0 0
    %4657 = vmatpush1.bf16.xpose.msra.mxu0 0
    %4658 = vmatprep.subr.bf16.mxu0 0
    %4659 = vmatpush1.bf16.xpose.msra.mxu0 0
    %4660 = vmatprep.subr.bf16.mxu0 0
    %4661 = vmatpush1.bf16.xpose.msra.mxu0 0
    %4662 = vmatprep.mubr.bf16.mxu0 %v4615
    %4663 = vmatmul.mubr.bf16.gmra.mrb[0].mxu0 %v4614
    %v4664 = vpop.f32.mrb[0].mxu0
    %v4665 = vadd.f32 0.0, %v4664
    %v4666 = vpop.f32.mrb[0].mxu0
    %v4667 = vpop.f32.mrb[0].mxu0
    %v4668 = vpop.f32.mrb[0].mxu0
    %4669 = vdwg.mxu0
    %4670 = vmatprep.subr.bf16.mxu0 %v882
    %4671 = vmatpush1.bf16.xpose.msra.mxu0 %v881
    %4672 = vmatprep.subr.bf16.mxu0 0
    %4673 = vmatpush1.bf16.xpose.msra.mxu0 0
    %4674 = vmatprep.subr.bf16.mxu0 0
    %4675 = vmatpush1.bf16.xpose.msra.mxu0 0
    %4676 = vmatprep.subr.bf16.mxu0 0
    %4677 = vmatpush1.bf16.xpose.msra.mxu0 0
    %4678 = vmatprep.subr.bf16.mxu0 0
    %4679 = vmatpush1.bf16.xpose.msra.mxu0 0
    %4680 = vmatprep.subr.bf16.mxu0 0
    %4681 = vmatpush1.bf16.xpose.msra.mxu0 0
    %4682 = vmatprep.subr.bf16.mxu0 0
    %4683 = vmatpush1.bf16.xpose.msra.mxu0 0
    %4684 = vmatprep.subr.bf16.mxu0 0
    %4685 = vmatpush1.bf16.xpose.msra.mxu0 0
    %4686 = vmatprep.subr.bf16.mxu0 0
    %4687 = vmatpush1.bf16.xpose.msra.mxu0 0
    %4688 = vmatprep.subr.bf16.mxu0 0
    %4689 = vmatpush1.bf16.xpose.msra.mxu0 0
    %4690 = vmatprep.subr.bf16.mxu0 0
    %4691 = vmatpush1.bf16.xpose.msra.mxu0 0
    %4692 = vmatprep.subr.bf16.mxu0 0
    %4693 = vmatpush1.bf16.xpose.msra.mxu0 0
    %4694 = vmatprep.subr.bf16.mxu0 0
    %4695 = vmatpush1.bf16.xpose.msra.mxu0 0
    %4696 = vmatprep.subr.bf16.mxu0 0
    %4697 = vmatpush1.bf16.xpose.msra.mxu0 0
    %4698 = vmatprep.subr.bf16.mxu0 0
    %4699 = vmatpush1.bf16.xpose.msra.mxu0 0
    %4700 = vmatprep.subr.bf16.mxu0 0
    %4701 = vmatpush1.bf16.xpose.msra.mxu0 0
    %4702 = vmatprep.mubr.bf16.mxu0 %v4617
    %4703 = vmatmul.mubr.bf16.gmra.mrb[0].mxu0 %v4616
    %v4704 = vpop.f32.mrb[0].mxu0
    %v4705 = vadd.f32 %v4665, %v4704
    %v4706 = vpop.f32.mrb[0].mxu0
    %v4707 = vpop.f32.mrb[0].mxu0
    %v4708 = vpop.f32.mrb[0].mxu0
    %4709 = vdwg.mxu0
    %4710 = vmatprep.subr.bf16.mxu0 %v884
    %4711 = vmatpush1.bf16.xpose.msra.mxu0 %v883
    %4712 = vmatprep.subr.bf16.mxu0 0
    %4713 = vmatpush1.bf16.xpose.msra.mxu0 0
    %4714 = vmatprep.subr.bf16.mxu0 0
    %4715 = vmatpush1.bf16.xpose.msra.mxu0 0
    %4716 = vmatprep.subr.bf16.mxu0 0
    %4717 = vmatpush1.bf16.xpose.msra.mxu0 0
    %4718 = vmatprep.subr.bf16.mxu0 0
    %4719 = vmatpush1.bf16.xpose.msra.mxu0 0
    %4720 = vmatprep.subr.bf16.mxu0 0
    %4721 = vmatpush1.bf16.xpose.msra.mxu0 0
    %4722 = vmatprep.subr.bf16.mxu0 0
    %4723 = vmatpush1.bf16.xpose.msra.mxu0 0
    %4724 = vmatprep.subr.bf16.mxu0 0
    %4725 = vmatpush1.bf16.xpose.msra.mxu0 0
    %4726 = vmatprep.subr.bf16.mxu0 0
    %4727 = vmatpush1.bf16.xpose.msra.mxu0 0
    %4728 = vmatprep.subr.bf16.mxu0 0
    %4729 = vmatpush1.bf16.xpose.msra.mxu0 0
    %4730 = vmatprep.subr.bf16.mxu0 0
    %4731 = vmatpush1.bf16.xpose.msra.mxu0 0
    %4732 = vmatprep.subr.bf16.mxu0 0
    %4733 = vmatpush1.bf16.xpose.msra.mxu0 0
    %4734 = vmatprep.subr.bf16.mxu0 0
    %4735 = vmatpush1.bf16.xpose.msra.mxu0 0
    %4736 = vmatprep.subr.bf16.mxu0 0
    %4737 = vmatpush1.bf16.xpose.msra.mxu0 0
    %4738 = vmatprep.subr.bf16.mxu0 0
    %4739 = vmatpush1.bf16.xpose.msra.mxu0 0
    %4740 = vmatprep.subr.bf16.mxu0 0
    %4741 = vmatpush1.bf16.xpose.msra.mxu0 0
    %4742 = vmatprep.mubr.bf16.mxu0 %v4619
    %4743 = vmatmul.mubr.bf16.gmra.mrb[0].mxu0 %v4618
    %v4744 = vpop.f32.mrb[0].mxu0
    %v4745 = vadd.f32 %v4705, %v4744
    %v4746 = vpop.f32.mrb[0].mxu0
    %v4747 = vpop.f32.mrb[0].mxu0
    %v4748 = vpop.f32.mrb[0].mxu0
    %4749 = vdwg.mxu0
    %4750 = vmatprep.subr.bf16.mxu0 %v886
    %4751 = vmatpush1.bf16.xpose.msra.mxu0 %v885
    %4752 = vmatprep.subr.bf16.mxu0 0
    %4753 = vmatpush1.bf16.xpose.msra.mxu0 0
    %4754 = vmatprep.subr.bf16.mxu0 0
    %4755 = vmatpush1.bf16.xpose.msra.mxu0 0
    %4756 = vmatprep.subr.bf16.mxu0 0
    %4757 = vmatpush1.bf16.xpose.msra.mxu0 0
    %4758 = vmatprep.subr.bf16.mxu0 0
    %4759 = vmatpush1.bf16.xpose.msra.mxu0 0
    %4760 = vmatprep.subr.bf16.mxu0 0
    %4761 = vmatpush1.bf16.xpose.msra.mxu0 0
    %4762 = vmatprep.subr.bf16.mxu0 0
    %4763 = vmatpush1.bf16.xpose.msra.mxu0 0
    %4764 = vmatprep.subr.bf16.mxu0 0
    %4765 = vmatpush1.bf16.xpose.msra.mxu0 0
    %4766 = vmatprep.subr.bf16.mxu0 0
    %4767 = vmatpush1.bf16.xpose.msra.mxu0 0
    %4768 = vmatprep.subr.bf16.mxu0 0
    %4769 = vmatpush1.bf16.xpose.msra.mxu0 0
    %4770 = vmatprep.subr.bf16.mxu0 0
    %4771 = vmatpush1.bf16.xpose.msra.mxu0 0
    %4772 = vmatprep.subr.bf16.mxu0 0
    %4773 = vmatpush1.bf16.xpose.msra.mxu0 0
    %4774 = vmatprep.subr.bf16.mxu0 0
    %4775 = vmatpush1.bf16.xpose.msra.mxu0 0
    %4776 = vmatprep.subr.bf16.mxu0 0
    %4777 = vmatpush1.bf16.xpose.msra.mxu0 0
    %4778 = vmatprep.subr.bf16.mxu0 0
    %4779 = vmatpush1.bf16.xpose.msra.mxu0 0
    %4780 = vmatprep.subr.bf16.mxu0 0
    %4781 = vmatpush1.bf16.xpose.msra.mxu0 0
    %4782 = vmatprep.mubr.bf16.mxu0 %v4621
    %4783 = vmatmul.mubr.bf16.gmra.mrb[0].mxu0 %v4620
    %v4784 = vpop.f32.mrb[0].mxu0
    %v4785 = vadd.f32 %v4745, %v4784
    %v4786 = vpop.f32.mrb[0].mxu0
    %v4787 = vpop.f32.mrb[0].mxu0
    %v4788 = vpop.f32.mrb[0].mxu0
    %4789 = vdwg.mxu0
    %v4790 = vrot.slane %v4247, 3
    %v4791 = vrot.slane %v4250, 3
    %v4792 = vrot.slane %v4253, 3
    %v4793 = vrot.slane %v4256, 3
    %v4794 = vrot.slane %v4259, 3
    %v4795 = vrot.slane %v4262, 3
    %v4796 = vrot.slane %v4265, 3
    %v4797 = vrot.slane %v4268, 3
    %4806 = vmatprep.subr.bf16.mxu0 %v1114
    %4807 = vmatpush1.bf16.xpose.msra.mxu0 %v1113
    %4808 = vmatprep.subr.bf16.mxu0 0
    %4809 = vmatpush1.bf16.xpose.msra.mxu0 0
    %4810 = vmatprep.subr.bf16.mxu0 0
    %4811 = vmatpush1.bf16.xpose.msra.mxu0 0
    %4812 = vmatprep.subr.bf16.mxu0 0
    %4813 = vmatpush1.bf16.xpose.msra.mxu0 0
    %4814 = vmatprep.subr.bf16.mxu0 0
    %4815 = vmatpush1.bf16.xpose.msra.mxu0 0
    %4816 = vmatprep.subr.bf16.mxu0 0
    %4817 = vmatpush1.bf16.xpose.msra.mxu0 0
    %4818 = vmatprep.subr.bf16.mxu0 0
    %4819 = vmatpush1.bf16.xpose.msra.mxu0 0
    %4820 = vmatprep.subr.bf16.mxu0 0
    %4821 = vmatpush1.bf16.xpose.msra.mxu0 0
    %4822 = vmatprep.subr.bf16.mxu0 0
    %4823 = vmatpush1.bf16.xpose.msra.mxu0 0
    %4824 = vmatprep.subr.bf16.mxu0 0
    %4825 = vmatpush1.bf16.xpose.msra.mxu0 0
    %4826 = vmatprep.subr.bf16.mxu0 0
    %4827 = vmatpush1.bf16.xpose.msra.mxu0 0
    %4828 = vmatprep.subr.bf16.mxu0 0
    %4829 = vmatpush1.bf16.xpose.msra.mxu0 0
    %4830 = vmatprep.subr.bf16.mxu0 0
    %4831 = vmatpush1.bf16.xpose.msra.mxu0 0
    %4832 = vmatprep.subr.bf16.mxu0 0
    %4833 = vmatpush1.bf16.xpose.msra.mxu0 0
    %4834 = vmatprep.subr.bf16.mxu0 0
    %4835 = vmatpush1.bf16.xpose.msra.mxu0 0
    %4836 = vmatprep.subr.bf16.mxu0 0
    %4837 = vmatpush1.bf16.xpose.msra.mxu0 0
    %4838 = vmatprep.mubr.bf16.mxu0 %v4791
    %4839 = vmatmul.mubr.bf16.gmra.mrb[0].mxu0 %v4790
    %v4840 = vpop.f32.mrb[0].mxu0
    %v4841 = vadd.f32 0.0, %v4840
    %v4842 = vpop.f32.mrb[0].mxu0
    %v4843 = vpop.f32.mrb[0].mxu0
    %v4844 = vpop.f32.mrb[0].mxu0
    %4845 = vdwg.mxu0
    %4846 = vmatprep.subr.bf16.mxu0 %v1116
    %4847 = vmatpush1.bf16.xpose.msra.mxu0 %v1115
    %4848 = vmatprep.subr.bf16.mxu0 0
    %4849 = vmatpush1.bf16.xpose.msra.mxu0 0
    %4850 = vmatprep.subr.bf16.mxu0 0
    %4851 = vmatpush1.bf16.xpose.msra.mxu0 0
    %4852 = vmatprep.subr.bf16.mxu0 0
    %4853 = vmatpush1.bf16.xpose.msra.mxu0 0
    %4854 = vmatprep.subr.bf16.mxu0 0
    %4855 = vmatpush1.bf16.xpose.msra.mxu0 0
    %4856 = vmatprep.subr.bf16.mxu0 0
    %4857 = vmatpush1.bf16.xpose.msra.mxu0 0
    %4858 = vmatprep.subr.bf16.mxu0 0
    %4859 = vmatpush1.bf16.xpose.msra.mxu0 0
    %4860 = vmatprep.subr.bf16.mxu0 0
    %4861 = vmatpush1.bf16.xpose.msra.mxu0 0
    %4862 = vmatprep.subr.bf16.mxu0 0
    %4863 = vmatpush1.bf16.xpose.msra.mxu0 0
    %4864 = vmatprep.subr.bf16.mxu0 0
    %4865 = vmatpush1.bf16.xpose.msra.mxu0 0
    %4866 = vmatprep.subr.bf16.mxu0 0
    %4867 = vmatpush1.bf16.xpose.msra.mxu0 0
    %4868 = vmatprep.subr.bf16.mxu0 0
    %4869 = vmatpush1.bf16.xpose.msra.mxu0 0
    %4870 = vmatprep.subr.bf16.mxu0 0
    %4871 = vmatpush1.bf16.xpose.msra.mxu0 0
    %4872 = vmatprep.subr.bf16.mxu0 0
    %4873 = vmatpush1.bf16.xpose.msra.mxu0 0
    %4874 = vmatprep.subr.bf16.mxu0 0
    %4875 = vmatpush1.bf16.xpose.msra.mxu0 0
    %4876 = vmatprep.subr.bf16.mxu0 0
    %4877 = vmatpush1.bf16.xpose.msra.mxu0 0
    %4878 = vmatprep.mubr.bf16.mxu0 %v4793
    %4879 = vmatmul.mubr.bf16.gmra.mrb[0].mxu0 %v4792
    %v4880 = vpop.f32.mrb[0].mxu0
    %v4881 = vadd.f32 %v4841, %v4880
    %v4882 = vpop.f32.mrb[0].mxu0
    %v4883 = vpop.f32.mrb[0].mxu0
    %v4884 = vpop.f32.mrb[0].mxu0
    %4885 = vdwg.mxu0
    %4886 = vmatprep.subr.bf16.mxu0 %v1118
    %4887 = vmatpush1.bf16.xpose.msra.mxu0 %v1117
    %4888 = vmatprep.subr.bf16.mxu0 0
    %4889 = vmatpush1.bf16.xpose.msra.mxu0 0
    %4890 = vmatprep.subr.bf16.mxu0 0
    %4891 = vmatpush1.bf16.xpose.msra.mxu0 0
    %4892 = vmatprep.subr.bf16.mxu0 0
    %4893 = vmatpush1.bf16.xpose.msra.mxu0 0
    %4894 = vmatprep.subr.bf16.mxu0 0
    %4895 = vmatpush1.bf16.xpose.msra.mxu0 0
    %4896 = vmatprep.subr.bf16.mxu0 0
    %4897 = vmatpush1.bf16.xpose.msra.mxu0 0
    %4898 = vmatprep.subr.bf16.mxu0 0
    %4899 = vmatpush1.bf16.xpose.msra.mxu0 0
    %4900 = vmatprep.subr.bf16.mxu0 0
    %4901 = vmatpush1.bf16.xpose.msra.mxu0 0
    %4902 = vmatprep.subr.bf16.mxu0 0
    %4903 = vmatpush1.bf16.xpose.msra.mxu0 0
    %4904 = vmatprep.subr.bf16.mxu0 0
    %4905 = vmatpush1.bf16.xpose.msra.mxu0 0
    %4906 = vmatprep.subr.bf16.mxu0 0
    %4907 = vmatpush1.bf16.xpose.msra.mxu0 0
    %4908 = vmatprep.subr.bf16.mxu0 0
    %4909 = vmatpush1.bf16.xpose.msra.mxu0 0
    %4910 = vmatprep.subr.bf16.mxu0 0
    %4911 = vmatpush1.bf16.xpose.msra.mxu0 0
    %4912 = vmatprep.subr.bf16.mxu0 0
    %4913 = vmatpush1.bf16.xpose.msra.mxu0 0
    %4914 = vmatprep.subr.bf16.mxu0 0
    %4915 = vmatpush1.bf16.xpose.msra.mxu0 0
    %4916 = vmatprep.subr.bf16.mxu0 0
    %4917 = vmatpush1.bf16.xpose.msra.mxu0 0
    %4918 = vmatprep.mubr.bf16.mxu0 %v4795
    %4919 = vmatmul.mubr.bf16.gmra.mrb[0].mxu0 %v4794
    %v4920 = vpop.f32.mrb[0].mxu0
    %v4921 = vadd.f32 %v4881, %v4920
    %v4922 = vpop.f32.mrb[0].mxu0
    %v4923 = vpop.f32.mrb[0].mxu0
    %v4924 = vpop.f32.mrb[0].mxu0
    %4925 = vdwg.mxu0
    %4926 = vmatprep.subr.bf16.mxu0 %v1120
    %4927 = vmatpush1.bf16.xpose.msra.mxu0 %v1119
    %4928 = vmatprep.subr.bf16.mxu0 0
    %4929 = vmatpush1.bf16.xpose.msra.mxu0 0
    %4930 = vmatprep.subr.bf16.mxu0 0
    %4931 = vmatpush1.bf16.xpose.msra.mxu0 0
    %4932 = vmatprep.subr.bf16.mxu0 0
    %4933 = vmatpush1.bf16.xpose.msra.mxu0 0
    %4934 = vmatprep.subr.bf16.mxu0 0
    %4935 = vmatpush1.bf16.xpose.msra.mxu0 0
    %4936 = vmatprep.subr.bf16.mxu0 0
    %4937 = vmatpush1.bf16.xpose.msra.mxu0 0
    %4938 = vmatprep.subr.bf16.mxu0 0
    %4939 = vmatpush1.bf16.xpose.msra.mxu0 0
    %4940 = vmatprep.subr.bf16.mxu0 0
    %4941 = vmatpush1.bf16.xpose.msra.mxu0 0
    %4942 = vmatprep.subr.bf16.mxu0 0
    %4943 = vmatpush1.bf16.xpose.msra.mxu0 0
    %4944 = vmatprep.subr.bf16.mxu0 0
    %4945 = vmatpush1.bf16.xpose.msra.mxu0 0
    %4946 = vmatprep.subr.bf16.mxu0 0
    %4947 = vmatpush1.bf16.xpose.msra.mxu0 0
    %4948 = vmatprep.subr.bf16.mxu0 0
    %4949 = vmatpush1.bf16.xpose.msra.mxu0 0
    %4950 = vmatprep.subr.bf16.mxu0 0
    %4951 = vmatpush1.bf16.xpose.msra.mxu0 0
    %4952 = vmatprep.subr.bf16.mxu0 0
    %4953 = vmatpush1.bf16.xpose.msra.mxu0 0
    %4954 = vmatprep.subr.bf16.mxu0 0
    %4955 = vmatpush1.bf16.xpose.msra.mxu0 0
    %4956 = vmatprep.subr.bf16.mxu0 0
    %4957 = vmatpush1.bf16.xpose.msra.mxu0 0
    %4958 = vmatprep.mubr.bf16.mxu0 %v4797
    %4959 = vmatmul.mubr.bf16.gmra.mrb[0].mxu0 %v4796
    %v4960 = vpop.f32.mrb[0].mxu0
    %v4961 = vadd.f32 %v4921, %v4960
    %v4962 = vpop.f32.mrb[0].mxu0
    %v4963 = vpop.f32.mrb[0].mxu0
    %v4964 = vpop.f32.mrb[0].mxu0
    %4965 = vdwg.mxu0
    %v4966 = vrot.slane %v4247, 4
    %v4967 = vrot.slane %v4250, 4
    %v4968 = vrot.slane %v4253, 4
    %v4969 = vrot.slane %v4256, 4
    %v4970 = vrot.slane %v4259, 4
    %v4971 = vrot.slane %v4262, 4
    %v4972 = vrot.slane %v4265, 4
    %v4973 = vrot.slane %v4268, 4
    %4982 = vmatprep.subr.bf16.mxu0 %v1348
    %4983 = vmatpush1.bf16.xpose.msra.mxu0 %v1347
    %4984 = vmatprep.subr.bf16.mxu0 0
    %4985 = vmatpush1.bf16.xpose.msra.mxu0 0
    %4986 = vmatprep.subr.bf16.mxu0 0
    %4987 = vmatpush1.bf16.xpose.msra.mxu0 0
    %4988 = vmatprep.subr.bf16.mxu0 0
    %4989 = vmatpush1.bf16.xpose.msra.mxu0 0
    %4990 = vmatprep.subr.bf16.mxu0 0
    %4991 = vmatpush1.bf16.xpose.msra.mxu0 0
    %4992 = vmatprep.subr.bf16.mxu0 0
    %4993 = vmatpush1.bf16.xpose.msra.mxu0 0
    %4994 = vmatprep.subr.bf16.mxu0 0
    %4995 = vmatpush1.bf16.xpose.msra.mxu0 0
    %4996 = vmatprep.subr.bf16.mxu0 0
    %4997 = vmatpush1.bf16.xpose.msra.mxu0 0
    %4998 = vmatprep.subr.bf16.mxu0 0
    %4999 = vmatpush1.bf16.xpose.msra.mxu0 0
    %5000 = vmatprep.subr.bf16.mxu0 0
    %5001 = vmatpush1.bf16.xpose.msra.mxu0 0
    %5002 = vmatprep.subr.bf16.mxu0 0
    %5003 = vmatpush1.bf16.xpose.msra.mxu0 0
    %5004 = vmatprep.subr.bf16.mxu0 0
    %5005 = vmatpush1.bf16.xpose.msra.mxu0 0
    %5006 = vmatprep.subr.bf16.mxu0 0
    %5007 = vmatpush1.bf16.xpose.msra.mxu0 0
    %5008 = vmatprep.subr.bf16.mxu0 0
    %5009 = vmatpush1.bf16.xpose.msra.mxu0 0
    %5010 = vmatprep.subr.bf16.mxu0 0
    %5011 = vmatpush1.bf16.xpose.msra.mxu0 0
    %5012 = vmatprep.subr.bf16.mxu0 0
    %5013 = vmatpush1.bf16.xpose.msra.mxu0 0
    %5014 = vmatprep.mubr.bf16.mxu0 %v4967
    %5015 = vmatmul.mubr.bf16.gmra.mrb[0].mxu0 %v4966
    %v5016 = vpop.f32.mrb[0].mxu0
    %v5017 = vadd.f32 0.0, %v5016
    %v5018 = vpop.f32.mrb[0].mxu0
    %v5019 = vpop.f32.mrb[0].mxu0
    %v5020 = vpop.f32.mrb[0].mxu0
    %5021 = vdwg.mxu0
    %5022 = vmatprep.subr.bf16.mxu0 %v1350
    %5023 = vmatpush1.bf16.xpose.msra.mxu0 %v1349
    %5024 = vmatprep.subr.bf16.mxu0 0
    %5025 = vmatpush1.bf16.xpose.msra.mxu0 0
    %5026 = vmatprep.subr.bf16.mxu0 0
    %5027 = vmatpush1.bf16.xpose.msra.mxu0 0
    %5028 = vmatprep.subr.bf16.mxu0 0
    %5029 = vmatpush1.bf16.xpose.msra.mxu0 0
    %5030 = vmatprep.subr.bf16.mxu0 0
    %5031 = vmatpush1.bf16.xpose.msra.mxu0 0
    %5032 = vmatprep.subr.bf16.mxu0 0
    %5033 = vmatpush1.bf16.xpose.msra.mxu0 0
    %5034 = vmatprep.subr.bf16.mxu0 0
    %5035 = vmatpush1.bf16.xpose.msra.mxu0 0
    %5036 = vmatprep.subr.bf16.mxu0 0
    %5037 = vmatpush1.bf16.xpose.msra.mxu0 0
    %5038 = vmatprep.subr.bf16.mxu0 0
    %5039 = vmatpush1.bf16.xpose.msra.mxu0 0
    %5040 = vmatprep.subr.bf16.mxu0 0
    %5041 = vmatpush1.bf16.xpose.msra.mxu0 0
    %5042 = vmatprep.subr.bf16.mxu0 0
    %5043 = vmatpush1.bf16.xpose.msra.mxu0 0
    %5044 = vmatprep.subr.bf16.mxu0 0
    %5045 = vmatpush1.bf16.xpose.msra.mxu0 0
    %5046 = vmatprep.subr.bf16.mxu0 0
    %5047 = vmatpush1.bf16.xpose.msra.mxu0 0
    %5048 = vmatprep.subr.bf16.mxu0 0
    %5049 = vmatpush1.bf16.xpose.msra.mxu0 0
    %5050 = vmatprep.subr.bf16.mxu0 0
    %5051 = vmatpush1.bf16.xpose.msra.mxu0 0
    %5052 = vmatprep.subr.bf16.mxu0 0
    %5053 = vmatpush1.bf16.xpose.msra.mxu0 0
    %5054 = vmatprep.mubr.bf16.mxu0 %v4969
    %5055 = vmatmul.mubr.bf16.gmra.mrb[0].mxu0 %v4968
    %v5056 = vpop.f32.mrb[0].mxu0
    %v5057 = vadd.f32 %v5017, %v5056
    %v5058 = vpop.f32.mrb[0].mxu0
    %v5059 = vpop.f32.mrb[0].mxu0
    %v5060 = vpop.f32.mrb[0].mxu0
    %5061 = vdwg.mxu0
    %5062 = vmatprep.subr.bf16.mxu0 %v1352
    %5063 = vmatpush1.bf16.xpose.msra.mxu0 %v1351
    %5064 = vmatprep.subr.bf16.mxu0 0
    %5065 = vmatpush1.bf16.xpose.msra.mxu0 0
    %5066 = vmatprep.subr.bf16.mxu0 0
    %5067 = vmatpush1.bf16.xpose.msra.mxu0 0
    %5068 = vmatprep.subr.bf16.mxu0 0
    %5069 = vmatpush1.bf16.xpose.msra.mxu0 0
    %5070 = vmatprep.subr.bf16.mxu0 0
    %5071 = vmatpush1.bf16.xpose.msra.mxu0 0
    %5072 = vmatprep.subr.bf16.mxu0 0
    %5073 = vmatpush1.bf16.xpose.msra.mxu0 0
    %5074 = vmatprep.subr.bf16.mxu0 0
    %5075 = vmatpush1.bf16.xpose.msra.mxu0 0
    %5076 = vmatprep.subr.bf16.mxu0 0
    %5077 = vmatpush1.bf16.xpose.msra.mxu0 0
    %5078 = vmatprep.subr.bf16.mxu0 0
    %5079 = vmatpush1.bf16.xpose.msra.mxu0 0
    %5080 = vmatprep.subr.bf16.mxu0 0
    %5081 = vmatpush1.bf16.xpose.msra.mxu0 0
    %5082 = vmatprep.subr.bf16.mxu0 0
    %5083 = vmatpush1.bf16.xpose.msra.mxu0 0
    %5084 = vmatprep.subr.bf16.mxu0 0
    %5085 = vmatpush1.bf16.xpose.msra.mxu0 0
    %5086 = vmatprep.subr.bf16.mxu0 0
    %5087 = vmatpush1.bf16.xpose.msra.mxu0 0
    %5088 = vmatprep.subr.bf16.mxu0 0
    %5089 = vmatpush1.bf16.xpose.msra.mxu0 0
    %5090 = vmatprep.subr.bf16.mxu0 0
    %5091 = vmatpush1.bf16.xpose.msra.mxu0 0
    %5092 = vmatprep.subr.bf16.mxu0 0
    %5093 = vmatpush1.bf16.xpose.msra.mxu0 0
    %5094 = vmatprep.mubr.bf16.mxu0 %v4971
    %5095 = vmatmul.mubr.bf16.gmra.mrb[0].mxu0 %v4970
    %v5096 = vpop.f32.mrb[0].mxu0
    %v5097 = vadd.f32 %v5057, %v5096
    %v5098 = vpop.f32.mrb[0].mxu0
    %v5099 = vpop.f32.mrb[0].mxu0
    %v5100 = vpop.f32.mrb[0].mxu0
    %5101 = vdwg.mxu0
    %5102 = vmatprep.subr.bf16.mxu0 %v1354
    %5103 = vmatpush1.bf16.xpose.msra.mxu0 %v1353
    %5104 = vmatprep.subr.bf16.mxu0 0
    %5105 = vmatpush1.bf16.xpose.msra.mxu0 0
    %5106 = vmatprep.subr.bf16.mxu0 0
    %5107 = vmatpush1.bf16.xpose.msra.mxu0 0
    %5108 = vmatprep.subr.bf16.mxu0 0
    %5109 = vmatpush1.bf16.xpose.msra.mxu0 0
    %5110 = vmatprep.subr.bf16.mxu0 0
    %5111 = vmatpush1.bf16.xpose.msra.mxu0 0
    %5112 = vmatprep.subr.bf16.mxu0 0
    %5113 = vmatpush1.bf16.xpose.msra.mxu0 0
    %5114 = vmatprep.subr.bf16.mxu0 0
    %5115 = vmatpush1.bf16.xpose.msra.mxu0 0
    %5116 = vmatprep.subr.bf16.mxu0 0
    %5117 = vmatpush1.bf16.xpose.msra.mxu0 0
    %5118 = vmatprep.subr.bf16.mxu0 0
    %5119 = vmatpush1.bf16.xpose.msra.mxu0 0
    %5120 = vmatprep.subr.bf16.mxu0 0
    %5121 = vmatpush1.bf16.xpose.msra.mxu0 0
    %5122 = vmatprep.subr.bf16.mxu0 0
    %5123 = vmatpush1.bf16.xpose.msra.mxu0 0
    %5124 = vmatprep.subr.bf16.mxu0 0
    %5125 = vmatpush1.bf16.xpose.msra.mxu0 0
    %5126 = vmatprep.subr.bf16.mxu0 0
    %5127 = vmatpush1.bf16.xpose.msra.mxu0 0
    %5128 = vmatprep.subr.bf16.mxu0 0
    %5129 = vmatpush1.bf16.xpose.msra.mxu0 0
    %5130 = vmatprep.subr.bf16.mxu0 0
    %5131 = vmatpush1.bf16.xpose.msra.mxu0 0
    %5132 = vmatprep.subr.bf16.mxu0 0
    %5133 = vmatpush1.bf16.xpose.msra.mxu0 0
    %5134 = vmatprep.mubr.bf16.mxu0 %v4973
    %5135 = vmatmul.mubr.bf16.gmra.mrb[0].mxu0 %v4972
    %v5136 = vpop.f32.mrb[0].mxu0
    %v5137 = vadd.f32 %v5097, %v5136
    %v5138 = vpop.f32.mrb[0].mxu0
    %v5139 = vpop.f32.mrb[0].mxu0
    %v5140 = vpop.f32.mrb[0].mxu0
    %5141 = vdwg.mxu0
    %v5142 = vrot.slane %v4247, 5
    %v5143 = vrot.slane %v4250, 5
    %v5144 = vrot.slane %v4253, 5
    %v5145 = vrot.slane %v4256, 5
    %v5146 = vrot.slane %v4259, 5
    %v5147 = vrot.slane %v4262, 5
    %v5148 = vrot.slane %v4265, 5
    %v5149 = vrot.slane %v4268, 5
    %5158 = vmatprep.subr.bf16.mxu0 %v1582
    %5159 = vmatpush1.bf16.xpose.msra.mxu0 %v1581
    %5160 = vmatprep.subr.bf16.mxu0 0
    %5161 = vmatpush1.bf16.xpose.msra.mxu0 0
    %5162 = vmatprep.subr.bf16.mxu0 0
    %5163 = vmatpush1.bf16.xpose.msra.mxu0 0
    %5164 = vmatprep.subr.bf16.mxu0 0
    %5165 = vmatpush1.bf16.xpose.msra.mxu0 0
    %5166 = vmatprep.subr.bf16.mxu0 0
    %5167 = vmatpush1.bf16.xpose.msra.mxu0 0
    %5168 = vmatprep.subr.bf16.mxu0 0
    %5169 = vmatpush1.bf16.xpose.msra.mxu0 0
    %5170 = vmatprep.subr.bf16.mxu0 0
    %5171 = vmatpush1.bf16.xpose.msra.mxu0 0
    %5172 = vmatprep.subr.bf16.mxu0 0
    %5173 = vmatpush1.bf16.xpose.msra.mxu0 0
    %5174 = vmatprep.subr.bf16.mxu0 0
    %5175 = vmatpush1.bf16.xpose.msra.mxu0 0
    %5176 = vmatprep.subr.bf16.mxu0 0
    %5177 = vmatpush1.bf16.xpose.msra.mxu0 0
    %5178 = vmatprep.subr.bf16.mxu0 0
    %5179 = vmatpush1.bf16.xpose.msra.mxu0 0
    %5180 = vmatprep.subr.bf16.mxu0 0
    %5181 = vmatpush1.bf16.xpose.msra.mxu0 0
    %5182 = vmatprep.subr.bf16.mxu0 0
    %5183 = vmatpush1.bf16.xpose.msra.mxu0 0
    %5184 = vmatprep.subr.bf16.mxu0 0
    %5185 = vmatpush1.bf16.xpose.msra.mxu0 0
    %5186 = vmatprep.subr.bf16.mxu0 0
    %5187 = vmatpush1.bf16.xpose.msra.mxu0 0
    %5188 = vmatprep.subr.bf16.mxu0 0
    %5189 = vmatpush1.bf16.xpose.msra.mxu0 0
    %5190 = vmatprep.mubr.bf16.mxu0 %v5143
    %5191 = vmatmul.mubr.bf16.gmra.mrb[0].mxu0 %v5142
    %v5192 = vpop.f32.mrb[0].mxu0
    %v5193 = vadd.f32 0.0, %v5192
    %v5194 = vpop.f32.mrb[0].mxu0
    %v5195 = vpop.f32.mrb[0].mxu0
    %v5196 = vpop.f32.mrb[0].mxu0
    %5197 = vdwg.mxu0
    %5198 = vmatprep.subr.bf16.mxu0 %v1584
    %5199 = vmatpush1.bf16.xpose.msra.mxu0 %v1583
    %5200 = vmatprep.subr.bf16.mxu0 0
    %5201 = vmatpush1.bf16.xpose.msra.mxu0 0
    %5202 = vmatprep.subr.bf16.mxu0 0
    %5203 = vmatpush1.bf16.xpose.msra.mxu0 0
    %5204 = vmatprep.subr.bf16.mxu0 0
    %5205 = vmatpush1.bf16.xpose.msra.mxu0 0
    %5206 = vmatprep.subr.bf16.mxu0 0
    %5207 = vmatpush1.bf16.xpose.msra.mxu0 0
    %5208 = vmatprep.subr.bf16.mxu0 0
    %5209 = vmatpush1.bf16.xpose.msra.mxu0 0
    %5210 = vmatprep.subr.bf16.mxu0 0
    %5211 = vmatpush1.bf16.xpose.msra.mxu0 0
    %5212 = vmatprep.subr.bf16.mxu0 0
    %5213 = vmatpush1.bf16.xpose.msra.mxu0 0
    %5214 = vmatprep.subr.bf16.mxu0 0
    %5215 = vmatpush1.bf16.xpose.msra.mxu0 0
    %5216 = vmatprep.subr.bf16.mxu0 0
    %5217 = vmatpush1.bf16.xpose.msra.mxu0 0
    %5218 = vmatprep.subr.bf16.mxu0 0
    %5219 = vmatpush1.bf16.xpose.msra.mxu0 0
    %5220 = vmatprep.subr.bf16.mxu0 0
    %5221 = vmatpush1.bf16.xpose.msra.mxu0 0
    %5222 = vmatprep.subr.bf16.mxu0 0
    %5223 = vmatpush1.bf16.xpose.msra.mxu0 0
    %5224 = vmatprep.subr.bf16.mxu0 0
    %5225 = vmatpush1.bf16.xpose.msra.mxu0 0
    %5226 = vmatprep.subr.bf16.mxu0 0
    %5227 = vmatpush1.bf16.xpose.msra.mxu0 0
    %5228 = vmatprep.subr.bf16.mxu0 0
    %5229 = vmatpush1.bf16.xpose.msra.mxu0 0
    %5230 = vmatprep.mubr.bf16.mxu0 %v5145
    %5231 = vmatmul.mubr.bf16.gmra.mrb[0].mxu0 %v5144
    %v5232 = vpop.f32.mrb[0].mxu0
    %v5233 = vadd.f32 %v5193, %v5232
    %v5234 = vpop.f32.mrb[0].mxu0
    %v5235 = vpop.f32.mrb[0].mxu0
    %v5236 = vpop.f32.mrb[0].mxu0
    %5237 = vdwg.mxu0
    %5238 = vmatprep.subr.bf16.mxu0 %v1586
    %5239 = vmatpush1.bf16.xpose.msra.mxu0 %v1585
    %5240 = vmatprep.subr.bf16.mxu0 0
    %5241 = vmatpush1.bf16.xpose.msra.mxu0 0
    %5242 = vmatprep.subr.bf16.mxu0 0
    %5243 = vmatpush1.bf16.xpose.msra.mxu0 0
    %5244 = vmatprep.subr.bf16.mxu0 0
    %5245 = vmatpush1.bf16.xpose.msra.mxu0 0
    %5246 = vmatprep.subr.bf16.mxu0 0
    %5247 = vmatpush1.bf16.xpose.msra.mxu0 0
    %5248 = vmatprep.subr.bf16.mxu0 0
    %5249 = vmatpush1.bf16.xpose.msra.mxu0 0
    %5250 = vmatprep.subr.bf16.mxu0 0
    %5251 = vmatpush1.bf16.xpose.msra.mxu0 0
    %5252 = vmatprep.subr.bf16.mxu0 0
    %5253 = vmatpush1.bf16.xpose.msra.mxu0 0
    %5254 = vmatprep.subr.bf16.mxu0 0
    %5255 = vmatpush1.bf16.xpose.msra.mxu0 0
    %5256 = vmatprep.subr.bf16.mxu0 0
    %5257 = vmatpush1.bf16.xpose.msra.mxu0 0
    %5258 = vmatprep.subr.bf16.mxu0 0
    %5259 = vmatpush1.bf16.xpose.msra.mxu0 0
    %5260 = vmatprep.subr.bf16.mxu0 0
    %5261 = vmatpush1.bf16.xpose.msra.mxu0 0
    %5262 = vmatprep.subr.bf16.mxu0 0
    %5263 = vmatpush1.bf16.xpose.msra.mxu0 0
    %5264 = vmatprep.subr.bf16.mxu0 0
    %5265 = vmatpush1.bf16.xpose.msra.mxu0 0
    %5266 = vmatprep.subr.bf16.mxu0 0
    %5267 = vmatpush1.bf16.xpose.msra.mxu0 0
    %5268 = vmatprep.subr.bf16.mxu0 0
    %5269 = vmatpush1.bf16.xpose.msra.mxu0 0
    %5270 = vmatprep.mubr.bf16.mxu0 %v5147
    %5271 = vmatmul.mubr.bf16.gmra.mrb[0].mxu0 %v5146
    %v5272 = vpop.f32.mrb[0].mxu0
    %v5273 = vadd.f32 %v5233, %v5272
    %v5274 = vpop.f32.mrb[0].mxu0
    %v5275 = vpop.f32.mrb[0].mxu0
    %v5276 = vpop.f32.mrb[0].mxu0
    %5277 = vdwg.mxu0
    %5278 = vmatprep.subr.bf16.mxu0 %v1588
    %5279 = vmatpush1.bf16.xpose.msra.mxu0 %v1587
    %5280 = vmatprep.subr.bf16.mxu0 0
    %5281 = vmatpush1.bf16.xpose.msra.mxu0 0
    %5282 = vmatprep.subr.bf16.mxu0 0
    %5283 = vmatpush1.bf16.xpose.msra.mxu0 0
    %5284 = vmatprep.subr.bf16.mxu0 0
    %5285 = vmatpush1.bf16.xpose.msra.mxu0 0
    %5286 = vmatprep.subr.bf16.mxu0 0
    %5287 = vmatpush1.bf16.xpose.msra.mxu0 0
    %5288 = vmatprep.subr.bf16.mxu0 0
    %5289 = vmatpush1.bf16.xpose.msra.mxu0 0
    %5290 = vmatprep.subr.bf16.mxu0 0
    %5291 = vmatpush1.bf16.xpose.msra.mxu0 0
    %5292 = vmatprep.subr.bf16.mxu0 0
    %5293 = vmatpush1.bf16.xpose.msra.mxu0 0
    %5294 = vmatprep.subr.bf16.mxu0 0
    %5295 = vmatpush1.bf16.xpose.msra.mxu0 0
    %5296 = vmatprep.subr.bf16.mxu0 0
    %5297 = vmatpush1.bf16.xpose.msra.mxu0 0
    %5298 = vmatprep.subr.bf16.mxu0 0
    %5299 = vmatpush1.bf16.xpose.msra.mxu0 0
    %5300 = vmatprep.subr.bf16.mxu0 0
    %5301 = vmatpush1.bf16.xpose.msra.mxu0 0
    %5302 = vmatprep.subr.bf16.mxu0 0
    %5303 = vmatpush1.bf16.xpose.msra.mxu0 0
    %5304 = vmatprep.subr.bf16.mxu0 0
    %5305 = vmatpush1.bf16.xpose.msra.mxu0 0
    %5306 = vmatprep.subr.bf16.mxu0 0
    %5307 = vmatpush1.bf16.xpose.msra.mxu0 0
    %5308 = vmatprep.subr.bf16.mxu0 0
    %5309 = vmatpush1.bf16.xpose.msra.mxu0 0
    %5310 = vmatprep.mubr.bf16.mxu0 %v5149
    %5311 = vmatmul.mubr.bf16.gmra.mrb[0].mxu0 %v5148
    %v5312 = vpop.f32.mrb[0].mxu0
    %v5313 = vadd.f32 %v5273, %v5312
    %v5314 = vpop.f32.mrb[0].mxu0
    %v5315 = vpop.f32.mrb[0].mxu0
    %v5316 = vpop.f32.mrb[0].mxu0
    %5317 = vdwg.mxu0
    %v5318 = vrot.slane %v4247, 6
    %v5319 = vrot.slane %v4250, 6
    %v5320 = vrot.slane %v4253, 6
    %v5321 = vrot.slane %v4256, 6
    %v5322 = vrot.slane %v4259, 6
    %v5323 = vrot.slane %v4262, 6
    %v5324 = vrot.slane %v4265, 6
    %v5325 = vrot.slane %v4268, 6
    %5334 = vmatprep.subr.bf16.mxu0 %v1816
    %5335 = vmatpush1.bf16.xpose.msra.mxu0 %v1815
    %5336 = vmatprep.subr.bf16.mxu0 0
    %5337 = vmatpush1.bf16.xpose.msra.mxu0 0
    %5338 = vmatprep.subr.bf16.mxu0 0
    %5339 = vmatpush1.bf16.xpose.msra.mxu0 0
    %5340 = vmatprep.subr.bf16.mxu0 0
    %5341 = vmatpush1.bf16.xpose.msra.mxu0 0
    %5342 = vmatprep.subr.bf16.mxu0 0
    %5343 = vmatpush1.bf16.xpose.msra.mxu0 0
    %5344 = vmatprep.subr.bf16.mxu0 0
    %5345 = vmatpush1.bf16.xpose.msra.mxu0 0
    %5346 = vmatprep.subr.bf16.mxu0 0
    %5347 = vmatpush1.bf16.xpose.msra.mxu0 0
    %5348 = vmatprep.subr.bf16.mxu0 0
    %5349 = vmatpush1.bf16.xpose.msra.mxu0 0
    %5350 = vmatprep.subr.bf16.mxu0 0
    %5351 = vmatpush1.bf16.xpose.msra.mxu0 0
    %5352 = vmatprep.subr.bf16.mxu0 0
    %5353 = vmatpush1.bf16.xpose.msra.mxu0 0
    %5354 = vmatprep.subr.bf16.mxu0 0
    %5355 = vmatpush1.bf16.xpose.msra.mxu0 0
    %5356 = vmatprep.subr.bf16.mxu0 0
    %5357 = vmatpush1.bf16.xpose.msra.mxu0 0
    %5358 = vmatprep.subr.bf16.mxu0 0
    %5359 = vmatpush1.bf16.xpose.msra.mxu0 0
    %5360 = vmatprep.subr.bf16.mxu0 0
    %5361 = vmatpush1.bf16.xpose.msra.mxu0 0
    %5362 = vmatprep.subr.bf16.mxu0 0
    %5363 = vmatpush1.bf16.xpose.msra.mxu0 0
    %5364 = vmatprep.subr.bf16.mxu0 0
    %5365 = vmatpush1.bf16.xpose.msra.mxu0 0
    %5366 = vmatprep.mubr.bf16.mxu0 %v5319
    %5367 = vmatmul.mubr.bf16.gmra.mrb[0].mxu0 %v5318
    %v5368 = vpop.f32.mrb[0].mxu0
    %v5369 = vadd.f32 0.0, %v5368
    %v5370 = vpop.f32.mrb[0].mxu0
    %v5371 = vpop.f32.mrb[0].mxu0
    %v5372 = vpop.f32.mrb[0].mxu0
    %5373 = vdwg.mxu0
    %5374 = vmatprep.subr.bf16.mxu0 %v1818
    %5375 = vmatpush1.bf16.xpose.msra.mxu0 %v1817
    %5376 = vmatprep.subr.bf16.mxu0 0
    %5377 = vmatpush1.bf16.xpose.msra.mxu0 0
    %5378 = vmatprep.subr.bf16.mxu0 0
    %5379 = vmatpush1.bf16.xpose.msra.mxu0 0
    %5380 = vmatprep.subr.bf16.mxu0 0
    %5381 = vmatpush1.bf16.xpose.msra.mxu0 0
    %5382 = vmatprep.subr.bf16.mxu0 0
    %5383 = vmatpush1.bf16.xpose.msra.mxu0 0
    %5384 = vmatprep.subr.bf16.mxu0 0
    %5385 = vmatpush1.bf16.xpose.msra.mxu0 0
    %5386 = vmatprep.subr.bf16.mxu0 0
    %5387 = vmatpush1.bf16.xpose.msra.mxu0 0
    %5388 = vmatprep.subr.bf16.mxu0 0
    %5389 = vmatpush1.bf16.xpose.msra.mxu0 0
    %5390 = vmatprep.subr.bf16.mxu0 0
    %5391 = vmatpush1.bf16.xpose.msra.mxu0 0
    %5392 = vmatprep.subr.bf16.mxu0 0
    %5393 = vmatpush1.bf16.xpose.msra.mxu0 0
    %5394 = vmatprep.subr.bf16.mxu0 0
    %5395 = vmatpush1.bf16.xpose.msra.mxu0 0
    %5396 = vmatprep.subr.bf16.mxu0 0
    %5397 = vmatpush1.bf16.xpose.msra.mxu0 0
    %5398 = vmatprep.subr.bf16.mxu0 0
    %5399 = vmatpush1.bf16.xpose.msra.mxu0 0
    %5400 = vmatprep.subr.bf16.mxu0 0
    %5401 = vmatpush1.bf16.xpose.msra.mxu0 0
    %5402 = vmatprep.subr.bf16.mxu0 0
    %5403 = vmatpush1.bf16.xpose.msra.mxu0 0
    %5404 = vmatprep.subr.bf16.mxu0 0
    %5405 = vmatpush1.bf16.xpose.msra.mxu0 0
    %5406 = vmatprep.mubr.bf16.mxu0 %v5321
    %5407 = vmatmul.mubr.bf16.gmra.mrb[0].mxu0 %v5320
    %v5408 = vpop.f32.mrb[0].mxu0
    %v5409 = vadd.f32 %v5369, %v5408
    %v5410 = vpop.f32.mrb[0].mxu0
    %v5411 = vpop.f32.mrb[0].mxu0
    %v5412 = vpop.f32.mrb[0].mxu0
    %5413 = vdwg.mxu0
    %5414 = vmatprep.subr.bf16.mxu0 %v1820
    %5415 = vmatpush1.bf16.xpose.msra.mxu0 %v1819
    %5416 = vmatprep.subr.bf16.mxu0 0
    %5417 = vmatpush1.bf16.xpose.msra.mxu0 0
    %5418 = vmatprep.subr.bf16.mxu0 0
    %5419 = vmatpush1.bf16.xpose.msra.mxu0 0
    %5420 = vmatprep.subr.bf16.mxu0 0
    %5421 = vmatpush1.bf16.xpose.msra.mxu0 0
    %5422 = vmatprep.subr.bf16.mxu0 0
    %5423 = vmatpush1.bf16.xpose.msra.mxu0 0
    %5424 = vmatprep.subr.bf16.mxu0 0
    %5425 = vmatpush1.bf16.xpose.msra.mxu0 0
    %5426 = vmatprep.subr.bf16.mxu0 0
    %5427 = vmatpush1.bf16.xpose.msra.mxu0 0
    %5428 = vmatprep.subr.bf16.mxu0 0
    %5429 = vmatpush1.bf16.xpose.msra.mxu0 0
    %5430 = vmatprep.subr.bf16.mxu0 0
    %5431 = vmatpush1.bf16.xpose.msra.mxu0 0
    %5432 = vmatprep.subr.bf16.mxu0 0
    %5433 = vmatpush1.bf16.xpose.msra.mxu0 0
    %5434 = vmatprep.subr.bf16.mxu0 0
    %5435 = vmatpush1.bf16.xpose.msra.mxu0 0
    %5436 = vmatprep.subr.bf16.mxu0 0
    %5437 = vmatpush1.bf16.xpose.msra.mxu0 0
    %5438 = vmatprep.subr.bf16.mxu0 0
    %5439 = vmatpush1.bf16.xpose.msra.mxu0 0
    %5440 = vmatprep.subr.bf16.mxu0 0
    %5441 = vmatpush1.bf16.xpose.msra.mxu0 0
    %5442 = vmatprep.subr.bf16.mxu0 0
    %5443 = vmatpush1.bf16.xpose.msra.mxu0 0
    %5444 = vmatprep.subr.bf16.mxu0 0
    %5445 = vmatpush1.bf16.xpose.msra.mxu0 0
    %5446 = vmatprep.mubr.bf16.mxu0 %v5323
    %5447 = vmatmul.mubr.bf16.gmra.mrb[0].mxu0 %v5322
    %v5448 = vpop.f32.mrb[0].mxu0
    %v5449 = vadd.f32 %v5409, %v5448
    %v5450 = vpop.f32.mrb[0].mxu0
    %v5451 = vpop.f32.mrb[0].mxu0
    %v5452 = vpop.f32.mrb[0].mxu0
    %5453 = vdwg.mxu0
    %5454 = vmatprep.subr.bf16.mxu0 %v1822
    %5455 = vmatpush1.bf16.xpose.msra.mxu0 %v1821
    %5456 = vmatprep.subr.bf16.mxu0 0
    %5457 = vmatpush1.bf16.xpose.msra.mxu0 0
    %5458 = vmatprep.subr.bf16.mxu0 0
    %5459 = vmatpush1.bf16.xpose.msra.mxu0 0
    %5460 = vmatprep.subr.bf16.mxu0 0
    %5461 = vmatpush1.bf16.xpose.msra.mxu0 0
    %5462 = vmatprep.subr.bf16.mxu0 0
    %5463 = vmatpush1.bf16.xpose.msra.mxu0 0
    %5464 = vmatprep.subr.bf16.mxu0 0
    %5465 = vmatpush1.bf16.xpose.msra.mxu0 0
    %5466 = vmatprep.subr.bf16.mxu0 0
    %5467 = vmatpush1.bf16.xpose.msra.mxu0 0
    %5468 = vmatprep.subr.bf16.mxu0 0
    %5469 = vmatpush1.bf16.xpose.msra.mxu0 0
    %5470 = vmatprep.subr.bf16.mxu0 0
    %5471 = vmatpush1.bf16.xpose.msra.mxu0 0
    %5472 = vmatprep.subr.bf16.mxu0 0
    %5473 = vmatpush1.bf16.xpose.msra.mxu0 0
    %5474 = vmatprep.subr.bf16.mxu0 0
    %5475 = vmatpush1.bf16.xpose.msra.mxu0 0
    %5476 = vmatprep.subr.bf16.mxu0 0
    %5477 = vmatpush1.bf16.xpose.msra.mxu0 0
    %5478 = vmatprep.subr.bf16.mxu0 0
    %5479 = vmatpush1.bf16.xpose.msra.mxu0 0
    %5480 = vmatprep.subr.bf16.mxu0 0
    %5481 = vmatpush1.bf16.xpose.msra.mxu0 0
    %5482 = vmatprep.subr.bf16.mxu0 0
    %5483 = vmatpush1.bf16.xpose.msra.mxu0 0
    %5484 = vmatprep.subr.bf16.mxu0 0
    %5485 = vmatpush1.bf16.xpose.msra.mxu0 0
    %5486 = vmatprep.mubr.bf16.mxu0 %v5325
    %5487 = vmatmul.mubr.bf16.gmra.mrb[0].mxu0 %v5324
    %v5488 = vpop.f32.mrb[0].mxu0
    %v5489 = vadd.f32 %v5449, %v5488
    %v5490 = vpop.f32.mrb[0].mxu0
    %v5491 = vpop.f32.mrb[0].mxu0
    %v5492 = vpop.f32.mrb[0].mxu0
    %5493 = vdwg.mxu0
    %v5494 = vrot.slane %v4247, 7
    %v5495 = vrot.slane %v4250, 7
    %v5496 = vrot.slane %v4253, 7
    %v5497 = vrot.slane %v4256, 7
    %v5498 = vrot.slane %v4259, 7
    %v5499 = vrot.slane %v4262, 7
    %v5500 = vrot.slane %v4265, 7
    %v5501 = vrot.slane %v4268, 7
    %5510 = vmatprep.subr.bf16.mxu0 %v2050
    %5511 = vmatpush1.bf16.xpose.msra.mxu0 %v2049
    %5512 = vmatprep.subr.bf16.mxu0 0
    %5513 = vmatpush1.bf16.xpose.msra.mxu0 0
    %5514 = vmatprep.subr.bf16.mxu0 0
    %5515 = vmatpush1.bf16.xpose.msra.mxu0 0
    %5516 = vmatprep.subr.bf16.mxu0 0
    %5517 = vmatpush1.bf16.xpose.msra.mxu0 0
    %5518 = vmatprep.subr.bf16.mxu0 0
    %5519 = vmatpush1.bf16.xpose.msra.mxu0 0
    %5520 = vmatprep.subr.bf16.mxu0 0
    %5521 = vmatpush1.bf16.xpose.msra.mxu0 0
    %5522 = vmatprep.subr.bf16.mxu0 0
    %5523 = vmatpush1.bf16.xpose.msra.mxu0 0
    %5524 = vmatprep.subr.bf16.mxu0 0
    %5525 = vmatpush1.bf16.xpose.msra.mxu0 0
    %5526 = vmatprep.subr.bf16.mxu0 0
    %5527 = vmatpush1.bf16.xpose.msra.mxu0 0
    %5528 = vmatprep.subr.bf16.mxu0 0
    %5529 = vmatpush1.bf16.xpose.msra.mxu0 0
    %5530 = vmatprep.subr.bf16.mxu0 0
    %5531 = vmatpush1.bf16.xpose.msra.mxu0 0
    %5532 = vmatprep.subr.bf16.mxu0 0
    %5533 = vmatpush1.bf16.xpose.msra.mxu0 0
    %5534 = vmatprep.subr.bf16.mxu0 0
    %5535 = vmatpush1.bf16.xpose.msra.mxu0 0
    %5536 = vmatprep.subr.bf16.mxu0 0
    %5537 = vmatpush1.bf16.xpose.msra.mxu0 0
    %5538 = vmatprep.subr.bf16.mxu0 0
    %5539 = vmatpush1.bf16.xpose.msra.mxu0 0
    %5540 = vmatprep.subr.bf16.mxu0 0
    %5541 = vmatpush1.bf16.xpose.msra.mxu0 0
    %5542 = vmatprep.mubr.bf16.mxu0 %v5495
    %5543 = vmatmul.mubr.bf16.gmra.mrb[0].mxu0 %v5494
    %v5544 = vpop.f32.mrb[0].mxu0
    %v5545 = vadd.f32 0.0, %v5544
    %v5546 = vpop.f32.mrb[0].mxu0
    %v5547 = vpop.f32.mrb[0].mxu0
    %v5548 = vpop.f32.mrb[0].mxu0
    %5549 = vdwg.mxu0
    %5550 = vmatprep.subr.bf16.mxu0 %v2052
    %5551 = vmatpush1.bf16.xpose.msra.mxu0 %v2051
    %5552 = vmatprep.subr.bf16.mxu0 0
    %5553 = vmatpush1.bf16.xpose.msra.mxu0 0
    %5554 = vmatprep.subr.bf16.mxu0 0
    %5555 = vmatpush1.bf16.xpose.msra.mxu0 0
    %5556 = vmatprep.subr.bf16.mxu0 0
    %5557 = vmatpush1.bf16.xpose.msra.mxu0 0
    %5558 = vmatprep.subr.bf16.mxu0 0
    %5559 = vmatpush1.bf16.xpose.msra.mxu0 0
    %5560 = vmatprep.subr.bf16.mxu0 0
    %5561 = vmatpush1.bf16.xpose.msra.mxu0 0
    %5562 = vmatprep.subr.bf16.mxu0 0
    %5563 = vmatpush1.bf16.xpose.msra.mxu0 0
    %5564 = vmatprep.subr.bf16.mxu0 0
    %5565 = vmatpush1.bf16.xpose.msra.mxu0 0
    %5566 = vmatprep.subr.bf16.mxu0 0
    %5567 = vmatpush1.bf16.xpose.msra.mxu0 0
    %5568 = vmatprep.subr.bf16.mxu0 0
    %5569 = vmatpush1.bf16.xpose.msra.mxu0 0
    %5570 = vmatprep.subr.bf16.mxu0 0
    %5571 = vmatpush1.bf16.xpose.msra.mxu0 0
    %5572 = vmatprep.subr.bf16.mxu0 0
    %5573 = vmatpush1.bf16.xpose.msra.mxu0 0
    %5574 = vmatprep.subr.bf16.mxu0 0
    %5575 = vmatpush1.bf16.xpose.msra.mxu0 0
    %5576 = vmatprep.subr.bf16.mxu0 0
    %5577 = vmatpush1.bf16.xpose.msra.mxu0 0
    %5578 = vmatprep.subr.bf16.mxu0 0
    %5579 = vmatpush1.bf16.xpose.msra.mxu0 0
    %5580 = vmatprep.subr.bf16.mxu0 0
    %5581 = vmatpush1.bf16.xpose.msra.mxu0 0
    %5582 = vmatprep.mubr.bf16.mxu0 %v5497
    %5583 = vmatmul.mubr.bf16.gmra.mrb[0].mxu0 %v5496
    %v5584 = vpop.f32.mrb[0].mxu0
    %v5585 = vadd.f32 %v5545, %v5584
    %v5586 = vpop.f32.mrb[0].mxu0
    %v5587 = vpop.f32.mrb[0].mxu0
    %v5588 = vpop.f32.mrb[0].mxu0
    %5589 = vdwg.mxu0
    %5590 = vmatprep.subr.bf16.mxu0 %v2054
    %5591 = vmatpush1.bf16.xpose.msra.mxu0 %v2053
    %5592 = vmatprep.subr.bf16.mxu0 0
    %5593 = vmatpush1.bf16.xpose.msra.mxu0 0
    %5594 = vmatprep.subr.bf16.mxu0 0
    %5595 = vmatpush1.bf16.xpose.msra.mxu0 0
    %5596 = vmatprep.subr.bf16.mxu0 0
    %5597 = vmatpush1.bf16.xpose.msra.mxu0 0
    %5598 = vmatprep.subr.bf16.mxu0 0
    %5599 = vmatpush1.bf16.xpose.msra.mxu0 0
    %5600 = vmatprep.subr.bf16.mxu0 0
    %5601 = vmatpush1.bf16.xpose.msra.mxu0 0
    %5602 = vmatprep.subr.bf16.mxu0 0
    %5603 = vmatpush1.bf16.xpose.msra.mxu0 0
    %5604 = vmatprep.subr.bf16.mxu0 0
    %5605 = vmatpush1.bf16.xpose.msra.mxu0 0
    %5606 = vmatprep.subr.bf16.mxu0 0
    %5607 = vmatpush1.bf16.xpose.msra.mxu0 0
    %5608 = vmatprep.subr.bf16.mxu0 0
    %5609 = vmatpush1.bf16.xpose.msra.mxu0 0
    %5610 = vmatprep.subr.bf16.mxu0 0
    %5611 = vmatpush1.bf16.xpose.msra.mxu0 0
    %5612 = vmatprep.subr.bf16.mxu0 0
    %5613 = vmatpush1.bf16.xpose.msra.mxu0 0
    %5614 = vmatprep.subr.bf16.mxu0 0
    %5615 = vmatpush1.bf16.xpose.msra.mxu0 0
    %5616 = vmatprep.subr.bf16.mxu0 0
    %5617 = vmatpush1.bf16.xpose.msra.mxu0 0
    %5618 = vmatprep.subr.bf16.mxu0 0
    %5619 = vmatpush1.bf16.xpose.msra.mxu0 0
    %5620 = vmatprep.subr.bf16.mxu0 0
    %5621 = vmatpush1.bf16.xpose.msra.mxu0 0
    %5622 = vmatprep.mubr.bf16.mxu0 %v5499
    %5623 = vmatmul.mubr.bf16.gmra.mrb[0].mxu0 %v5498
    %v5624 = vpop.f32.mrb[0].mxu0
    %v5625 = vadd.f32 %v5585, %v5624
    %v5626 = vpop.f32.mrb[0].mxu0
    %v5627 = vpop.f32.mrb[0].mxu0
    %v5628 = vpop.f32.mrb[0].mxu0
    %5629 = vdwg.mxu0
    %5630 = vmatprep.subr.bf16.mxu0 %v2056
    %5631 = vmatpush1.bf16.xpose.msra.mxu0 %v2055
    %5632 = vmatprep.subr.bf16.mxu0 0
    %5633 = vmatpush1.bf16.xpose.msra.mxu0 0
    %5634 = vmatprep.subr.bf16.mxu0 0
    %5635 = vmatpush1.bf16.xpose.msra.mxu0 0
    %5636 = vmatprep.subr.bf16.mxu0 0
    %5637 = vmatpush1.bf16.xpose.msra.mxu0 0
    %5638 = vmatprep.subr.bf16.mxu0 0
    %5639 = vmatpush1.bf16.xpose.msra.mxu0 0
    %5640 = vmatprep.subr.bf16.mxu0 0
    %5641 = vmatpush1.bf16.xpose.msra.mxu0 0
    %5642 = vmatprep.subr.bf16.mxu0 0
    %5643 = vmatpush1.bf16.xpose.msra.mxu0 0
    %5644 = vmatprep.subr.bf16.mxu0 0
    %5645 = vmatpush1.bf16.xpose.msra.mxu0 0
    %5646 = vmatprep.subr.bf16.mxu0 0
    %5647 = vmatpush1.bf16.xpose.msra.mxu0 0
    %5648 = vmatprep.subr.bf16.mxu0 0
    %5649 = vmatpush1.bf16.xpose.msra.mxu0 0
    %5650 = vmatprep.subr.bf16.mxu0 0
    %5651 = vmatpush1.bf16.xpose.msra.mxu0 0
    %5652 = vmatprep.subr.bf16.mxu0 0
    %5653 = vmatpush1.bf16.xpose.msra.mxu0 0
    %5654 = vmatprep.subr.bf16.mxu0 0
    %5655 = vmatpush1.bf16.xpose.msra.mxu0 0
    %5656 = vmatprep.subr.bf16.mxu0 0
    %5657 = vmatpush1.bf16.xpose.msra.mxu0 0
    %5658 = vmatprep.subr.bf16.mxu0 0
    %5659 = vmatpush1.bf16.xpose.msra.mxu0 0
    %5660 = vmatprep.subr.bf16.mxu0 0
    %5661 = vmatpush1.bf16.xpose.msra.mxu0 0
    %5662 = vmatprep.mubr.bf16.mxu0 %v5501
    %5663 = vmatmul.mubr.bf16.gmra.mrb[0].mxu0 %v5500
    %v5664 = vpop.f32.mrb[0].mxu0
    %v5665 = vadd.f32 %v5625, %v5664
    %v5666 = vpop.f32.mrb[0].mxu0
    %v5667 = vpop.f32.mrb[0].mxu0
    %v5668 = vpop.f32.mrb[0].mxu0
    %5669 = vdwg.mxu0
    %5670 = vmatprep.subr.bf16.mxu0 %v2250
    %5671 = vmatpush1.bf16.xpose.msra.mxu0 %v2249
    %5672 = vmatprep.subr.bf16.mxu0 0
    %5673 = vmatpush1.bf16.xpose.msra.mxu0 0
    %5674 = vmatprep.subr.bf16.mxu0 0
    %5675 = vmatpush1.bf16.xpose.msra.mxu0 0
    %5676 = vmatprep.subr.bf16.mxu0 0
    %5677 = vmatpush1.bf16.xpose.msra.mxu0 0
    %5678 = vmatprep.subr.bf16.mxu0 0
    %5679 = vmatpush1.bf16.xpose.msra.mxu0 0
    %5680 = vmatprep.subr.bf16.mxu0 0
    %5681 = vmatpush1.bf16.xpose.msra.mxu0 0
    %5682 = vmatprep.subr.bf16.mxu0 0
    %5683 = vmatpush1.bf16.xpose.msra.mxu0 0
    %5684 = vmatprep.subr.bf16.mxu0 0
    %5685 = vmatpush1.bf16.xpose.msra.mxu0 0
    %5686 = vmatprep.subr.bf16.mxu0 0
    %5687 = vmatpush1.bf16.xpose.msra.mxu0 0
    %5688 = vmatprep.subr.bf16.mxu0 0
    %5689 = vmatpush1.bf16.xpose.msra.mxu0 0
    %5690 = vmatprep.subr.bf16.mxu0 0
    %5691 = vmatpush1.bf16.xpose.msra.mxu0 0
    %5692 = vmatprep.subr.bf16.mxu0 0
    %5693 = vmatpush1.bf16.xpose.msra.mxu0 0
    %5694 = vmatprep.subr.bf16.mxu0 0
    %5695 = vmatpush1.bf16.xpose.msra.mxu0 0
    %5696 = vmatprep.subr.bf16.mxu0 0
    %5697 = vmatpush1.bf16.xpose.msra.mxu0 0
    %5698 = vmatprep.subr.bf16.mxu0 0
    %5699 = vmatpush1.bf16.xpose.msra.mxu0 0
    %5700 = vmatprep.subr.bf16.mxu0 0
    %5701 = vmatpush1.bf16.xpose.msra.mxu0 0
    %5702 = vmatprep.mubr.bf16.mxu0 %v4239
    %5703 = vmatmul.mubr.bf16.gmra.mrb[0].mxu0 %v4238
    %v5704 = vpop.f32.mrb[0].mxu0
    %v5705 = vadd.f32 %v4433, %v5704
    %v5706 = vpop.f32.mrb[0].mxu0
    %v5707 = vpop.f32.mrb[0].mxu0
    %v5708 = vpop.f32.mrb[0].mxu0
    %5709 = vdwg.mxu0
    %5710 = vmatprep.subr.bf16.mxu0 %v2252
    %5711 = vmatpush1.bf16.xpose.msra.mxu0 %v2251
    %5712 = vmatprep.subr.bf16.mxu0 0
    %5713 = vmatpush1.bf16.xpose.msra.mxu0 0
    %5714 = vmatprep.subr.bf16.mxu0 0
    %5715 = vmatpush1.bf16.xpose.msra.mxu0 0
    %5716 = vmatprep.subr.bf16.mxu0 0
    %5717 = vmatpush1.bf16.xpose.msra.mxu0 0
    %5718 = vmatprep.subr.bf16.mxu0 0
    %5719 = vmatpush1.bf16.xpose.msra.mxu0 0
    %5720 = vmatprep.subr.bf16.mxu0 0
    %5721 = vmatpush1.bf16.xpose.msra.mxu0 0
    %5722 = vmatprep.subr.bf16.mxu0 0
    %5723 = vmatpush1.bf16.xpose.msra.mxu0 0
    %5724 = vmatprep.subr.bf16.mxu0 0
    %5725 = vmatpush1.bf16.xpose.msra.mxu0 0
    %5726 = vmatprep.subr.bf16.mxu0 0
    %5727 = vmatpush1.bf16.xpose.msra.mxu0 0
    %5728 = vmatprep.subr.bf16.mxu0 0
    %5729 = vmatpush1.bf16.xpose.msra.mxu0 0
    %5730 = vmatprep.subr.bf16.mxu0 0
    %5731 = vmatpush1.bf16.xpose.msra.mxu0 0
    %5732 = vmatprep.subr.bf16.mxu0 0
    %5733 = vmatpush1.bf16.xpose.msra.mxu0 0
    %5734 = vmatprep.subr.bf16.mxu0 0
    %5735 = vmatpush1.bf16.xpose.msra.mxu0 0
    %5736 = vmatprep.subr.bf16.mxu0 0
    %5737 = vmatpush1.bf16.xpose.msra.mxu0 0
    %5738 = vmatprep.subr.bf16.mxu0 0
    %5739 = vmatpush1.bf16.xpose.msra.mxu0 0
    %5740 = vmatprep.subr.bf16.mxu0 0
    %5741 = vmatpush1.bf16.xpose.msra.mxu0 0
    %5742 = vmatprep.mubr.bf16.mxu0 %v4241
    %5743 = vmatmul.mubr.bf16.gmra.mrb[0].mxu0 %v4240
    %v5744 = vpop.f32.mrb[0].mxu0
    %v5745 = vadd.f32 %v5705, %v5744
    %v5746 = vpop.f32.mrb[0].mxu0
    %v5747 = vpop.f32.mrb[0].mxu0
    %v5748 = vpop.f32.mrb[0].mxu0
    %5749 = vdwg.mxu0
    %5750 = vmatprep.subr.bf16.mxu0 %v2254
    %5751 = vmatpush1.bf16.xpose.msra.mxu0 %v2253
    %5752 = vmatprep.subr.bf16.mxu0 0
    %5753 = vmatpush1.bf16.xpose.msra.mxu0 0
    %5754 = vmatprep.subr.bf16.mxu0 0
    %5755 = vmatpush1.bf16.xpose.msra.mxu0 0
    %5756 = vmatprep.subr.bf16.mxu0 0
    %5757 = vmatpush1.bf16.xpose.msra.mxu0 0
    %5758 = vmatprep.subr.bf16.mxu0 0
    %5759 = vmatpush1.bf16.xpose.msra.mxu0 0
    %5760 = vmatprep.subr.bf16.mxu0 0
    %5761 = vmatpush1.bf16.xpose.msra.mxu0 0
    %5762 = vmatprep.subr.bf16.mxu0 0
    %5763 = vmatpush1.bf16.xpose.msra.mxu0 0
    %5764 = vmatprep.subr.bf16.mxu0 0
    %5765 = vmatpush1.bf16.xpose.msra.mxu0 0
    %5766 = vmatprep.subr.bf16.mxu0 0
    %5767 = vmatpush1.bf16.xpose.msra.mxu0 0
    %5768 = vmatprep.subr.bf16.mxu0 0
    %5769 = vmatpush1.bf16.xpose.msra.mxu0 0
    %5770 = vmatprep.subr.bf16.mxu0 0
    %5771 = vmatpush1.bf16.xpose.msra.mxu0 0
    %5772 = vmatprep.subr.bf16.mxu0 0
    %5773 = vmatpush1.bf16.xpose.msra.mxu0 0
    %5774 = vmatprep.subr.bf16.mxu0 0
    %5775 = vmatpush1.bf16.xpose.msra.mxu0 0
    %5776 = vmatprep.subr.bf16.mxu0 0
    %5777 = vmatpush1.bf16.xpose.msra.mxu0 0
    %5778 = vmatprep.subr.bf16.mxu0 0
    %5779 = vmatpush1.bf16.xpose.msra.mxu0 0
    %5780 = vmatprep.subr.bf16.mxu0 0
    %5781 = vmatpush1.bf16.xpose.msra.mxu0 0
    %5782 = vmatprep.mubr.bf16.mxu0 %v4243
    %5783 = vmatmul.mubr.bf16.gmra.mrb[0].mxu0 %v4242
    %v5784 = vpop.f32.mrb[0].mxu0
    %v5785 = vadd.f32 %v5745, %v5784
    %v5786 = vpop.f32.mrb[0].mxu0
    %v5787 = vpop.f32.mrb[0].mxu0
    %v5788 = vpop.f32.mrb[0].mxu0
    %5789 = vdwg.mxu0
    %5790 = vmatprep.subr.bf16.mxu0 %v2256
    %5791 = vmatpush1.bf16.xpose.msra.mxu0 %v2255
    %5792 = vmatprep.subr.bf16.mxu0 0
    %5793 = vmatpush1.bf16.xpose.msra.mxu0 0
    %5794 = vmatprep.subr.bf16.mxu0 0
    %5795 = vmatpush1.bf16.xpose.msra.mxu0 0
    %5796 = vmatprep.subr.bf16.mxu0 0
    %5797 = vmatpush1.bf16.xpose.msra.mxu0 0
    %5798 = vmatprep.subr.bf16.mxu0 0
    %5799 = vmatpush1.bf16.xpose.msra.mxu0 0
    %5800 = vmatprep.subr.bf16.mxu0 0
    %5801 = vmatpush1.bf16.xpose.msra.mxu0 0
    %5802 = vmatprep.subr.bf16.mxu0 0
    %5803 = vmatpush1.bf16.xpose.msra.mxu0 0
    %5804 = vmatprep.subr.bf16.mxu0 0
    %5805 = vmatpush1.bf16.xpose.msra.mxu0 0
    %5806 = vmatprep.subr.bf16.mxu0 0
    %5807 = vmatpush1.bf16.xpose.msra.mxu0 0
    %5808 = vmatprep.subr.bf16.mxu0 0
    %5809 = vmatpush1.bf16.xpose.msra.mxu0 0
    %5810 = vmatprep.subr.bf16.mxu0 0
    %5811 = vmatpush1.bf16.xpose.msra.mxu0 0
    %5812 = vmatprep.subr.bf16.mxu0 0
    %5813 = vmatpush1.bf16.xpose.msra.mxu0 0
    %5814 = vmatprep.subr.bf16.mxu0 0
    %5815 = vmatpush1.bf16.xpose.msra.mxu0 0
    %5816 = vmatprep.subr.bf16.mxu0 0
    %5817 = vmatpush1.bf16.xpose.msra.mxu0 0
    %5818 = vmatprep.subr.bf16.mxu0 0
    %5819 = vmatpush1.bf16.xpose.msra.mxu0 0
    %5820 = vmatprep.subr.bf16.mxu0 0
    %5821 = vmatpush1.bf16.xpose.msra.mxu0 0
    %5822 = vmatprep.mubr.bf16.mxu0 %v4245
    %5823 = vmatmul.mubr.bf16.gmra.mrb[0].mxu0 %v4244
    %v5824 = vpop.f32.mrb[0].mxu0
    %v5825 = vadd.f32 %v5785, %v5824
    %v5826 = vpop.f32.mrb[0].mxu0
    %v5827 = vpop.f32.mrb[0].mxu0
    %v5828 = vpop.f32.mrb[0].mxu0
    %5829 = vdwg.mxu0
    %v5838 = vrot.slane %v4238, 1
    %v5839 = vrot.slane %v4239, 1
    %v5840 = vrot.slane %v4240, 1
    %v5841 = vrot.slane %v4241, 1
    %v5842 = vrot.slane %v4242, 1
    %v5843 = vrot.slane %v4243, 1
    %v5844 = vrot.slane %v4244, 1
    %v5845 = vrot.slane %v4245, 1
    %5854 = vmatprep.subr.bf16.mxu0 %v2474
    %5855 = vmatpush1.bf16.xpose.msra.mxu0 %v2473
    %5856 = vmatprep.subr.bf16.mxu0 0
    %5857 = vmatpush1.bf16.xpose.msra.mxu0 0
    %5858 = vmatprep.subr.bf16.mxu0 0
    %5859 = vmatpush1.bf16.xpose.msra.mxu0 0
    %5860 = vmatprep.subr.bf16.mxu0 0
    %5861 = vmatpush1.bf16.xpose.msra.mxu0 0
    %5862 = vmatprep.subr.bf16.mxu0 0
    %5863 = vmatpush1.bf16.xpose.msra.mxu0 0
    %5864 = vmatprep.subr.bf16.mxu0 0
    %5865 = vmatpush1.bf16.xpose.msra.mxu0 0
    %5866 = vmatprep.subr.bf16.mxu0 0
    %5867 = vmatpush1.bf16.xpose.msra.mxu0 0
    %5868 = vmatprep.subr.bf16.mxu0 0
    %5869 = vmatpush1.bf16.xpose.msra.mxu0 0
    %5870 = vmatprep.subr.bf16.mxu0 0
    %5871 = vmatpush1.bf16.xpose.msra.mxu0 0
    %5872 = vmatprep.subr.bf16.mxu0 0
    %5873 = vmatpush1.bf16.xpose.msra.mxu0 0
    %5874 = vmatprep.subr.bf16.mxu0 0
    %5875 = vmatpush1.bf16.xpose.msra.mxu0 0
    %5876 = vmatprep.subr.bf16.mxu0 0
    %5877 = vmatpush1.bf16.xpose.msra.mxu0 0
    %5878 = vmatprep.subr.bf16.mxu0 0
    %5879 = vmatpush1.bf16.xpose.msra.mxu0 0
    %5880 = vmatprep.subr.bf16.mxu0 0
    %5881 = vmatpush1.bf16.xpose.msra.mxu0 0
    %5882 = vmatprep.subr.bf16.mxu0 0
    %5883 = vmatpush1.bf16.xpose.msra.mxu0 0
    %5884 = vmatprep.subr.bf16.mxu0 0
    %5885 = vmatpush1.bf16.xpose.msra.mxu0 0
    %5886 = vmatprep.mubr.bf16.mxu0 %v5839
    %5887 = vmatmul.mubr.bf16.gmra.mrb[0].mxu0 %v5838
    %v5888 = vpop.f32.mrb[0].mxu0
    %v5889 = vadd.f32 %v4609, %v5888
    %v5890 = vpop.f32.mrb[0].mxu0
    %v5891 = vpop.f32.mrb[0].mxu0
    %v5892 = vpop.f32.mrb[0].mxu0
    %5893 = vdwg.mxu0
    %5894 = vmatprep.subr.bf16.mxu0 %v2476
    %5895 = vmatpush1.bf16.xpose.msra.mxu0 %v2475
    %5896 = vmatprep.subr.bf16.mxu0 0
    %5897 = vmatpush1.bf16.xpose.msra.mxu0 0
    %5898 = vmatprep.subr.bf16.mxu0 0
    %5899 = vmatpush1.bf16.xpose.msra.mxu0 0
    %5900 = vmatprep.subr.bf16.mxu0 0
    %5901 = vmatpush1.bf16.xpose.msra.mxu0 0
    %5902 = vmatprep.subr.bf16.mxu0 0
    %5903 = vmatpush1.bf16.xpose.msra.mxu0 0
    %5904 = vmatprep.subr.bf16.mxu0 0
    %5905 = vmatpush1.bf16.xpose.msra.mxu0 0
    %5906 = vmatprep.subr.bf16.mxu0 0
    %5907 = vmatpush1.bf16.xpose.msra.mxu0 0
    %5908 = vmatprep.subr.bf16.mxu0 0
    %5909 = vmatpush1.bf16.xpose.msra.mxu0 0
    %5910 = vmatprep.subr.bf16.mxu0 0
    %5911 = vmatpush1.bf16.xpose.msra.mxu0 0
    %5912 = vmatprep.subr.bf16.mxu0 0
    %5913 = vmatpush1.bf16.xpose.msra.mxu0 0
    %5914 = vmatprep.subr.bf16.mxu0 0
    %5915 = vmatpush1.bf16.xpose.msra.mxu0 0
    %5916 = vmatprep.subr.bf16.mxu0 0
    %5917 = vmatpush1.bf16.xpose.msra.mxu0 0
    %5918 = vmatprep.subr.bf16.mxu0 0
    %5919 = vmatpush1.bf16.xpose.msra.mxu0 0
    %5920 = vmatprep.subr.bf16.mxu0 0
    %5921 = vmatpush1.bf16.xpose.msra.mxu0 0
    %5922 = vmatprep.subr.bf16.mxu0 0
    %5923 = vmatpush1.bf16.xpose.msra.mxu0 0
    %5924 = vmatprep.subr.bf16.mxu0 0
    %5925 = vmatpush1.bf16.xpose.msra.mxu0 0
    %5926 = vmatprep.mubr.bf16.mxu0 %v5841
    %5927 = vmatmul.mubr.bf16.gmra.mrb[0].mxu0 %v5840
    %v5928 = vpop.f32.mrb[0].mxu0
    %v5929 = vadd.f32 %v5889, %v5928
    %v5930 = vpop.f32.mrb[0].mxu0
    %v5931 = vpop.f32.mrb[0].mxu0
    %v5932 = vpop.f32.mrb[0].mxu0
    %5933 = vdwg.mxu0
    %5934 = vmatprep.subr.bf16.mxu0 %v2478
    %5935 = vmatpush1.bf16.xpose.msra.mxu0 %v2477
    %5936 = vmatprep.subr.bf16.mxu0 0
    %5937 = vmatpush1.bf16.xpose.msra.mxu0 0
    %5938 = vmatprep.subr.bf16.mxu0 0
    %5939 = vmatpush1.bf16.xpose.msra.mxu0 0
    %5940 = vmatprep.subr.bf16.mxu0 0
    %5941 = vmatpush1.bf16.xpose.msra.mxu0 0
    %5942 = vmatprep.subr.bf16.mxu0 0
    %5943 = vmatpush1.bf16.xpose.msra.mxu0 0
    %5944 = vmatprep.subr.bf16.mxu0 0
    %5945 = vmatpush1.bf16.xpose.msra.mxu0 0
    %5946 = vmatprep.subr.bf16.mxu0 0
    %5947 = vmatpush1.bf16.xpose.msra.mxu0 0
    %5948 = vmatprep.subr.bf16.mxu0 0
    %5949 = vmatpush1.bf16.xpose.msra.mxu0 0
    %5950 = vmatprep.subr.bf16.mxu0 0
    %5951 = vmatpush1.bf16.xpose.msra.mxu0 0
    %5952 = vmatprep.subr.bf16.mxu0 0
    %5953 = vmatpush1.bf16.xpose.msra.mxu0 0
    %5954 = vmatprep.subr.bf16.mxu0 0
    %5955 = vmatpush1.bf16.xpose.msra.mxu0 0
    %5956 = vmatprep.subr.bf16.mxu0 0
    %5957 = vmatpush1.bf16.xpose.msra.mxu0 0
    %5958 = vmatprep.subr.bf16.mxu0 0
    %5959 = vmatpush1.bf16.xpose.msra.mxu0 0
    %5960 = vmatprep.subr.bf16.mxu0 0
    %5961 = vmatpush1.bf16.xpose.msra.mxu0 0
    %5962 = vmatprep.subr.bf16.mxu0 0
    %5963 = vmatpush1.bf16.xpose.msra.mxu0 0
    %5964 = vmatprep.subr.bf16.mxu0 0
    %5965 = vmatpush1.bf16.xpose.msra.mxu0 0
    %5966 = vmatprep.mubr.bf16.mxu0 %v5843
    %5967 = vmatmul.mubr.bf16.gmra.mrb[0].mxu0 %v5842
    %v5968 = vpop.f32.mrb[0].mxu0
    %v5969 = vadd.f32 %v5929, %v5968
    %v5970 = vpop.f32.mrb[0].mxu0
    %v5971 = vpop.f32.mrb[0].mxu0
    %v5972 = vpop.f32.mrb[0].mxu0
    %5973 = vdwg.mxu0
    %5974 = vmatprep.subr.bf16.mxu0 %v2480
    %5975 = vmatpush1.bf16.xpose.msra.mxu0 %v2479
    %5976 = vmatprep.subr.bf16.mxu0 0
    %5977 = vmatpush1.bf16.xpose.msra.mxu0 0
    %5978 = vmatprep.subr.bf16.mxu0 0
    %5979 = vmatpush1.bf16.xpose.msra.mxu0 0
    %5980 = vmatprep.subr.bf16.mxu0 0
    %5981 = vmatpush1.bf16.xpose.msra.mxu0 0
    %5982 = vmatprep.subr.bf16.mxu0 0
    %5983 = vmatpush1.bf16.xpose.msra.mxu0 0
    %5984 = vmatprep.subr.bf16.mxu0 0
    %5985 = vmatpush1.bf16.xpose.msra.mxu0 0
    %5986 = vmatprep.subr.bf16.mxu0 0
    %5987 = vmatpush1.bf16.xpose.msra.mxu0 0
    %5988 = vmatprep.subr.bf16.mxu0 0
    %5989 = vmatpush1.bf16.xpose.msra.mxu0 0
    %5990 = vmatprep.subr.bf16.mxu0 0
    %5991 = vmatpush1.bf16.xpose.msra.mxu0 0
    %5992 = vmatprep.subr.bf16.mxu0 0
    %5993 = vmatpush1.bf16.xpose.msra.mxu0 0
    %5994 = vmatprep.subr.bf16.mxu0 0
    %5995 = vmatpush1.bf16.xpose.msra.mxu0 0
    %5996 = vmatprep.subr.bf16.mxu0 0
    %5997 = vmatpush1.bf16.xpose.msra.mxu0 0
    %5998 = vmatprep.subr.bf16.mxu0 0
    %5999 = vmatpush1.bf16.xpose.msra.mxu0 0
    %6000 = vmatprep.subr.bf16.mxu0 0
    %6001 = vmatpush1.bf16.xpose.msra.mxu0 0
    %6002 = vmatprep.subr.bf16.mxu0 0
    %6003 = vmatpush1.bf16.xpose.msra.mxu0 0
    %6004 = vmatprep.subr.bf16.mxu0 0
    %6005 = vmatpush1.bf16.xpose.msra.mxu0 0
    %6006 = vmatprep.mubr.bf16.mxu0 %v5845
    %6007 = vmatmul.mubr.bf16.gmra.mrb[0].mxu0 %v5844
    %v6008 = vpop.f32.mrb[0].mxu0
    %v6009 = vadd.f32 %v5969, %v6008
    %v6010 = vpop.f32.mrb[0].mxu0
    %v6011 = vpop.f32.mrb[0].mxu0
    %v6012 = vpop.f32.mrb[0].mxu0
    %6013 = vdwg.mxu0
    %v6014 = vrot.slane %v4238, 2
    %v6015 = vrot.slane %v4239, 2
    %v6016 = vrot.slane %v4240, 2
    %v6017 = vrot.slane %v4241, 2
    %v6018 = vrot.slane %v4242, 2
    %v6019 = vrot.slane %v4243, 2
    %v6020 = vrot.slane %v4244, 2
    %v6021 = vrot.slane %v4245, 2
    %6030 = vmatprep.subr.bf16.mxu0 %v2690
    %6031 = vmatpush1.bf16.xpose.msra.mxu0 %v2689
    %6032 = vmatprep.subr.bf16.mxu0 0
    %6033 = vmatpush1.bf16.xpose.msra.mxu0 0
    %6034 = vmatprep.subr.bf16.mxu0 0
    %6035 = vmatpush1.bf16.xpose.msra.mxu0 0
    %6036 = vmatprep.subr.bf16.mxu0 0
    %6037 = vmatpush1.bf16.xpose.msra.mxu0 0
    %6038 = vmatprep.subr.bf16.mxu0 0
    %6039 = vmatpush1.bf16.xpose.msra.mxu0 0
    %6040 = vmatprep.subr.bf16.mxu0 0
    %6041 = vmatpush1.bf16.xpose.msra.mxu0 0
    %6042 = vmatprep.subr.bf16.mxu0 0
    %6043 = vmatpush1.bf16.xpose.msra.mxu0 0
    %6044 = vmatprep.subr.bf16.mxu0 0
    %6045 = vmatpush1.bf16.xpose.msra.mxu0 0
    %6046 = vmatprep.subr.bf16.mxu0 0
    %6047 = vmatpush1.bf16.xpose.msra.mxu0 0
    %6048 = vmatprep.subr.bf16.mxu0 0
    %6049 = vmatpush1.bf16.xpose.msra.mxu0 0
    %6050 = vmatprep.subr.bf16.mxu0 0
    %6051 = vmatpush1.bf16.xpose.msra.mxu0 0
    %6052 = vmatprep.subr.bf16.mxu0 0
    %6053 = vmatpush1.bf16.xpose.msra.mxu0 0
    %6054 = vmatprep.subr.bf16.mxu0 0
    %6055 = vmatpush1.bf16.xpose.msra.mxu0 0
    %6056 = vmatprep.subr.bf16.mxu0 0
    %6057 = vmatpush1.bf16.xpose.msra.mxu0 0
    %6058 = vmatprep.subr.bf16.mxu0 0
    %6059 = vmatpush1.bf16.xpose.msra.mxu0 0
    %6060 = vmatprep.subr.bf16.mxu0 0
    %6061 = vmatpush1.bf16.xpose.msra.mxu0 0
    %6062 = vmatprep.mubr.bf16.mxu0 %v6015
    %6063 = vmatmul.mubr.bf16.gmra.mrb[0].mxu0 %v6014
    %v6064 = vpop.f32.mrb[0].mxu0
    %v6065 = vadd.f32 %v4785, %v6064
    %v6066 = vpop.f32.mrb[0].mxu0
    %v6067 = vpop.f32.mrb[0].mxu0
    %v6068 = vpop.f32.mrb[0].mxu0
    %6069 = vdwg.mxu0
    %6070 = vmatprep.subr.bf16.mxu0 %v2692
    %6071 = vmatpush1.bf16.xpose.msra.mxu0 %v2691
    %6072 = vmatprep.subr.bf16.mxu0 0
    %6073 = vmatpush1.bf16.xpose.msra.mxu0 0
    %6074 = vmatprep.subr.bf16.mxu0 0
    %6075 = vmatpush1.bf16.xpose.msra.mxu0 0
    %6076 = vmatprep.subr.bf16.mxu0 0
    %6077 = vmatpush1.bf16.xpose.msra.mxu0 0
    %6078 = vmatprep.subr.bf16.mxu0 0
    %6079 = vmatpush1.bf16.xpose.msra.mxu0 0
    %6080 = vmatprep.subr.bf16.mxu0 0
    %6081 = vmatpush1.bf16.xpose.msra.mxu0 0
    %6082 = vmatprep.subr.bf16.mxu0 0
    %6083 = vmatpush1.bf16.xpose.msra.mxu0 0
    %6084 = vmatprep.subr.bf16.mxu0 0
    %6085 = vmatpush1.bf16.xpose.msra.mxu0 0
    %6086 = vmatprep.subr.bf16.mxu0 0
    %6087 = vmatpush1.bf16.xpose.msra.mxu0 0
    %6088 = vmatprep.subr.bf16.mxu0 0
    %6089 = vmatpush1.bf16.xpose.msra.mxu0 0
    %6090 = vmatprep.subr.bf16.mxu0 0
    %6091 = vmatpush1.bf16.xpose.msra.mxu0 0
    %6092 = vmatprep.subr.bf16.mxu0 0
    %6093 = vmatpush1.bf16.xpose.msra.mxu0 0
    %6094 = vmatprep.subr.bf16.mxu0 0
    %6095 = vmatpush1.bf16.xpose.msra.mxu0 0
    %6096 = vmatprep.subr.bf16.mxu0 0
    %6097 = vmatpush1.bf16.xpose.msra.mxu0 0
    %6098 = vmatprep.subr.bf16.mxu0 0
    %6099 = vmatpush1.bf16.xpose.msra.mxu0 0
    %6100 = vmatprep.subr.bf16.mxu0 0
    %6101 = vmatpush1.bf16.xpose.msra.mxu0 0
    %6102 = vmatprep.mubr.bf16.mxu0 %v6017
    %6103 = vmatmul.mubr.bf16.gmra.mrb[0].mxu0 %v6016
    %v6104 = vpop.f32.mrb[0].mxu0
    %v6105 = vadd.f32 %v6065, %v6104
    %v6106 = vpop.f32.mrb[0].mxu0
    %v6107 = vpop.f32.mrb[0].mxu0
    %v6108 = vpop.f32.mrb[0].mxu0
    %6109 = vdwg.mxu0
    %6110 = vmatprep.subr.bf16.mxu0 %v2694
    %6111 = vmatpush1.bf16.xpose.msra.mxu0 %v2693
    %6112 = vmatprep.subr.bf16.mxu0 0
    %6113 = vmatpush1.bf16.xpose.msra.mxu0 0
    %6114 = vmatprep.subr.bf16.mxu0 0
    %6115 = vmatpush1.bf16.xpose.msra.mxu0 0
    %6116 = vmatprep.subr.bf16.mxu0 0
    %6117 = vmatpush1.bf16.xpose.msra.mxu0 0
    %6118 = vmatprep.subr.bf16.mxu0 0
    %6119 = vmatpush1.bf16.xpose.msra.mxu0 0
    %6120 = vmatprep.subr.bf16.mxu0 0
    %6121 = vmatpush1.bf16.xpose.msra.mxu0 0
    %6122 = vmatprep.subr.bf16.mxu0 0
    %6123 = vmatpush1.bf16.xpose.msra.mxu0 0
    %6124 = vmatprep.subr.bf16.mxu0 0
    %6125 = vmatpush1.bf16.xpose.msra.mxu0 0
    %6126 = vmatprep.subr.bf16.mxu0 0
    %6127 = vmatpush1.bf16.xpose.msra.mxu0 0
    %6128 = vmatprep.subr.bf16.mxu0 0
    %6129 = vmatpush1.bf16.xpose.msra.mxu0 0
    %6130 = vmatprep.subr.bf16.mxu0 0
    %6131 = vmatpush1.bf16.xpose.msra.mxu0 0
    %6132 = vmatprep.subr.bf16.mxu0 0
    %6133 = vmatpush1.bf16.xpose.msra.mxu0 0
    %6134 = vmatprep.subr.bf16.mxu0 0
    %6135 = vmatpush1.bf16.xpose.msra.mxu0 0
    %6136 = vmatprep.subr.bf16.mxu0 0
    %6137 = vmatpush1.bf16.xpose.msra.mxu0 0
    %6138 = vmatprep.subr.bf16.mxu0 0
    %6139 = vmatpush1.bf16.xpose.msra.mxu0 0
    %6140 = vmatprep.subr.bf16.mxu0 0
    %6141 = vmatpush1.bf16.xpose.msra.mxu0 0
    %6142 = vmatprep.mubr.bf16.mxu0 %v6019
    %6143 = vmatmul.mubr.bf16.gmra.mrb[0].mxu0 %v6018
    %v6144 = vpop.f32.mrb[0].mxu0
    %v6145 = vadd.f32 %v6105, %v6144
    %v6146 = vpop.f32.mrb[0].mxu0
    %v6147 = vpop.f32.mrb[0].mxu0
    %v6148 = vpop.f32.mrb[0].mxu0
    %6149 = vdwg.mxu0
    %6150 = vmatprep.subr.bf16.mxu0 %v2696
    %6151 = vmatpush1.bf16.xpose.msra.mxu0 %v2695
    %6152 = vmatprep.subr.bf16.mxu0 0
    %6153 = vmatpush1.bf16.xpose.msra.mxu0 0
    %6154 = vmatprep.subr.bf16.mxu0 0
    %6155 = vmatpush1.bf16.xpose.msra.mxu0 0
    %6156 = vmatprep.subr.bf16.mxu0 0
    %6157 = vmatpush1.bf16.xpose.msra.mxu0 0
    %6158 = vmatprep.subr.bf16.mxu0 0
    %6159 = vmatpush1.bf16.xpose.msra.mxu0 0
    %6160 = vmatprep.subr.bf16.mxu0 0
    %6161 = vmatpush1.bf16.xpose.msra.mxu0 0
    %6162 = vmatprep.subr.bf16.mxu0 0
    %6163 = vmatpush1.bf16.xpose.msra.mxu0 0
    %6164 = vmatprep.subr.bf16.mxu0 0
    %6165 = vmatpush1.bf16.xpose.msra.mxu0 0
    %6166 = vmatprep.subr.bf16.mxu0 0
    %6167 = vmatpush1.bf16.xpose.msra.mxu0 0
    %6168 = vmatprep.subr.bf16.mxu0 0
    %6169 = vmatpush1.bf16.xpose.msra.mxu0 0
    %6170 = vmatprep.subr.bf16.mxu0 0
    %6171 = vmatpush1.bf16.xpose.msra.mxu0 0
    %6172 = vmatprep.subr.bf16.mxu0 0
    %6173 = vmatpush1.bf16.xpose.msra.mxu0 0
    %6174 = vmatprep.subr.bf16.mxu0 0
    %6175 = vmatpush1.bf16.xpose.msra.mxu0 0
    %6176 = vmatprep.subr.bf16.mxu0 0
    %6177 = vmatpush1.bf16.xpose.msra.mxu0 0
    %6178 = vmatprep.subr.bf16.mxu0 0
    %6179 = vmatpush1.bf16.xpose.msra.mxu0 0
    %6180 = vmatprep.subr.bf16.mxu0 0
    %6181 = vmatpush1.bf16.xpose.msra.mxu0 0
    %6182 = vmatprep.mubr.bf16.mxu0 %v6021
    %6183 = vmatmul.mubr.bf16.gmra.mrb[0].mxu0 %v6020
    %v6184 = vpop.f32.mrb[0].mxu0
    %v6185 = vadd.f32 %v6145, %v6184
    %v6186 = vpop.f32.mrb[0].mxu0
    %v6187 = vpop.f32.mrb[0].mxu0
    %v6188 = vpop.f32.mrb[0].mxu0
    %6189 = vdwg.mxu0
    %v6190 = vrot.slane %v4238, 3
    %v6191 = vrot.slane %v4239, 3
    %v6192 = vrot.slane %v4240, 3
    %v6193 = vrot.slane %v4241, 3
    %v6194 = vrot.slane %v4242, 3
    %v6195 = vrot.slane %v4243, 3
    %v6196 = vrot.slane %v4244, 3
    %v6197 = vrot.slane %v4245, 3
    %6206 = vmatprep.subr.bf16.mxu0 %v2906
    %6207 = vmatpush1.bf16.xpose.msra.mxu0 %v2905
    %6208 = vmatprep.subr.bf16.mxu0 0
    %6209 = vmatpush1.bf16.xpose.msra.mxu0 0
    %6210 = vmatprep.subr.bf16.mxu0 0
    %6211 = vmatpush1.bf16.xpose.msra.mxu0 0
    %6212 = vmatprep.subr.bf16.mxu0 0
    %6213 = vmatpush1.bf16.xpose.msra.mxu0 0
    %6214 = vmatprep.subr.bf16.mxu0 0
    %6215 = vmatpush1.bf16.xpose.msra.mxu0 0
    %6216 = vmatprep.subr.bf16.mxu0 0
    %6217 = vmatpush1.bf16.xpose.msra.mxu0 0
    %6218 = vmatprep.subr.bf16.mxu0 0
    %6219 = vmatpush1.bf16.xpose.msra.mxu0 0
    %6220 = vmatprep.subr.bf16.mxu0 0
    %6221 = vmatpush1.bf16.xpose.msra.mxu0 0
    %6222 = vmatprep.subr.bf16.mxu0 0
    %6223 = vmatpush1.bf16.xpose.msra.mxu0 0
    %6224 = vmatprep.subr.bf16.mxu0 0
    %6225 = vmatpush1.bf16.xpose.msra.mxu0 0
    %6226 = vmatprep.subr.bf16.mxu0 0
    %6227 = vmatpush1.bf16.xpose.msra.mxu0 0
    %6228 = vmatprep.subr.bf16.mxu0 0
    %6229 = vmatpush1.bf16.xpose.msra.mxu0 0
    %6230 = vmatprep.subr.bf16.mxu0 0
    %6231 = vmatpush1.bf16.xpose.msra.mxu0 0
    %6232 = vmatprep.subr.bf16.mxu0 0
    %6233 = vmatpush1.bf16.xpose.msra.mxu0 0
    %6234 = vmatprep.subr.bf16.mxu0 0
    %6235 = vmatpush1.bf16.xpose.msra.mxu0 0
    %6236 = vmatprep.subr.bf16.mxu0 0
    %6237 = vmatpush1.bf16.xpose.msra.mxu0 0
    %6238 = vmatprep.mubr.bf16.mxu0 %v6191
    %6239 = vmatmul.mubr.bf16.gmra.mrb[0].mxu0 %v6190
    %v6240 = vpop.f32.mrb[0].mxu0
    %v6241 = vadd.f32 %v4961, %v6240
    %v6242 = vpop.f32.mrb[0].mxu0
    %v6243 = vpop.f32.mrb[0].mxu0
    %v6244 = vpop.f32.mrb[0].mxu0
    %6245 = vdwg.mxu0
    %6246 = vmatprep.subr.bf16.mxu0 %v2908
    %6247 = vmatpush1.bf16.xpose.msra.mxu0 %v2907
    %6248 = vmatprep.subr.bf16.mxu0 0
    %6249 = vmatpush1.bf16.xpose.msra.mxu0 0
    %6250 = vmatprep.subr.bf16.mxu0 0
    %6251 = vmatpush1.bf16.xpose.msra.mxu0 0
    %6252 = vmatprep.subr.bf16.mxu0 0
    %6253 = vmatpush1.bf16.xpose.msra.mxu0 0
    %6254 = vmatprep.subr.bf16.mxu0 0
    %6255 = vmatpush1.bf16.xpose.msra.mxu0 0
    %6256 = vmatprep.subr.bf16.mxu0 0
    %6257 = vmatpush1.bf16.xpose.msra.mxu0 0
    %6258 = vmatprep.subr.bf16.mxu0 0
    %6259 = vmatpush1.bf16.xpose.msra.mxu0 0
    %6260 = vmatprep.subr.bf16.mxu0 0
    %6261 = vmatpush1.bf16.xpose.msra.mxu0 0
    %6262 = vmatprep.subr.bf16.mxu0 0
    %6263 = vmatpush1.bf16.xpose.msra.mxu0 0
    %6264 = vmatprep.subr.bf16.mxu0 0
    %6265 = vmatpush1.bf16.xpose.msra.mxu0 0
    %6266 = vmatprep.subr.bf16.mxu0 0
    %6267 = vmatpush1.bf16.xpose.msra.mxu0 0
    %6268 = vmatprep.subr.bf16.mxu0 0
    %6269 = vmatpush1.bf16.xpose.msra.mxu0 0
    %6270 = vmatprep.subr.bf16.mxu0 0
    %6271 = vmatpush1.bf16.xpose.msra.mxu0 0
    %6272 = vmatprep.subr.bf16.mxu0 0
    %6273 = vmatpush1.bf16.xpose.msra.mxu0 0
    %6274 = vmatprep.subr.bf16.mxu0 0
    %6275 = vmatpush1.bf16.xpose.msra.mxu0 0
    %6276 = vmatprep.subr.bf16.mxu0 0
    %6277 = vmatpush1.bf16.xpose.msra.mxu0 0
    %6278 = vmatprep.mubr.bf16.mxu0 %v6193
    %6279 = vmatmul.mubr.bf16.gmra.mrb[0].mxu0 %v6192
    %v6280 = vpop.f32.mrb[0].mxu0
    %v6281 = vadd.f32 %v6241, %v6280
    %v6282 = vpop.f32.mrb[0].mxu0
    %v6283 = vpop.f32.mrb[0].mxu0
    %v6284 = vpop.f32.mrb[0].mxu0
    %6285 = vdwg.mxu0
    %6286 = vmatprep.subr.bf16.mxu0 %v2910
    %6287 = vmatpush1.bf16.xpose.msra.mxu0 %v2909
    %6288 = vmatprep.subr.bf16.mxu0 0
    %6289 = vmatpush1.bf16.xpose.msra.mxu0 0
    %6290 = vmatprep.subr.bf16.mxu0 0
    %6291 = vmatpush1.bf16.xpose.msra.mxu0 0
    %6292 = vmatprep.subr.bf16.mxu0 0
    %6293 = vmatpush1.bf16.xpose.msra.mxu0 0
    %6294 = vmatprep.subr.bf16.mxu0 0
    %6295 = vmatpush1.bf16.xpose.msra.mxu0 0
    %6296 = vmatprep.subr.bf16.mxu0 0
    %6297 = vmatpush1.bf16.xpose.msra.mxu0 0
    %6298 = vmatprep.subr.bf16.mxu0 0
    %6299 = vmatpush1.bf16.xpose.msra.mxu0 0
    %6300 = vmatprep.subr.bf16.mxu0 0
    %6301 = vmatpush1.bf16.xpose.msra.mxu0 0
    %6302 = vmatprep.subr.bf16.mxu0 0
    %6303 = vmatpush1.bf16.xpose.msra.mxu0 0
    %6304 = vmatprep.subr.bf16.mxu0 0
    %6305 = vmatpush1.bf16.xpose.msra.mxu0 0
    %6306 = vmatprep.subr.bf16.mxu0 0
    %6307 = vmatpush1.bf16.xpose.msra.mxu0 0
    %6308 = vmatprep.subr.bf16.mxu0 0
    %6309 = vmatpush1.bf16.xpose.msra.mxu0 0
    %6310 = vmatprep.subr.bf16.mxu0 0
    %6311 = vmatpush1.bf16.xpose.msra.mxu0 0
    %6312 = vmatprep.subr.bf16.mxu0 0
    %6313 = vmatpush1.bf16.xpose.msra.mxu0 0
    %6314 = vmatprep.subr.bf16.mxu0 0
    %6315 = vmatpush1.bf16.xpose.msra.mxu0 0
    %6316 = vmatprep.subr.bf16.mxu0 0
    %6317 = vmatpush1.bf16.xpose.msra.mxu0 0
    %6318 = vmatprep.mubr.bf16.mxu0 %v6195
    %6319 = vmatmul.mubr.bf16.gmra.mrb[0].mxu0 %v6194
    %v6320 = vpop.f32.mrb[0].mxu0
    %v6321 = vadd.f32 %v6281, %v6320
    %v6322 = vpop.f32.mrb[0].mxu0
    %v6323 = vpop.f32.mrb[0].mxu0
    %v6324 = vpop.f32.mrb[0].mxu0
    %6325 = vdwg.mxu0
    %6326 = vmatprep.subr.bf16.mxu0 %v2912
    %6327 = vmatpush1.bf16.xpose.msra.mxu0 %v2911
    %6328 = vmatprep.subr.bf16.mxu0 0
    %6329 = vmatpush1.bf16.xpose.msra.mxu0 0
    %6330 = vmatprep.subr.bf16.mxu0 0
    %6331 = vmatpush1.bf16.xpose.msra.mxu0 0
    %6332 = vmatprep.subr.bf16.mxu0 0
    %6333 = vmatpush1.bf16.xpose.msra.mxu0 0
    %6334 = vmatprep.subr.bf16.mxu0 0
    %6335 = vmatpush1.bf16.xpose.msra.mxu0 0
    %6336 = vmatprep.subr.bf16.mxu0 0
    %6337 = vmatpush1.bf16.xpose.msra.mxu0 0
    %6338 = vmatprep.subr.bf16.mxu0 0
    %6339 = vmatpush1.bf16.xpose.msra.mxu0 0
    %6340 = vmatprep.subr.bf16.mxu0 0
    %6341 = vmatpush1.bf16.xpose.msra.mxu0 0
    %6342 = vmatprep.subr.bf16.mxu0 0
    %6343 = vmatpush1.bf16.xpose.msra.mxu0 0
    %6344 = vmatprep.subr.bf16.mxu0 0
    %6345 = vmatpush1.bf16.xpose.msra.mxu0 0
    %6346 = vmatprep.subr.bf16.mxu0 0
    %6347 = vmatpush1.bf16.xpose.msra.mxu0 0
    %6348 = vmatprep.subr.bf16.mxu0 0
    %6349 = vmatpush1.bf16.xpose.msra.mxu0 0
    %6350 = vmatprep.subr.bf16.mxu0 0
    %6351 = vmatpush1.bf16.xpose.msra.mxu0 0
    %6352 = vmatprep.subr.bf16.mxu0 0
    %6353 = vmatpush1.bf16.xpose.msra.mxu0 0
    %6354 = vmatprep.subr.bf16.mxu0 0
    %6355 = vmatpush1.bf16.xpose.msra.mxu0 0
    %6356 = vmatprep.subr.bf16.mxu0 0
    %6357 = vmatpush1.bf16.xpose.msra.mxu0 0
    %6358 = vmatprep.mubr.bf16.mxu0 %v6197
    %6359 = vmatmul.mubr.bf16.gmra.mrb[0].mxu0 %v6196
    %v6360 = vpop.f32.mrb[0].mxu0
    %v6361 = vadd.f32 %v6321, %v6360
    %v6362 = vpop.f32.mrb[0].mxu0
    %v6363 = vpop.f32.mrb[0].mxu0
    %v6364 = vpop.f32.mrb[0].mxu0
    %6365 = vdwg.mxu0
    %v6366 = vrot.slane %v4238, 4
    %v6367 = vrot.slane %v4239, 4
    %v6368 = vrot.slane %v4240, 4
    %v6369 = vrot.slane %v4241, 4
    %v6370 = vrot.slane %v4242, 4
    %v6371 = vrot.slane %v4243, 4
    %v6372 = vrot.slane %v4244, 4
    %v6373 = vrot.slane %v4245, 4
    %6382 = vmatprep.subr.bf16.mxu0 %v3122
    %6383 = vmatpush1.bf16.xpose.msra.mxu0 %v3121
    %6384 = vmatprep.subr.bf16.mxu0 0
    %6385 = vmatpush1.bf16.xpose.msra.mxu0 0
    %6386 = vmatprep.subr.bf16.mxu0 0
    %6387 = vmatpush1.bf16.xpose.msra.mxu0 0
    %6388 = vmatprep.subr.bf16.mxu0 0
    %6389 = vmatpush1.bf16.xpose.msra.mxu0 0
    %6390 = vmatprep.subr.bf16.mxu0 0
    %6391 = vmatpush1.bf16.xpose.msra.mxu0 0
    %6392 = vmatprep.subr.bf16.mxu0 0
    %6393 = vmatpush1.bf16.xpose.msra.mxu0 0
    %6394 = vmatprep.subr.bf16.mxu0 0
    %6395 = vmatpush1.bf16.xpose.msra.mxu0 0
    %6396 = vmatprep.subr.bf16.mxu0 0
    %6397 = vmatpush1.bf16.xpose.msra.mxu0 0
    %6398 = vmatprep.subr.bf16.mxu0 0
    %6399 = vmatpush1.bf16.xpose.msra.mxu0 0
    %6400 = vmatprep.subr.bf16.mxu0 0
    %6401 = vmatpush1.bf16.xpose.msra.mxu0 0
    %6402 = vmatprep.subr.bf16.mxu0 0
    %6403 = vmatpush1.bf16.xpose.msra.mxu0 0
    %6404 = vmatprep.subr.bf16.mxu0 0
    %6405 = vmatpush1.bf16.xpose.msra.mxu0 0
    %6406 = vmatprep.subr.bf16.mxu0 0
    %6407 = vmatpush1.bf16.xpose.msra.mxu0 0
    %6408 = vmatprep.subr.bf16.mxu0 0
    %6409 = vmatpush1.bf16.xpose.msra.mxu0 0
    %6410 = vmatprep.subr.bf16.mxu0 0
    %6411 = vmatpush1.bf16.xpose.msra.mxu0 0
    %6412 = vmatprep.subr.bf16.mxu0 0
    %6413 = vmatpush1.bf16.xpose.msra.mxu0 0
    %6414 = vmatprep.mubr.bf16.mxu0 %v6367
    %6415 = vmatmul.mubr.bf16.gmra.mrb[0].mxu0 %v6366
    %v6416 = vpop.f32.mrb[0].mxu0
    %v6417 = vadd.f32 %v5137, %v6416
    %v6418 = vpop.f32.mrb[0].mxu0
    %v6419 = vpop.f32.mrb[0].mxu0
    %v6420 = vpop.f32.mrb[0].mxu0
    %6421 = vdwg.mxu0
    %6422 = vmatprep.subr.bf16.mxu0 %v3124
    %6423 = vmatpush1.bf16.xpose.msra.mxu0 %v3123
    %6424 = vmatprep.subr.bf16.mxu0 0
    %6425 = vmatpush1.bf16.xpose.msra.mxu0 0
    %6426 = vmatprep.subr.bf16.mxu0 0
    %6427 = vmatpush1.bf16.xpose.msra.mxu0 0
    %6428 = vmatprep.subr.bf16.mxu0 0
    %6429 = vmatpush1.bf16.xpose.msra.mxu0 0
    %6430 = vmatprep.subr.bf16.mxu0 0
    %6431 = vmatpush1.bf16.xpose.msra.mxu0 0
    %6432 = vmatprep.subr.bf16.mxu0 0
    %6433 = vmatpush1.bf16.xpose.msra.mxu0 0
    %6434 = vmatprep.subr.bf16.mxu0 0
    %6435 = vmatpush1.bf16.xpose.msra.mxu0 0
    %6436 = vmatprep.subr.bf16.mxu0 0
    %6437 = vmatpush1.bf16.xpose.msra.mxu0 0
    %6438 = vmatprep.subr.bf16.mxu0 0
    %6439 = vmatpush1.bf16.xpose.msra.mxu0 0
    %6440 = vmatprep.subr.bf16.mxu0 0
    %6441 = vmatpush1.bf16.xpose.msra.mxu0 0
    %6442 = vmatprep.subr.bf16.mxu0 0
    %6443 = vmatpush1.bf16.xpose.msra.mxu0 0
    %6444 = vmatprep.subr.bf16.mxu0 0
    %6445 = vmatpush1.bf16.xpose.msra.mxu0 0
    %6446 = vmatprep.subr.bf16.mxu0 0
    %6447 = vmatpush1.bf16.xpose.msra.mxu0 0
    %6448 = vmatprep.subr.bf16.mxu0 0
    %6449 = vmatpush1.bf16.xpose.msra.mxu0 0
    %6450 = vmatprep.subr.bf16.mxu0 0
    %6451 = vmatpush1.bf16.xpose.msra.mxu0 0
    %6452 = vmatprep.subr.bf16.mxu0 0
    %6453 = vmatpush1.bf16.xpose.msra.mxu0 0
    %6454 = vmatprep.mubr.bf16.mxu0 %v6369
    %6455 = vmatmul.mubr.bf16.gmra.mrb[0].mxu0 %v6368
    %v6456 = vpop.f32.mrb[0].mxu0
    %v6457 = vadd.f32 %v6417, %v6456
    %v6458 = vpop.f32.mrb[0].mxu0
    %v6459 = vpop.f32.mrb[0].mxu0
    %v6460 = vpop.f32.mrb[0].mxu0
    %6461 = vdwg.mxu0
    %6462 = vmatprep.subr.bf16.mxu0 %v3126
    %6463 = vmatpush1.bf16.xpose.msra.mxu0 %v3125
    %6464 = vmatprep.subr.bf16.mxu0 0
    %6465 = vmatpush1.bf16.xpose.msra.mxu0 0
    %6466 = vmatprep.subr.bf16.mxu0 0
    %6467 = vmatpush1.bf16.xpose.msra.mxu0 0
    %6468 = vmatprep.subr.bf16.mxu0 0
    %6469 = vmatpush1.bf16.xpose.msra.mxu0 0
    %6470 = vmatprep.subr.bf16.mxu0 0
    %6471 = vmatpush1.bf16.xpose.msra.mxu0 0
    %6472 = vmatprep.subr.bf16.mxu0 0
    %6473 = vmatpush1.bf16.xpose.msra.mxu0 0
    %6474 = vmatprep.subr.bf16.mxu0 0
    %6475 = vmatpush1.bf16.xpose.msra.mxu0 0
    %6476 = vmatprep.subr.bf16.mxu0 0
    %6477 = vmatpush1.bf16.xpose.msra.mxu0 0
    %6478 = vmatprep.subr.bf16.mxu0 0
    %6479 = vmatpush1.bf16.xpose.msra.mxu0 0
    %6480 = vmatprep.subr.bf16.mxu0 0
    %6481 = vmatpush1.bf16.xpose.msra.mxu0 0
    %6482 = vmatprep.subr.bf16.mxu0 0
    %6483 = vmatpush1.bf16.xpose.msra.mxu0 0
    %6484 = vmatprep.subr.bf16.mxu0 0
    %6485 = vmatpush1.bf16.xpose.msra.mxu0 0
    %6486 = vmatprep.subr.bf16.mxu0 0
    %6487 = vmatpush1.bf16.xpose.msra.mxu0 0
    %6488 = vmatprep.subr.bf16.mxu0 0
    %6489 = vmatpush1.bf16.xpose.msra.mxu0 0
    %6490 = vmatprep.subr.bf16.mxu0 0
    %6491 = vmatpush1.bf16.xpose.msra.mxu0 0
    %6492 = vmatprep.subr.bf16.mxu0 0
    %6493 = vmatpush1.bf16.xpose.msra.mxu0 0
    %6494 = vmatprep.mubr.bf16.mxu0 %v6371
    %6495 = vmatmul.mubr.bf16.gmra.mrb[0].mxu0 %v6370
    %v6496 = vpop.f32.mrb[0].mxu0
    %v6497 = vadd.f32 %v6457, %v6496
    %v6498 = vpop.f32.mrb[0].mxu0
    %v6499 = vpop.f32.mrb[0].mxu0
    %v6500 = vpop.f32.mrb[0].mxu0
    %6501 = vdwg.mxu0
    %6502 = vmatprep.subr.bf16.mxu0 %v3128
    %6503 = vmatpush1.bf16.xpose.msra.mxu0 %v3127
    %6504 = vmatprep.subr.bf16.mxu0 0
    %6505 = vmatpush1.bf16.xpose.msra.mxu0 0
    %6506 = vmatprep.subr.bf16.mxu0 0
    %6507 = vmatpush1.bf16.xpose.msra.mxu0 0
    %6508 = vmatprep.subr.bf16.mxu0 0
    %6509 = vmatpush1.bf16.xpose.msra.mxu0 0
    %6510 = vmatprep.subr.bf16.mxu0 0
    %6511 = vmatpush1.bf16.xpose.msra.mxu0 0
    %6512 = vmatprep.subr.bf16.mxu0 0
    %6513 = vmatpush1.bf16.xpose.msra.mxu0 0
    %6514 = vmatprep.subr.bf16.mxu0 0
    %6515 = vmatpush1.bf16.xpose.msra.mxu0 0
    %6516 = vmatprep.subr.bf16.mxu0 0
    %6517 = vmatpush1.bf16.xpose.msra.mxu0 0
    %6518 = vmatprep.subr.bf16.mxu0 0
    %6519 = vmatpush1.bf16.xpose.msra.mxu0 0
    %6520 = vmatprep.subr.bf16.mxu0 0
    %6521 = vmatpush1.bf16.xpose.msra.mxu0 0
    %6522 = vmatprep.subr.bf16.mxu0 0
    %6523 = vmatpush1.bf16.xpose.msra.mxu0 0
    %6524 = vmatprep.subr.bf16.mxu0 0
    %6525 = vmatpush1.bf16.xpose.msra.mxu0 0
    %6526 = vmatprep.subr.bf16.mxu0 0
    %6527 = vmatpush1.bf16.xpose.msra.mxu0 0
    %6528 = vmatprep.subr.bf16.mxu0 0
    %6529 = vmatpush1.bf16.xpose.msra.mxu0 0
    %6530 = vmatprep.subr.bf16.mxu0 0
    %6531 = vmatpush1.bf16.xpose.msra.mxu0 0
    %6532 = vmatprep.subr.bf16.mxu0 0
    %6533 = vmatpush1.bf16.xpose.msra.mxu0 0
    %6534 = vmatprep.mubr.bf16.mxu0 %v6373
    %6535 = vmatmul.mubr.bf16.gmra.mrb[0].mxu0 %v6372
    %v6536 = vpop.f32.mrb[0].mxu0
    %v6537 = vadd.f32 %v6497, %v6536
    %v6538 = vpop.f32.mrb[0].mxu0
    %v6539 = vpop.f32.mrb[0].mxu0
    %v6540 = vpop.f32.mrb[0].mxu0
    %6541 = vdwg.mxu0
    %v6542 = vrot.slane %v4238, 5
    %v6543 = vrot.slane %v4239, 5
    %v6544 = vrot.slane %v4240, 5
    %v6545 = vrot.slane %v4241, 5
    %v6546 = vrot.slane %v4242, 5
    %v6547 = vrot.slane %v4243, 5
    %v6548 = vrot.slane %v4244, 5
    %v6549 = vrot.slane %v4245, 5
    %6558 = vmatprep.subr.bf16.mxu0 %v3338
    %6559 = vmatpush1.bf16.xpose.msra.mxu0 %v3337
    %6560 = vmatprep.subr.bf16.mxu0 0
    %6561 = vmatpush1.bf16.xpose.msra.mxu0 0
    %6562 = vmatprep.subr.bf16.mxu0 0
    %6563 = vmatpush1.bf16.xpose.msra.mxu0 0
    %6564 = vmatprep.subr.bf16.mxu0 0
    %6565 = vmatpush1.bf16.xpose.msra.mxu0 0
    %6566 = vmatprep.subr.bf16.mxu0 0
    %6567 = vmatpush1.bf16.xpose.msra.mxu0 0
    %6568 = vmatprep.subr.bf16.mxu0 0
    %6569 = vmatpush1.bf16.xpose.msra.mxu0 0
    %6570 = vmatprep.subr.bf16.mxu0 0
    %6571 = vmatpush1.bf16.xpose.msra.mxu0 0
    %6572 = vmatprep.subr.bf16.mxu0 0
    %6573 = vmatpush1.bf16.xpose.msra.mxu0 0
    %6574 = vmatprep.subr.bf16.mxu0 0
    %6575 = vmatpush1.bf16.xpose.msra.mxu0 0
    %6576 = vmatprep.subr.bf16.mxu0 0
    %6577 = vmatpush1.bf16.xpose.msra.mxu0 0
    %6578 = vmatprep.subr.bf16.mxu0 0
    %6579 = vmatpush1.bf16.xpose.msra.mxu0 0
    %6580 = vmatprep.subr.bf16.mxu0 0
    %6581 = vmatpush1.bf16.xpose.msra.mxu0 0
    %6582 = vmatprep.subr.bf16.mxu0 0
    %6583 = vmatpush1.bf16.xpose.msra.mxu0 0
    %6584 = vmatprep.subr.bf16.mxu0 0
    %6585 = vmatpush1.bf16.xpose.msra.mxu0 0
    %6586 = vmatprep.subr.bf16.mxu0 0
    %6587 = vmatpush1.bf16.xpose.msra.mxu0 0
    %6588 = vmatprep.subr.bf16.mxu0 0
    %6589 = vmatpush1.bf16.xpose.msra.mxu0 0
    %6590 = vmatprep.mubr.bf16.mxu0 %v6543
    %6591 = vmatmul.mubr.bf16.gmra.mrb[0].mxu0 %v6542
    %v6592 = vpop.f32.mrb[0].mxu0
    %v6593 = vadd.f32 %v5313, %v6592
    %v6594 = vpop.f32.mrb[0].mxu0
    %v6595 = vpop.f32.mrb[0].mxu0
    %v6596 = vpop.f32.mrb[0].mxu0
    %6597 = vdwg.mxu0
    %6598 = vmatprep.subr.bf16.mxu0 %v3340
    %6599 = vmatpush1.bf16.xpose.msra.mxu0 %v3339
    %6600 = vmatprep.subr.bf16.mxu0 0
    %6601 = vmatpush1.bf16.xpose.msra.mxu0 0
    %6602 = vmatprep.subr.bf16.mxu0 0
    %6603 = vmatpush1.bf16.xpose.msra.mxu0 0
    %6604 = vmatprep.subr.bf16.mxu0 0
    %6605 = vmatpush1.bf16.xpose.msra.mxu0 0
    %6606 = vmatprep.subr.bf16.mxu0 0
    %6607 = vmatpush1.bf16.xpose.msra.mxu0 0
    %6608 = vmatprep.subr.bf16.mxu0 0
    %6609 = vmatpush1.bf16.xpose.msra.mxu0 0
    %6610 = vmatprep.subr.bf16.mxu0 0
    %6611 = vmatpush1.bf16.xpose.msra.mxu0 0
    %6612 = vmatprep.subr.bf16.mxu0 0
    %6613 = vmatpush1.bf16.xpose.msra.mxu0 0
    %6614 = vmatprep.subr.bf16.mxu0 0
    %6615 = vmatpush1.bf16.xpose.msra.mxu0 0
    %6616 = vmatprep.subr.bf16.mxu0 0
    %6617 = vmatpush1.bf16.xpose.msra.mxu0 0
    %6618 = vmatprep.subr.bf16.mxu0 0
    %6619 = vmatpush1.bf16.xpose.msra.mxu0 0
    %6620 = vmatprep.subr.bf16.mxu0 0
    %6621 = vmatpush1.bf16.xpose.msra.mxu0 0
    %6622 = vmatprep.subr.bf16.mxu0 0
    %6623 = vmatpush1.bf16.xpose.msra.mxu0 0
    %6624 = vmatprep.subr.bf16.mxu0 0
    %6625 = vmatpush1.bf16.xpose.msra.mxu0 0
    %6626 = vmatprep.subr.bf16.mxu0 0
    %6627 = vmatpush1.bf16.xpose.msra.mxu0 0
    %6628 = vmatprep.subr.bf16.mxu0 0
    %6629 = vmatpush1.bf16.xpose.msra.mxu0 0
    %6630 = vmatprep.mubr.bf16.mxu0 %v6545
    %6631 = vmatmul.mubr.bf16.gmra.mrb[0].mxu0 %v6544
    %v6632 = vpop.f32.mrb[0].mxu0
    %v6633 = vadd.f32 %v6593, %v6632
    %v6634 = vpop.f32.mrb[0].mxu0
    %v6635 = vpop.f32.mrb[0].mxu0
    %v6636 = vpop.f32.mrb[0].mxu0
    %6637 = vdwg.mxu0
    %6638 = vmatprep.subr.bf16.mxu0 %v3342
    %6639 = vmatpush1.bf16.xpose.msra.mxu0 %v3341
    %6640 = vmatprep.subr.bf16.mxu0 0
    %6641 = vmatpush1.bf16.xpose.msra.mxu0 0
    %6642 = vmatprep.subr.bf16.mxu0 0
    %6643 = vmatpush1.bf16.xpose.msra.mxu0 0
    %6644 = vmatprep.subr.bf16.mxu0 0
    %6645 = vmatpush1.bf16.xpose.msra.mxu0 0
    %6646 = vmatprep.subr.bf16.mxu0 0
    %6647 = vmatpush1.bf16.xpose.msra.mxu0 0
    %6648 = vmatprep.subr.bf16.mxu0 0
    %6649 = vmatpush1.bf16.xpose.msra.mxu0 0
    %6650 = vmatprep.subr.bf16.mxu0 0
    %6651 = vmatpush1.bf16.xpose.msra.mxu0 0
    %6652 = vmatprep.subr.bf16.mxu0 0
    %6653 = vmatpush1.bf16.xpose.msra.mxu0 0
    %6654 = vmatprep.subr.bf16.mxu0 0
    %6655 = vmatpush1.bf16.xpose.msra.mxu0 0
    %6656 = vmatprep.subr.bf16.mxu0 0
    %6657 = vmatpush1.bf16.xpose.msra.mxu0 0
    %6658 = vmatprep.subr.bf16.mxu0 0
    %6659 = vmatpush1.bf16.xpose.msra.mxu0 0
    %6660 = vmatprep.subr.bf16.mxu0 0
    %6661 = vmatpush1.bf16.xpose.msra.mxu0 0
    %6662 = vmatprep.subr.bf16.mxu0 0
    %6663 = vmatpush1.bf16.xpose.msra.mxu0 0
    %6664 = vmatprep.subr.bf16.mxu0 0
    %6665 = vmatpush1.bf16.xpose.msra.mxu0 0
    %6666 = vmatprep.subr.bf16.mxu0 0
    %6667 = vmatpush1.bf16.xpose.msra.mxu0 0
    %6668 = vmatprep.subr.bf16.mxu0 0
    %6669 = vmatpush1.bf16.xpose.msra.mxu0 0
    %6670 = vmatprep.mubr.bf16.mxu0 %v6547
    %6671 = vmatmul.mubr.bf16.gmra.mrb[0].mxu0 %v6546
    %v6672 = vpop.f32.mrb[0].mxu0
    %v6673 = vadd.f32 %v6633, %v6672
    %v6674 = vpop.f32.mrb[0].mxu0
    %v6675 = vpop.f32.mrb[0].mxu0
    %v6676 = vpop.f32.mrb[0].mxu0
    %6677 = vdwg.mxu0
    %6678 = vmatprep.subr.bf16.mxu0 %v3344
    %6679 = vmatpush1.bf16.xpose.msra.mxu0 %v3343
    %6680 = vmatprep.subr.bf16.mxu0 0
    %6681 = vmatpush1.bf16.xpose.msra.mxu0 0
    %6682 = vmatprep.subr.bf16.mxu0 0
    %6683 = vmatpush1.bf16.xpose.msra.mxu0 0
    %6684 = vmatprep.subr.bf16.mxu0 0
    %6685 = vmatpush1.bf16.xpose.msra.mxu0 0
    %6686 = vmatprep.subr.bf16.mxu0 0
    %6687 = vmatpush1.bf16.xpose.msra.mxu0 0
    %6688 = vmatprep.subr.bf16.mxu0 0
    %6689 = vmatpush1.bf16.xpose.msra.mxu0 0
    %6690 = vmatprep.subr.bf16.mxu0 0
    %6691 = vmatpush1.bf16.xpose.msra.mxu0 0
    %6692 = vmatprep.subr.bf16.mxu0 0
    %6693 = vmatpush1.bf16.xpose.msra.mxu0 0
    %6694 = vmatprep.subr.bf16.mxu0 0
    %6695 = vmatpush1.bf16.xpose.msra.mxu0 0
    %6696 = vmatprep.subr.bf16.mxu0 0
    %6697 = vmatpush1.bf16.xpose.msra.mxu0 0
    %6698 = vmatprep.subr.bf16.mxu0 0
    %6699 = vmatpush1.bf16.xpose.msra.mxu0 0
    %6700 = vmatprep.subr.bf16.mxu0 0
    %6701 = vmatpush1.bf16.xpose.msra.mxu0 0
    %6702 = vmatprep.subr.bf16.mxu0 0
    %6703 = vmatpush1.bf16.xpose.msra.mxu0 0
    %6704 = vmatprep.subr.bf16.mxu0 0
    %6705 = vmatpush1.bf16.xpose.msra.mxu0 0
    %6706 = vmatprep.subr.bf16.mxu0 0
    %6707 = vmatpush1.bf16.xpose.msra.mxu0 0
    %6708 = vmatprep.subr.bf16.mxu0 0
    %6709 = vmatpush1.bf16.xpose.msra.mxu0 0
    %6710 = vmatprep.mubr.bf16.mxu0 %v6549
    %6711 = vmatmul.mubr.bf16.gmra.mrb[0].mxu0 %v6548
    %v6712 = vpop.f32.mrb[0].mxu0
    %v6713 = vadd.f32 %v6673, %v6712
    %v6714 = vpop.f32.mrb[0].mxu0
    %v6715 = vpop.f32.mrb[0].mxu0
    %v6716 = vpop.f32.mrb[0].mxu0
    %6717 = vdwg.mxu0
    %v6718 = vrot.slane %v4238, 6
    %v6719 = vrot.slane %v4239, 6
    %v6720 = vrot.slane %v4240, 6
    %v6721 = vrot.slane %v4241, 6
    %v6722 = vrot.slane %v4242, 6
    %v6723 = vrot.slane %v4243, 6
    %v6724 = vrot.slane %v4244, 6
    %v6725 = vrot.slane %v4245, 6
    %6734 = vmatprep.subr.bf16.mxu0 %v3554
    %6735 = vmatpush1.bf16.xpose.msra.mxu0 %v3553
    %6736 = vmatprep.subr.bf16.mxu0 0
    %6737 = vmatpush1.bf16.xpose.msra.mxu0 0
    %6738 = vmatprep.subr.bf16.mxu0 0
    %6739 = vmatpush1.bf16.xpose.msra.mxu0 0
    %6740 = vmatprep.subr.bf16.mxu0 0
    %6741 = vmatpush1.bf16.xpose.msra.mxu0 0
    %6742 = vmatprep.subr.bf16.mxu0 0
    %6743 = vmatpush1.bf16.xpose.msra.mxu0 0
    %6744 = vmatprep.subr.bf16.mxu0 0
    %6745 = vmatpush1.bf16.xpose.msra.mxu0 0
    %6746 = vmatprep.subr.bf16.mxu0 0
    %6747 = vmatpush1.bf16.xpose.msra.mxu0 0
    %6748 = vmatprep.subr.bf16.mxu0 0
    %6749 = vmatpush1.bf16.xpose.msra.mxu0 0
    %6750 = vmatprep.subr.bf16.mxu0 0
    %6751 = vmatpush1.bf16.xpose.msra.mxu0 0
    %6752 = vmatprep.subr.bf16.mxu0 0
    %6753 = vmatpush1.bf16.xpose.msra.mxu0 0
    %6754 = vmatprep.subr.bf16.mxu0 0
    %6755 = vmatpush1.bf16.xpose.msra.mxu0 0
    %6756 = vmatprep.subr.bf16.mxu0 0
    %6757 = vmatpush1.bf16.xpose.msra.mxu0 0
    %6758 = vmatprep.subr.bf16.mxu0 0
    %6759 = vmatpush1.bf16.xpose.msra.mxu0 0
    %6760 = vmatprep.subr.bf16.mxu0 0
    %6761 = vmatpush1.bf16.xpose.msra.mxu0 0
    %6762 = vmatprep.subr.bf16.mxu0 0
    %6763 = vmatpush1.bf16.xpose.msra.mxu0 0
    %6764 = vmatprep.subr.bf16.mxu0 0
    %6765 = vmatpush1.bf16.xpose.msra.mxu0 0
    %6766 = vmatprep.mubr.bf16.mxu0 %v6719
    %6767 = vmatmul.mubr.bf16.gmra.mrb[0].mxu0 %v6718
    %v6768 = vpop.f32.mrb[0].mxu0
    %v6769 = vadd.f32 %v5489, %v6768
    %v6770 = vpop.f32.mrb[0].mxu0
    %v6771 = vpop.f32.mrb[0].mxu0
    %v6772 = vpop.f32.mrb[0].mxu0
    %6773 = vdwg.mxu0
    %6774 = vmatprep.subr.bf16.mxu0 %v3556
    %6775 = vmatpush1.bf16.xpose.msra.mxu0 %v3555
    %6776 = vmatprep.subr.bf16.mxu0 0
    %6777 = vmatpush1.bf16.xpose.msra.mxu0 0
    %6778 = vmatprep.subr.bf16.mxu0 0
    %6779 = vmatpush1.bf16.xpose.msra.mxu0 0
    %6780 = vmatprep.subr.bf16.mxu0 0
    %6781 = vmatpush1.bf16.xpose.msra.mxu0 0
    %6782 = vmatprep.subr.bf16.mxu0 0
    %6783 = vmatpush1.bf16.xpose.msra.mxu0 0
    %6784 = vmatprep.subr.bf16.mxu0 0
    %6785 = vmatpush1.bf16.xpose.msra.mxu0 0
    %6786 = vmatprep.subr.bf16.mxu0 0
    %6787 = vmatpush1.bf16.xpose.msra.mxu0 0
    %6788 = vmatprep.subr.bf16.mxu0 0
    %6789 = vmatpush1.bf16.xpose.msra.mxu0 0
    %6790 = vmatprep.subr.bf16.mxu0 0
    %6791 = vmatpush1.bf16.xpose.msra.mxu0 0
    %6792 = vmatprep.subr.bf16.mxu0 0
    %6793 = vmatpush1.bf16.xpose.msra.mxu0 0
    %6794 = vmatprep.subr.bf16.mxu0 0
    %6795 = vmatpush1.bf16.xpose.msra.mxu0 0
    %6796 = vmatprep.subr.bf16.mxu0 0
    %6797 = vmatpush1.bf16.xpose.msra.mxu0 0
    %6798 = vmatprep.subr.bf16.mxu0 0
    %6799 = vmatpush1.bf16.xpose.msra.mxu0 0
    %6800 = vmatprep.subr.bf16.mxu0 0
    %6801 = vmatpush1.bf16.xpose.msra.mxu0 0
    %6802 = vmatprep.subr.bf16.mxu0 0
    %6803 = vmatpush1.bf16.xpose.msra.mxu0 0
    %6804 = vmatprep.subr.bf16.mxu0 0
    %6805 = vmatpush1.bf16.xpose.msra.mxu0 0
    %6806 = vmatprep.mubr.bf16.mxu0 %v6721
    %6807 = vmatmul.mubr.bf16.gmra.mrb[0].mxu0 %v6720
    %v6808 = vpop.f32.mrb[0].mxu0
    %v6809 = vadd.f32 %v6769, %v6808
    %v6810 = vpop.f32.mrb[0].mxu0
    %v6811 = vpop.f32.mrb[0].mxu0
    %v6812 = vpop.f32.mrb[0].mxu0
    %6813 = vdwg.mxu0
    %6814 = vmatprep.subr.bf16.mxu0 %v3558
    %6815 = vmatpush1.bf16.xpose.msra.mxu0 %v3557
    %6816 = vmatprep.subr.bf16.mxu0 0
    %6817 = vmatpush1.bf16.xpose.msra.mxu0 0
    %6818 = vmatprep.subr.bf16.mxu0 0
    %6819 = vmatpush1.bf16.xpose.msra.mxu0 0
    %6820 = vmatprep.subr.bf16.mxu0 0
    %6821 = vmatpush1.bf16.xpose.msra.mxu0 0
    %6822 = vmatprep.subr.bf16.mxu0 0
    %6823 = vmatpush1.bf16.xpose.msra.mxu0 0
    %6824 = vmatprep.subr.bf16.mxu0 0
    %6825 = vmatpush1.bf16.xpose.msra.mxu0 0
    %6826 = vmatprep.subr.bf16.mxu0 0
    %6827 = vmatpush1.bf16.xpose.msra.mxu0 0
    %6828 = vmatprep.subr.bf16.mxu0 0
    %6829 = vmatpush1.bf16.xpose.msra.mxu0 0
    %6830 = vmatprep.subr.bf16.mxu0 0
    %6831 = vmatpush1.bf16.xpose.msra.mxu0 0
    %6832 = vmatprep.subr.bf16.mxu0 0
    %6833 = vmatpush1.bf16.xpose.msra.mxu0 0
    %6834 = vmatprep.subr.bf16.mxu0 0
    %6835 = vmatpush1.bf16.xpose.msra.mxu0 0
    %6836 = vmatprep.subr.bf16.mxu0 0
    %6837 = vmatpush1.bf16.xpose.msra.mxu0 0
    %6838 = vmatprep.subr.bf16.mxu0 0
    %6839 = vmatpush1.bf16.xpose.msra.mxu0 0
    %6840 = vmatprep.subr.bf16.mxu0 0
    %6841 = vmatpush1.bf16.xpose.msra.mxu0 0
    %6842 = vmatprep.subr.bf16.mxu0 0
    %6843 = vmatpush1.bf16.xpose.msra.mxu0 0
    %6844 = vmatprep.subr.bf16.mxu0 0
    %6845 = vmatpush1.bf16.xpose.msra.mxu0 0
    %6846 = vmatprep.mubr.bf16.mxu0 %v6723
    %6847 = vmatmul.mubr.bf16.gmra.mrb[0].mxu0 %v6722
    %v6848 = vpop.f32.mrb[0].mxu0
    %v6849 = vadd.f32 %v6809, %v6848
    %v6850 = vpop.f32.mrb[0].mxu0
    %v6851 = vpop.f32.mrb[0].mxu0
    %v6852 = vpop.f32.mrb[0].mxu0
    %6853 = vdwg.mxu0
    %6854 = vmatprep.subr.bf16.mxu0 %v3560
    %6855 = vmatpush1.bf16.xpose.msra.mxu0 %v3559
    %6856 = vmatprep.subr.bf16.mxu0 0
    %6857 = vmatpush1.bf16.xpose.msra.mxu0 0
    %6858 = vmatprep.subr.bf16.mxu0 0
    %6859 = vmatpush1.bf16.xpose.msra.mxu0 0
    %6860 = vmatprep.subr.bf16.mxu0 0
    %6861 = vmatpush1.bf16.xpose.msra.mxu0 0
    %6862 = vmatprep.subr.bf16.mxu0 0
    %6863 = vmatpush1.bf16.xpose.msra.mxu0 0
    %6864 = vmatprep.subr.bf16.mxu0 0
    %6865 = vmatpush1.bf16.xpose.msra.mxu0 0
    %6866 = vmatprep.subr.bf16.mxu0 0
    %6867 = vmatpush1.bf16.xpose.msra.mxu0 0
    %6868 = vmatprep.subr.bf16.mxu0 0
    %6869 = vmatpush1.bf16.xpose.msra.mxu0 0
    %6870 = vmatprep.subr.bf16.mxu0 0
    %6871 = vmatpush1.bf16.xpose.msra.mxu0 0
    %6872 = vmatprep.subr.bf16.mxu0 0
    %6873 = vmatpush1.bf16.xpose.msra.mxu0 0
    %6874 = vmatprep.subr.bf16.mxu0 0
    %6875 = vmatpush1.bf16.xpose.msra.mxu0 0
    %6876 = vmatprep.subr.bf16.mxu0 0
    %6877 = vmatpush1.bf16.xpose.msra.mxu0 0
    %6878 = vmatprep.subr.bf16.mxu0 0
    %6879 = vmatpush1.bf16.xpose.msra.mxu0 0
    %6880 = vmatprep.subr.bf16.mxu0 0
    %6881 = vmatpush1.bf16.xpose.msra.mxu0 0
    %6882 = vmatprep.subr.bf16.mxu0 0
    %6883 = vmatpush1.bf16.xpose.msra.mxu0 0
    %6884 = vmatprep.subr.bf16.mxu0 0
    %6885 = vmatpush1.bf16.xpose.msra.mxu0 0
    %6886 = vmatprep.mubr.bf16.mxu0 %v6725
    %6887 = vmatmul.mubr.bf16.gmra.mrb[0].mxu0 %v6724
    %v6888 = vpop.f32.mrb[0].mxu0
    %v6889 = vadd.f32 %v6849, %v6888
    %v6890 = vpop.f32.mrb[0].mxu0
    %v6891 = vpop.f32.mrb[0].mxu0
    %v6892 = vpop.f32.mrb[0].mxu0
    %6893 = vdwg.mxu0
    %v6894 = vrot.slane %v4238, 7
    %v6895 = vrot.slane %v4239, 7
    %v6896 = vrot.slane %v4240, 7
    %v6897 = vrot.slane %v4241, 7
    %v6898 = vrot.slane %v4242, 7
    %v6899 = vrot.slane %v4243, 7
    %v6900 = vrot.slane %v4244, 7
    %v6901 = vrot.slane %v4245, 7
    %6910 = vmatprep.subr.bf16.mxu0 %v3770
    %6911 = vmatpush1.bf16.xpose.msra.mxu0 %v3769
    %6912 = vmatprep.subr.bf16.mxu0 0
    %6913 = vmatpush1.bf16.xpose.msra.mxu0 0
    %6914 = vmatprep.subr.bf16.mxu0 0
    %6915 = vmatpush1.bf16.xpose.msra.mxu0 0
    %6916 = vmatprep.subr.bf16.mxu0 0
    %6917 = vmatpush1.bf16.xpose.msra.mxu0 0
    %6918 = vmatprep.subr.bf16.mxu0 0
    %6919 = vmatpush1.bf16.xpose.msra.mxu0 0
    %6920 = vmatprep.subr.bf16.mxu0 0
    %6921 = vmatpush1.bf16.xpose.msra.mxu0 0
    %6922 = vmatprep.subr.bf16.mxu0 0
    %6923 = vmatpush1.bf16.xpose.msra.mxu0 0
    %6924 = vmatprep.subr.bf16.mxu0 0
    %6925 = vmatpush1.bf16.xpose.msra.mxu0 0
    %6926 = vmatprep.subr.bf16.mxu0 0
    %6927 = vmatpush1.bf16.xpose.msra.mxu0 0
    %6928 = vmatprep.subr.bf16.mxu0 0
    %6929 = vmatpush1.bf16.xpose.msra.mxu0 0
    %6930 = vmatprep.subr.bf16.mxu0 0
    %6931 = vmatpush1.bf16.xpose.msra.mxu0 0
    %6932 = vmatprep.subr.bf16.mxu0 0
    %6933 = vmatpush1.bf16.xpose.msra.mxu0 0
    %6934 = vmatprep.subr.bf16.mxu0 0
    %6935 = vmatpush1.bf16.xpose.msra.mxu0 0
    %6936 = vmatprep.subr.bf16.mxu0 0
    %6937 = vmatpush1.bf16.xpose.msra.mxu0 0
    %6938 = vmatprep.subr.bf16.mxu0 0
    %6939 = vmatpush1.bf16.xpose.msra.mxu0 0
    %6940 = vmatprep.subr.bf16.mxu0 0
    %6941 = vmatpush1.bf16.xpose.msra.mxu0 0
    %6942 = vmatprep.mubr.bf16.mxu0 %v6895
    %6943 = vmatmul.mubr.bf16.gmra.mrb[0].mxu0 %v6894
    %v6944 = vpop.f32.mrb[0].mxu0
    %v6945 = vadd.f32 %v5665, %v6944
    %v6946 = vpop.f32.mrb[0].mxu0
    %v6947 = vpop.f32.mrb[0].mxu0
    %v6948 = vpop.f32.mrb[0].mxu0
    %6949 = vdwg.mxu0
    %6950 = vmatprep.subr.bf16.mxu0 %v3772
    %6951 = vmatpush1.bf16.xpose.msra.mxu0 %v3771
    %6952 = vmatprep.subr.bf16.mxu0 0
    %6953 = vmatpush1.bf16.xpose.msra.mxu0 0
    %6954 = vmatprep.subr.bf16.mxu0 0
    %6955 = vmatpush1.bf16.xpose.msra.mxu0 0
    %6956 = vmatprep.subr.bf16.mxu0 0
    %6957 = vmatpush1.bf16.xpose.msra.mxu0 0
    %6958 = vmatprep.subr.bf16.mxu0 0
    %6959 = vmatpush1.bf16.xpose.msra.mxu0 0
    %6960 = vmatprep.subr.bf16.mxu0 0
    %6961 = vmatpush1.bf16.xpose.msra.mxu0 0
    %6962 = vmatprep.subr.bf16.mxu0 0
    %6963 = vmatpush1.bf16.xpose.msra.mxu0 0
    %6964 = vmatprep.subr.bf16.mxu0 0
    %6965 = vmatpush1.bf16.xpose.msra.mxu0 0
    %6966 = vmatprep.subr.bf16.mxu0 0
    %6967 = vmatpush1.bf16.xpose.msra.mxu0 0
    %6968 = vmatprep.subr.bf16.mxu0 0
    %6969 = vmatpush1.bf16.xpose.msra.mxu0 0
    %6970 = vmatprep.subr.bf16.mxu0 0
    %6971 = vmatpush1.bf16.xpose.msra.mxu0 0
    %6972 = vmatprep.subr.bf16.mxu0 0
    %6973 = vmatpush1.bf16.xpose.msra.mxu0 0
    %6974 = vmatprep.subr.bf16.mxu0 0
    %6975 = vmatpush1.bf16.xpose.msra.mxu0 0
    %6976 = vmatprep.subr.bf16.mxu0 0
    %6977 = vmatpush1.bf16.xpose.msra.mxu0 0
    %6978 = vmatprep.subr.bf16.mxu0 0
    %6979 = vmatpush1.bf16.xpose.msra.mxu0 0
    %6980 = vmatprep.subr.bf16.mxu0 0
    %6981 = vmatpush1.bf16.xpose.msra.mxu0 0
    %6982 = vmatprep.mubr.bf16.mxu0 %v6897
    %6983 = vmatmul.mubr.bf16.gmra.mrb[0].mxu0 %v6896
    %v6984 = vpop.f32.mrb[0].mxu0
    %v6985 = vadd.f32 %v6945, %v6984
    %v6986 = vpop.f32.mrb[0].mxu0
    %v6987 = vpop.f32.mrb[0].mxu0
    %v6988 = vpop.f32.mrb[0].mxu0
    %6989 = vdwg.mxu0
    %6990 = vmatprep.subr.bf16.mxu0 %v3774
    %6991 = vmatpush1.bf16.xpose.msra.mxu0 %v3773
    %6992 = vmatprep.subr.bf16.mxu0 0
    %6993 = vmatpush1.bf16.xpose.msra.mxu0 0
    %6994 = vmatprep.subr.bf16.mxu0 0
    %6995 = vmatpush1.bf16.xpose.msra.mxu0 0
    %6996 = vmatprep.subr.bf16.mxu0 0
    %6997 = vmatpush1.bf16.xpose.msra.mxu0 0
    %6998 = vmatprep.subr.bf16.mxu0 0
    %6999 = vmatpush1.bf16.xpose.msra.mxu0 0
    %7000 = vmatprep.subr.bf16.mxu0 0
    %7001 = vmatpush1.bf16.xpose.msra.mxu0 0
    %7002 = vmatprep.subr.bf16.mxu0 0
    %7003 = vmatpush1.bf16.xpose.msra.mxu0 0
    %7004 = vmatprep.subr.bf16.mxu0 0
    %7005 = vmatpush1.bf16.xpose.msra.mxu0 0
    %7006 = vmatprep.subr.bf16.mxu0 0
    %7007 = vmatpush1.bf16.xpose.msra.mxu0 0
    %7008 = vmatprep.subr.bf16.mxu0 0
    %7009 = vmatpush1.bf16.xpose.msra.mxu0 0
    %7010 = vmatprep.subr.bf16.mxu0 0
    %7011 = vmatpush1.bf16.xpose.msra.mxu0 0
    %7012 = vmatprep.subr.bf16.mxu0 0
    %7013 = vmatpush1.bf16.xpose.msra.mxu0 0
    %7014 = vmatprep.subr.bf16.mxu0 0
    %7015 = vmatpush1.bf16.xpose.msra.mxu0 0
    %7016 = vmatprep.subr.bf16.mxu0 0
    %7017 = vmatpush1.bf16.xpose.msra.mxu0 0
    %7018 = vmatprep.subr.bf16.mxu0 0
    %7019 = vmatpush1.bf16.xpose.msra.mxu0 0
    %7020 = vmatprep.subr.bf16.mxu0 0
    %7021 = vmatpush1.bf16.xpose.msra.mxu0 0
    %7022 = vmatprep.mubr.bf16.mxu0 %v6899
    %7023 = vmatmul.mubr.bf16.gmra.mrb[0].mxu0 %v6898
    %v7024 = vpop.f32.mrb[0].mxu0
    %v7025 = vadd.f32 %v6985, %v7024
    %v7026 = vpop.f32.mrb[0].mxu0
    %v7027 = vpop.f32.mrb[0].mxu0
    %v7028 = vpop.f32.mrb[0].mxu0
    %7029 = vdwg.mxu0
    %7030 = vmatprep.subr.bf16.mxu0 %v3776
    %7031 = vmatpush1.bf16.xpose.msra.mxu0 %v3775
    %7032 = vmatprep.subr.bf16.mxu0 0
    %7033 = vmatpush1.bf16.xpose.msra.mxu0 0
    %7034 = vmatprep.subr.bf16.mxu0 0
    %7035 = vmatpush1.bf16.xpose.msra.mxu0 0
    %7036 = vmatprep.subr.bf16.mxu0 0
    %7037 = vmatpush1.bf16.xpose.msra.mxu0 0
    %7038 = vmatprep.subr.bf16.mxu0 0
    %7039 = vmatpush1.bf16.xpose.msra.mxu0 0
    %7040 = vmatprep.subr.bf16.mxu0 0
    %7041 = vmatpush1.bf16.xpose.msra.mxu0 0
    %7042 = vmatprep.subr.bf16.mxu0 0
    %7043 = vmatpush1.bf16.xpose.msra.mxu0 0
    %7044 = vmatprep.subr.bf16.mxu0 0
    %7045 = vmatpush1.bf16.xpose.msra.mxu0 0
    %7046 = vmatprep.subr.bf16.mxu0 0
    %7047 = vmatpush1.bf16.xpose.msra.mxu0 0
    %7048 = vmatprep.subr.bf16.mxu0 0
    %7049 = vmatpush1.bf16.xpose.msra.mxu0 0
    %7050 = vmatprep.subr.bf16.mxu0 0
    %7051 = vmatpush1.bf16.xpose.msra.mxu0 0
    %7052 = vmatprep.subr.bf16.mxu0 0
    %7053 = vmatpush1.bf16.xpose.msra.mxu0 0
    %7054 = vmatprep.subr.bf16.mxu0 0
    %7055 = vmatpush1.bf16.xpose.msra.mxu0 0
    %7056 = vmatprep.subr.bf16.mxu0 0
    %7057 = vmatpush1.bf16.xpose.msra.mxu0 0
    %7058 = vmatprep.subr.bf16.mxu0 0
    %7059 = vmatpush1.bf16.xpose.msra.mxu0 0
    %7060 = vmatprep.subr.bf16.mxu0 0
    %7061 = vmatpush1.bf16.xpose.msra.mxu0 0
    %7062 = vmatprep.mubr.bf16.mxu0 %v6901
    %7063 = vmatmul.mubr.bf16.gmra.mrb[0].mxu0 %v6900
    %v7064 = vpop.f32.mrb[0].mxu0
    %v7065 = vadd.f32 %v7025, %v7064
    %v7066 = vpop.f32.mrb[0].mxu0
    %v7067 = vpop.f32.mrb[0].mxu0
    %v7068 = vpop.f32.mrb[0].mxu0
    %7069 = vdwg.mxu0
    %v7070 = vadd.f32 %v5825, %v6009
    %v7071 = vadd.f32 %v6185, %v6361
    %v7072 = vadd.f32 %v6537, %v6713
    %v7073 = vadd.f32 %v6889, %v7065
    %v7074 = vadd.f32 %v7070, %v7071
    %v7075 = vadd.f32 %v7072, %v7073
    %v7076 = vadd.f32 %v7074, %v7075
    %v7077 = vadd.f32 %v7076, %v26
    %v7079 = vrot.slane %v7077, 7
    %vm7081 = vcmask 1040384
    %v7082 = vsel %vm7081, %v3952, %v7079
    %vm7083 = vcmask 74752
    %7084 = vst.msk [vmem:[#allocation2] sm:$0x3] %vm7083, %v7082
    // Predicated region
    $region22: #{tpu_custom_call.1} parent=1 // pred_check
      _
    $region23: #{tpu_custom_call.1} parent=1 // pred_check_branch
      %7086 = sbr.rel (0) target = $region25
    $region24: #{tpu_custom_call.1} parent=1 // pred_region
      %s7088 = ssub.s32 32, 32
      %7089 = vsyncadd [#allocation3], %s7088
      %s7091 = sshll.u32 [#allocation2], 4
      %s7092 = int_to_ptr.vmem [resolvable:$true] %s7091
      %7094 = dma.vmem_to_hbm [thread:$0]  %s7092, 32, %s5, [#allocation3]
    $region25: #{tpu_custom_call.1} parent=1 // pred_fallthru
      _
    // Predicated region
    $region26: #{tpu_custom_call.1} parent=1 // pred_check
      _
    $region27: #{tpu_custom_call.1} parent=1 // pred_check_branch
      %7096 = sbr.rel (0) target = $region29
    $region28: #{tpu_custom_call.1} parent=1 // pred_region
      %7097 = dma.done [#allocation3], 32
    $region29: #{tpu_custom_call.1} parent=1 // pred_fallthru
      _
    %7098 = vsyncpa [#allocation3], 1

</llo_original>
